<compile_context>
chip_gen: v5e
topology: v5e:2x2
jax: 0.10.0
libtpu: 0.0.40
codegen_flags: <defaults>
</compile_context>

<pallas_src>
import functools
import math

import jax
import jax.numpy as jnp
from jax.experimental import pallas as pl
from jax.experimental.pallas import tpu as pltpu

LN_EPS = 1e-5  # PyTorch LayerNorm default
LANE = 128


def _encoder_layer_kernel(z_ref, pe_ref, wqkv_ref, wo_ref, ln1_ref, ln2_ref,
                          w1_ref, w2_ref, emask_ref, o_ref, attn_sc,
                          *, heads, c_real):
    """bt batch elements: PE-add -> pre-LN MHA -> pre-LN FFN -> even-channel residual.

    Activations live on a (bt*S, Cp) slab (Cp = lane-padded channels).  Padded lanes
    carry exact zeros end-to-end; `c_real` is the true channel count.
    """
    bt, S, Cp = z_ref.shape
    C = c_real
    hd = C // heads
    M = bt * S
    inv_c = 1.0 / float(C)

    # lane-validity row for the padded channels (hoisted; reused by both LayerNorms)
    lane_valid = jax.lax.broadcasted_iota(jnp.int32, (1, Cp), 1) < C

    z3 = z_ref[...]                               # (bt, S, Cp) original input (residual)
    x3 = z3 + pe_ref[...]                         # broadcast PE over the batch dim
    x2 = x3.reshape(M, Cp)                        # fold batch into the matmul M dim
    z2 = z3.reshape(M, Cp)

    def layer_norm(t, w_row):
        # Two-pass centered variance (biased, matching PyTorch); padded lanes are
        # masked to exact zero so the padding never perturbs the statistics.
        mu = jnp.sum(t, axis=-1, keepdims=True) * inv_c
        d = jnp.where(lane_valid, t - mu, 0.0)
        var = jnp.sum(d * d, axis=-1, keepdims=True) * inv_c
        return d * jax.lax.rsqrt(var + LN_EPS) * w_row

    # ----- pre-LN self-attention: ONE fused QKV matmul, per-head softmax core, -----
    # ----- ONE fused output projection (heads concatenated via VMEM scratch).  -----
    xn_b = layer_norm(x2, ln1_ref[...]).astype(jnp.bfloat16)
    # (M, Cp) @ (Cp, QKVp); columns = [Wq*softmax_scale | Wk | Wv | 0-pad]
    qkv = jnp.dot(xn_b, wqkv_ref[...], preferred_element_type=jnp.float32)

    for h in range(heads):                        # static unroll; tiny per-head core
        lo = h * hd
        q3 = qkv[:, lo:lo + hd].reshape(bt, S, hd).astype(jnp.bfloat16)
        k3 = qkv[:, C + lo:C + lo + hd].reshape(bt, S, hd).astype(jnp.bfloat16)
        v3 = qkv[:, 2 * C + lo:2 * C + lo + hd].reshape(bt, S, hd).astype(jnp.bfloat16)

        # softmax scale already folded into the Wq columns (wrapper)
        s = jnp.einsum('bqd,bkd->bqk', q3, k3,
                       preferred_element_type=jnp.float32)           # (bt, S, S)
        s = s - jnp.max(s, axis=-1, keepdims=True)
        p = jnp.exp(s)
        p = p * pl.reciprocal(jnp.sum(p, axis=-1, keepdims=True), approx=True)

        oh = jnp.einsum('bqk,bkd->bqd', p.astype(jnp.bfloat16), v3,
                        preferred_element_type=jnp.float32)          # (bt, S, hd)
        attn_sc[:, :, lo:lo + hd] = oh            # static-offset write (no concat)

    # single (M, C) @ (C, Cp) output projection replaces per-head dots + f32 adds
    attn = jnp.dot(attn_sc[...].reshape(M, C).astype(jnp.bfloat16), wo_ref[...],
                   preferred_element_type=jnp.float32)               # (M, Cp)
    x2 = x2 + attn

    # ----- pre-LN feed-forward block: x = x + W2(SiLU(W1(LN2(x)))) -----
    xn2_b = layer_norm(x2, ln2_ref[...]).astype(jnp.bfloat16)
    h1 = jnp.dot(xn2_b, w1_ref[...], preferred_element_type=jnp.float32)   # (M, F)
    h1 = h1 * jax.nn.sigmoid(h1)                                           # SiLU in f32
    ff = jnp.dot(h1.astype(jnp.bfloat16), w2_ref[...],
                 preferred_element_type=jnp.float32)                       # (M, Cp)

    # ----- X[:, ::2, :, :] += Z[:, ::2, :, :] via a precomputed channel mask -----
    y2 = x2 + ff + z2 * emask_ref[...]
    o_ref[...] = y2.reshape(bt, S, Cp)


def _pick_batch_tile(B, S):
    """Batch-folding factor bt | B (matmul slab has M = bt*S rows).

    Prefer M ~ 256 (v6e/v7x MXU) but only while grid = B//bt >= 4 so each v7x
    TensorCore keeps >= 2 pipelined steps; otherwise settle for M ~ 128 with
    grid >= 2 (megacore); last resort is the biggest slab <= 256 rows.
    """
    divs = [d for d in range(1, B + 1) if B % d == 0]

    def pick(m_max, min_grid):
        c = [d for d in divs if d * S <= m_max and B // d >= min_grid]
        return max(c) if c else 1

    bt = max(pick(256, 4), pick(128, 2))
    if bt * S < min(128, B * S):      # couldn't reach a 128-row slab with grid >= 2:
        bt = pick(256, 1)             # take the biggest slab even if grid == 1
    return bt


def self_attention_forward(x_nchw, pe_w, pe_h, params, *, heads):
    B, C, H, W = x_nchw.shape
    S = H * W
    hd = C // heads
    F_dim = params["lin1_w"].shape[0]
    Cp = ((C + LANE - 1) // LANE) * LANE             # lane-padded channel dim (>=128)
    QKVp = ((3 * C + LANE - 1) // LANE) * LANE       # lane-padded fused qkv width
    pad_c = Cp - C
    scale = 1.0 / math.sqrt(hd)

    # positional-embedding linears (tiny glue, plain JAX); spacing=1 -> no subsampling
    pw = pe_w @ params["w_emb_w"].T + params["w_emb_b"]       # (W, C)
    ph = pe_h @ params["h_emb_w"].T + params["h_emb_b"]       # (H, C)
    pe_seq = (ph[:, None, :] + pw[None, :, :]).reshape(S, C)  # pe[s=h*W+w, c]
    pe_pad = jnp.pad(pe_seq, [(0, 0), (0, pad_c)])

    # NCHW -> [B, S, C], zero-pad channels so every load / VPU op / store is 128-lane dense
    z_seq = jnp.transpose(x_nchw, (0, 2, 3, 1)).reshape(B, S, C)
    z_pad = jnp.pad(z_seq, [(0, 0), (0, 0), (0, pad_c)])

    # ---- weights: [in, out] layout, fused + zero-padded, bf16 at the MXU boundary ----
    in_w = params["in_proj_w"]                     # (3C, C), rows = [Wq; Wk; Wv]
    # fused QKV weight: columns [Wq * softmax_scale | Wk | Wv], lane-padded to QKVp
    w_qkv_t = jnp.concatenate([in_w[0 * C:1 * C].T * scale,
                               in_w[1 * C:2 * C].T,
                               in_w[2 * C:3 * C].T], axis=1)                 # (C, 3C)
    w_qkv = jnp.pad(w_qkv_t, [(0, pad_c), (0, QKVp - 3 * C)]).astype(jnp.bfloat16)

    wo = jnp.pad(params["out_proj_w"].T, [(0, 0), (0, pad_c)]).astype(jnp.bfloat16)  # (C, Cp)
    w1 = jnp.pad(params["lin1_w"].T, [(0, pad_c), (0, 0)]).astype(jnp.bfloat16)      # (Cp, F)
    w2 = jnp.pad(params["lin2_w"].T, [(0, 0), (0, pad_c)]).astype(jnp.bfloat16)      # (F, Cp)

    ln1 = jnp.pad(params["ln1_w"], (0, pad_c)).reshape(1, Cp)                # f32
    ln2 = jnp.pad(params["ln2_w"], (0, pad_c)).reshape(1, Cp)                # f32

    cidx = jnp.arange(Cp)
    even_mask = ((cidx % 2 == 0) & (cidx < C)).astype(jnp.float32).reshape(1, Cp)

    bt = _pick_batch_tile(B, S)
    grid_steps = B // bt
    M = bt * S

    kernel = functools.partial(_encoder_layer_kernel, heads=heads, c_real=C)

    # advisory cost estimate so XLA schedules the surrounding pad/transpose glue sensibly
    flops = int(2 * B * S * (Cp * QKVp + C * Cp + 2 * Cp * F_dim)
                + 4 * B * heads * S * S * hd)
    transcendentals = int(B * heads * S * S + B * S * F_dim + 2 * B * S)

    def nbytes(a):
        return int(a.size) * a.dtype.itemsize

    weight_bytes = sum(nbytes(a) for a in (pe_pad, w_qkv, wo, ln1, ln2, w1, w2, even_mask))
    bytes_accessed = int(nbytes(z_pad) + B * S * Cp * 4 + weight_bytes)
    cost = pl.CostEstimate(flops=flops, transcendentals=transcendentals,
                           bytes_accessed=bytes_accessed)

    # explicit VMEM budget: double-buffered activation blocks + weights + f32 in-kernel
    # temporaries, 2x slack, clamped to v7x's 64 MiB physical VMEM (floor 32 MiB).
    act_block = M * Cp * 4
    tmp_bytes = M * (6 * Cp + QKVp + F_dim) * 4 + bt * S * S * 4 + M * C * 4
    vmem_limit = int(min(64 * 1024 * 1024,
                         max(32 * 1024 * 1024,
                             2 * (4 * act_block + weight_bytes + tmp_bytes))))

    def call_encoder(single_buffer_weights):
        def wspec(shape):
            index_map = lambda *_: (0,) * len(shape)
            if single_buffer_weights:
                # grid-invariant operands: single-buffer to halve resident weight VMEM
                return pl.BlockSpec(shape, index_map, pipeline_mode=pl.Buffered(1))
            return pl.BlockSpec(shape, index_map)

        return pl.pallas_call(
            kernel,
            out_shape=jax.ShapeDtypeStruct((B, S, Cp), jnp.float32),
            grid_spec=pltpu.PrefetchScalarGridSpec(
                num_scalar_prefetch=0,
                grid=(grid_steps,),
                in_specs=[
                    pl.BlockSpec((bt, S, Cp), lambda b: (b, 0, 0)),  # z (bt batches/step)
                    wspec((S, Cp)),        # positional embedding (f32)
                    wspec((Cp, QKVp)),     # fused Wqkv (bf16, q columns pre-scaled)
                    wspec((C, Cp)),        # Wo (bf16)
                    wspec((1, Cp)),        # LN1 weight (f32)
                    wspec((1, Cp)),        # LN2 weight (f32)
                    wspec((Cp, F_dim)),    # W1^T (bf16)
                    wspec((F_dim, Cp)),    # W2^T (bf16)
                    wspec((1, Cp)),        # even-channel residual mask (f32)
                ],
                out_specs=pl.BlockSpec((bt, S, Cp), lambda b: (b, 0, 0)),
                scratch_shapes=[pltpu.VMEM((bt, S, C), jnp.float32)],  # head concat
            ),
            compiler_params=pltpu.CompilerParams(
                dimension_semantics=("parallel",),
                vmem_limit_bytes=vmem_limit),
            cost_estimate=cost,
        )(z_pad, pe_pad, w_qkv, wo, ln1, ln2, w1, w2, even_mask)

    try:
        out_pad = call_encoder(True)
    except Exception:
        # TODO(synk): some JAX versions reject pl.Buffered(1) single-buffering on
        # pallas_call BlockSpecs; fall back to default double-buffered weights.
        out_pad = call_encoder(False)

    # strip channel padding, [B, S, C] -> NCHW
    out_seq = out_pad[:, :, :C]
    return out_seq.reshape(B, H, W, C).transpose(0, 3, 1, 2)


def reference_forward(x_nchw, pe_w, pe_h, params, *, heads):
    """Pure-JAX f32 reference mirroring the PyTorch forward (eval mode)."""
    B, C, H, W = x_nchw.shape
    S = H * W
    head_dim = C // heads

    pw = pe_w @ params["w_emb_w"].T + params["w_emb_b"]
    ph = pe_h @ params["h_emb_w"].T + params["h_emb_b"]
    pe = (ph[:, None, :] + pw[None, :, :]).reshape(S, C)

    z = jnp.transpose(x_nchw, (0, 2, 3, 1)).reshape(B, S, C)
    x = z + pe[None]

    def ln(t, w):
        mu = t.mean(-1, keepdims=True)
        var = ((t - mu) ** 2).mean(-1, keepdims=True)
        return (t - mu) * jax.lax.rsqrt(var + LN_EPS) * w

    xn = ln(x, params["ln1_w"])
    qkv = xn @ params["in_proj_w"].T
    q, k, v = jnp.split(qkv, 3, axis=-1)
    q = q.reshape(B, S, heads, head_dim).transpose(0, 2, 1, 3)
    k = k.reshape(B, S, heads, head_dim).transpose(0, 2, 1, 3)
    v = v.reshape(B, S, heads, head_dim).transpose(0, 2, 1, 3)
    s = jnp.einsum("bhqd,bhkd->bhqk", q, k) / math.sqrt(head_dim)
    p = jax.nn.softmax(s, axis=-1)
    a = jnp.einsum("bhqk,bhkd->bhqd", p, v).transpose(0, 2, 1, 3).reshape(B, S, C)
    x = x + a @ params["out_proj_w"].T

    xn2 = ln(x, params["ln2_w"])
    h1 = xn2 @ params["lin1_w"].T
    h1 = h1 * jax.nn.sigmoid(h1)
    x = x + h1 @ params["lin2_w"].T

    y = x + jnp.where((jnp.arange(C) % 2 == 0)[None, None, :], z, 0.0)
    return y.reshape(B, H, W, C).transpose(0, 3, 1, 2)


def init_params(key, d_model, heads, size_emb, feedforward):
    ks = jax.random.split(key, 10)

    def dense(k, shape, fan_in):
        return jax.random.normal(k, shape, jnp.float32) / math.sqrt(fan_in)

    p = {}
    # MultiheadAttention (bias=False), PyTorch layouts
    p["in_proj_w"] = dense(ks[0], (3 * d_model, d_model), d_model)     # [3C, C]
    p["out_proj_w"] = dense(ks[1], (d_model, d_model), d_model)        # [C, C]
    # LayerNorms (bias=False -> weight only)
    p["ln1_w"] = 1.0 + 0.1 * jax.random.normal(ks[2], (d_model,), jnp.float32)
    p["ln2_w"] = 1.0 + 0.1 * jax.random.normal(ks[3], (d_model,), jnp.float32)
    # FFN (bias=False)
    p["lin1_w"] = dense(ks[4], (feedforward, d_model), d_model)        # [F, C]
    p["lin2_w"] = dense(ks[5], (d_model, feedforward), feedforward)    # [C, F]
    # size-embedding linears (default nn.Linear: with bias)
    p["w_emb_w"] = dense(ks[6], (d_model, size_emb), size_emb)         # [C, E]
    p["w_emb_b"] = 0.01 * jax.random.normal(ks[7], (d_model,), jnp.float32)
    p["h_emb_w"] = dense(ks[8], (d_model, size_emb), size_emb)         # [C, E]
    p["h_emb_b"] = 0.01 * jax.random.normal(ks[9], (d_model,), jnp.float32)
    return p


if __name__ == "__main__":
    # B=4 so that batch folding (bt=2, M=128) still leaves a grid of 2 parallel steps.
    B, d_model, heads = 4, 32, 4
    H, W = 8, 8
    size_emb, feedforward = 32, 64

    key = jax.random.PRNGKey(0)
    kx, kpw, kph, kp = jax.random.split(key, 4)
    x = jax.random.normal(kx, (B, d_model, H, W), jnp.float32)   # NCHW, like PyTorch
    pe_w = jax.random.normal(kpw, (W, size_emb), jnp.float32)
    pe_h = jax.random.normal(kph, (H, size_emb), jnp.float32)
    params = init_params(kp, d_model, heads, size_emb, feedforward)

    out = self_attention_forward(x, pe_w, pe_h, params, heads=heads)
    out = jax.block_until_ready(out)
    assert out.shape == (B, d_model, H, W)

    ref = reference_forward(x, pe_w, pe_h, params, heads=heads)
    max_err = float(jnp.max(jnp.abs(out - ref)))
    mean_err = float(jnp.mean(jnp.abs(out - ref)))
    ref_scale = float(jnp.max(jnp.abs(ref)))
    # bf16 operands at the MXU boundaries (+ approx softmax reciprocal) loosen the
    # match against the pure-f32 reference; check mean error and scale-relative max.
    if not (mean_err < 3e-2 and max_err < 3e-2 * max(1.0, ref_scale)):
        raise AssertionError(
            f"mismatch vs JAX reference: max {max_err:.4f}, mean {mean_err:.4f}, "
            f"ref_scale {ref_scale:.2f}")

    print("KERNEL_OK")
</pallas_src>

<mosaic_0001>
module attributes {stable_mosaic.version = 11 : i64} {
  func.func @_encoder_layer_kernel(%arg0: i32, %arg1: memref<2x64x128xf32, #tpu.memory_space<vmem>>, %arg2: memref<64x128xf32, #tpu.memory_space<vmem>>, %arg3: memref<128x128xbf16, #tpu.memory_space<vmem>>, %arg4: memref<32x128xbf16, #tpu.memory_space<vmem>>, %arg5: memref<1x128xf32, #tpu.memory_space<vmem>>, %arg6: memref<1x128xf32, #tpu.memory_space<vmem>>, %arg7: memref<128x64xbf16, #tpu.memory_space<vmem>>, %arg8: memref<64x128xbf16, #tpu.memory_space<vmem>>, %arg9: memref<1x128xf32, #tpu.memory_space<vmem>>, %arg10: memref<2x64x128xf32, #tpu.memory_space<vmem>>, %arg11: memref<2x64x32xf32, #tpu.memory_space<vmem>>) attributes {dimension_semantics = [#tpu.dimension_semantics<parallel>], iteration_bounds = array<i64: 2>, scalar_prefetch = 0 : i64, scratch_operands = 1 : i64, tpu.core_type = #tpu.core_type<tc>, window_params = [{transform_indices = @transform_0, window_bounds = array<i64: 2, 64, 128>}, {pipeline_mode = #tpu.pipeline_mode<synchronous>, transform_indices = @transform_1, window_bounds = array<i64: 64, 128>}, {pipeline_mode = #tpu.pipeline_mode<synchronous>, transform_indices = @transform_2, window_bounds = array<i64: 128, 128>}, {pipeline_mode = #tpu.pipeline_mode<synchronous>, transform_indices = @transform_3, window_bounds = array<i64: 32, 128>}, {pipeline_mode = #tpu.pipeline_mode<synchronous>, transform_indices = @transform_4, window_bounds = array<i64: 1, 128>}, {pipeline_mode = #tpu.pipeline_mode<synchronous>, transform_indices = @transform_5, window_bounds = array<i64: 1, 128>}, {pipeline_mode = #tpu.pipeline_mode<synchronous>, transform_indices = @transform_6, window_bounds = array<i64: 128, 64>}, {pipeline_mode = #tpu.pipeline_mode<synchronous>, transform_indices = @transform_7, window_bounds = array<i64: 64, 128>}, {pipeline_mode = #tpu.pipeline_mode<synchronous>, transform_indices = @transform_8, window_bounds = array<i64: 1, 128>}, {transform_indices = @transform_9, window_bounds = array<i64: 2, 64, 128>}]} {
    %0 = tpu.iota {dimensions = array<i32: 1>} : vector<1x128xi32>
    %c32_i32 = arith.constant 32 : i32
    %1 = vector.broadcast %c32_i32 : i32 to vector<1x128xi32>
    %2 = arith.cmpi slt, %0, %1 : vector<1x128xi32>
    %c0 = arith.constant 0 : index
    %c0_0 = arith.constant 0 : index
    %c0_1 = arith.constant 0 : index
    %3 = vector.load %arg1[%c0, %c0_0, %c0_1] : memref<2x64x128xf32, #tpu.memory_space<vmem>>, vector<2x64x128xf32>
    %c0_2 = arith.constant 0 : index
    %c0_3 = arith.constant 0 : index
    %4 = vector.load %arg2[%c0_2, %c0_3] : memref<64x128xf32, #tpu.memory_space<vmem>>, vector<64x128xf32>
    %5 = vector.shape_cast %4 : vector<64x128xf32> to vector<1x64x128xf32>
    %6 = vector.broadcast %5 : vector<1x64x128xf32> to vector<2x64x128xf32>
    %7 = arith.addf %3, %6 : vector<2x64x128xf32>
    %8 = vector.shape_cast %7 : vector<2x64x128xf32> to vector<128x128xf32>
    %9 = vector.shape_cast %3 : vector<2x64x128xf32> to vector<128x128xf32>
    %c0_4 = arith.constant 0 : index
    %c0_5 = arith.constant 0 : index
    %10 = vector.load %arg5[%c0_4, %c0_5] : memref<1x128xf32, #tpu.memory_space<vmem>>, vector<1x128xf32>
    %cst = arith.constant dense<0.000000e+00> : vector<128xf32>
    %11 = vector.multi_reduction <add>, %8, %cst [1] : vector<128x128xf32> to vector<128xf32>
    %12 = vector.shape_cast %11 : vector<128xf32> to vector<128x1xf32>
    %cst_6 = arith.constant 3.125000e-02 : f32
    %13 = vector.broadcast %cst_6 : f32 to vector<128x1xf32>
    %14 = arith.mulf %12, %13 : vector<128x1xf32>
    %15 = vector.broadcast %14 : vector<128x1xf32> to vector<128x128xf32>
    %16 = arith.subf %8, %15 : vector<128x128xf32>
    %cst_7 = arith.constant 0.000000e+00 : f32
    %17 = vector.shape_cast %2 : vector<1x128xi1> to vector<1x128xi1>
    %18 = vector.broadcast %17 : vector<1x128xi1> to vector<128x128xi1>
    %19 = vector.broadcast %cst_7 : f32 to vector<128x128xf32>
    %20 = arith.select %18, %16, %19 : vector<128x128xi1>, vector<128x128xf32>
    %21 = arith.mulf %20, %20 : vector<128x128xf32>
    %cst_8 = arith.constant dense<0.000000e+00> : vector<128xf32>
    %22 = vector.multi_reduction <add>, %21, %cst_8 [1] : vector<128x128xf32> to vector<128xf32>
    %23 = vector.shape_cast %22 : vector<128xf32> to vector<128x1xf32>
    %cst_9 = arith.constant 3.125000e-02 : f32
    %24 = vector.broadcast %cst_9 : f32 to vector<128x1xf32>
    %25 = arith.mulf %23, %24 : vector<128x1xf32>
    %cst_10 = arith.constant 9.99999974E-6 : f32
    %26 = vector.broadcast %cst_10 : f32 to vector<128x1xf32>
    %27 = arith.addf %25, %26 : vector<128x1xf32>
    %28 = math.rsqrt %27 : vector<128x1xf32>
    %29 = vector.broadcast %28 : vector<128x1xf32> to vector<128x128xf32>
    %30 = arith.mulf %20, %29 : vector<128x128xf32>
    %31 = vector.broadcast %10 : vector<1x128xf32> to vector<128x128xf32>
    %32 = arith.mulf %30, %31 : vector<128x128xf32>
    %33 = arith.truncf %32 : vector<128x128xf32> to vector<128x128xbf16>
    %c0_11 = arith.constant 0 : index
    %c0_12 = arith.constant 0 : index
    %34 = vector.load %arg3[%c0_11, %c0_12] : memref<128x128xbf16, #tpu.memory_space<vmem>>, vector<128x128xbf16>
    %cst_13 = arith.constant dense<0.000000e+00> : vector<128x128xf32>
    %35 = tpu.matmul %33, %34, %cst_13 {dimension_numbers = #tpu.dot_dimension_numbers<[1], [0], [0], [1], [0, 0, 1, 1], [], []>} : vector<128x128xbf16>, vector<128x128xbf16>, vector<128x128xf32> -> vector<128x128xf32>
    %36 = vector.extract_strided_slice %35 {offsets = [0, 0], sizes = [128, 8], strides = [1, 1]} : vector<128x128xf32> to vector<128x8xf32>
    %37 = vector.shape_cast %36 : vector<128x8xf32> to vector<2x64x8xf32>
    %38 = arith.truncf %37 : vector<2x64x8xf32> to vector<2x64x8xbf16>
    %39 = vector.extract_strided_slice %35 {offsets = [0, 32], sizes = [128, 8], strides = [1, 1]} : vector<128x128xf32> to vector<128x8xf32>
    %40 = vector.shape_cast %39 : vector<128x8xf32> to vector<2x64x8xf32>
    %41 = arith.truncf %40 : vector<2x64x8xf32> to vector<2x64x8xbf16>
    %42 = vector.extract_strided_slice %35 {offsets = [0, 64], sizes = [128, 8], strides = [1, 1]} : vector<128x128xf32> to vector<128x8xf32>
    %43 = vector.shape_cast %42 : vector<128x8xf32> to vector<2x64x8xf32>
    %44 = arith.truncf %43 : vector<2x64x8xf32> to vector<2x64x8xbf16>
    "tpu.trace_start"() <{level = 10 : i32, message = "bqd,bkd->bqk"}> : () -> ()
    %cst_14 = arith.constant dense<0.000000e+00> : vector<2x64x64xf32>
    %45 = tpu.matmul %38, %41, %cst_14 {dimension_numbers = #tpu.dot_dimension_numbers<[2], [2], [1], [1], [0, 0, 0, 1, 1, 1], [0], [0]>} : vector<2x64x8xbf16>, vector<2x64x8xbf16>, vector<2x64x64xf32> -> vector<2x64x64xf32>
    "tpu.trace_stop"() : () -> ()
    %cst_15 = arith.constant dense<0xFF800000> : vector<2x64xf32>
    %46 = vector.multi_reduction <maximumf>, %45, %cst_15 [2] : vector<2x64x64xf32> to vector<2x64xf32>
    %47 = vector.shape_cast %46 : vector<2x64xf32> to vector<2x64x1xf32>
    %48 = vector.broadcast %47 : vector<2x64x1xf32> to vector<2x64x64xf32>
    %49 = arith.subf %45, %48 : vector<2x64x64xf32>
    %50 = math.exp %49 : vector<2x64x64xf32>
    %cst_16 = arith.constant dense<0.000000e+00> : vector<2x64xf32>
    %51 = vector.multi_reduction <add>, %50, %cst_16 [2] : vector<2x64x64xf32> to vector<2x64xf32>
    %52 = vector.shape_cast %51 : vector<2x64xf32> to vector<2x64x1xf32>
    %53 = tpu.reciprocal %52 {approx = true} : vector<2x64x1xf32> -> vector<2x64x1xf32>
    %54 = vector.broadcast %53 : vector<2x64x1xf32> to vector<2x64x64xf32>
    %55 = arith.mulf %50, %54 : vector<2x64x64xf32>
    %56 = arith.truncf %55 : vector<2x64x64xf32> to vector<2x64x64xbf16>
    "tpu.trace_start"() <{level = 10 : i32, message = "bqk,bkd->bqd"}> : () -> ()
    %cst_17 = arith.constant dense<0.000000e+00> : vector<2x64x8xf32>
    %57 = tpu.matmul %56, %44, %cst_17 {dimension_numbers = #tpu.dot_dimension_numbers<[2], [1], [1], [2], [0, 0, 0, 1, 1, 2], [0], [0]>} : vector<2x64x64xbf16>, vector<2x64x8xbf16>, vector<2x64x8xf32> -> vector<2x64x8xf32>
    "tpu.trace_stop"() : () -> ()
    %c0_18 = arith.constant 0 : index
    %c0_19 = arith.constant 0 : index
    %c0_20 = arith.constant 0 : index
    %58 = vector.load %arg11[%c0_18, %c0_19, %c0_20] : memref<2x64x32xf32, #tpu.memory_space<vmem>>, vector<2x64x8xf32>
    tpu.vector_store %arg11[%c0_18, %c0_19, %c0_20], %57 {strides = array<i32>} : memref<2x64x32xf32, #tpu.memory_space<vmem>>, vector<2x64x8xf32>,
    %59 = vector.extract_strided_slice %35 {offsets = [0, 8], sizes = [128, 8], strides = [1, 1]} : vector<128x128xf32> to vector<128x8xf32>
    %60 = vector.shape_cast %59 : vector<128x8xf32> to vector<2x64x8xf32>
    %61 = arith.truncf %60 : vector<2x64x8xf32> to vector<2x64x8xbf16>
    %62 = vector.extract_strided_slice %35 {offsets = [0, 40], sizes = [128, 8], strides = [1, 1]} : vector<128x128xf32> to vector<128x8xf32>
    %63 = vector.shape_cast %62 : vector<128x8xf32> to vector<2x64x8xf32>
    %64 = arith.truncf %63 : vector<2x64x8xf32> to vector<2x64x8xbf16>
    %65 = vector.extract_strided_slice %35 {offsets = [0, 72], sizes = [128, 8], strides = [1, 1]} : vector<128x128xf32> to vector<128x8xf32>
    %66 = vector.shape_cast %65 : vector<128x8xf32> to vector<2x64x8xf32>
    %67 = arith.truncf %66 : vector<2x64x8xf32> to vector<2x64x8xbf16>
    "tpu.trace_start"() <{level = 10 : i32, message = "bqd,bkd->bqk"}> : () -> ()
    %cst_21 = arith.constant dense<0.000000e+00> : vector<2x64x64xf32>
    %68 = tpu.matmul %61, %64, %cst_21 {dimension_numbers = #tpu.dot_dimension_numbers<[2], [2], [1], [1], [0, 0, 0, 1, 1, 1], [0], [0]>} : vector<2x64x8xbf16>, vector<2x64x8xbf16>, vector<2x64x64xf32> -> vector<2x64x64xf32>
    "tpu.trace_stop"() : () -> ()
    %cst_22 = arith.constant dense<0xFF800000> : vector<2x64xf32>
    %69 = vector.multi_reduction <maximumf>, %68, %cst_22 [2] : vector<2x64x64xf32> to vector<2x64xf32>
    %70 = vector.shape_cast %69 : vector<2x64xf32> to vector<2x64x1xf32>
    %71 = vector.broadcast %70 : vector<2x64x1xf32> to vector<2x64x64xf32>
    %72 = arith.subf %68, %71 : vector<2x64x64xf32>
    %73 = math.exp %72 : vector<2x64x64xf32>
    %cst_23 = arith.constant dense<0.000000e+00> : vector<2x64xf32>
    %74 = vector.multi_reduction <add>, %73, %cst_23 [2] : vector<2x64x64xf32> to vector<2x64xf32>
    %75 = vector.shape_cast %74 : vector<2x64xf32> to vector<2x64x1xf32>
    %76 = tpu.reciprocal %75 {approx = true} : vector<2x64x1xf32> -> vector<2x64x1xf32>
    %77 = vector.broadcast %76 : vector<2x64x1xf32> to vector<2x64x64xf32>
    %78 = arith.mulf %73, %77 : vector<2x64x64xf32>
    %79 = arith.truncf %78 : vector<2x64x64xf32> to vector<2x64x64xbf16>
    "tpu.trace_start"() <{level = 10 : i32, message = "bqk,bkd->bqd"}> : () -> ()
    %cst_24 = arith.constant dense<0.000000e+00> : vector<2x64x8xf32>
    %80 = tpu.matmul %79, %67, %cst_24 {dimension_numbers = #tpu.dot_dimension_numbers<[2], [1], [1], [2], [0, 0, 0, 1, 1, 2], [0], [0]>} : vector<2x64x64xbf16>, vector<2x64x8xbf16>, vector<2x64x8xf32> -> vector<2x64x8xf32>
    "tpu.trace_stop"() : () -> ()
    %c0_25 = arith.constant 0 : index
    %c0_26 = arith.constant 0 : index
    %c8 = arith.constant 8 : index
    %81 = vector.load %arg11[%c0_25, %c0_26, %c8] : memref<2x64x32xf32, #tpu.memory_space<vmem>>, vector<2x64x8xf32>
    tpu.vector_store %arg11[%c0_25, %c0_26, %c8], %80 {strides = array<i32>} : memref<2x64x32xf32, #tpu.memory_space<vmem>>, vector<2x64x8xf32>,
    %82 = vector.extract_strided_slice %35 {offsets = [0, 16], sizes = [128, 8], strides = [1, 1]} : vector<128x128xf32> to vector<128x8xf32>
    %83 = vector.shape_cast %82 : vector<128x8xf32> to vector<2x64x8xf32>
    %84 = arith.truncf %83 : vector<2x64x8xf32> to vector<2x64x8xbf16>
    %85 = vector.extract_strided_slice %35 {offsets = [0, 48], sizes = [128, 8], strides = [1, 1]} : vector<128x128xf32> to vector<128x8xf32>
    %86 = vector.shape_cast %85 : vector<128x8xf32> to vector<2x64x8xf32>
    %87 = arith.truncf %86 : vector<2x64x8xf32> to vector<2x64x8xbf16>
    %88 = vector.extract_strided_slice %35 {offsets = [0, 80], sizes = [128, 8], strides = [1, 1]} : vector<128x128xf32> to vector<128x8xf32>
    %89 = vector.shape_cast %88 : vector<128x8xf32> to vector<2x64x8xf32>
    %90 = arith.truncf %89 : vector<2x64x8xf32> to vector<2x64x8xbf16>
    "tpu.trace_start"() <{level = 10 : i32, message = "bqd,bkd->bqk"}> : () -> ()
    %cst_27 = arith.constant dense<0.000000e+00> : vector<2x64x64xf32>
    %91 = tpu.matmul %84, %87, %cst_27 {dimension_numbers = #tpu.dot_dimension_numbers<[2], [2], [1], [1], [0, 0, 0, 1, 1, 1], [0], [0]>} : vector<2x64x8xbf16>, vector<2x64x8xbf16>, vector<2x64x64xf32> -> vector<2x64x64xf32>
    "tpu.trace_stop"() : () -> ()
    %cst_28 = arith.constant dense<0xFF800000> : vector<2x64xf32>
    %92 = vector.multi_reduction <maximumf>, %91, %cst_28 [2] : vector<2x64x64xf32> to vector<2x64xf32>
    %93 = vector.shape_cast %92 : vector<2x64xf32> to vector<2x64x1xf32>
    %94 = vector.broadcast %93 : vector<2x64x1xf32> to vector<2x64x64xf32>
    %95 = arith.subf %91, %94 : vector<2x64x64xf32>
    %96 = math.exp %95 : vector<2x64x64xf32>
    %cst_29 = arith.constant dense<0.000000e+00> : vector<2x64xf32>
    %97 = vector.multi_reduction <add>, %96, %cst_29 [2] : vector<2x64x64xf32> to vector<2x64xf32>
    %98 = vector.shape_cast %97 : vector<2x64xf32> to vector<2x64x1xf32>
    %99 = tpu.reciprocal %98 {approx = true} : vector<2x64x1xf32> -> vector<2x64x1xf32>
    %100 = vector.broadcast %99 : vector<2x64x1xf32> to vector<2x64x64xf32>
    %101 = arith.mulf %96, %100 : vector<2x64x64xf32>
    %102 = arith.truncf %101 : vector<2x64x64xf32> to vector<2x64x64xbf16>
    "tpu.trace_start"() <{level = 10 : i32, message = "bqk,bkd->bqd"}> : () -> ()
    %cst_30 = arith.constant dense<0.000000e+00> : vector<2x64x8xf32>
    %103 = tpu.matmul %102, %90, %cst_30 {dimension_numbers = #tpu.dot_dimension_numbers<[2], [1], [1], [2], [0, 0, 0, 1, 1, 2], [0], [0]>} : vector<2x64x64xbf16>, vector<2x64x8xbf16>, vector<2x64x8xf32> -> vector<2x64x8xf32>
    "tpu.trace_stop"() : () -> ()
    %c0_31 = arith.constant 0 : index
    %c0_32 = arith.constant 0 : index
    %c16 = arith.constant 16 : index
    %104 = vector.load %arg11[%c0_31, %c0_32, %c16] : memref<2x64x32xf32, #tpu.memory_space<vmem>>, vector<2x64x8xf32>
    tpu.vector_store %arg11[%c0_31, %c0_32, %c16], %103 {strides = array<i32>} : memref<2x64x32xf32, #tpu.memory_space<vmem>>, vector<2x64x8xf32>,
    %105 = vector.extract_strided_slice %35 {offsets = [0, 24], sizes = [128, 8], strides = [1, 1]} : vector<128x128xf32> to vector<128x8xf32>
    %106 = vector.shape_cast %105 : vector<128x8xf32> to vector<2x64x8xf32>
    %107 = arith.truncf %106 : vector<2x64x8xf32> to vector<2x64x8xbf16>
    %108 = vector.extract_strided_slice %35 {offsets = [0, 56], sizes = [128, 8], strides = [1, 1]} : vector<128x128xf32> to vector<128x8xf32>
    %109 = vector.shape_cast %108 : vector<128x8xf32> to vector<2x64x8xf32>
    %110 = arith.truncf %109 : vector<2x64x8xf32> to vector<2x64x8xbf16>
    %111 = vector.extract_strided_slice %35 {offsets = [0, 88], sizes = [128, 8], strides = [1, 1]} : vector<128x128xf32> to vector<128x8xf32>
    %112 = vector.shape_cast %111 : vector<128x8xf32> to vector<2x64x8xf32>
    %113 = arith.truncf %112 : vector<2x64x8xf32> to vector<2x64x8xbf16>
    "tpu.trace_start"() <{level = 10 : i32, message = "bqd,bkd->bqk"}> : () -> ()
    %cst_33 = arith.constant dense<0.000000e+00> : vector<2x64x64xf32>
    %114 = tpu.matmul %107, %110, %cst_33 {dimension_numbers = #tpu.dot_dimension_numbers<[2], [2], [1], [1], [0, 0, 0, 1, 1, 1], [0], [0]>} : vector<2x64x8xbf16>, vector<2x64x8xbf16>, vector<2x64x64xf32> -> vector<2x64x64xf32>
    "tpu.trace_stop"() : () -> ()
    %cst_34 = arith.constant dense<0xFF800000> : vector<2x64xf32>
    %115 = vector.multi_reduction <maximumf>, %114, %cst_34 [2] : vector<2x64x64xf32> to vector<2x64xf32>
    %116 = vector.shape_cast %115 : vector<2x64xf32> to vector<2x64x1xf32>
    %117 = vector.broadcast %116 : vector<2x64x1xf32> to vector<2x64x64xf32>
    %118 = arith.subf %114, %117 : vector<2x64x64xf32>
    %119 = math.exp %118 : vector<2x64x64xf32>
    %cst_35 = arith.constant dense<0.000000e+00> : vector<2x64xf32>
    %120 = vector.multi_reduction <add>, %119, %cst_35 [2] : vector<2x64x64xf32> to vector<2x64xf32>
    %121 = vector.shape_cast %120 : vector<2x64xf32> to vector<2x64x1xf32>
    %122 = tpu.reciprocal %121 {approx = true} : vector<2x64x1xf32> -> vector<2x64x1xf32>
    %123 = vector.broadcast %122 : vector<2x64x1xf32> to vector<2x64x64xf32>
    %124 = arith.mulf %119, %123 : vector<2x64x64xf32>
    %125 = arith.truncf %124 : vector<2x64x64xf32> to vector<2x64x64xbf16>
    "tpu.trace_start"() <{level = 10 : i32, message = "bqk,bkd->bqd"}> : () -> ()
    %cst_36 = arith.constant dense<0.000000e+00> : vector<2x64x8xf32>
    %126 = tpu.matmul %125, %113, %cst_36 {dimension_numbers = #tpu.dot_dimension_numbers<[2], [1], [1], [2], [0, 0, 0, 1, 1, 2], [0], [0]>} : vector<2x64x64xbf16>, vector<2x64x8xbf16>, vector<2x64x8xf32> -> vector<2x64x8xf32>
    "tpu.trace_stop"() : () -> ()
    %c0_37 = arith.constant 0 : index
    %c0_38 = arith.constant 0 : index
    %c24 = arith.constant 24 : index
    %127 = vector.load %arg11[%c0_37, %c0_38, %c24] : memref<2x64x32xf32, #tpu.memory_space<vmem>>, vector<2x64x8xf32>
    tpu.vector_store %arg11[%c0_37, %c0_38, %c24], %126 {strides = array<i32>} : memref<2x64x32xf32, #tpu.memory_space<vmem>>, vector<2x64x8xf32>,
    %c0_39 = arith.constant 0 : index
    %c0_40 = arith.constant 0 : index
    %c0_41 = arith.constant 0 : index
    %128 = vector.load %arg11[%c0_39, %c0_40, %c0_41] : memref<2x64x32xf32, #tpu.memory_space<vmem>>, vector<2x64x32xf32>
    %129 = vector.shape_cast %128 : vector<2x64x32xf32> to vector<128x32xf32>
    %130 = arith.truncf %129 : vector<128x32xf32> to vector<128x32xbf16>
    %c0_42 = arith.constant 0 : index
    %c0_43 = arith.constant 0 : index
    %131 = vector.load %arg4[%c0_42, %c0_43] : memref<32x128xbf16, #tpu.memory_space<vmem>>, vector<32x128xbf16>
    %cst_44 = arith.constant dense<0.000000e+00> : vector<128x128xf32>
    %132 = tpu.matmul %130, %131, %cst_44 {dimension_numbers = #tpu.dot_dimension_numbers<[1], [0], [0], [1], [0, 0, 1, 1], [], []>} : vector<128x32xbf16>, vector<32x128xbf16>, vector<128x128xf32> -> vector<128x128xf32>
    %133 = arith.addf %8, %132 : vector<128x128xf32>
    %c0_45 = arith.constant 0 : index
    %c0_46 = arith.constant 0 : index
    %134 = vector.load %arg6[%c0_45, %c0_46] : memref<1x128xf32, #tpu.memory_space<vmem>>, vector<1x128xf32>
    %cst_47 = arith.constant dense<0.000000e+00> : vector<128xf32>
    %135 = vector.multi_reduction <add>, %133, %cst_47 [1] : vector<128x128xf32> to vector<128xf32>
    %136 = vector.shape_cast %135 : vector<128xf32> to vector<128x1xf32>
    %cst_48 = arith.constant 3.125000e-02 : f32
    %137 = vector.broadcast %cst_48 : f32 to vector<128x1xf32>
    %138 = arith.mulf %136, %137 : vector<128x1xf32>
    %139 = vector.broadcast %138 : vector<128x1xf32> to vector<128x128xf32>
    %140 = arith.subf %133, %139 : vector<128x128xf32>
    %cst_49 = arith.constant 0.000000e+00 : f32
    %141 = vector.shape_cast %2 : vector<1x128xi1> to vector<1x128xi1>
    %142 = vector.broadcast %141 : vector<1x128xi1> to vector<128x128xi1>
    %143 = vector.broadcast %cst_49 : f32 to vector<128x128xf32>
    %144 = arith.select %142, %140, %143 : vector<128x128xi1>, vector<128x128xf32>
    %145 = arith.mulf %144, %144 : vector<128x128xf32>
    %cst_50 = arith.constant dense<0.000000e+00> : vector<128xf32>
    %146 = vector.multi_reduction <add>, %145, %cst_50 [1] : vector<128x128xf32> to vector<128xf32>
    %147 = vector.shape_cast %146 : vector<128xf32> to vector<128x1xf32>
    %cst_51 = arith.constant 3.125000e-02 : f32
    %148 = vector.broadcast %cst_51 : f32 to vector<128x1xf32>
    %149 = arith.mulf %147, %148 : vector<128x1xf32>
    %cst_52 = arith.constant 9.99999974E-6 : f32
    %150 = vector.broadcast %cst_52 : f32 to vector<128x1xf32>
    %151 = arith.addf %149, %150 : vector<128x1xf32>
    %152 = math.rsqrt %151 : vector<128x1xf32>
    %153 = vector.broadcast %152 : vector<128x1xf32> to vector<128x128xf32>
    %154 = arith.mulf %144, %153 : vector<128x128xf32>
    %155 = vector.broadcast %134 : vector<1x128xf32> to vector<128x128xf32>
    %156 = arith.mulf %154, %155 : vector<128x128xf32>
    %157 = arith.truncf %156 : vector<128x128xf32> to vector<128x128xbf16>
    %c0_53 = arith.constant 0 : index
    %c0_54 = arith.constant 0 : index
    %158 = vector.load %arg7[%c0_53, %c0_54] : memref<128x64xbf16, #tpu.memory_space<vmem>>, vector<128x64xbf16>
    %cst_55 = arith.constant dense<0.000000e+00> : vector<128x64xf32>
    %159 = tpu.matmul %157, %158, %cst_55 {dimension_numbers = #tpu.dot_dimension_numbers<[1], [0], [0], [1], [0, 0, 1, 1], [], []>} : vector<128x128xbf16>, vector<128x64xbf16>, vector<128x64xf32> -> vector<128x64xf32>
    %160 = arith.negf %159 : vector<128x64xf32>
    %161 = math.exp %160 : vector<128x64xf32>
    %cst_56 = arith.constant 1.000000e+00 : f32
    %162 = vector.broadcast %cst_56 : f32 to vector<128x64xf32>
    %163 = arith.addf %162, %161 : vector<128x64xf32>
    %164 = arith.divf %162, %163 : vector<128x64xf32>
    %165 = arith.mulf %159, %164 : vector<128x64xf32>
    %166 = arith.truncf %165 : vector<128x64xf32> to vector<128x64xbf16>
    %c0_57 = arith.constant 0 : index
    %c0_58 = arith.constant 0 : index
    %167 = vector.load %arg8[%c0_57, %c0_58] : memref<64x128xbf16, #tpu.memory_space<vmem>>, vector<64x128xbf16>
    %cst_59 = arith.constant dense<0.000000e+00> : vector<128x128xf32>
    %168 = tpu.matmul %166, %167, %cst_59 {dimension_numbers = #tpu.dot_dimension_numbers<[1], [0], [0], [1], [0, 0, 1, 1], [], []>} : vector<128x64xbf16>, vector<64x128xbf16>, vector<128x128xf32> -> vector<128x128xf32>
    %169 = arith.addf %133, %168 : vector<128x128xf32>
    %c0_60 = arith.constant 0 : index
    %c0_61 = arith.constant 0 : index
    %170 = vector.load %arg9[%c0_60, %c0_61] : memref<1x128xf32, #tpu.memory_space<vmem>>, vector<1x128xf32>
    %171 = vector.broadcast %170 : vector<1x128xf32> to vector<128x128xf32>
    %172 = arith.mulf %9, %171 : vector<128x128xf32>
    %173 = arith.addf %169, %172 : vector<128x128xf32>
    %174 = vector.shape_cast %173 : vector<128x128xf32> to vector<2x64x128xf32>
    %c0_62 = arith.constant 0 : index
    %c0_63 = arith.constant 0 : index
    %c0_64 = arith.constant 0 : index
    %175 = vector.load %arg10[%c0_62, %c0_63, %c0_64] : memref<2x64x128xf32, #tpu.memory_space<vmem>>, vector<2x64x128xf32>
    tpu.vector_store %arg10[%c0_62, %c0_63, %c0_64], %174 {strides = array<i32>} : memref<2x64x128xf32, #tpu.memory_space<vmem>>, vector<2x64x128xf32>,
    return
  }
  func.func @transform_0(%arg0: i32) -> (i32, i32, i32) {
    %c0_i32 = arith.constant 0 : i32
    %c0_i32_0 = arith.constant 0 : i32
    %c0_i32_1 = arith.constant 0 : i32
    return %arg0, %c0_i32, %c0_i32_0 : i32, i32, i32
  }
  func.func @transform_1(%arg0: i32) -> (i32, i32) {
    %c0_i32 = arith.constant 0 : i32
    %c0_i32_0 = arith.constant 0 : i32
    %c0_i32_1 = arith.constant 0 : i32
    return %c0_i32, %c0_i32_0 : i32, i32
  }
  func.func @transform_2(%arg0: i32) -> (i32, i32) {
    %c0_i32 = arith.constant 0 : i32
    %c0_i32_0 = arith.constant 0 : i32
    %c0_i32_1 = arith.constant 0 : i32
    return %c0_i32, %c0_i32_0 : i32, i32
  }
  func.func @transform_3(%arg0: i32) -> (i32, i32) {
    %c0_i32 = arith.constant 0 : i32
    %c0_i32_0 = arith.constant 0 : i32
    %c0_i32_1 = arith.constant 0 : i32
    return %c0_i32, %c0_i32_0 : i32, i32
  }
  func.func @transform_4(%arg0: i32) -> (i32, i32) {
    %c0_i32 = arith.constant 0 : i32
    %c0_i32_0 = arith.constant 0 : i32
    %c0_i32_1 = arith.constant 0 : i32
    return %c0_i32, %c0_i32_0 : i32, i32
  }
  func.func @transform_5(%arg0: i32) -> (i32, i32) {
    %c0_i32 = arith.constant 0 : i32
    %c0_i32_0 = arith.constant 0 : i32
    %c0_i32_1 = arith.constant 0 : i32
    return %c0_i32, %c0_i32_0 : i32, i32
  }
  func.func @transform_6(%arg0: i32) -> (i32, i32) {
    %c0_i32 = arith.constant 0 : i32
    %c0_i32_0 = arith.constant 0 : i32
    %c0_i32_1 = arith.constant 0 : i32
    return %c0_i32, %c0_i32_0 : i32, i32
  }
  func.func @transform_7(%arg0: i32) -> (i32, i32) {
    %c0_i32 = arith.constant 0 : i32
    %c0_i32_0 = arith.constant 0 : i32
    %c0_i32_1 = arith.constant 0 : i32
    return %c0_i32, %c0_i32_0 : i32, i32
  }
  func.func @transform_8(%arg0: i32) -> (i32, i32) {
    %c0_i32 = arith.constant 0 : i32
    %c0_i32_0 = arith.constant 0 : i32
    %c0_i32_1 = arith.constant 0 : i32
    return %c0_i32, %c0_i32_0 : i32, i32
  }
  func.func @transform_9(%arg0: i32) -> (i32, i32, i32) {
    %c0_i32 = arith.constant 0 : i32
    %c0_i32_0 = arith.constant 0 : i32
    %c0_i32_1 = arith.constant 0 : i32
    return %arg0, %c0_i32, %c0_i32_0 : i32, i32, i32
  }
}

module attributes {stable_mosaic.version = 11 : i64} {
  func.func @_encoder_layer_kernel(%arg0: i32, %arg1: memref<2x64x128xf32, #tpu.memory_space<vmem>>, %arg2: memref<64x128xf32, #tpu.memory_space<vmem>>, %arg3: memref<128x128xbf16, #tpu.memory_space<vmem>>, %arg4: memref<32x128xbf16, #tpu.memory_space<vmem>>, %arg5: memref<1x128xf32, #tpu.memory_space<vmem>>, %arg6: memref<1x128xf32, #tpu.memory_space<vmem>>, %arg7: memref<128x64xbf16, #tpu.memory_space<vmem>>, %arg8: memref<64x128xbf16, #tpu.memory_space<vmem>>, %arg9: memref<1x128xf32, #tpu.memory_space<vmem>>, %arg10: memref<2x64x128xf32, #tpu.memory_space<vmem>>, %arg11: memref<2x64x32xf32, #tpu.memory_space<vmem>>) attributes {dimension_semantics = [#tpu.dimension_semantics<parallel>], iteration_bounds = array<i64: 2>, scalar_prefetch = 0 : i64, scratch_operands = 1 : i64, tpu.core_type = #tpu.core_type<tc>, window_params = [{transform_indices = @transform_0, window_bounds = array<i64: 2, 64, 128>}, {pipeline_mode = #tpu.pipeline_mode<synchronous>, transform_indices = @transform_1, window_bounds = array<i64: 64, 128>}, {pipeline_mode = #tpu.pipeline_mode<synchronous>, transform_indices = @transform_2, window_bounds = array<i64: 128, 128>}, {pipeline_mode = #tpu.pipeline_mode<synchronous>, transform_indices = @transform_3, window_bounds = array<i64: 32, 128>}, {pipeline_mode = #tpu.pipeline_mode<synchronous>, transform_indices = @transform_4, window_bounds = array<i64: 1, 128>}, {pipeline_mode = #tpu.pipeline_mode<synchronous>, transform_indices = @transform_5, window_bounds = array<i64: 1, 128>}, {pipeline_mode = #tpu.pipeline_mode<synchronous>, transform_indices = @transform_6, window_bounds = array<i64: 128, 64>}, {pipeline_mode = #tpu.pipeline_mode<synchronous>, transform_indices = @transform_7, window_bounds = array<i64: 64, 128>}, {pipeline_mode = #tpu.pipeline_mode<synchronous>, transform_indices = @transform_8, window_bounds = array<i64: 1, 128>}, {transform_indices = @transform_9, window_bounds = array<i64: 2, 64, 128>}]} {
    %0 = tpu.iota {dimensions = array<i32: 1>} : vector<1x128xi32>
    %c32_i32 = arith.constant 32 : i32
    %1 = vector.broadcast %c32_i32 : i32 to vector<1x128xi32>
    %2 = arith.cmpi slt, %0, %1 : vector<1x128xi32>
    %c0 = arith.constant 0 : index
    %c0_0 = arith.constant 0 : index
    %c0_1 = arith.constant 0 : index
    %3 = vector.load %arg1[%c0, %c0_0, %c0_1] : memref<2x64x128xf32, #tpu.memory_space<vmem>>, vector<2x64x128xf32>
    %c0_2 = arith.constant 0 : index
    %c0_3 = arith.constant 0 : index
    %4 = vector.load %arg2[%c0_2, %c0_3] : memref<64x128xf32, #tpu.memory_space<vmem>>, vector<64x128xf32>
    %5 = vector.shape_cast %4 : vector<64x128xf32> to vector<1x64x128xf32>
    %6 = vector.broadcast %5 : vector<1x64x128xf32> to vector<2x64x128xf32>
    %7 = arith.addf %3, %6 : vector<2x64x128xf32>
    %8 = vector.shape_cast %7 : vector<2x64x128xf32> to vector<128x128xf32>
    %9 = vector.shape_cast %3 : vector<2x64x128xf32> to vector<128x128xf32>
    %c0_4 = arith.constant 0 : index
    %c0_5 = arith.constant 0 : index
    %10 = vector.load %arg5[%c0_4, %c0_5] : memref<1x128xf32, #tpu.memory_space<vmem>>, vector<1x128xf32>
    %cst = arith.constant dense<0.000000e+00> : vector<128xf32>
    %11 = vector.multi_reduction <add>, %8, %cst [1] : vector<128x128xf32> to vector<128xf32>
    %12 = vector.shape_cast %11 : vector<128xf32> to vector<128x1xf32>
    %cst_6 = arith.constant 3.125000e-02 : f32
    %13 = vector.broadcast %cst_6 : f32 to vector<128x1xf32>
    %14 = arith.mulf %12, %13 : vector<128x1xf32>
    %15 = vector.broadcast %14 : vector<128x1xf32> to vector<128x128xf32>
    %16 = arith.subf %8, %15 : vector<128x128xf32>
    %cst_7 = arith.constant 0.000000e+00 : f32
    %17 = vector.shape_cast %2 : vector<1x128xi1> to vector<1x128xi1>
    %18 = vector.broadcast %17 : vector<1x128xi1> to vector<128x128xi1>
    %19 = vector.broadcast %cst_7 : f32 to vector<128x128xf32>
    %20 = arith.select %18, %16, %19 : vector<128x128xi1>, vector<128x128xf32>
    %21 = arith.mulf %20, %20 : vector<128x128xf32>
    %cst_8 = arith.constant dense<0.000000e+00> : vector<128xf32>
    %22 = vector.multi_reduction <add>, %21, %cst_8 [1] : vector<128x128xf32> to vector<128xf32>
    %23 = vector.shape_cast %22 : vector<128xf32> to vector<128x1xf32>
    %cst_9 = arith.constant 3.125000e-02 : f32
    %24 = vector.broadcast %cst_9 : f32 to vector<128x1xf32>
    %25 = arith.mulf %23, %24 : vector<128x1xf32>
    %cst_10 = arith.constant 9.99999974E-6 : f32
    %26 = vector.broadcast %cst_10 : f32 to vector<128x1xf32>
    %27 = arith.addf %25, %26 : vector<128x1xf32>
    %28 = math.rsqrt %27 : vector<128x1xf32>
    %29 = vector.broadcast %28 : vector<128x1xf32> to vector<128x128xf32>
    %30 = arith.mulf %20, %29 : vector<128x128xf32>
    %31 = vector.broadcast %10 : vector<1x128xf32> to vector<128x128xf32>
    %32 = arith.mulf %30, %31 : vector<128x128xf32>
    %33 = arith.truncf %32 : vector<128x128xf32> to vector<128x128xbf16>
    %c0_11 = arith.constant 0 : index
    %c0_12 = arith.constant 0 : index
    %34 = vector.load %arg3[%c0_11, %c0_12] : memref<128x128xbf16, #tpu.memory_space<vmem>>, vector<128x128xbf16>
    %cst_13 = arith.constant dense<0.000000e+00> : vector<128x128xf32>
    %35 = tpu.matmul %33, %34, %cst_13 {dimension_numbers = #tpu.dot_dimension_numbers<[1], [0], [0], [1], [0, 0, 1, 1], [], []>} : vector<128x128xbf16>, vector<128x128xbf16>, vector<128x128xf32> -> vector<128x128xf32>
    %36 = vector.extract_strided_slice %35 {offsets = [0, 0], sizes = [128, 8], strides = [1, 1]} : vector<128x128xf32> to vector<128x8xf32>
    %37 = vector.shape_cast %36 : vector<128x8xf32> to vector<2x64x8xf32>
    %38 = arith.truncf %37 : vector<2x64x8xf32> to vector<2x64x8xbf16>
    %39 = vector.extract_strided_slice %35 {offsets = [0, 32], sizes = [128, 8], strides = [1, 1]} : vector<128x128xf32> to vector<128x8xf32>
    %40 = vector.shape_cast %39 : vector<128x8xf32> to vector<2x64x8xf32>
    %41 = arith.truncf %40 : vector<2x64x8xf32> to vector<2x64x8xbf16>
    %42 = vector.extract_strided_slice %35 {offsets = [0, 64], sizes = [128, 8], strides = [1, 1]} : vector<128x128xf32> to vector<128x8xf32>
    %43 = vector.shape_cast %42 : vector<128x8xf32> to vector<2x64x8xf32>
    %44 = arith.truncf %43 : vector<2x64x8xf32> to vector<2x64x8xbf16>
    "tpu.trace_start"() <{level = 10 : i32, message = "bqd,bkd->bqk"}> : () -> ()
    %cst_14 = arith.constant dense<0.000000e+00> : vector<2x64x64xf32>
    %45 = tpu.matmul %38, %41, %cst_14 {dimension_numbers = #tpu.dot_dimension_numbers<[2], [2], [1], [1], [0, 0, 0, 1, 1, 1], [0], [0]>} : vector<2x64x8xbf16>, vector<2x64x8xbf16>, vector<2x64x64xf32> -> vector<2x64x64xf32>
    "tpu.trace_stop"() : () -> ()
    %cst_15 = arith.constant dense<0xFF800000> : vector<2x64xf32>
    %46 = vector.multi_reduction <maximumf>, %45, %cst_15 [2] : vector<2x64x64xf32> to vector<2x64xf32>
    %47 = vector.shape_cast %46 : vector<2x64xf32> to vector<2x64x1xf32>
    %48 = vector.broadcast %47 : vector<2x64x1xf32> to vector<2x64x64xf32>
    %49 = arith.subf %45, %48 : vector<2x64x64xf32>
    %50 = math.exp %49 : vector<2x64x64xf32>
    %cst_16 = arith.constant dense<0.000000e+00> : vector<2x64xf32>
    %51 = vector.multi_reduction <add>, %50, %cst_16 [2] : vector<2x64x64xf32> to vector<2x64xf32>
    %52 = vector.shape_cast %51 : vector<2x64xf32> to vector<2x64x1xf32>
    %53 = tpu.reciprocal %52 {approx = true} : vector<2x64x1xf32> -> vector<2x64x1xf32>
    %54 = vector.broadcast %53 : vector<2x64x1xf32> to vector<2x64x64xf32>
    %55 = arith.mulf %50, %54 : vector<2x64x64xf32>
    %56 = arith.truncf %55 : vector<2x64x64xf32> to vector<2x64x64xbf16>
    "tpu.trace_start"() <{level = 10 : i32, message = "bqk,bkd->bqd"}> : () -> ()
    %cst_17 = arith.constant dense<0.000000e+00> : vector<2x64x8xf32>
    %57 = tpu.matmul %56, %44, %cst_17 {dimension_numbers = #tpu.dot_dimension_numbers<[2], [1], [1], [2], [0, 0, 0, 1, 1, 2], [0], [0]>} : vector<2x64x64xbf16>, vector<2x64x8xbf16>, vector<2x64x8xf32> -> vector<2x64x8xf32>
    "tpu.trace_stop"() : () -> ()
    %c0_18 = arith.constant 0 : index
    %c0_19 = arith.constant 0 : index
    %c0_20 = arith.constant 0 : index
    %58 = vector.load %arg11[%c0_18, %c0_19, %c0_20] : memref<2x64x32xf32, #tpu.memory_space<vmem>>, vector<2x64x8xf32>
    tpu.vector_store %arg11[%c0_18, %c0_19, %c0_20], %57 {strides = array<i32>} : memref<2x64x32xf32, #tpu.memory_space<vmem>>, vector<2x64x8xf32>,
    %59 = vector.extract_strided_slice %35 {offsets = [0, 8], sizes = [128, 8], strides = [1, 1]} : vector<128x128xf32> to vector<128x8xf32>
    %60 = vector.shape_cast %59 : vector<128x8xf32> to vector<2x64x8xf32>
    %61 = arith.truncf %60 : vector<2x64x8xf32> to vector<2x64x8xbf16>
    %62 = vector.extract_strided_slice %35 {offsets = [0, 40], sizes = [128, 8], strides = [1, 1]} : vector<128x128xf32> to vector<128x8xf32>
    %63 = vector.shape_cast %62 : vector<128x8xf32> to vector<2x64x8xf32>
    %64 = arith.truncf %63 : vector<2x64x8xf32> to vector<2x64x8xbf16>
    %65 = vector.extract_strided_slice %35 {offsets = [0, 72], sizes = [128, 8], strides = [1, 1]} : vector<128x128xf32> to vector<128x8xf32>
    %66 = vector.shape_cast %65 : vector<128x8xf32> to vector<2x64x8xf32>
    %67 = arith.truncf %66 : vector<2x64x8xf32> to vector<2x64x8xbf16>
    "tpu.trace_start"() <{level = 10 : i32, message = "bqd,bkd->bqk"}> : () -> ()
    %cst_21 = arith.constant dense<0.000000e+00> : vector<2x64x64xf32>
    %68 = tpu.matmul %61, %64, %cst_21 {dimension_numbers = #tpu.dot_dimension_numbers<[2], [2], [1], [1], [0, 0, 0, 1, 1, 1], [0], [0]>} : vector<2x64x8xbf16>, vector<2x64x8xbf16>, vector<2x64x64xf32> -> vector<2x64x64xf32>
    "tpu.trace_stop"() : () -> ()
    %cst_22 = arith.constant dense<0xFF800000> : vector<2x64xf32>
    %69 = vector.multi_reduction <maximumf>, %68, %cst_22 [2] : vector<2x64x64xf32> to vector<2x64xf32>
    %70 = vector.shape_cast %69 : vector<2x64xf32> to vector<2x64x1xf32>
    %71 = vector.broadcast %70 : vector<2x64x1xf32> to vector<2x64x64xf32>
    %72 = arith.subf %68, %71 : vector<2x64x64xf32>
    %73 = math.exp %72 : vector<2x64x64xf32>
    %cst_23 = arith.constant dense<0.000000e+00> : vector<2x64xf32>
    %74 = vector.multi_reduction <add>, %73, %cst_23 [2] : vector<2x64x64xf32> to vector<2x64xf32>
    %75 = vector.shape_cast %74 : vector<2x64xf32> to vector<2x64x1xf32>
    %76 = tpu.reciprocal %75 {approx = true} : vector<2x64x1xf32> -> vector<2x64x1xf32>
    %77 = vector.broadcast %76 : vector<2x64x1xf32> to vector<2x64x64xf32>
    %78 = arith.mulf %73, %77 : vector<2x64x64xf32>
    %79 = arith.truncf %78 : vector<2x64x64xf32> to vector<2x64x64xbf16>
    "tpu.trace_start"() <{level = 10 : i32, message = "bqk,bkd->bqd"}> : () -> ()
    %cst_24 = arith.constant dense<0.000000e+00> : vector<2x64x8xf32>
    %80 = tpu.matmul %79, %67, %cst_24 {dimension_numbers = #tpu.dot_dimension_numbers<[2], [1], [1], [2], [0, 0, 0, 1, 1, 2], [0], [0]>} : vector<2x64x64xbf16>, vector<2x64x8xbf16>, vector<2x64x8xf32> -> vector<2x64x8xf32>
    "tpu.trace_stop"() : () -> ()
    %c0_25 = arith.constant 0 : index
    %c0_26 = arith.constant 0 : index
    %c8 = arith.constant 8 : index
    %81 = vector.load %arg11[%c0_25, %c0_26, %c8] : memref<2x64x32xf32, #tpu.memory_space<vmem>>, vector<2x64x8xf32>
    tpu.vector_store %arg11[%c0_25, %c0_26, %c8], %80 {strides = array<i32>} : memref<2x64x32xf32, #tpu.memory_space<vmem>>, vector<2x64x8xf32>,
    %82 = vector.extract_strided_slice %35 {offsets = [0, 16], sizes = [128, 8], strides = [1, 1]} : vector<128x128xf32> to vector<128x8xf32>
    %83 = vector.shape_cast %82 : vector<128x8xf32> to vector<2x64x8xf32>
    %84 = arith.truncf %83 : vector<2x64x8xf32> to vector<2x64x8xbf16>
    %85 = vector.extract_strided_slice %35 {offsets = [0, 48], sizes = [128, 8], strides = [1, 1]} : vector<128x128xf32> to vector<128x8xf32>
    %86 = vector.shape_cast %85 : vector<128x8xf32> to vector<2x64x8xf32>
    %87 = arith.truncf %86 : vector<2x64x8xf32> to vector<2x64x8xbf16>
    %88 = vector.extract_strided_slice %35 {offsets = [0, 80], sizes = [128, 8], strides = [1, 1]} : vector<128x128xf32> to vector<128x8xf32>
    %89 = vector.shape_cast %88 : vector<128x8xf32> to vector<2x64x8xf32>
    %90 = arith.truncf %89 : vector<2x64x8xf32> to vector<2x64x8xbf16>
    "tpu.trace_start"() <{level = 10 : i32, message = "bqd,bkd->bqk"}> : () -> ()
    %cst_27 = arith.constant dense<0.000000e+00> : vector<2x64x64xf32>
    %91 = tpu.matmul %84, %87, %cst_27 {dimension_numbers = #tpu.dot_dimension_numbers<[2], [2], [1], [1], [0, 0, 0, 1, 1, 1], [0], [0]>} : vector<2x64x8xbf16>, vector<2x64x8xbf16>, vector<2x64x64xf32> -> vector<2x64x64xf32>
    "tpu.trace_stop"() : () -> ()
    %cst_28 = arith.constant dense<0xFF800000> : vector<2x64xf32>
    %92 = vector.multi_reduction <maximumf>, %91, %cst_28 [2] : vector<2x64x64xf32> to vector<2x64xf32>
    %93 = vector.shape_cast %92 : vector<2x64xf32> to vector<2x64x1xf32>
    %94 = vector.broadcast %93 : vector<2x64x1xf32> to vector<2x64x64xf32>
    %95 = arith.subf %91, %94 : vector<2x64x64xf32>
    %96 = math.exp %95 : vector<2x64x64xf32>
    %cst_29 = arith.constant dense<0.000000e+00> : vector<2x64xf32>
    %97 = vector.multi_reduction <add>, %96, %cst_29 [2] : vector<2x64x64xf32> to vector<2x64xf32>
    %98 = vector.shape_cast %97 : vector<2x64xf32> to vector<2x64x1xf32>
    %99 = tpu.reciprocal %98 {approx = true} : vector<2x64x1xf32> -> vector<2x64x1xf32>
    %100 = vector.broadcast %99 : vector<2x64x1xf32> to vector<2x64x64xf32>
    %101 = arith.mulf %96, %100 : vector<2x64x64xf32>
    %102 = arith.truncf %101 : vector<2x64x64xf32> to vector<2x64x64xbf16>
    "tpu.trace_start"() <{level = 10 : i32, message = "bqk,bkd->bqd"}> : () -> ()
    %cst_30 = arith.constant dense<0.000000e+00> : vector<2x64x8xf32>
    %103 = tpu.matmul %102, %90, %cst_30 {dimension_numbers = #tpu.dot_dimension_numbers<[2], [1], [1], [2], [0, 0, 0, 1, 1, 2], [0], [0]>} : vector<2x64x64xbf16>, vector<2x64x8xbf16>, vector<2x64x8xf32> -> vector<2x64x8xf32>
    "tpu.trace_stop"() : () -> ()
    %c0_31 = arith.constant 0 : index
    %c0_32 = arith.constant 0 : index
    %c16 = arith.constant 16 : index
    %104 = vector.load %arg11[%c0_31, %c0_32, %c16] : memref<2x64x32xf32, #tpu.memory_space<vmem>>, vector<2x64x8xf32>
    tpu.vector_store %arg11[%c0_31, %c0_32, %c16], %103 {strides = array<i32>} : memref<2x64x32xf32, #tpu.memory_space<vmem>>, vector<2x64x8xf32>,
    %105 = vector.extract_strided_slice %35 {offsets = [0, 24], sizes = [128, 8], strides = [1, 1]} : vector<128x128xf32> to vector<128x8xf32>
    %106 = vector.shape_cast %105 : vector<128x8xf32> to vector<2x64x8xf32>
    %107 = arith.truncf %106 : vector<2x64x8xf32> to vector<2x64x8xbf16>
    %108 = vector.extract_strided_slice %35 {offsets = [0, 56], sizes = [128, 8], strides = [1, 1]} : vector<128x128xf32> to vector<128x8xf32>
    %109 = vector.shape_cast %108 : vector<128x8xf32> to vector<2x64x8xf32>
    %110 = arith.truncf %109 : vector<2x64x8xf32> to vector<2x64x8xbf16>
    %111 = vector.extract_strided_slice %35 {offsets = [0, 88], sizes = [128, 8], strides = [1, 1]} : vector<128x128xf32> to vector<128x8xf32>
    %112 = vector.shape_cast %111 : vector<128x8xf32> to vector<2x64x8xf32>
    %113 = arith.truncf %112 : vector<2x64x8xf32> to vector<2x64x8xbf16>
    "tpu.trace_start"() <{level = 10 : i32, message = "bqd,bkd->bqk"}> : () -> ()
    %cst_33 = arith.constant dense<0.000000e+00> : vector<2x64x64xf32>
    %114 = tpu.matmul %107, %110, %cst_33 {dimension_numbers = #tpu.dot_dimension_numbers<[2], [2], [1], [1], [0, 0, 0, 1, 1, 1], [0], [0]>} : vector<2x64x8xbf16>, vector<2x64x8xbf16>, vector<2x64x64xf32> -> vector<2x64x64xf32>
    "tpu.trace_stop"() : () -> ()
    %cst_34 = arith.constant dense<0xFF800000> : vector<2x64xf32>
    %115 = vector.multi_reduction <maximumf>, %114, %cst_34 [2] : vector<2x64x64xf32> to vector<2x64xf32>
    %116 = vector.shape_cast %115 : vector<2x64xf32> to vector<2x64x1xf32>
    %117 = vector.broadcast %116 : vector<2x64x1xf32> to vector<2x64x64xf32>
    %118 = arith.subf %114, %117 : vector<2x64x64xf32>
    %119 = math.exp %118 : vector<2x64x64xf32>
    %cst_35 = arith.constant dense<0.000000e+00> : vector<2x64xf32>
    %120 = vector.multi_reduction <add>, %119, %cst_35 [2] : vector<2x64x64xf32> to vector<2x64xf32>
    %121 = vector.shape_cast %120 : vector<2x64xf32> to vector<2x64x1xf32>
    %122 = tpu.reciprocal %121 {approx = true} : vector<2x64x1xf32> -> vector<2x64x1xf32>
    %123 = vector.broadcast %122 : vector<2x64x1xf32> to vector<2x64x64xf32>
    %124 = arith.mulf %119, %123 : vector<2x64x64xf32>
    %125 = arith.truncf %124 : vector<2x64x64xf32> to vector<2x64x64xbf16>
    "tpu.trace_start"() <{level = 10 : i32, message = "bqk,bkd->bqd"}> : () -> ()
    %cst_36 = arith.constant dense<0.000000e+00> : vector<2x64x8xf32>
    %126 = tpu.matmul %125, %113, %cst_36 {dimension_numbers = #tpu.dot_dimension_numbers<[2], [1], [1], [2], [0, 0, 0, 1, 1, 2], [0], [0]>} : vector<2x64x64xbf16>, vector<2x64x8xbf16>, vector<2x64x8xf32> -> vector<2x64x8xf32>
    "tpu.trace_stop"() : () -> ()
    %c0_37 = arith.constant 0 : index
    %c0_38 = arith.constant 0 : index
    %c24 = arith.constant 24 : index
    %127 = vector.load %arg11[%c0_37, %c0_38, %c24] : memref<2x64x32xf32, #tpu.memory_space<vmem>>, vector<2x64x8xf32>
    tpu.vector_store %arg11[%c0_37, %c0_38, %c24], %126 {strides = array<i32>} : memref<2x64x32xf32, #tpu.memory_space<vmem>>, vector<2x64x8xf32>,
    %c0_39 = arith.constant 0 : index
    %c0_40 = arith.constant 0 : index
    %c0_41 = arith.constant 0 : index
    %128 = vector.load %arg11[%c0_39, %c0_40, %c0_41] : memref<2x64x32xf32, #tpu.memory_space<vmem>>, vector<2x64x32xf32>
    %129 = vector.shape_cast %128 : vector<2x64x32xf32> to vector<128x32xf32>
    %130 = arith.truncf %129 : vector<128x32xf32> to vector<128x32xbf16>
    %c0_42 = arith.constant 0 : index
    %c0_43 = arith.constant 0 : index
    %131 = vector.load %arg4[%c0_42, %c0_43] : memref<32x128xbf16, #tpu.memory_space<vmem>>, vector<32x128xbf16>
    %cst_44 = arith.constant dense<0.000000e+00> : vector<128x128xf32>
    %132 = tpu.matmul %130, %131, %cst_44 {dimension_numbers = #tpu.dot_dimension_numbers<[1], [0], [0], [1], [0, 0, 1, 1], [], []>} : vector<128x32xbf16>, vector<32x128xbf16>, vector<128x128xf32> -> vector<128x128xf32>
    %133 = arith.addf %8, %132 : vector<128x128xf32>
    %c0_45 = arith.constant 0 : index
    %c0_46 = arith.constant 0 : index
    %134 = vector.load %arg6[%c0_45, %c0_46] : memref<1x128xf32, #tpu.memory_space<vmem>>, vector<1x128xf32>
    %cst_47 = arith.constant dense<0.000000e+00> : vector<128xf32>
    %135 = vector.multi_reduction <add>, %133, %cst_47 [1] : vector<128x128xf32> to vector<128xf32>
    %136 = vector.shape_cast %135 : vector<128xf32> to vector<128x1xf32>
    %cst_48 = arith.constant 3.125000e-02 : f32
    %137 = vector.broadcast %cst_48 : f32 to vector<128x1xf32>
    %138 = arith.mulf %136, %137 : vector<128x1xf32>
    %139 = vector.broadcast %138 : vector<128x1xf32> to vector<128x128xf32>
    %140 = arith.subf %133, %139 : vector<128x128xf32>
    %cst_49 = arith.constant 0.000000e+00 : f32
    %141 = vector.shape_cast %2 : vector<1x128xi1> to vector<1x128xi1>
    %142 = vector.broadcast %141 : vector<1x128xi1> to vector<128x128xi1>
    %143 = vector.broadcast %cst_49 : f32 to vector<128x128xf32>
    %144 = arith.select %142, %140, %143 : vector<128x128xi1>, vector<128x128xf32>
    %145 = arith.mulf %144, %144 : vector<128x128xf32>
    %cst_50 = arith.constant dense<0.000000e+00> : vector<128xf32>
    %146 = vector.multi_reduction <add>, %145, %cst_50 [1] : vector<128x128xf32> to vector<128xf32>
    %147 = vector.shape_cast %146 : vector<128xf32> to vector<128x1xf32>
    %cst_51 = arith.constant 3.125000e-02 : f32
    %148 = vector.broadcast %cst_51 : f32 to vector<128x1xf32>
    %149 = arith.mulf %147, %148 : vector<128x1xf32>
    %cst_52 = arith.constant 9.99999974E-6 : f32
    %150 = vector.broadcast %cst_52 : f32 to vector<128x1xf32>
    %151 = arith.addf %149, %150 : vector<128x1xf32>
    %152 = math.rsqrt %151 : vector<128x1xf32>
    %153 = vector.broadcast %152 : vector<128x1xf32> to vector<128x128xf32>
    %154 = arith.mulf %144, %153 : vector<128x128xf32>
    %155 = vector.broadcast %134 : vector<1x128xf32> to vector<128x128xf32>
    %156 = arith.mulf %154, %155 : vector<128x128xf32>
    %157 = arith.truncf %156 : vector<128x128xf32> to vector<128x128xbf16>
    %c0_53 = arith.constant 0 : index
    %c0_54 = arith.constant 0 : index
    %158 = vector.load %arg7[%c0_53, %c0_54] : memref<128x64xbf16, #tpu.memory_space<vmem>>, vector<128x64xbf16>
    %cst_55 = arith.constant dense<0.000000e+00> : vector<128x64xf32>
    %159 = tpu.matmul %157, %158, %cst_55 {dimension_numbers = #tpu.dot_dimension_numbers<[1], [0], [0], [1], [0, 0, 1, 1], [], []>} : vector<128x128xbf16>, vector<128x64xbf16>, vector<128x64xf32> -> vector<128x64xf32>
    %160 = arith.negf %159 : vector<128x64xf32>
    %161 = math.exp %160 : vector<128x64xf32>
    %cst_56 = arith.constant 1.000000e+00 : f32
    %162 = vector.broadcast %cst_56 : f32 to vector<128x64xf32>
    %163 = arith.addf %162, %161 : vector<128x64xf32>
    %164 = arith.divf %162, %163 : vector<128x64xf32>
    %165 = arith.mulf %159, %164 : vector<128x64xf32>
    %166 = arith.truncf %165 : vector<128x64xf32> to vector<128x64xbf16>
    %c0_57 = arith.constant 0 : index
    %c0_58 = arith.constant 0 : index
    %167 = vector.load %arg8[%c0_57, %c0_58] : memref<64x128xbf16, #tpu.memory_space<vmem>>, vector<64x128xbf16>
    %cst_59 = arith.constant dense<0.000000e+00> : vector<128x128xf32>
    %168 = tpu.matmul %166, %167, %cst_59 {dimension_numbers = #tpu.dot_dimension_numbers<[1], [0], [0], [1], [0, 0, 1, 1], [], []>} : vector<128x64xbf16>, vector<64x128xbf16>, vector<128x128xf32> -> vector<128x128xf32>
    %169 = arith.addf %133, %168 : vector<128x128xf32>
    %c0_60 = arith.constant 0 : index
    %c0_61 = arith.constant 0 : index
    %170 = vector.load %arg9[%c0_60, %c0_61] : memref<1x128xf32, #tpu.memory_space<vmem>>, vector<1x128xf32>
    %171 = vector.broadcast %170 : vector<1x128xf32> to vector<128x128xf32>
    %172 = arith.mulf %9, %171 : vector<128x128xf32>
    %173 = arith.addf %169, %172 : vector<128x128xf32>
    %174 = vector.shape_cast %173 : vector<128x128xf32> to vector<2x64x128xf32>
    %c0_62 = arith.constant 0 : index
    %c0_63 = arith.constant 0 : index
    %c0_64 = arith.constant 0 : index
    %175 = vector.load %arg10[%c0_62, %c0_63, %c0_64] : memref<2x64x128xf32, #tpu.memory_space<vmem>>, vector<2x64x128xf32>
    tpu.vector_store %arg10[%c0_62, %c0_63, %c0_64], %174 {strides = array<i32>} : memref<2x64x128xf32, #tpu.memory_space<vmem>>, vector<2x64x128xf32>,
    return
  }
  func.func @transform_0(%arg0: i32) -> (i32, i32, i32) {
    %c0_i32 = arith.constant 0 : i32
    %c0_i32_0 = arith.constant 0 : i32
    %c0_i32_1 = arith.constant 0 : i32
    return %arg0, %c0_i32, %c0_i32_0 : i32, i32, i32
  }
  func.func @transform_1(%arg0: i32) -> (i32, i32) {
    %c0_i32 = arith.constant 0 : i32
    %c0_i32_0 = arith.constant 0 : i32
    %c0_i32_1 = arith.constant 0 : i32
    return %c0_i32, %c0_i32_0 : i32, i32
  }
  func.func @transform_2(%arg0: i32) -> (i32, i32) {
    %c0_i32 = arith.constant 0 : i32
    %c0_i32_0 = arith.constant 0 : i32
    %c0_i32_1 = arith.constant 0 : i32
    return %c0_i32, %c0_i32_0 : i32, i32
  }
  func.func @transform_3(%arg0: i32) -> (i32, i32) {
    %c0_i32 = arith.constant 0 : i32
    %c0_i32_0 = arith.constant 0 : i32
    %c0_i32_1 = arith.constant 0 : i32
    return %c0_i32, %c0_i32_0 : i32, i32
  }
  func.func @transform_4(%arg0: i32) -> (i32, i32) {
    %c0_i32 = arith.constant 0 : i32
    %c0_i32_0 = arith.constant 0 : i32
    %c0_i32_1 = arith.constant 0 : i32
    return %c0_i32, %c0_i32_0 : i32, i32
  }
  func.func @transform_5(%arg0: i32) -> (i32, i32) {
    %c0_i32 = arith.constant 0 : i32
    %c0_i32_0 = arith.constant 0 : i32
    %c0_i32_1 = arith.constant 0 : i32
    return %c0_i32, %c0_i32_0 : i32, i32
  }
  func.func @transform_6(%arg0: i32) -> (i32, i32) {
    %c0_i32 = arith.constant 0 : i32
    %c0_i32_0 = arith.constant 0 : i32
    %c0_i32_1 = arith.constant 0 : i32
    return %c0_i32, %c0_i32_0 : i32, i32
  }
  func.func @transform_7(%arg0: i32) -> (i32, i32) {
    %c0_i32 = arith.constant 0 : i32
    %c0_i32_0 = arith.constant 0 : i32
    %c0_i32_1 = arith.constant 0 : i32
    return %c0_i32, %c0_i32_0 : i32, i32
  }
  func.func @transform_8(%arg0: i32) -> (i32, i32) {
    %c0_i32 = arith.constant 0 : i32
    %c0_i32_0 = arith.constant 0 : i32
    %c0_i32_1 = arith.constant 0 : i32
    return %c0_i32, %c0_i32_0 : i32, i32
  }
  func.func @transform_9(%arg0: i32) -> (i32, i32, i32) {
    %c0_i32 = arith.constant 0 : i32
    %c0_i32_0 = arith.constant 0 : i32
    %c0_i32_1 = arith.constant 0 : i32
    return %arg0, %c0_i32, %c0_i32_0 : i32, i32, i32
  }
}

</mosaic_0001>

<llo_original>
// kernel: tpu_custom_call.1
$region0: #{tpu_custom_call.1}
  #allocation0 [shape = 'u32[]', space=smem, size = 0x4, offset = 0x4, fixed_abs, tag = 'smem constant byte address 0x4 - core index']
  #allocation1 [shape = 'u32[72,128]{1,0:T(1,128)}', space=vmem, size = 0x9000, scoped, tag = 'internal scratch']
  #allocation2 [shape = 'f32[2,64,32]{2,1,0:T(8,128)}', space=vmem, size = 0x10000, scoped, tag = 'scratch operand']
  %s0 = inlined_call_operand.hbm [shape: f32[4,64,128], index: 0, kind: input, shape index: {}]
  %s1 = inlined_call_operand.vmem [shape: f32[64,128], index: 1, kind: input, shape index: {}]
  %s2 = inlined_call_operand.hbm [shape: bf16[128,128], index: 2, kind: input, shape index: {}]
  %s3 = inlined_call_operand.hbm [shape: bf16[32,128], index: 3, kind: input, shape index: {}]
  %s4 = inlined_call_operand.vmem [shape: f32[1,128], index: 4, kind: input, shape index: {}]
  %s5 = inlined_call_operand.vmem [shape: f32[1,128], index: 5, kind: input, shape index: {}]
  %s6 = inlined_call_operand.vmem [shape: bf16[128,64], index: 6, kind: input, shape index: {}]
  %s7 = inlined_call_operand.vmem [shape: bf16[64,128], index: 7, kind: input, shape index: {}]
  %s8 = inlined_call_operand.vmem [shape: f32[1,128], index: 8, kind: input, shape index: {}]
  %s9 = inlined_call_operand.hbm [shape: f32[4,64,128], index: 9, kind: output, shape index: {}]
  %s10 = sld [smem:[#allocation0]]
  $region81: #{tpu_custom_call.1} parent=0
    _
  %s12 = ssub.s32 1, %s10
  %s13 = scalar_select 0, %s12, %s10
  $region1: #{tpu_custom_call.1} parent=0
    #allocation3 [shape = 'u8[131072]{0}', space=vmem, size = 0x20000, scoped, tag = 'input window, operand 0']
    #allocation4 [shape = 's32[2]{0}', space=sflag, size = 0x8, scoped, tag = 'scoped memory for tpu_custom_call.1']
    #allocation5 [shape = 's32[2]{0}', space=sflag, size = 0x8, scoped, tag = 'scoped memory for tpu_custom_call.1']
    #allocation6 [shape = 'u8[32768]{0}', space=vmem, size = 0x8000, scoped, tag = 'input window, operand 2, single buffered']
    #allocation7 [shape = 's32[1]{0}', space=sflag, size = 0x4, scoped, tag = 'scoped memory for tpu_custom_call.1']
    #allocation8 [shape = 'u8[8192]{0}', space=vmem, size = 0x2000, scoped, tag = 'input window, operand 3, single buffered']
    #allocation9 [shape = 'u8[131072]{0}', space=vmem, size = 0x20000, scoped, tag = 'output window, operand 0']
    %14 = vsyncpa [#allocation4], 0
    %s15 = scalar_lea.sflag [#allocation4], 1
    %16 = vsyncpa %s15, 0
    %17 = vsyncpa [#allocation7], 0
    %18 = vsyncpa [#allocation5], 0
    %s19 = scalar_lea.sflag [#allocation5], 1
    %20 = vsyncpa %s19, 0
    loop: start=0, step=1, limit=4
    $region2: #{tpu_custom_call.1} parent=1 // loop_pre_header
      _
    $region3: #{tpu_custom_call.1} parent=1 // loop_header
      %s22 = sphi 0, %s26
      %p23 = scmp.ge.s32.totalorder %s22, 4
      %s32 = sphi 0, %s34
      %s35 = sphi 0, %s32
      %s36 = sphi 0, %s35
      %s52 = sphi 0, %s36
      %s56 = sphi 0, %s56
      %s58 = sphi 0, %s56
      %s59 = sphi 0, %s58
      %s73 = sphi 0, %s59
      %s77 = sphi 0, %s77
      %s79 = sphi 0, %s77
      %s80 = sphi 0, %s79
      %s94 = sphi 0, %s80
      %s98 = sphi 0, %s98
      %s100 = sphi 0, %s98
      %s101 = sphi 0, %s100
      %s115 = sphi 0, %s101
      %s119 = sphi 0, %s119
      %s121 = sphi 0, %s119
      %s122 = sphi 0, %s121
      %s136 = sphi 0, %s122
      %s140 = sphi 0, %s140
      %s142 = sphi 0, %s140
      %s143 = sphi 0, %s142
      %s157 = sphi 0, %s143
      %s161 = sphi 0, %s161
      %s163 = sphi 0, %s161
      %s164 = sphi 0, %s163
      %s178 = sphi 0, %s164
      %s182 = sphi 0, %s182
      %s184 = sphi 0, %s182
      %s185 = sphi 0, %s184
      %s199 = sphi 0, %s185
      %s203 = sphi 0, %s203
      %s205 = sphi 0, %s203
      %s206 = sphi 0, %s205
      %s220 = sphi 0, %s206
      %s226 = sphi 0, %s228
      %s229 = sphi 0, %s226
      %s230 = sphi 0, %s229
      %s246 = sphi 0, %s230
    $region4: #{tpu_custom_call.1} parent=1 // loop_header_branch
      %25 = sbr.rel (%p23) target = $region8
    $region5: #{tpu_custom_call.1} parent=1 // loop_body
      %s27 = ssub.s32 %s22, 1
      %s28 = ssub.s32 %s22, 2
      %s29 = sadd.s32 %s22, 1
      %s30 = ssub.s32 %s22, %s29
      %p31 = scmp.eq.s32.totalorder %s30, 0
      %s33 = sadd.s32 %s32, 1
      %s34 = scalar_select %p31, %s32, %s33
      %p37 = pneg %p31
      %p38 = scmp.eq.s32.totalorder %s22, 1
      %p39 = por %p37, %p38
      %p40 = scmp.ne.s32.totalorder %s32, %s35
      %p41 = scmp.eq.s32.totalorder %s22, 0
      %p42 = por %p40, %p41
      %p43 = scmp.ne.s32.totalorder %s32, %s35
      %p44 = scmp.eq.s32.totalorder %s27, 1
      %p45 = por %p43, %p44
      %p46 = scmp.ne.s32.totalorder %s35, %s36
      %p47 = scmp.eq.s32.totalorder %s27, 0
      %p48 = por %p46, %p47
      %p49 = scmp.ne.s32.totalorder %s35, %s36
      %p50 = scmp.eq.s32.totalorder %s28, 1
      %p51 = por %p49, %p50
      %p53 = scmp.ne.s32.totalorder %s36, %s52
      %p54 = scmp.eq.s32.totalorder %s28, 0
      %p55 = por %p53, %p54
      %s57 = sadd.s32 %s56, 1
      %p60 = scmp.eq.s32.totalorder %s22, 1
      %p61 = scmp.ne.s32.totalorder %s56, %s58
      %p62 = scmp.eq.s32.totalorder %s22, 0
      %p63 = por %p61, %p62
      %p64 = scmp.ne.s32.totalorder %s56, %s58
      %p65 = scmp.eq.s32.totalorder %s27, 1
      %p66 = por %p64, %p65
      %p67 = scmp.ne.s32.totalorder %s58, %s59
      %p68 = scmp.eq.s32.totalorder %s27, 0
      %p69 = por %p67, %p68
      %p70 = scmp.ne.s32.totalorder %s58, %s59
      %p71 = scmp.eq.s32.totalorder %s28, 1
      %p72 = por %p70, %p71
      %p74 = scmp.ne.s32.totalorder %s59, %s73
      %p75 = scmp.eq.s32.totalorder %s28, 0
      %p76 = por %p74, %p75
      %s78 = sadd.s32 %s77, 1
      %p81 = scmp.eq.s32.totalorder %s22, 1
      %p82 = scmp.ne.s32.totalorder %s77, %s79
      %p83 = scmp.eq.s32.totalorder %s22, 0
      %p84 = por %p82, %p83
      %p85 = scmp.ne.s32.totalorder %s77, %s79
      %p86 = scmp.eq.s32.totalorder %s27, 1
      %p87 = por %p85, %p86
      %p88 = scmp.ne.s32.totalorder %s79, %s80
      %p89 = scmp.eq.s32.totalorder %s27, 0
      %p90 = por %p88, %p89
      %p91 = scmp.ne.s32.totalorder %s79, %s80
      %p92 = scmp.eq.s32.totalorder %s28, 1
      %p93 = por %p91, %p92
      %p95 = scmp.ne.s32.totalorder %s80, %s94
      %p96 = scmp.eq.s32.totalorder %s28, 0
      %p97 = por %p95, %p96
      %s99 = sadd.s32 %s98, 1
      %p102 = scmp.eq.s32.totalorder %s22, 1
      %p103 = scmp.ne.s32.totalorder %s98, %s100
      %p104 = scmp.eq.s32.totalorder %s22, 0
      %p105 = por %p103, %p104
      %p106 = scmp.ne.s32.totalorder %s98, %s100
      %p107 = scmp.eq.s32.totalorder %s27, 1
      %p108 = por %p106, %p107
      %p109 = scmp.ne.s32.totalorder %s100, %s101
      %p110 = scmp.eq.s32.totalorder %s27, 0
      %p111 = por %p109, %p110
      %p112 = scmp.ne.s32.totalorder %s100, %s101
      %p113 = scmp.eq.s32.totalorder %s28, 1
      %p114 = por %p112, %p113
      %p116 = scmp.ne.s32.totalorder %s101, %s115
      %p117 = scmp.eq.s32.totalorder %s28, 0
      %p118 = por %p116, %p117
      %s120 = sadd.s32 %s119, 1
      %p123 = scmp.eq.s32.totalorder %s22, 1
      %p124 = scmp.ne.s32.totalorder %s119, %s121
      %p125 = scmp.eq.s32.totalorder %s22, 0
      %p126 = por %p124, %p125
      %p127 = scmp.ne.s32.totalorder %s119, %s121
      %p128 = scmp.eq.s32.totalorder %s27, 1
      %p129 = por %p127, %p128
      %p130 = scmp.ne.s32.totalorder %s121, %s122
      %p131 = scmp.eq.s32.totalorder %s27, 0
      %p132 = por %p130, %p131
      %p133 = scmp.ne.s32.totalorder %s121, %s122
      %p134 = scmp.eq.s32.totalorder %s28, 1
      %p135 = por %p133, %p134
      %p137 = scmp.ne.s32.totalorder %s122, %s136
      %p138 = scmp.eq.s32.totalorder %s28, 0
      %p139 = por %p137, %p138
      %s141 = sadd.s32 %s140, 1
      %p144 = scmp.eq.s32.totalorder %s22, 1
      %p145 = scmp.ne.s32.totalorder %s140, %s142
      %p146 = scmp.eq.s32.totalorder %s22, 0
      %p147 = por %p145, %p146
      %p148 = scmp.ne.s32.totalorder %s140, %s142
      %p149 = scmp.eq.s32.totalorder %s27, 1
      %p150 = por %p148, %p149
      %p151 = scmp.ne.s32.totalorder %s142, %s143
      %p152 = scmp.eq.s32.totalorder %s27, 0
      %p153 = por %p151, %p152
      %p154 = scmp.ne.s32.totalorder %s142, %s143
      %p155 = scmp.eq.s32.totalorder %s28, 1
      %p156 = por %p154, %p155
      %p158 = scmp.ne.s32.totalorder %s143, %s157
      %p159 = scmp.eq.s32.totalorder %s28, 0
      %p160 = por %p158, %p159
      %s162 = sadd.s32 %s161, 1
      %p165 = scmp.eq.s32.totalorder %s22, 1
      %p166 = scmp.ne.s32.totalorder %s161, %s163
      %p167 = scmp.eq.s32.totalorder %s22, 0
      %p168 = por %p166, %p167
      %p169 = scmp.ne.s32.totalorder %s161, %s163
      %p170 = scmp.eq.s32.totalorder %s27, 1
      %p171 = por %p169, %p170
      %p172 = scmp.ne.s32.totalorder %s163, %s164
      %p173 = scmp.eq.s32.totalorder %s27, 0
      %p174 = por %p172, %p173
      %p175 = scmp.ne.s32.totalorder %s163, %s164
      %p176 = scmp.eq.s32.totalorder %s28, 1
      %p177 = por %p175, %p176
      %p179 = scmp.ne.s32.totalorder %s164, %s178
      %p180 = scmp.eq.s32.totalorder %s28, 0
      %p181 = por %p179, %p180
      %s183 = sadd.s32 %s182, 1
      %p186 = scmp.eq.s32.totalorder %s22, 1
      %p187 = scmp.ne.s32.totalorder %s182, %s184
      %p188 = scmp.eq.s32.totalorder %s22, 0
      %p189 = por %p187, %p188
      %p190 = scmp.ne.s32.totalorder %s182, %s184
      %p191 = scmp.eq.s32.totalorder %s27, 1
      %p192 = por %p190, %p191
      %p193 = scmp.ne.s32.totalorder %s184, %s185
      %p194 = scmp.eq.s32.totalorder %s27, 0
      %p195 = por %p193, %p194
      %p196 = scmp.ne.s32.totalorder %s184, %s185
      %p197 = scmp.eq.s32.totalorder %s28, 1
      %p198 = por %p196, %p197
      %p200 = scmp.ne.s32.totalorder %s185, %s199
      %p201 = scmp.eq.s32.totalorder %s28, 0
      %p202 = por %p200, %p201
      %s204 = sadd.s32 %s203, 1
      %p207 = scmp.eq.s32.totalorder %s22, 1
      %p208 = scmp.ne.s32.totalorder %s203, %s205
      %p209 = scmp.eq.s32.totalorder %s22, 0
      %p210 = por %p208, %p209
      %p211 = scmp.ne.s32.totalorder %s203, %s205
      %p212 = scmp.eq.s32.totalorder %s27, 1
      %p213 = por %p211, %p212
      %p214 = scmp.ne.s32.totalorder %s205, %s206
      %p215 = scmp.eq.s32.totalorder %s27, 0
      %p216 = por %p214, %p215
      %p217 = scmp.ne.s32.totalorder %s205, %s206
      %p218 = scmp.eq.s32.totalorder %s28, 1
      %p219 = por %p217, %p218
      %p221 = scmp.ne.s32.totalorder %s206, %s220
      %p222 = scmp.eq.s32.totalorder %s28, 0
      %p223 = por %p221, %p222
      %s224 = ssub.s32 %s22, %s29
      %p225 = scmp.eq.s32.totalorder %s224, 0
      %s227 = sadd.s32 %s226, 1
      %s228 = scalar_select %p225, %s226, %s227
      %p231 = pneg %p225
      %p232 = scmp.eq.s32.totalorder %s22, 1
      %p233 = por %p231, %p232
      %p234 = scmp.ne.s32.totalorder %s226, %s229
      %p235 = scmp.eq.s32.totalorder %s22, 0
      %p236 = por %p234, %p235
      %p237 = scmp.ne.s32.totalorder %s226, %s229
      %p238 = scmp.eq.s32.totalorder %s27, 1
      %p239 = por %p237, %p238
      %p240 = scmp.ne.s32.totalorder %s229, %s230
      %p241 = scmp.eq.s32.totalorder %s27, 0
      %p242 = por %p240, %p241
      %p243 = scmp.ne.s32.totalorder %s229, %s230
      %p244 = scmp.eq.s32.totalorder %s28, 1
      %p245 = por %p243, %p244
      %p247 = scmp.ne.s32.totalorder %s230, %s246
      %p248 = scmp.eq.s32.totalorder %s28, 0
      %p249 = por %p247, %p248
      %p250 = scmp.le.s32.totalorder 1, %s22
      %p251 = scmp.lt.s32.totalorder %s22, 3
      %p252 = pnand %p250, %p251
      %p253 = pneg %p252
      // Predicated region
      $region9: #{tpu_custom_call.1} parent=5 // pred_check
        _
      $region10: #{tpu_custom_call.1} parent=5 // pred_check_branch
        %255 = sbr.rel (%p252) target = $region12
      $region11: #{tpu_custom_call.1} parent=5 // pred_region
        %s256 = ssub.s32 %s22, 1
        // Predicated region
        $region13: #{tpu_custom_call.1} parent=11 // pred_check
          %p257 = pneg %p69
        $region14: #{tpu_custom_call.1} parent=11 // pred_check_branch
          %259 = sbr.rel (%p257) target = $region16
        $region15: #{tpu_custom_call.1} parent=11 // pred_region
          _
        $region16: #{tpu_custom_call.1} parent=11 // pred_fallthru
          _
        // Predicated region
        $region17: #{tpu_custom_call.1} parent=11 // pred_check
          %p260 = pneg %p90
        $region18: #{tpu_custom_call.1} parent=11 // pred_check_branch
          %262 = sbr.rel (%p260) target = $region20
        $region19: #{tpu_custom_call.1} parent=11 // pred_region
          %264 = vsyncadd [#allocation7], 0
          %s265 = sshll.u32 %s2, 4
          %s266 = int_to_ptr.hbm [resolvable:$true] %s265
          %s267 = sshll.u32 [#allocation6], 4
          %s268 = int_to_ptr.vmem [resolvable:$true] %s267
          %273 = dma.hbm_to_vmem [thread:$0]  %s266, 1024, %s268, [#allocation7], 64, 64, 4
        $region20: #{tpu_custom_call.1} parent=11 // pred_fallthru
          _
        // Predicated region
        $region21: #{tpu_custom_call.1} parent=11 // pred_check
          %p274 = pneg %p111
        $region22: #{tpu_custom_call.1} parent=11 // pred_check_branch
          %276 = sbr.rel (%p274) target = $region24
        $region23: #{tpu_custom_call.1} parent=11 // pred_region
          %278 = vsyncadd [#allocation7], 0
          %s279 = sshll.u32 %s3, 4
          %s280 = int_to_ptr.hbm [resolvable:$true] %s279
          %s281 = sshll.u32 [#allocation8], 4
          %s282 = int_to_ptr.vmem [resolvable:$true] %s281
          %287 = dma.hbm_to_vmem [thread:$0]  %s280, 256, %s282, [#allocation7], 64, 64, 4
        $region24: #{tpu_custom_call.1} parent=11 // pred_fallthru
          _
        // Predicated region
        $region25: #{tpu_custom_call.1} parent=11 // pred_check
          %p288 = pneg %p132
        $region26: #{tpu_custom_call.1} parent=11 // pred_check_branch
          %290 = sbr.rel (%p288) target = $region28
        $region27: #{tpu_custom_call.1} parent=11 // pred_region
          _
        $region28: #{tpu_custom_call.1} parent=11 // pred_fallthru
          _
        // Predicated region
        $region29: #{tpu_custom_call.1} parent=11 // pred_check
          %p291 = pneg %p153
        $region30: #{tpu_custom_call.1} parent=11 // pred_check_branch
          %293 = sbr.rel (%p291) target = $region32
        $region31: #{tpu_custom_call.1} parent=11 // pred_region
          _
        $region32: #{tpu_custom_call.1} parent=11 // pred_fallthru
          _
        // Predicated region
        $region33: #{tpu_custom_call.1} parent=11 // pred_check
          %p294 = pneg %p174
        $region34: #{tpu_custom_call.1} parent=11 // pred_check_branch
          %296 = sbr.rel (%p294) target = $region36
        $region35: #{tpu_custom_call.1} parent=11 // pred_region
          _
        $region36: #{tpu_custom_call.1} parent=11 // pred_fallthru
          _
        // Predicated region
        $region37: #{tpu_custom_call.1} parent=11 // pred_check
          %p297 = pneg %p195
        $region38: #{tpu_custom_call.1} parent=11 // pred_check_branch
          %299 = sbr.rel (%p297) target = $region40
        $region39: #{tpu_custom_call.1} parent=11 // pred_region
          _
        $region40: #{tpu_custom_call.1} parent=11 // pred_fallthru
          _
        // Predicated region
        $region41: #{tpu_custom_call.1} parent=11 // pred_check
          %p300 = pneg %p216
        $region42: #{tpu_custom_call.1} parent=11 // pred_check_branch
          %302 = sbr.rel (%p300) target = $region44
        $region43: #{tpu_custom_call.1} parent=11 // pred_region
          _
        $region44: #{tpu_custom_call.1} parent=11 // pred_fallthru
          _
      $region12: #{tpu_custom_call.1} parent=5 // pred_fallthru
        _
      %p303 = scmp.lt.s32.totalorder %s22, 2
      // Predicated region
      $region45: #{tpu_custom_call.1} parent=5 // pred_check
        %p304 = pneg %p303
      $region46: #{tpu_custom_call.1} parent=5 // pred_check_branch
        %306 = sbr.rel (%p304) target = $region48
      $region47: #{tpu_custom_call.1} parent=5 // pred_region
        // Predicated region
        $region49: #{tpu_custom_call.1} parent=47 // pred_check
          %p307 = pneg %p42
        $region50: #{tpu_custom_call.1} parent=47 // pred_check_branch
          %309 = sbr.rel (%p307) target = $region52
        $region51: #{tpu_custom_call.1} parent=47 // pred_region
          %s310 = sand.u32 %s32, 1
          %s311 = scalar_lea.sflag [#allocation4], %s310
          %s312 = sand.u32 %s32, 1
          %s313 = smul.addr %s312, 128
          %s314 = scalar_lea.vmem [#allocation3], %s313
          %s315 = smul.u32 2, %s22
          %317 = vsyncadd %s311, 0
          %s318 = smul.addr %s315, 8
          %s319 = smul.addr %s318, 8
          %s320 = scalar_lea.hbm %s0, %s319
          %s321 = sshll.u32 %s320, 4
          %s322 = int_to_ptr.hbm [resolvable:$true] %s321
          %s323 = sshll.u32 %s314, 4
          %s324 = int_to_ptr.vmem [resolvable:$true] %s323
          %329 = dma.hbm_to_vmem [thread:$0]  %s322, 2048, %s324, %s311, 128, 128, 8
        $region52: #{tpu_custom_call.1} parent=47 // pred_fallthru
          _
      $region48: #{tpu_custom_call.1} parent=5 // pred_fallthru
        _
      %p330 = scmp.le.s32.totalorder 1, %s22
      %p331 = scmp.lt.s32.totalorder %s22, 3
      %p332 = pnand %p330, %p331
      %p333 = pneg %p332
      // Predicated region
      $region53: #{tpu_custom_call.1} parent=5 // pred_check
        _
      $region54: #{tpu_custom_call.1} parent=5 // pred_check_branch
        %335 = sbr.rel (%p332) target = $region56
      $region55: #{tpu_custom_call.1} parent=5 // pred_region
        %s336 = ssub.s32 %s22, 1
        %s337 = sand.u32 %s35, 1
        %s338 = scalar_lea.sflag [#allocation4], %s337
        %s339 = sand.u32 %s35, 1
        %s340 = smul.addr %s339, 128
        %s341 = scalar_lea.vmem [#allocation3], %s340
        // Predicated region
        $region57: #{tpu_custom_call.1} parent=55 // pred_check
          %p342 = pneg %p48
        $region58: #{tpu_custom_call.1} parent=55 // pred_check_branch
          %344 = sbr.rel (%p342) target = $region60
        $region59: #{tpu_custom_call.1} parent=55 // pred_region
          %346 = dma.done %s338, 2048
        $region60: #{tpu_custom_call.1} parent=55 // pred_fallthru
          _
        // Predicated region
        $region61: #{tpu_custom_call.1} parent=55 // pred_check
          %p347 = pneg %p90
        $region62: #{tpu_custom_call.1} parent=55 // pred_check_branch
          %349 = sbr.rel (%p347) target = $region64
        $region63: #{tpu_custom_call.1} parent=55 // pred_region
          %351 = dma.done [#allocation7], 1024
        $region64: #{tpu_custom_call.1} parent=55 // pred_fallthru
          _
        // Predicated region
        $region65: #{tpu_custom_call.1} parent=55 // pred_check
          %p352 = pneg %p111
        $region66: #{tpu_custom_call.1} parent=55 // pred_check_branch
          %354 = sbr.rel (%p352) target = $region68
        $region67: #{tpu_custom_call.1} parent=55 // pred_region
          %356 = dma.done [#allocation7], 256
        $region68: #{tpu_custom_call.1} parent=55 // pred_fallthru
          _
        %s357 = sand.u32 %s35, 1
        %s358 = scalar_lea.sflag [#allocation4], %s357
        %s359 = sand.u32 %s35, 1
        %s360 = smul.addr %s359, 128
        %s361 = scalar_lea.vmem [#allocation3], %s360
        %p362 = pneg %p48
        %p363 = pneg %p45
        %p364 = pneg %p69
        %p365 = pneg %p66
        %p366 = pneg %p90
        %p367 = pneg %p87
        %p368 = pneg %p111
        %p369 = pneg %p108
        %p370 = pneg %p132
        %p371 = pneg %p129
        %p372 = pneg %p153
        %p373 = pneg %p150
        %p374 = pneg %p174
        %p375 = pneg %p171
        %p376 = pneg %p195
        %p377 = pneg %p192
        %p378 = pneg %p216
        %p379 = pneg %p213
        %p380 = pneg %p242
        %p381 = pneg %p239
        %s382 = sand.u32 %s229, 1
        %s383 = scalar_lea.sflag [#allocation5], %s382
        %s384 = sand.u32 %s229, 1
        %s385 = smul.addr %s384, 128
        %s386 = scalar_lea.vmem [#allocation9], %s385
        %s387 = smul.u32 2, %s27
        %s388 = smul.u32 2, %s27
        %v390 = vlaneseq
        %v391 = vand.u32 %v390, 127
        %vm392 = vcmp.lt.s32.totalorder %v391, 32
        %v393 = vld [vmem:[%s341] sm:$0xff]
        %v394 = vld [vmem:[%s341 + $0x8] sm:$0xff]
        %v395 = vld [vmem:[%s341 + $0x10] sm:$0xff]
        %v396 = vld [vmem:[%s341 + $0x18] sm:$0xff]
        %v397 = vld [vmem:[%s341 + $0x20] sm:$0xff]
        %v398 = vld [vmem:[%s341 + $0x28] sm:$0xff]
        %v399 = vld [vmem:[%s341 + $0x30] sm:$0xff]
        %v400 = vld [vmem:[%s341 + $0x38] sm:$0xff]
        %v401 = vld [vmem:[%s341 + $0x40] sm:$0xff]
        %v402 = vld [vmem:[%s341 + $0x48] sm:$0xff]
        %v403 = vld [vmem:[%s341 + $0x50] sm:$0xff]
        %v404 = vld [vmem:[%s341 + $0x58] sm:$0xff]
        %v405 = vld [vmem:[%s341 + $0x60] sm:$0xff]
        %v406 = vld [vmem:[%s341 + $0x68] sm:$0xff]
        %v407 = vld [vmem:[%s341 + $0x70] sm:$0xff]
        %v408 = vld [vmem:[%s341 + $0x78] sm:$0xff]
        %v409 = vld [vmem:[%s1] sm:$0xff]
        %v410 = vld [vmem:[%s1 + $0x8] sm:$0xff]
        %v411 = vld [vmem:[%s1 + $0x10] sm:$0xff]
        %v412 = vld [vmem:[%s1 + $0x18] sm:$0xff]
        %v413 = vld [vmem:[%s1 + $0x20] sm:$0xff]
        %v414 = vld [vmem:[%s1 + $0x28] sm:$0xff]
        %v415 = vld [vmem:[%s1 + $0x30] sm:$0xff]
        %v416 = vld [vmem:[%s1 + $0x38] sm:$0xff]
        %v417 = vadd.f32 %v393, %v409
        %v418 = vadd.f32 %v394, %v410
        %v419 = vadd.f32 %v395, %v411
        %v420 = vadd.f32 %v396, %v412
        %v421 = vadd.f32 %v397, %v413
        %v422 = vadd.f32 %v398, %v414
        %v423 = vadd.f32 %v399, %v415
        %v424 = vadd.f32 %v400, %v416
        %v425 = vadd.f32 %v401, %v409
        %v426 = vadd.f32 %v402, %v410
        %v427 = vadd.f32 %v403, %v411
        %v428 = vadd.f32 %v404, %v412
        %v429 = vadd.f32 %v405, %v413
        %v430 = vadd.f32 %v406, %v414
        %v431 = vadd.f32 %v407, %v415
        %v432 = vadd.f32 %v408, %v416
        %v433 = vld [vmem:[%s4] sm:$0x1]
        %434 = vadd.xlane.f32.xlu0 %v417
        %v435 = vpop.xlane.xlu0 %434
        %436 = vadd.xlane.f32.xlu0 %v418
        %v437 = vpop.xlane.xlu0 %436
        %438 = vadd.xlane.f32.xlu0 %v419
        %v439 = vpop.xlane.xlu0 %438
        %440 = vadd.xlane.f32.xlu0 %v420
        %v441 = vpop.xlane.xlu0 %440
        %442 = vadd.xlane.f32.xlu0 %v421
        %v443 = vpop.xlane.xlu0 %442
        %444 = vadd.xlane.f32.xlu0 %v422
        %v445 = vpop.xlane.xlu0 %444
        %446 = vadd.xlane.f32.xlu0 %v423
        %v447 = vpop.xlane.xlu0 %446
        %448 = vadd.xlane.f32.xlu0 %v424
        %v449 = vpop.xlane.xlu0 %448
        %450 = vadd.xlane.f32.xlu0 %v425
        %v451 = vpop.xlane.xlu0 %450
        %452 = vadd.xlane.f32.xlu0 %v426
        %v453 = vpop.xlane.xlu0 %452
        %454 = vadd.xlane.f32.xlu0 %v427
        %v455 = vpop.xlane.xlu0 %454
        %456 = vadd.xlane.f32.xlu0 %v428
        %v457 = vpop.xlane.xlu0 %456
        %458 = vadd.xlane.f32.xlu0 %v429
        %v459 = vpop.xlane.xlu0 %458
        %460 = vadd.xlane.f32.xlu0 %v430
        %v461 = vpop.xlane.xlu0 %460
        %462 = vadd.xlane.f32.xlu0 %v431
        %v463 = vpop.xlane.xlu0 %462
        %464 = vadd.xlane.f32.xlu0 %v432
        %v465 = vpop.xlane.xlu0 %464
        %v466 = vmul.f32 %v435, 0.03125
        %v467 = vmul.f32 %v437, 0.03125
        %v468 = vmul.f32 %v439, 0.03125
        %v469 = vmul.f32 %v441, 0.03125
        %v470 = vmul.f32 %v443, 0.03125
        %v471 = vmul.f32 %v445, 0.03125
        %v472 = vmul.f32 %v447, 0.03125
        %v473 = vmul.f32 %v449, 0.03125
        %v474 = vmul.f32 %v451, 0.03125
        %v475 = vmul.f32 %v453, 0.03125
        %v476 = vmul.f32 %v455, 0.03125
        %v477 = vmul.f32 %v457, 0.03125
        %v478 = vmul.f32 %v459, 0.03125
        %v479 = vmul.f32 %v461, 0.03125
        %v480 = vmul.f32 %v463, 0.03125
        %v481 = vmul.f32 %v465, 0.03125
        %v482 = vsub.f32 %v417, %v466
        %v483 = vsub.f32 %v418, %v467
        %v484 = vsub.f32 %v419, %v468
        %v485 = vsub.f32 %v420, %v469
        %v486 = vsub.f32 %v421, %v470
        %v487 = vsub.f32 %v422, %v471
        %v488 = vsub.f32 %v423, %v472
        %v489 = vsub.f32 %v424, %v473
        %v490 = vsub.f32 %v425, %v474
        %v491 = vsub.f32 %v426, %v475
        %v492 = vsub.f32 %v427, %v476
        %v493 = vsub.f32 %v428, %v477
        %v494 = vsub.f32 %v429, %v478
        %v495 = vsub.f32 %v430, %v479
        %v496 = vsub.f32 %v431, %v480
        %v497 = vsub.f32 %v432, %v481
        %v498 = vsel %vm392, 1, 0
        %vm499 = vcmp.eq.s32.totalorder %v498, 1
        %v500 = vsel %vm499, %v482, 0.0
        %v501 = vsel %vm499, %v483, 0.0
        %v502 = vsel %vm499, %v484, 0.0
        %v503 = vsel %vm499, %v485, 0.0
        %v504 = vsel %vm499, %v486, 0.0
        %v505 = vsel %vm499, %v487, 0.0
        %v506 = vsel %vm499, %v488, 0.0
        %v507 = vsel %vm499, %v489, 0.0
        %v508 = vsel %vm499, %v490, 0.0
        %v509 = vsel %vm499, %v491, 0.0
        %v510 = vsel %vm499, %v492, 0.0
        %v511 = vsel %vm499, %v493, 0.0
        %v512 = vsel %vm499, %v494, 0.0
        %v513 = vsel %vm499, %v495, 0.0
        %v514 = vsel %vm499, %v496, 0.0
        %v515 = vsel %vm499, %v497, 0.0
        %v516 = vmul.f32 %v500, %v500
        %v517 = vmul.f32 %v501, %v501
        %v518 = vmul.f32 %v502, %v502
        %v519 = vmul.f32 %v503, %v503
        %v520 = vmul.f32 %v504, %v504
        %v521 = vmul.f32 %v505, %v505
        %v522 = vmul.f32 %v506, %v506
        %v523 = vmul.f32 %v507, %v507
        %v524 = vmul.f32 %v508, %v508
        %v525 = vmul.f32 %v509, %v509
        %v526 = vmul.f32 %v510, %v510
        %v527 = vmul.f32 %v511, %v511
        %v528 = vmul.f32 %v512, %v512
        %v529 = vmul.f32 %v513, %v513
        %v530 = vmul.f32 %v514, %v514
        %v531 = vmul.f32 %v515, %v515
        %532 = vadd.xlane.f32.xlu0 %v516
        %v533 = vpop.xlane.xlu0 %532
        %534 = vadd.xlane.f32.xlu0 %v517
        %v535 = vpop.xlane.xlu0 %534
        %536 = vadd.xlane.f32.xlu0 %v518
        %v537 = vpop.xlane.xlu0 %536
        %538 = vadd.xlane.f32.xlu0 %v519
        %v539 = vpop.xlane.xlu0 %538
        %540 = vadd.xlane.f32.xlu0 %v520
        %v541 = vpop.xlane.xlu0 %540
        %542 = vadd.xlane.f32.xlu0 %v521
        %v543 = vpop.xlane.xlu0 %542
        %544 = vadd.xlane.f32.xlu0 %v522
        %v545 = vpop.xlane.xlu0 %544
        %546 = vadd.xlane.f32.xlu0 %v523
        %v547 = vpop.xlane.xlu0 %546
        %548 = vadd.xlane.f32.xlu0 %v524
        %v549 = vpop.xlane.xlu0 %548
        %550 = vadd.xlane.f32.xlu0 %v525
        %v551 = vpop.xlane.xlu0 %550
        %552 = vadd.xlane.f32.xlu0 %v526
        %v553 = vpop.xlane.xlu0 %552
        %554 = vadd.xlane.f32.xlu0 %v527
        %v555 = vpop.xlane.xlu0 %554
        %556 = vadd.xlane.f32.xlu0 %v528
        %v557 = vpop.xlane.xlu0 %556
        %558 = vadd.xlane.f32.xlu0 %v529
        %v559 = vpop.xlane.xlu0 %558
        %560 = vadd.xlane.f32.xlu0 %v530
        %v561 = vpop.xlane.xlu0 %560
        %562 = vadd.xlane.f32.xlu0 %v531
        %v563 = vpop.xlane.xlu0 %562
        %v564 = vmul.f32 %v533, 0.03125
        %v565 = vmul.f32 %v535, 0.03125
        %v566 = vmul.f32 %v537, 0.03125
        %v567 = vmul.f32 %v539, 0.03125
        %v568 = vmul.f32 %v541, 0.03125
        %v569 = vmul.f32 %v543, 0.03125
        %v570 = vmul.f32 %v545, 0.03125
        %v571 = vmul.f32 %v547, 0.03125
        %v572 = vmul.f32 %v549, 0.03125
        %v573 = vmul.f32 %v551, 0.03125
        %v574 = vmul.f32 %v553, 0.03125
        %v575 = vmul.f32 %v555, 0.03125
        %v576 = vmul.f32 %v557, 0.03125
        %v577 = vmul.f32 %v559, 0.03125
        %v578 = vmul.f32 %v561, 0.03125
        %v579 = vmul.f32 %v563, 0.03125
        %v580 = vadd.f32 %v564, 1e-05
        %v581 = vadd.f32 %v565, 1e-05
        %v582 = vadd.f32 %v566, 1e-05
        %v583 = vadd.f32 %v567, 1e-05
        %v584 = vadd.f32 %v568, 1e-05
        %v585 = vadd.f32 %v569, 1e-05
        %v586 = vadd.f32 %v570, 1e-05
        %v587 = vadd.f32 %v571, 1e-05
        %v588 = vadd.f32 %v572, 1e-05
        %v589 = vadd.f32 %v573, 1e-05
        %v590 = vadd.f32 %v574, 1e-05
        %v591 = vadd.f32 %v575, 1e-05
        %v592 = vadd.f32 %v576, 1e-05
        %v593 = vadd.f32 %v577, 1e-05
        %v594 = vadd.f32 %v578, 1e-05
        %v595 = vadd.f32 %v579, 1e-05
        %v596 = vrsqrt.pop %v580
        %v597 = vmul.f32 %v596, %v580
        %v598 = vmul.f32 %v597, %v596
        %v599 = vmul.f32 0.5, %v598
        %v600 = vsub.f32 1.5, %v599
        %v601 = vmul.f32 %v596, %v600
        %vm602 = vweird.f32 %v580
        %vm603 = vweird.f32 %v596
        %vm604 = vmor %vm602, %vm603
        %v605 = vsel %vm604, %v596, %v601
        %v606 = vrsqrt.pop %v581
        %v607 = vmul.f32 %v606, %v581
        %v608 = vmul.f32 %v607, %v606
        %v609 = vmul.f32 0.5, %v608
        %v610 = vsub.f32 1.5, %v609
        %v611 = vmul.f32 %v606, %v610
        %vm612 = vweird.f32 %v581
        %vm613 = vweird.f32 %v606
        %vm614 = vmor %vm612, %vm613
        %v615 = vsel %vm614, %v606, %v611
        %v616 = vrsqrt.pop %v582
        %v617 = vmul.f32 %v616, %v582
        %v618 = vmul.f32 %v617, %v616
        %v619 = vmul.f32 0.5, %v618
        %v620 = vsub.f32 1.5, %v619
        %v621 = vmul.f32 %v616, %v620
        %vm622 = vweird.f32 %v582
        %vm623 = vweird.f32 %v616
        %vm624 = vmor %vm622, %vm623
        %v625 = vsel %vm624, %v616, %v621
        %v626 = vrsqrt.pop %v583
        %v627 = vmul.f32 %v626, %v583
        %v628 = vmul.f32 %v627, %v626
        %v629 = vmul.f32 0.5, %v628
        %v630 = vsub.f32 1.5, %v629
        %v631 = vmul.f32 %v626, %v630
        %vm632 = vweird.f32 %v583
        %vm633 = vweird.f32 %v626
        %vm634 = vmor %vm632, %vm633
        %v635 = vsel %vm634, %v626, %v631
        %v636 = vrsqrt.pop %v584
        %v637 = vmul.f32 %v636, %v584
        %v638 = vmul.f32 %v637, %v636
        %v639 = vmul.f32 0.5, %v638
        %v640 = vsub.f32 1.5, %v639
        %v641 = vmul.f32 %v636, %v640
        %vm642 = vweird.f32 %v584
        %vm643 = vweird.f32 %v636
        %vm644 = vmor %vm642, %vm643
        %v645 = vsel %vm644, %v636, %v641
        %v646 = vrsqrt.pop %v585
        %v647 = vmul.f32 %v646, %v585
        %v648 = vmul.f32 %v647, %v646
        %v649 = vmul.f32 0.5, %v648
        %v650 = vsub.f32 1.5, %v649
        %v651 = vmul.f32 %v646, %v650
        %vm652 = vweird.f32 %v585
        %vm653 = vweird.f32 %v646
        %vm654 = vmor %vm652, %vm653
        %v655 = vsel %vm654, %v646, %v651
        %v656 = vrsqrt.pop %v586
        %v657 = vmul.f32 %v656, %v586
        %v658 = vmul.f32 %v657, %v656
        %v659 = vmul.f32 0.5, %v658
        %v660 = vsub.f32 1.5, %v659
        %v661 = vmul.f32 %v656, %v660
        %vm662 = vweird.f32 %v586
        %vm663 = vweird.f32 %v656
        %vm664 = vmor %vm662, %vm663
        %v665 = vsel %vm664, %v656, %v661
        %v666 = vrsqrt.pop %v587
        %v667 = vmul.f32 %v666, %v587
        %v668 = vmul.f32 %v667, %v666
        %v669 = vmul.f32 0.5, %v668
        %v670 = vsub.f32 1.5, %v669
        %v671 = vmul.f32 %v666, %v670
        %vm672 = vweird.f32 %v587
        %vm673 = vweird.f32 %v666
        %vm674 = vmor %vm672, %vm673
        %v675 = vsel %vm674, %v666, %v671
        %v676 = vrsqrt.pop %v588
        %v677 = vmul.f32 %v676, %v588
        %v678 = vmul.f32 %v677, %v676
        %v679 = vmul.f32 0.5, %v678
        %v680 = vsub.f32 1.5, %v679
        %v681 = vmul.f32 %v676, %v680
        %vm682 = vweird.f32 %v588
        %vm683 = vweird.f32 %v676
        %vm684 = vmor %vm682, %vm683
        %v685 = vsel %vm684, %v676, %v681
        %v686 = vrsqrt.pop %v589
        %v687 = vmul.f32 %v686, %v589
        %v688 = vmul.f32 %v687, %v686
        %v689 = vmul.f32 0.5, %v688
        %v690 = vsub.f32 1.5, %v689
        %v691 = vmul.f32 %v686, %v690
        %vm692 = vweird.f32 %v589
        %vm693 = vweird.f32 %v686
        %vm694 = vmor %vm692, %vm693
        %v695 = vsel %vm694, %v686, %v691
        %v696 = vrsqrt.pop %v590
        %v697 = vmul.f32 %v696, %v590
        %v698 = vmul.f32 %v697, %v696
        %v699 = vmul.f32 0.5, %v698
        %v700 = vsub.f32 1.5, %v699
        %v701 = vmul.f32 %v696, %v700
        %vm702 = vweird.f32 %v590
        %vm703 = vweird.f32 %v696
        %vm704 = vmor %vm702, %vm703
        %v705 = vsel %vm704, %v696, %v701
        %v706 = vrsqrt.pop %v591
        %v707 = vmul.f32 %v706, %v591
        %v708 = vmul.f32 %v707, %v706
        %v709 = vmul.f32 0.5, %v708
        %v710 = vsub.f32 1.5, %v709
        %v711 = vmul.f32 %v706, %v710
        %vm712 = vweird.f32 %v591
        %vm713 = vweird.f32 %v706
        %vm714 = vmor %vm712, %vm713
        %v715 = vsel %vm714, %v706, %v711
        %v716 = vrsqrt.pop %v592
        %v717 = vmul.f32 %v716, %v592
        %v718 = vmul.f32 %v717, %v716
        %v719 = vmul.f32 0.5, %v718
        %v720 = vsub.f32 1.5, %v719
        %v721 = vmul.f32 %v716, %v720
        %vm722 = vweird.f32 %v592
        %vm723 = vweird.f32 %v716
        %vm724 = vmor %vm722, %vm723
        %v725 = vsel %vm724, %v716, %v721
        %v726 = vrsqrt.pop %v593
        %v727 = vmul.f32 %v726, %v593
        %v728 = vmul.f32 %v727, %v726
        %v729 = vmul.f32 0.5, %v728
        %v730 = vsub.f32 1.5, %v729
        %v731 = vmul.f32 %v726, %v730
        %vm732 = vweird.f32 %v593
        %vm733 = vweird.f32 %v726
        %vm734 = vmor %vm732, %vm733
        %v735 = vsel %vm734, %v726, %v731
        %v736 = vrsqrt.pop %v594
        %v737 = vmul.f32 %v736, %v594
        %v738 = vmul.f32 %v737, %v736
        %v739 = vmul.f32 0.5, %v738
        %v740 = vsub.f32 1.5, %v739
        %v741 = vmul.f32 %v736, %v740
        %vm742 = vweird.f32 %v594
        %vm743 = vweird.f32 %v736
        %vm744 = vmor %vm742, %vm743
        %v745 = vsel %vm744, %v736, %v741
        %v746 = vrsqrt.pop %v595
        %v747 = vmul.f32 %v746, %v595
        %v748 = vmul.f32 %v747, %v746
        %v749 = vmul.f32 0.5, %v748
        %v750 = vsub.f32 1.5, %v749
        %v751 = vmul.f32 %v746, %v750
        %vm752 = vweird.f32 %v595
        %vm753 = vweird.f32 %v746
        %vm754 = vmor %vm752, %vm753
        %v755 = vsel %vm754, %v746, %v751
        %v756 = vmul.f32 %v500, %v605
        %v757 = vmul.f32 %v501, %v615
        %v758 = vmul.f32 %v502, %v625
        %v759 = vmul.f32 %v503, %v635
        %v760 = vmul.f32 %v504, %v645
        %v761 = vmul.f32 %v505, %v655
        %v762 = vmul.f32 %v506, %v665
        %v763 = vmul.f32 %v507, %v675
        %v764 = vmul.f32 %v508, %v685
        %v765 = vmul.f32 %v509, %v695
        %v766 = vmul.f32 %v510, %v705
        %v767 = vmul.f32 %v511, %v715
        %v768 = vmul.f32 %v512, %v725
        %v769 = vmul.f32 %v513, %v735
        %v770 = vmul.f32 %v514, %v745
        %v771 = vmul.f32 %v515, %v755
        %v773 = vperm.slane %v433, 0
        %v775 = vmul.f32 %v756, %v773
        %v776 = vmul.f32 %v757, %v773
        %v777 = vmul.f32 %v758, %v773
        %v778 = vmul.f32 %v759, %v773
        %v779 = vmul.f32 %v760, %v773
        %v780 = vmul.f32 %v761, %v773
        %v781 = vmul.f32 %v762, %v773
        %v782 = vmul.f32 %v763, %v773
        %v783 = vmul.f32 %v764, %v773
        %v784 = vmul.f32 %v765, %v773
        %v785 = vmul.f32 %v766, %v773
        %v786 = vmul.f32 %v767, %v773
        %v787 = vmul.f32 %v768, %v773
        %v788 = vmul.f32 %v769, %v773
        %v789 = vmul.f32 %v770, %v773
        %v790 = vmul.f32 %v771, %v773
        %v791 = vpack.c.bf16 %v776, %v775
        %v792 = vpack.c.bf16 %v778, %v777
        %v793 = vpack.c.bf16 %v780, %v779
        %v794 = vpack.c.bf16 %v782, %v781
        %v795 = vpack.c.bf16 %v784, %v783
        %v796 = vpack.c.bf16 %v786, %v785
        %v797 = vpack.c.bf16 %v788, %v787
        %v798 = vpack.c.bf16 %v790, %v789
        %v799 = vld [vmem:[#allocation6] sm:$0xf]
        %v800 = vld [vmem:[#allocation6 + $0x4] sm:$0xf]
        %v801 = vld [vmem:[#allocation6 + $0x8] sm:$0xf]
        %v802 = vld [vmem:[#allocation6 + $0xc] sm:$0xf]
        %v803 = vld [vmem:[#allocation6 + $0x10] sm:$0xf]
        %v804 = vld [vmem:[#allocation6 + $0x14] sm:$0xf]
        %v805 = vld [vmem:[#allocation6 + $0x18] sm:$0xf]
        %v806 = vld [vmem:[#allocation6 + $0x1c] sm:$0xf]
        %v807 = vld [vmem:[#allocation6 + $0x20] sm:$0xf]
        %v808 = vld [vmem:[#allocation6 + $0x24] sm:$0xf]
        %v809 = vld [vmem:[#allocation6 + $0x28] sm:$0xf]
        %v810 = vld [vmem:[#allocation6 + $0x2c] sm:$0xf]
        %v811 = vld [vmem:[#allocation6 + $0x30] sm:$0xf]
        %v812 = vld [vmem:[#allocation6 + $0x34] sm:$0xf]
        %v813 = vld [vmem:[#allocation6 + $0x38] sm:$0xf]
        %v814 = vld [vmem:[#allocation6 + $0x3c] sm:$0xf]
        %v831 = vunpack.c.l.b16 %v799
        %v832 = vunpack.c.l.b16 %v800
        %v833 = vunpack.c.l.b16 %v801
        %v834 = vunpack.c.l.b16 %v802
        %v835 = vunpack.c.l.b16 %v803
        %v836 = vunpack.c.l.b16 %v804
        %v837 = vunpack.c.l.b16 %v805
        %v838 = vunpack.c.l.b16 %v806
        %v839 = vunpack.c.l.b16 %v807
        %v840 = vunpack.c.l.b16 %v808
        %v841 = vunpack.c.l.b16 %v809
        %v842 = vunpack.c.l.b16 %v810
        %v843 = vunpack.c.l.b16 %v811
        %v844 = vunpack.c.l.b16 %v812
        %v845 = vunpack.c.l.b16 %v813
        %v846 = vunpack.c.l.b16 %v814
        %v847 = vpack.c.b16 %v832, %v831
        %v848 = vpack.c.b16 %v834, %v833
        %v849 = vpack.c.b16 %v836, %v835
        %v850 = vpack.c.b16 %v838, %v837
        %v851 = vpack.c.b16 %v840, %v839
        %v852 = vpack.c.b16 %v842, %v841
        %v853 = vpack.c.b16 %v844, %v843
        %v854 = vpack.c.b16 %v846, %v845
        %863 = vmatpush.bf16.msra.mxu0 %v854
        %864 = vmatpush.bf16.msra.mxu0 %v853
        %865 = vmatpush.bf16.msra.mxu0 %v852
        %866 = vmatpush.bf16.msra.mxu0 %v851
        %867 = vmatpush.bf16.msra.mxu0 %v850
        %868 = vmatpush.bf16.msra.mxu0 %v849
        %869 = vmatpush.bf16.msra.mxu0 %v848
        %870 = vmatpush.bf16.msra.mxu0 %v847
        %871 = vmatmul.bf16.gmra.mxu0 %v791
        %v872 = vpop.f32.mrf.mxu0
        %v873 = vadd.f32 0.0, %v872
        %v874 = vpop.f32.mrf.mxu0
        %v875 = vadd.f32 0.0, %v874
        %876 = vmatmul.bf16.gmra.mxu0 %v792
        %v877 = vpop.f32.mrf.mxu0
        %v878 = vadd.f32 0.0, %v877
        %v879 = vpop.f32.mrf.mxu0
        %v880 = vadd.f32 0.0, %v879
        %881 = vmatmul.bf16.gmra.mxu0 %v793
        %v882 = vpop.f32.mrf.mxu0
        %v883 = vadd.f32 0.0, %v882
        %v884 = vpop.f32.mrf.mxu0
        %v885 = vadd.f32 0.0, %v884
        %886 = vmatmul.bf16.gmra.mxu0 %v794
        %v887 = vpop.f32.mrf.mxu0
        %v888 = vadd.f32 0.0, %v887
        %v889 = vpop.f32.mrf.mxu0
        %v890 = vadd.f32 0.0, %v889
        %891 = vmatmul.bf16.gmra.mxu0 %v795
        %v892 = vpop.f32.mrf.mxu0
        %v893 = vadd.f32 0.0, %v892
        %v894 = vpop.f32.mrf.mxu0
        %v895 = vadd.f32 0.0, %v894
        %896 = vmatmul.bf16.gmra.mxu0 %v796
        %v897 = vpop.f32.mrf.mxu0
        %v898 = vadd.f32 0.0, %v897
        %v899 = vpop.f32.mrf.mxu0
        %v900 = vadd.f32 0.0, %v899
        %901 = vmatmul.bf16.gmra.mxu0 %v797
        %v902 = vpop.f32.mrf.mxu0
        %v903 = vadd.f32 0.0, %v902
        %v904 = vpop.f32.mrf.mxu0
        %v905 = vadd.f32 0.0, %v904
        %906 = vmatmul.bf16.gmra.mxu0 %v798
        %v907 = vpop.f32.mrf.mxu0
        %v908 = vadd.f32 0.0, %v907
        %v909 = vpop.f32.mrf.mxu0
        %v910 = vadd.f32 0.0, %v909
        %911 = vdwg.mxu0
        %v912 = vpack.c.bf16 %v873, %v873
        %v913 = vpack.c.bf16 %v875, %v875
        %v914 = vpack.c.bf16 %v878, %v878
        %v915 = vpack.c.bf16 %v880, %v880
        %v916 = vpack.c.bf16 %v883, %v883
        %v917 = vpack.c.bf16 %v885, %v885
        %v918 = vpack.c.bf16 %v888, %v888
        %v919 = vpack.c.bf16 %v890, %v890
        %v920 = vpack.c.bf16 %v893, %v893
        %v921 = vpack.c.bf16 %v895, %v895
        %v922 = vpack.c.bf16 %v898, %v898
        %v923 = vpack.c.bf16 %v900, %v900
        %v924 = vpack.c.bf16 %v903, %v903
        %v925 = vpack.c.bf16 %v905, %v905
        %v926 = vpack.c.bf16 %v908, %v908
        %v927 = vpack.c.bf16 %v910, %v910
        %v936 = vunpack.c.l.b16 %v912
        %v937 = vunpack.c.l.b16 %v913
        %v938 = vunpack.c.l.b16 %v914
        %v939 = vunpack.c.l.b16 %v915
        %v940 = vunpack.c.l.b16 %v916
        %v941 = vunpack.c.l.b16 %v917
        %v942 = vunpack.c.l.b16 %v918
        %v943 = vunpack.c.l.b16 %v919
        %v944 = vpack.c.b16 %v937, %v936
        %v945 = vpack.c.b16 %v939, %v938
        %v946 = vpack.c.b16 %v941, %v940
        %v947 = vpack.c.b16 %v943, %v942
        %948 = vrot.lane.b32.xlu0 %v944, 96
        %v949 = vpop.permute.xlu0 %948
        %950 = vrot.lane.b32.xlu0 %v945, 96
        %v951 = vpop.permute.xlu0 %950
        %952 = vrot.lane.b32.xlu0 %v946, 96
        %v953 = vpop.permute.xlu0 %952
        %954 = vrot.lane.b32.xlu0 %v947, 96
        %v955 = vpop.permute.xlu0 %954
        %vm956 = vcmask 64512
        %v958 = vsel %vm956, %v944, 0
        %v961 = vsel %vm956, %v945, 0
        %v964 = vsel %vm956, %v946, 0
        %v967 = vsel %vm956, %v947, 0
        %v970 = vsel %vm956, %v949, 0
        %v973 = vsel %vm956, %v951, 0
        %v976 = vsel %vm956, %v953, 0
        %v979 = vsel %vm956, %v955, 0
        %981 = vmatpush.bf16.xpose.msra.mxu0 0
        %982 = vmatpush.bf16.xpose.msra.mxu0 0
        %983 = vmatpush.bf16.xpose.msra.mxu0 0
        %984 = vmatpush.bf16.xpose.msra.mxu0 0
        %985 = vmatpush.bf16.xpose.msra.mxu0 %v979
        %986 = vmatpush.bf16.xpose.msra.mxu0 %v976
        %987 = vmatpush.bf16.xpose.msra.mxu0 %v973
        %988 = vmatpush.bf16.xpose.msra.mxu0 %v970
        %989 = vmatmul.bf16.gmra.mxu0 %v958
        %v990 = vpop.f32.mrf.mxu0
        %v991 = vadd.f32 0.0, %v990
        %v992 = vpop.f32.mrf.mxu0
        %v993 = vadd.f32 0.0, %v992
        %994 = vmatmul.bf16.gmra.mxu0 %v961
        %v995 = vpop.f32.mrf.mxu0
        %v996 = vadd.f32 0.0, %v995
        %v997 = vpop.f32.mrf.mxu0
        %v998 = vadd.f32 0.0, %v997
        %999 = vmatmul.bf16.gmra.mxu0 %v964
        %v1000 = vpop.f32.mrf.mxu0
        %v1001 = vadd.f32 0.0, %v1000
        %v1002 = vpop.f32.mrf.mxu0
        %v1003 = vadd.f32 0.0, %v1002
        %1004 = vmatmul.bf16.gmra.mxu0 %v967
        %v1005 = vpop.f32.mrf.mxu0
        %v1006 = vadd.f32 0.0, %v1005
        %v1007 = vpop.f32.mrf.mxu0
        %v1008 = vadd.f32 0.0, %v1007
        %1009 = vdwg.mxu0
        %v1018 = vunpack.c.l.b16 %v920
        %v1019 = vunpack.c.l.b16 %v921
        %v1020 = vunpack.c.l.b16 %v922
        %v1021 = vunpack.c.l.b16 %v923
        %v1022 = vunpack.c.l.b16 %v924
        %v1023 = vunpack.c.l.b16 %v925
        %v1024 = vunpack.c.l.b16 %v926
        %v1025 = vunpack.c.l.b16 %v927
        %v1026 = vpack.c.b16 %v1019, %v1018
        %v1027 = vpack.c.b16 %v1021, %v1020
        %v1028 = vpack.c.b16 %v1023, %v1022
        %v1029 = vpack.c.b16 %v1025, %v1024
        %1030 = vrot.lane.b32.xlu0 %v1026, 96
        %v1031 = vpop.permute.xlu0 %1030
        %1032 = vrot.lane.b32.xlu0 %v1027, 96
        %v1033 = vpop.permute.xlu0 %1032
        %1034 = vrot.lane.b32.xlu0 %v1028, 96
        %v1035 = vpop.permute.xlu0 %1034
        %1036 = vrot.lane.b32.xlu0 %v1029, 96
        %v1037 = vpop.permute.xlu0 %1036
        %v1039 = vsel %vm956, %v1026, 0
        %v1042 = vsel %vm956, %v1027, 0
        %v1045 = vsel %vm956, %v1028, 0
        %v1048 = vsel %vm956, %v1029, 0
        %v1051 = vsel %vm956, %v1031, 0
        %v1054 = vsel %vm956, %v1033, 0
        %v1057 = vsel %vm956, %v1035, 0
        %v1060 = vsel %vm956, %v1037, 0
        %1062 = vmatpush.bf16.xpose.msra.mxu0 0
        %1063 = vmatpush.bf16.xpose.msra.mxu0 0
        %1064 = vmatpush.bf16.xpose.msra.mxu0 0
        %1065 = vmatpush.bf16.xpose.msra.mxu0 0
        %1066 = vmatpush.bf16.xpose.msra.mxu0 %v1060
        %1067 = vmatpush.bf16.xpose.msra.mxu0 %v1057
        %1068 = vmatpush.bf16.xpose.msra.mxu0 %v1054
        %1069 = vmatpush.bf16.xpose.msra.mxu0 %v1051
        %1070 = vmatmul.bf16.gmra.mxu0 %v1039
        %v1071 = vpop.f32.mrf.mxu0
        %v1072 = vadd.f32 0.0, %v1071
        %v1073 = vpop.f32.mrf.mxu0
        %v1074 = vadd.f32 0.0, %v1073
        %1075 = vmatmul.bf16.gmra.mxu0 %v1042
        %v1076 = vpop.f32.mrf.mxu0
        %v1077 = vadd.f32 0.0, %v1076
        %v1078 = vpop.f32.mrf.mxu0
        %v1079 = vadd.f32 0.0, %v1078
        %1080 = vmatmul.bf16.gmra.mxu0 %v1045
        %v1081 = vpop.f32.mrf.mxu0
        %v1082 = vadd.f32 0.0, %v1081
        %v1083 = vpop.f32.mrf.mxu0
        %v1084 = vadd.f32 0.0, %v1083
        %1085 = vmatmul.bf16.gmra.mxu0 %v1048
        %v1086 = vpop.f32.mrf.mxu0
        %v1087 = vadd.f32 0.0, %v1086
        %v1088 = vpop.f32.mrf.mxu0
        %v1089 = vadd.f32 0.0, %v1088
        %1090 = vdwg.mxu0
        %vm1091 = vcmask 523264
        %v1092 = vsel %vm1091, %v991, -inf
        %1093 = vmax.xlane.f32.xlu0 %v1092
        %v1094 = vpop.xlane.xlu0 %1093
        %v1095 = vsel %vm1091, %v993, -inf
        %1096 = vmax.xlane.f32.xlu0 %v1095
        %v1097 = vpop.xlane.xlu0 %1096
        %v1098 = vsel %vm1091, %v996, -inf
        %1099 = vmax.xlane.f32.xlu0 %v1098
        %v1100 = vpop.xlane.xlu0 %1099
        %v1101 = vsel %vm1091, %v998, -inf
        %1102 = vmax.xlane.f32.xlu0 %v1101
        %v1103 = vpop.xlane.xlu0 %1102
        %v1104 = vsel %vm1091, %v1001, -inf
        %1105 = vmax.xlane.f32.xlu0 %v1104
        %v1106 = vpop.xlane.xlu0 %1105
        %v1107 = vsel %vm1091, %v1003, -inf
        %1108 = vmax.xlane.f32.xlu0 %v1107
        %v1109 = vpop.xlane.xlu0 %1108
        %v1110 = vsel %vm1091, %v1006, -inf
        %1111 = vmax.xlane.f32.xlu0 %v1110
        %v1112 = vpop.xlane.xlu0 %1111
        %v1113 = vsel %vm1091, %v1008, -inf
        %1114 = vmax.xlane.f32.xlu0 %v1113
        %v1115 = vpop.xlane.xlu0 %1114
        %v1116 = vsel %vm1091, %v1072, -inf
        %1117 = vmax.xlane.f32.xlu0 %v1116
        %v1118 = vpop.xlane.xlu0 %1117
        %v1119 = vsel %vm1091, %v1074, -inf
        %1120 = vmax.xlane.f32.xlu0 %v1119
        %v1121 = vpop.xlane.xlu0 %1120
        %v1122 = vsel %vm1091, %v1077, -inf
        %1123 = vmax.xlane.f32.xlu0 %v1122
        %v1124 = vpop.xlane.xlu0 %1123
        %v1125 = vsel %vm1091, %v1079, -inf
        %1126 = vmax.xlane.f32.xlu0 %v1125
        %v1127 = vpop.xlane.xlu0 %1126
        %v1128 = vsel %vm1091, %v1082, -inf
        %1129 = vmax.xlane.f32.xlu0 %v1128
        %v1130 = vpop.xlane.xlu0 %1129
        %v1131 = vsel %vm1091, %v1084, -inf
        %1132 = vmax.xlane.f32.xlu0 %v1131
        %v1133 = vpop.xlane.xlu0 %1132
        %v1134 = vsel %vm1091, %v1087, -inf
        %1135 = vmax.xlane.f32.xlu0 %v1134
        %v1136 = vpop.xlane.xlu0 %1135
        %v1137 = vsel %vm1091, %v1089, -inf
        %1138 = vmax.xlane.f32.xlu0 %v1137
        %v1139 = vpop.xlane.xlu0 %1138
        %v1140 = vsub.f32 %v991, %v1094
        %v1141 = vsub.f32 %v993, %v1097
        %v1142 = vsub.f32 %v996, %v1100
        %v1143 = vsub.f32 %v998, %v1103
        %v1144 = vsub.f32 %v1001, %v1106
        %v1145 = vsub.f32 %v1003, %v1109
        %v1146 = vsub.f32 %v1006, %v1112
        %v1147 = vsub.f32 %v1008, %v1115
        %v1148 = vsub.f32 %v1072, %v1118
        %v1149 = vsub.f32 %v1074, %v1121
        %v1150 = vsub.f32 %v1077, %v1124
        %v1151 = vsub.f32 %v1079, %v1127
        %v1152 = vsub.f32 %v1082, %v1130
        %v1153 = vsub.f32 %v1084, %v1133
        %v1154 = vsub.f32 %v1087, %v1136
        %v1155 = vsub.f32 %v1089, %v1139
        %v1156 = vmul.f32 %v1140, 1.442695
        %v1157 = vpow.pop %v1156
        %v1158 = vmul.f32 %v1141, 1.442695
        %v1159 = vpow.pop %v1158
        %v1160 = vmul.f32 %v1142, 1.442695
        %v1161 = vpow.pop %v1160
        %v1162 = vmul.f32 %v1143, 1.442695
        %v1163 = vpow.pop %v1162
        %v1164 = vmul.f32 %v1144, 1.442695
        %v1165 = vpow.pop %v1164
        %v1166 = vmul.f32 %v1145, 1.442695
        %v1167 = vpow.pop %v1166
        %v1168 = vmul.f32 %v1146, 1.442695
        %v1169 = vpow.pop %v1168
        %v1170 = vmul.f32 %v1147, 1.442695
        %v1171 = vpow.pop %v1170
        %v1172 = vmul.f32 %v1148, 1.442695
        %v1173 = vpow.pop %v1172
        %v1174 = vmul.f32 %v1149, 1.442695
        %v1175 = vpow.pop %v1174
        %v1176 = vmul.f32 %v1150, 1.442695
        %v1177 = vpow.pop %v1176
        %v1178 = vmul.f32 %v1151, 1.442695
        %v1179 = vpow.pop %v1178
        %v1180 = vmul.f32 %v1152, 1.442695
        %v1181 = vpow.pop %v1180
        %v1182 = vmul.f32 %v1153, 1.442695
        %v1183 = vpow.pop %v1182
        %v1184 = vmul.f32 %v1154, 1.442695
        %v1185 = vpow.pop %v1184
        %v1186 = vmul.f32 %v1155, 1.442695
        %v1187 = vpow.pop %v1186
        %v1188 = vsel %vm1091, %v1157, 0.0
        %1189 = vadd.xlane.f32.xlu0 %v1188
        %v1190 = vpop.xlane.xlu0 %1189
        %v1191 = vsel %vm1091, %v1159, 0.0
        %1192 = vadd.xlane.f32.xlu0 %v1191
        %v1193 = vpop.xlane.xlu0 %1192
        %v1194 = vsel %vm1091, %v1161, 0.0
        %1195 = vadd.xlane.f32.xlu0 %v1194
        %v1196 = vpop.xlane.xlu0 %1195
        %v1197 = vsel %vm1091, %v1163, 0.0
        %1198 = vadd.xlane.f32.xlu0 %v1197
        %v1199 = vpop.xlane.xlu0 %1198
        %v1200 = vsel %vm1091, %v1165, 0.0
        %1201 = vadd.xlane.f32.xlu0 %v1200
        %v1202 = vpop.xlane.xlu0 %1201
        %v1203 = vsel %vm1091, %v1167, 0.0
        %1204 = vadd.xlane.f32.xlu0 %v1203
        %v1205 = vpop.xlane.xlu0 %1204
        %v1206 = vsel %vm1091, %v1169, 0.0
        %1207 = vadd.xlane.f32.xlu0 %v1206
        %v1208 = vpop.xlane.xlu0 %1207
        %v1209 = vsel %vm1091, %v1171, 0.0
        %1210 = vadd.xlane.f32.xlu0 %v1209
        %v1211 = vpop.xlane.xlu0 %1210
        %v1212 = vsel %vm1091, %v1173, 0.0
        %1213 = vadd.xlane.f32.xlu0 %v1212
        %v1214 = vpop.xlane.xlu0 %1213
        %v1215 = vsel %vm1091, %v1175, 0.0
        %1216 = vadd.xlane.f32.xlu0 %v1215
        %v1217 = vpop.xlane.xlu0 %1216
        %v1218 = vsel %vm1091, %v1177, 0.0
        %1219 = vadd.xlane.f32.xlu0 %v1218
        %v1220 = vpop.xlane.xlu0 %1219
        %v1221 = vsel %vm1091, %v1179, 0.0
        %1222 = vadd.xlane.f32.xlu0 %v1221
        %v1223 = vpop.xlane.xlu0 %1222
        %v1224 = vsel %vm1091, %v1181, 0.0
        %1225 = vadd.xlane.f32.xlu0 %v1224
        %v1226 = vpop.xlane.xlu0 %1225
        %v1227 = vsel %vm1091, %v1183, 0.0
        %1228 = vadd.xlane.f32.xlu0 %v1227
        %v1229 = vpop.xlane.xlu0 %1228
        %v1230 = vsel %vm1091, %v1185, 0.0
        %1231 = vadd.xlane.f32.xlu0 %v1230
        %v1232 = vpop.xlane.xlu0 %1231
        %v1233 = vsel %vm1091, %v1187, 0.0
        %1234 = vadd.xlane.f32.xlu0 %v1233
        %v1235 = vpop.xlane.xlu0 %1234
        %v1236 = vrcp.pop %v1190
        %v1237 = vrcp.pop %v1193
        %v1238 = vrcp.pop %v1196
        %v1239 = vrcp.pop %v1199
        %v1240 = vrcp.pop %v1202
        %v1241 = vrcp.pop %v1205
        %v1242 = vrcp.pop %v1208
        %v1243 = vrcp.pop %v1211
        %v1244 = vrcp.pop %v1214
        %v1245 = vrcp.pop %v1217
        %v1246 = vrcp.pop %v1220
        %v1247 = vrcp.pop %v1223
        %v1248 = vrcp.pop %v1226
        %v1249 = vrcp.pop %v1229
        %v1250 = vrcp.pop %v1232
        %v1251 = vrcp.pop %v1235
        %v1252 = vmul.f32 %v1157, %v1236
        %v1253 = vmul.f32 %v1159, %v1237
        %v1254 = vmul.f32 %v1161, %v1238
        %v1255 = vmul.f32 %v1163, %v1239
        %v1256 = vmul.f32 %v1165, %v1240
        %v1257 = vmul.f32 %v1167, %v1241
        %v1258 = vmul.f32 %v1169, %v1242
        %v1259 = vmul.f32 %v1171, %v1243
        %v1260 = vmul.f32 %v1173, %v1244
        %v1261 = vmul.f32 %v1175, %v1245
        %v1262 = vmul.f32 %v1177, %v1246
        %v1263 = vmul.f32 %v1179, %v1247
        %v1264 = vmul.f32 %v1181, %v1248
        %v1265 = vmul.f32 %v1183, %v1249
        %v1266 = vmul.f32 %v1185, %v1250
        %v1267 = vmul.f32 %v1187, %v1251
        %v1268 = vpack.c.bf16 %v1252, %v1252
        %v1269 = vpack.c.bf16 %v1253, %v1253
        %v1270 = vpack.c.bf16 %v1254, %v1254
        %v1271 = vpack.c.bf16 %v1255, %v1255
        %v1272 = vpack.c.bf16 %v1256, %v1256
        %v1273 = vpack.c.bf16 %v1257, %v1257
        %v1274 = vpack.c.bf16 %v1258, %v1258
        %v1275 = vpack.c.bf16 %v1259, %v1259
        %v1276 = vpack.c.bf16 %v1260, %v1260
        %v1277 = vpack.c.bf16 %v1261, %v1261
        %v1278 = vpack.c.bf16 %v1262, %v1262
        %v1279 = vpack.c.bf16 %v1263, %v1263
        %v1280 = vpack.c.bf16 %v1264, %v1264
        %v1281 = vpack.c.bf16 %v1265, %v1265
        %v1282 = vpack.c.bf16 %v1266, %v1266
        %v1283 = vpack.c.bf16 %v1267, %v1267
        %v1292 = vunpack.c.l.b16 %v1268
        %v1293 = vunpack.c.l.b16 %v1269
        %v1294 = vunpack.c.l.b16 %v1270
        %v1295 = vunpack.c.l.b16 %v1271
        %v1296 = vunpack.c.l.b16 %v1272
        %v1297 = vunpack.c.l.b16 %v1273
        %v1298 = vunpack.c.l.b16 %v1274
        %v1299 = vunpack.c.l.b16 %v1275
        %v1300 = vpack.c.b16 %v1293, %v1292
        %v1301 = vpack.c.b16 %v1295, %v1294
        %v1302 = vpack.c.b16 %v1297, %v1296
        %v1303 = vpack.c.b16 %v1299, %v1298
        %1304 = vrot.lane.b32.xlu0 %v944, 64
        %v1305 = vpop.permute.xlu0 %1304
        %1306 = vrot.lane.b32.xlu0 %v945, 64
        %v1307 = vpop.permute.xlu0 %1306
        %1308 = vrot.lane.b32.xlu0 %v946, 64
        %v1309 = vpop.permute.xlu0 %1308
        %1310 = vrot.lane.b32.xlu0 %v947, 64
        %v1311 = vpop.permute.xlu0 %1310
        %v1317 = vsel %vm1091, %v1300, 0
        %v1320 = vsel %vm1091, %v1301, 0
        %v1323 = vsel %vm1091, %v1302, 0
        %v1326 = vsel %vm1091, %v1303, 0
        %1328 = vmatpush.bf16.msra.mxu0 0
        %1329 = vmatpush.bf16.msra.mxu0 0
        %1330 = vmatpush.bf16.msra.mxu0 0
        %1331 = vmatpush.bf16.msra.mxu0 0
        %1332 = vmatpush.bf16.msra.mxu0 %v1311
        %1333 = vmatpush.bf16.msra.mxu0 %v1309
        %1334 = vmatpush.bf16.msra.mxu0 %v1307
        %1335 = vmatpush.bf16.msra.mxu0 %v1305
        %1336 = vmatmul.bf16.gmra.mxu0 %v1317
        %v1337 = vpop.f32.mrf.mxu0
        %v1338 = vadd.f32 0.0, %v1337
        %v1339 = vpop.f32.mrf.mxu0
        %v1340 = vadd.f32 0.0, %v1339
        %1341 = vmatmul.bf16.gmra.mxu0 %v1320
        %v1342 = vpop.f32.mrf.mxu0
        %v1343 = vadd.f32 0.0, %v1342
        %v1344 = vpop.f32.mrf.mxu0
        %v1345 = vadd.f32 0.0, %v1344
        %1346 = vmatmul.bf16.gmra.mxu0 %v1323
        %v1347 = vpop.f32.mrf.mxu0
        %v1348 = vadd.f32 0.0, %v1347
        %v1349 = vpop.f32.mrf.mxu0
        %v1350 = vadd.f32 0.0, %v1349
        %1351 = vmatmul.bf16.gmra.mxu0 %v1326
        %v1352 = vpop.f32.mrf.mxu0
        %v1353 = vadd.f32 0.0, %v1352
        %v1354 = vpop.f32.mrf.mxu0
        %v1355 = vadd.f32 0.0, %v1354
        %1356 = vdwg.mxu0
        %v1365 = vunpack.c.l.b16 %v1276
        %v1366 = vunpack.c.l.b16 %v1277
        %v1367 = vunpack.c.l.b16 %v1278
        %v1368 = vunpack.c.l.b16 %v1279
        %v1369 = vunpack.c.l.b16 %v1280
        %v1370 = vunpack.c.l.b16 %v1281
        %v1371 = vunpack.c.l.b16 %v1282
        %v1372 = vunpack.c.l.b16 %v1283
        %v1373 = vpack.c.b16 %v1366, %v1365
        %v1374 = vpack.c.b16 %v1368, %v1367
        %v1375 = vpack.c.b16 %v1370, %v1369
        %v1376 = vpack.c.b16 %v1372, %v1371
        %1377 = vrot.lane.b32.xlu0 %v1026, 64
        %v1378 = vpop.permute.xlu0 %1377
        %1379 = vrot.lane.b32.xlu0 %v1027, 64
        %v1380 = vpop.permute.xlu0 %1379
        %1381 = vrot.lane.b32.xlu0 %v1028, 64
        %v1382 = vpop.permute.xlu0 %1381
        %1383 = vrot.lane.b32.xlu0 %v1029, 64
        %v1384 = vpop.permute.xlu0 %1383
        %v1390 = vsel %vm1091, %v1373, 0
        %v1393 = vsel %vm1091, %v1374, 0
        %v1396 = vsel %vm1091, %v1375, 0
        %v1399 = vsel %vm1091, %v1376, 0
        %1401 = vmatpush.bf16.msra.mxu0 0
        %1402 = vmatpush.bf16.msra.mxu0 0
        %1403 = vmatpush.bf16.msra.mxu0 0
        %1404 = vmatpush.bf16.msra.mxu0 0
        %1405 = vmatpush.bf16.msra.mxu0 %v1384
        %1406 = vmatpush.bf16.msra.mxu0 %v1382
        %1407 = vmatpush.bf16.msra.mxu0 %v1380
        %1408 = vmatpush.bf16.msra.mxu0 %v1378
        %1409 = vmatmul.bf16.gmra.mxu0 %v1390
        %v1410 = vpop.f32.mrf.mxu0
        %v1411 = vadd.f32 0.0, %v1410
        %v1412 = vpop.f32.mrf.mxu0
        %v1413 = vadd.f32 0.0, %v1412
        %1414 = vmatmul.bf16.gmra.mxu0 %v1393
        %v1415 = vpop.f32.mrf.mxu0
        %v1416 = vadd.f32 0.0, %v1415
        %v1417 = vpop.f32.mrf.mxu0
        %v1418 = vadd.f32 0.0, %v1417
        %1419 = vmatmul.bf16.gmra.mxu0 %v1396
        %v1420 = vpop.f32.mrf.mxu0
        %v1421 = vadd.f32 0.0, %v1420
        %v1422 = vpop.f32.mrf.mxu0
        %v1423 = vadd.f32 0.0, %v1422
        %1424 = vmatmul.bf16.gmra.mxu0 %v1399
        %v1425 = vpop.f32.mrf.mxu0
        %v1426 = vadd.f32 0.0, %v1425
        %v1427 = vpop.f32.mrf.mxu0
        %v1428 = vadd.f32 0.0, %v1427
        %1429 = vdwg.mxu0
        %1430 = vst.msk [vmem:[#allocation2] sm:$0xff] %vm956, %v1338
        %1431 = vst.msk [vmem:[#allocation2 + $0x8] sm:$0xff] %vm956, %v1340
        %1432 = vst.msk [vmem:[#allocation2 + $0x10] sm:$0xff] %vm956, %v1343
        %1433 = vst.msk [vmem:[#allocation2 + $0x18] sm:$0xff] %vm956, %v1345
        %1434 = vst.msk [vmem:[#allocation2 + $0x20] sm:$0xff] %vm956, %v1348
        %1435 = vst.msk [vmem:[#allocation2 + $0x28] sm:$0xff] %vm956, %v1350
        %1436 = vst.msk [vmem:[#allocation2 + $0x30] sm:$0xff] %vm956, %v1353
        %1437 = vst.msk [vmem:[#allocation2 + $0x38] sm:$0xff] %vm956, %v1355
        %1438 = vst.msk [vmem:[#allocation2 + $0x40] sm:$0xff] %vm956, %v1411
        %1439 = vst.msk [vmem:[#allocation2 + $0x48] sm:$0xff] %vm956, %v1413
        %1440 = vst.msk [vmem:[#allocation2 + $0x50] sm:$0xff] %vm956, %v1416
        %1441 = vst.msk [vmem:[#allocation2 + $0x58] sm:$0xff] %vm956, %v1418
        %1442 = vst.msk [vmem:[#allocation2 + $0x60] sm:$0xff] %vm956, %v1421
        %1443 = vst.msk [vmem:[#allocation2 + $0x68] sm:$0xff] %vm956, %v1423
        %1444 = vst.msk [vmem:[#allocation2 + $0x70] sm:$0xff] %vm956, %v1426
        %1445 = vst.msk [vmem:[#allocation2 + $0x78] sm:$0xff] %vm956, %v1428
        %1446 = vrot.lane.b32.xlu0 %v944, 120
        %v1447 = vpop.permute.xlu0 %1446
        %1448 = vrot.lane.b32.xlu0 %v945, 120
        %v1449 = vpop.permute.xlu0 %1448
        %1450 = vrot.lane.b32.xlu0 %v946, 120
        %v1451 = vpop.permute.xlu0 %1450
        %1452 = vrot.lane.b32.xlu0 %v947, 120
        %v1453 = vpop.permute.xlu0 %1452
        %1454 = vrot.lane.b32.xlu0 %v944, 88
        %v1455 = vpop.permute.xlu0 %1454
        %1456 = vrot.lane.b32.xlu0 %v945, 88
        %v1457 = vpop.permute.xlu0 %1456
        %1458 = vrot.lane.b32.xlu0 %v946, 88
        %v1459 = vpop.permute.xlu0 %1458
        %1460 = vrot.lane.b32.xlu0 %v947, 88
        %v1461 = vpop.permute.xlu0 %1460
        %v1463 = vsel %vm956, %v1447, 0
        %v1466 = vsel %vm956, %v1449, 0
        %v1469 = vsel %vm956, %v1451, 0
        %v1472 = vsel %vm956, %v1453, 0
        %v1475 = vsel %vm956, %v1455, 0
        %v1478 = vsel %vm956, %v1457, 0
        %v1481 = vsel %vm956, %v1459, 0
        %v1484 = vsel %vm956, %v1461, 0
        %1486 = vmatpush.bf16.xpose.msra.mxu0 0
        %1487 = vmatpush.bf16.xpose.msra.mxu0 0
        %1488 = vmatpush.bf16.xpose.msra.mxu0 0
        %1489 = vmatpush.bf16.xpose.msra.mxu0 0
        %1490 = vmatpush.bf16.xpose.msra.mxu0 %v1484
        %1491 = vmatpush.bf16.xpose.msra.mxu0 %v1481
        %1492 = vmatpush.bf16.xpose.msra.mxu0 %v1478
        %1493 = vmatpush.bf16.xpose.msra.mxu0 %v1475
        %1494 = vmatmul.bf16.gmra.mxu0 %v1463
        %v1495 = vpop.f32.mrf.mxu0
        %v1496 = vadd.f32 0.0, %v1495
        %v1497 = vpop.f32.mrf.mxu0
        %v1498 = vadd.f32 0.0, %v1497
        %1499 = vmatmul.bf16.gmra.mxu0 %v1466
        %v1500 = vpop.f32.mrf.mxu0
        %v1501 = vadd.f32 0.0, %v1500
        %v1502 = vpop.f32.mrf.mxu0
        %v1503 = vadd.f32 0.0, %v1502
        %1504 = vmatmul.bf16.gmra.mxu0 %v1469
        %v1505 = vpop.f32.mrf.mxu0
        %v1506 = vadd.f32 0.0, %v1505
        %v1507 = vpop.f32.mrf.mxu0
        %v1508 = vadd.f32 0.0, %v1507
        %1509 = vmatmul.bf16.gmra.mxu0 %v1472
        %v1510 = vpop.f32.mrf.mxu0
        %v1511 = vadd.f32 0.0, %v1510
        %v1512 = vpop.f32.mrf.mxu0
        %v1513 = vadd.f32 0.0, %v1512
        %1514 = vdwg.mxu0
        %1515 = vrot.lane.b32.xlu0 %v1026, 120
        %v1516 = vpop.permute.xlu0 %1515
        %1517 = vrot.lane.b32.xlu0 %v1027, 120
        %v1518 = vpop.permute.xlu0 %1517
        %1519 = vrot.lane.b32.xlu0 %v1028, 120
        %v1520 = vpop.permute.xlu0 %1519
        %1521 = vrot.lane.b32.xlu0 %v1029, 120
        %v1522 = vpop.permute.xlu0 %1521
        %1523 = vrot.lane.b32.xlu0 %v1026, 88
        %v1524 = vpop.permute.xlu0 %1523
        %1525 = vrot.lane.b32.xlu0 %v1027, 88
        %v1526 = vpop.permute.xlu0 %1525
        %1527 = vrot.lane.b32.xlu0 %v1028, 88
        %v1528 = vpop.permute.xlu0 %1527
        %1529 = vrot.lane.b32.xlu0 %v1029, 88
        %v1530 = vpop.permute.xlu0 %1529
        %v1532 = vsel %vm956, %v1516, 0
        %v1535 = vsel %vm956, %v1518, 0
        %v1538 = vsel %vm956, %v1520, 0
        %v1541 = vsel %vm956, %v1522, 0
        %v1544 = vsel %vm956, %v1524, 0
        %v1547 = vsel %vm956, %v1526, 0
        %v1550 = vsel %vm956, %v1528, 0
        %v1553 = vsel %vm956, %v1530, 0
        %1555 = vmatpush.bf16.xpose.msra.mxu0 0
        %1556 = vmatpush.bf16.xpose.msra.mxu0 0
        %1557 = vmatpush.bf16.xpose.msra.mxu0 0
        %1558 = vmatpush.bf16.xpose.msra.mxu0 0
        %1559 = vmatpush.bf16.xpose.msra.mxu0 %v1553
        %1560 = vmatpush.bf16.xpose.msra.mxu0 %v1550
        %1561 = vmatpush.bf16.xpose.msra.mxu0 %v1547
        %1562 = vmatpush.bf16.xpose.msra.mxu0 %v1544
        %1563 = vmatmul.bf16.gmra.mxu0 %v1532
        %v1564 = vpop.f32.mrf.mxu0
        %v1565 = vadd.f32 0.0, %v1564
        %v1566 = vpop.f32.mrf.mxu0
        %v1567 = vadd.f32 0.0, %v1566
        %1568 = vmatmul.bf16.gmra.mxu0 %v1535
        %v1569 = vpop.f32.mrf.mxu0
        %v1570 = vadd.f32 0.0, %v1569
        %v1571 = vpop.f32.mrf.mxu0
        %v1572 = vadd.f32 0.0, %v1571
        %1573 = vmatmul.bf16.gmra.mxu0 %v1538
        %v1574 = vpop.f32.mrf.mxu0
        %v1575 = vadd.f32 0.0, %v1574
        %v1576 = vpop.f32.mrf.mxu0
        %v1577 = vadd.f32 0.0, %v1576
        %1578 = vmatmul.bf16.gmra.mxu0 %v1541
        %v1579 = vpop.f32.mrf.mxu0
        %v1580 = vadd.f32 0.0, %v1579
        %v1581 = vpop.f32.mrf.mxu0
        %v1582 = vadd.f32 0.0, %v1581
        %1583 = vdwg.mxu0
        %v1584 = vsel %vm1091, %v1496, -inf
        %1585 = vmax.xlane.f32.xlu0 %v1584
        %v1586 = vpop.xlane.xlu0 %1585
        %v1587 = vsel %vm1091, %v1498, -inf
        %1588 = vmax.xlane.f32.xlu0 %v1587
        %v1589 = vpop.xlane.xlu0 %1588
        %v1590 = vsel %vm1091, %v1501, -inf
        %1591 = vmax.xlane.f32.xlu0 %v1590
        %v1592 = vpop.xlane.xlu0 %1591
        %v1593 = vsel %vm1091, %v1503, -inf
        %1594 = vmax.xlane.f32.xlu0 %v1593
        %v1595 = vpop.xlane.xlu0 %1594
        %v1596 = vsel %vm1091, %v1506, -inf
        %1597 = vmax.xlane.f32.xlu0 %v1596
        %v1598 = vpop.xlane.xlu0 %1597
        %v1599 = vsel %vm1091, %v1508, -inf
        %1600 = vmax.xlane.f32.xlu0 %v1599
        %v1601 = vpop.xlane.xlu0 %1600
        %v1602 = vsel %vm1091, %v1511, -inf
        %1603 = vmax.xlane.f32.xlu0 %v1602
        %v1604 = vpop.xlane.xlu0 %1603
        %v1605 = vsel %vm1091, %v1513, -inf
        %1606 = vmax.xlane.f32.xlu0 %v1605
        %v1607 = vpop.xlane.xlu0 %1606
        %v1608 = vsel %vm1091, %v1565, -inf
        %1609 = vmax.xlane.f32.xlu0 %v1608
        %v1610 = vpop.xlane.xlu0 %1609
        %v1611 = vsel %vm1091, %v1567, -inf
        %1612 = vmax.xlane.f32.xlu0 %v1611
        %v1613 = vpop.xlane.xlu0 %1612
        %v1614 = vsel %vm1091, %v1570, -inf
        %1615 = vmax.xlane.f32.xlu0 %v1614
        %v1616 = vpop.xlane.xlu0 %1615
        %v1617 = vsel %vm1091, %v1572, -inf
        %1618 = vmax.xlane.f32.xlu0 %v1617
        %v1619 = vpop.xlane.xlu0 %1618
        %v1620 = vsel %vm1091, %v1575, -inf
        %1621 = vmax.xlane.f32.xlu0 %v1620
        %v1622 = vpop.xlane.xlu0 %1621
        %v1623 = vsel %vm1091, %v1577, -inf
        %1624 = vmax.xlane.f32.xlu0 %v1623
        %v1625 = vpop.xlane.xlu0 %1624
        %v1626 = vsel %vm1091, %v1580, -inf
        %1627 = vmax.xlane.f32.xlu0 %v1626
        %v1628 = vpop.xlane.xlu0 %1627
        %v1629 = vsel %vm1091, %v1582, -inf
        %1630 = vmax.xlane.f32.xlu0 %v1629
        %v1631 = vpop.xlane.xlu0 %1630
        %v1632 = vsub.f32 %v1496, %v1586
        %v1633 = vsub.f32 %v1498, %v1589
        %v1634 = vsub.f32 %v1501, %v1592
        %v1635 = vsub.f32 %v1503, %v1595
        %v1636 = vsub.f32 %v1506, %v1598
        %v1637 = vsub.f32 %v1508, %v1601
        %v1638 = vsub.f32 %v1511, %v1604
        %v1639 = vsub.f32 %v1513, %v1607
        %v1640 = vsub.f32 %v1565, %v1610
        %v1641 = vsub.f32 %v1567, %v1613
        %v1642 = vsub.f32 %v1570, %v1616
        %v1643 = vsub.f32 %v1572, %v1619
        %v1644 = vsub.f32 %v1575, %v1622
        %v1645 = vsub.f32 %v1577, %v1625
        %v1646 = vsub.f32 %v1580, %v1628
        %v1647 = vsub.f32 %v1582, %v1631
        %v1648 = vmul.f32 %v1632, 1.442695
        %v1649 = vpow.pop %v1648
        %v1650 = vmul.f32 %v1633, 1.442695
        %v1651 = vpow.pop %v1650
        %v1652 = vmul.f32 %v1634, 1.442695
        %v1653 = vpow.pop %v1652
        %v1654 = vmul.f32 %v1635, 1.442695
        %v1655 = vpow.pop %v1654
        %v1656 = vmul.f32 %v1636, 1.442695
        %v1657 = vpow.pop %v1656
        %v1658 = vmul.f32 %v1637, 1.442695
        %v1659 = vpow.pop %v1658
        %v1660 = vmul.f32 %v1638, 1.442695
        %v1661 = vpow.pop %v1660
        %v1662 = vmul.f32 %v1639, 1.442695
        %v1663 = vpow.pop %v1662
        %v1664 = vmul.f32 %v1640, 1.442695
        %v1665 = vpow.pop %v1664
        %v1666 = vmul.f32 %v1641, 1.442695
        %v1667 = vpow.pop %v1666
        %v1668 = vmul.f32 %v1642, 1.442695
        %v1669 = vpow.pop %v1668
        %v1670 = vmul.f32 %v1643, 1.442695
        %v1671 = vpow.pop %v1670
        %v1672 = vmul.f32 %v1644, 1.442695
        %v1673 = vpow.pop %v1672
        %v1674 = vmul.f32 %v1645, 1.442695
        %v1675 = vpow.pop %v1674
        %v1676 = vmul.f32 %v1646, 1.442695
        %v1677 = vpow.pop %v1676
        %v1678 = vmul.f32 %v1647, 1.442695
        %v1679 = vpow.pop %v1678
        %v1680 = vsel %vm1091, %v1649, 0.0
        %1681 = vadd.xlane.f32.xlu0 %v1680
        %v1682 = vpop.xlane.xlu0 %1681
        %v1683 = vsel %vm1091, %v1651, 0.0
        %1684 = vadd.xlane.f32.xlu0 %v1683
        %v1685 = vpop.xlane.xlu0 %1684
        %v1686 = vsel %vm1091, %v1653, 0.0
        %1687 = vadd.xlane.f32.xlu0 %v1686
        %v1688 = vpop.xlane.xlu0 %1687
        %v1689 = vsel %vm1091, %v1655, 0.0
        %1690 = vadd.xlane.f32.xlu0 %v1689
        %v1691 = vpop.xlane.xlu0 %1690
        %v1692 = vsel %vm1091, %v1657, 0.0
        %1693 = vadd.xlane.f32.xlu0 %v1692
        %v1694 = vpop.xlane.xlu0 %1693
        %v1695 = vsel %vm1091, %v1659, 0.0
        %1696 = vadd.xlane.f32.xlu0 %v1695
        %v1697 = vpop.xlane.xlu0 %1696
        %v1698 = vsel %vm1091, %v1661, 0.0
        %1699 = vadd.xlane.f32.xlu0 %v1698
        %v1700 = vpop.xlane.xlu0 %1699
        %v1701 = vsel %vm1091, %v1663, 0.0
        %1702 = vadd.xlane.f32.xlu0 %v1701
        %v1703 = vpop.xlane.xlu0 %1702
        %v1704 = vsel %vm1091, %v1665, 0.0
        %1705 = vadd.xlane.f32.xlu0 %v1704
        %v1706 = vpop.xlane.xlu0 %1705
        %v1707 = vsel %vm1091, %v1667, 0.0
        %1708 = vadd.xlane.f32.xlu0 %v1707
        %v1709 = vpop.xlane.xlu0 %1708
        %v1710 = vsel %vm1091, %v1669, 0.0
        %1711 = vadd.xlane.f32.xlu0 %v1710
        %v1712 = vpop.xlane.xlu0 %1711
        %v1713 = vsel %vm1091, %v1671, 0.0
        %1714 = vadd.xlane.f32.xlu0 %v1713
        %v1715 = vpop.xlane.xlu0 %1714
        %v1716 = vsel %vm1091, %v1673, 0.0
        %1717 = vadd.xlane.f32.xlu0 %v1716
        %v1718 = vpop.xlane.xlu0 %1717
        %v1719 = vsel %vm1091, %v1675, 0.0
        %1720 = vadd.xlane.f32.xlu0 %v1719
        %v1721 = vpop.xlane.xlu0 %1720
        %v1722 = vsel %vm1091, %v1677, 0.0
        %1723 = vadd.xlane.f32.xlu0 %v1722
        %v1724 = vpop.xlane.xlu0 %1723
        %v1725 = vsel %vm1091, %v1679, 0.0
        %1726 = vadd.xlane.f32.xlu0 %v1725
        %v1727 = vpop.xlane.xlu0 %1726
        %v1728 = vrcp.pop %v1682
        %v1729 = vrcp.pop %v1685
        %v1730 = vrcp.pop %v1688
        %v1731 = vrcp.pop %v1691
        %v1732 = vrcp.pop %v1694
        %v1733 = vrcp.pop %v1697
        %v1734 = vrcp.pop %v1700
        %v1735 = vrcp.pop %v1703
        %v1736 = vrcp.pop %v1706
        %v1737 = vrcp.pop %v1709
        %v1738 = vrcp.pop %v1712
        %v1739 = vrcp.pop %v1715
        %v1740 = vrcp.pop %v1718
        %v1741 = vrcp.pop %v1721
        %v1742 = vrcp.pop %v1724
        %v1743 = vrcp.pop %v1727
        %v1744 = vmul.f32 %v1649, %v1728
        %v1745 = vmul.f32 %v1651, %v1729
        %v1746 = vmul.f32 %v1653, %v1730
        %v1747 = vmul.f32 %v1655, %v1731
        %v1748 = vmul.f32 %v1657, %v1732
        %v1749 = vmul.f32 %v1659, %v1733
        %v1750 = vmul.f32 %v1661, %v1734
        %v1751 = vmul.f32 %v1663, %v1735
        %v1752 = vmul.f32 %v1665, %v1736
        %v1753 = vmul.f32 %v1667, %v1737
        %v1754 = vmul.f32 %v1669, %v1738
        %v1755 = vmul.f32 %v1671, %v1739
        %v1756 = vmul.f32 %v1673, %v1740
        %v1757 = vmul.f32 %v1675, %v1741
        %v1758 = vmul.f32 %v1677, %v1742
        %v1759 = vmul.f32 %v1679, %v1743
        %v1760 = vpack.c.bf16 %v1744, %v1744
        %v1761 = vpack.c.bf16 %v1745, %v1745
        %v1762 = vpack.c.bf16 %v1746, %v1746
        %v1763 = vpack.c.bf16 %v1747, %v1747
        %v1764 = vpack.c.bf16 %v1748, %v1748
        %v1765 = vpack.c.bf16 %v1749, %v1749
        %v1766 = vpack.c.bf16 %v1750, %v1750
        %v1767 = vpack.c.bf16 %v1751, %v1751
        %v1768 = vpack.c.bf16 %v1752, %v1752
        %v1769 = vpack.c.bf16 %v1753, %v1753
        %v1770 = vpack.c.bf16 %v1754, %v1754
        %v1771 = vpack.c.bf16 %v1755, %v1755
        %v1772 = vpack.c.bf16 %v1756, %v1756
        %v1773 = vpack.c.bf16 %v1757, %v1757
        %v1774 = vpack.c.bf16 %v1758, %v1758
        %v1775 = vpack.c.bf16 %v1759, %v1759
        %v1784 = vunpack.c.l.b16 %v1760
        %v1785 = vunpack.c.l.b16 %v1761
        %v1786 = vunpack.c.l.b16 %v1762
        %v1787 = vunpack.c.l.b16 %v1763
        %v1788 = vunpack.c.l.b16 %v1764
        %v1789 = vunpack.c.l.b16 %v1765
        %v1790 = vunpack.c.l.b16 %v1766
        %v1791 = vunpack.c.l.b16 %v1767
        %v1792 = vpack.c.b16 %v1785, %v1784
        %v1793 = vpack.c.b16 %v1787, %v1786
        %v1794 = vpack.c.b16 %v1789, %v1788
        %v1795 = vpack.c.b16 %v1791, %v1790
        %1796 = vrot.lane.b32.xlu0 %v944, 56
        %v1797 = vpop.permute.xlu0 %1796
        %1798 = vrot.lane.b32.xlu0 %v945, 56
        %v1799 = vpop.permute.xlu0 %1798
        %1800 = vrot.lane.b32.xlu0 %v946, 56
        %v1801 = vpop.permute.xlu0 %1800
        %1802 = vrot.lane.b32.xlu0 %v947, 56
        %v1803 = vpop.permute.xlu0 %1802
        %v1809 = vsel %vm1091, %v1792, 0
        %v1812 = vsel %vm1091, %v1793, 0
        %v1815 = vsel %vm1091, %v1794, 0
        %v1818 = vsel %vm1091, %v1795, 0
        %1820 = vmatpush.bf16.msra.mxu0 0
        %1821 = vmatpush.bf16.msra.mxu0 0
        %1822 = vmatpush.bf16.msra.mxu0 0
        %1823 = vmatpush.bf16.msra.mxu0 0
        %1824 = vmatpush.bf16.msra.mxu0 %v1803
        %1825 = vmatpush.bf16.msra.mxu0 %v1801
        %1826 = vmatpush.bf16.msra.mxu0 %v1799
        %1827 = vmatpush.bf16.msra.mxu0 %v1797
        %1828 = vmatmul.bf16.gmra.mxu0 %v1809
        %v1829 = vpop.f32.mrf.mxu0
        %v1830 = vadd.f32 0.0, %v1829
        %v1831 = vpop.f32.mrf.mxu0
        %v1832 = vadd.f32 0.0, %v1831
        %1833 = vmatmul.bf16.gmra.mxu0 %v1812
        %v1834 = vpop.f32.mrf.mxu0
        %v1835 = vadd.f32 0.0, %v1834
        %v1836 = vpop.f32.mrf.mxu0
        %v1837 = vadd.f32 0.0, %v1836
        %1838 = vmatmul.bf16.gmra.mxu0 %v1815
        %v1839 = vpop.f32.mrf.mxu0
        %v1840 = vadd.f32 0.0, %v1839
        %v1841 = vpop.f32.mrf.mxu0
        %v1842 = vadd.f32 0.0, %v1841
        %1843 = vmatmul.bf16.gmra.mxu0 %v1818
        %v1844 = vpop.f32.mrf.mxu0
        %v1845 = vadd.f32 0.0, %v1844
        %v1846 = vpop.f32.mrf.mxu0
        %v1847 = vadd.f32 0.0, %v1846
        %1848 = vdwg.mxu0
        %v1857 = vunpack.c.l.b16 %v1768
        %v1858 = vunpack.c.l.b16 %v1769
        %v1859 = vunpack.c.l.b16 %v1770
        %v1860 = vunpack.c.l.b16 %v1771
        %v1861 = vunpack.c.l.b16 %v1772
        %v1862 = vunpack.c.l.b16 %v1773
        %v1863 = vunpack.c.l.b16 %v1774
        %v1864 = vunpack.c.l.b16 %v1775
        %v1865 = vpack.c.b16 %v1858, %v1857
        %v1866 = vpack.c.b16 %v1860, %v1859
        %v1867 = vpack.c.b16 %v1862, %v1861
        %v1868 = vpack.c.b16 %v1864, %v1863
        %1869 = vrot.lane.b32.xlu0 %v1026, 56
        %v1870 = vpop.permute.xlu0 %1869
        %1871 = vrot.lane.b32.xlu0 %v1027, 56
        %v1872 = vpop.permute.xlu0 %1871
        %1873 = vrot.lane.b32.xlu0 %v1028, 56
        %v1874 = vpop.permute.xlu0 %1873
        %1875 = vrot.lane.b32.xlu0 %v1029, 56
        %v1876 = vpop.permute.xlu0 %1875
        %v1882 = vsel %vm1091, %v1865, 0
        %v1885 = vsel %vm1091, %v1866, 0
        %v1888 = vsel %vm1091, %v1867, 0
        %v1891 = vsel %vm1091, %v1868, 0
        %1893 = vmatpush.bf16.msra.mxu0 0
        %1894 = vmatpush.bf16.msra.mxu0 0
        %1895 = vmatpush.bf16.msra.mxu0 0
        %1896 = vmatpush.bf16.msra.mxu0 0
        %1897 = vmatpush.bf16.msra.mxu0 %v1876
        %1898 = vmatpush.bf16.msra.mxu0 %v1874
        %1899 = vmatpush.bf16.msra.mxu0 %v1872
        %1900 = vmatpush.bf16.msra.mxu0 %v1870
        %1901 = vmatmul.bf16.gmra.mxu0 %v1882
        %v1902 = vpop.f32.mrf.mxu0
        %v1903 = vadd.f32 0.0, %v1902
        %v1904 = vpop.f32.mrf.mxu0
        %v1905 = vadd.f32 0.0, %v1904
        %1906 = vmatmul.bf16.gmra.mxu0 %v1885
        %v1907 = vpop.f32.mrf.mxu0
        %v1908 = vadd.f32 0.0, %v1907
        %v1909 = vpop.f32.mrf.mxu0
        %v1910 = vadd.f32 0.0, %v1909
        %1911 = vmatmul.bf16.gmra.mxu0 %v1888
        %v1912 = vpop.f32.mrf.mxu0
        %v1913 = vadd.f32 0.0, %v1912
        %v1914 = vpop.f32.mrf.mxu0
        %v1915 = vadd.f32 0.0, %v1914
        %1916 = vmatmul.bf16.gmra.mxu0 %v1891
        %v1917 = vpop.f32.mrf.mxu0
        %v1918 = vadd.f32 0.0, %v1917
        %v1919 = vpop.f32.mrf.mxu0
        %v1920 = vadd.f32 0.0, %v1919
        %1921 = vdwg.mxu0
        %1938 = vrot.lane.b32.xlu0 %v1830, 8
        %v1939 = vpop.permute.xlu0 %1938
        %1940 = vrot.lane.b32.xlu0 %v1832, 8
        %v1941 = vpop.permute.xlu0 %1940
        %1942 = vrot.lane.b32.xlu0 %v1835, 8
        %v1943 = vpop.permute.xlu0 %1942
        %1944 = vrot.lane.b32.xlu0 %v1837, 8
        %v1945 = vpop.permute.xlu0 %1944
        %1946 = vrot.lane.b32.xlu0 %v1840, 8
        %v1947 = vpop.permute.xlu0 %1946
        %1948 = vrot.lane.b32.xlu0 %v1842, 8
        %v1949 = vpop.permute.xlu0 %1948
        %1950 = vrot.lane.b32.xlu0 %v1845, 8
        %v1951 = vpop.permute.xlu0 %1950
        %1952 = vrot.lane.b32.xlu0 %v1847, 8
        %v1953 = vpop.permute.xlu0 %1952
        %1954 = vrot.lane.b32.xlu0 %v1903, 8
        %v1955 = vpop.permute.xlu0 %1954
        %1956 = vrot.lane.b32.xlu0 %v1905, 8
        %v1957 = vpop.permute.xlu0 %1956
        %1958 = vrot.lane.b32.xlu0 %v1908, 8
        %v1959 = vpop.permute.xlu0 %1958
        %1960 = vrot.lane.b32.xlu0 %v1910, 8
        %v1961 = vpop.permute.xlu0 %1960
        %1962 = vrot.lane.b32.xlu0 %v1913, 8
        %v1963 = vpop.permute.xlu0 %1962
        %1964 = vrot.lane.b32.xlu0 %v1915, 8
        %v1965 = vpop.permute.xlu0 %1964
        %1966 = vrot.lane.b32.xlu0 %v1918, 8
        %v1967 = vpop.permute.xlu0 %1966
        %1968 = vrot.lane.b32.xlu0 %v1920, 8
        %v1969 = vpop.permute.xlu0 %1968
        %vm1986 = vcmask 130112
        %1987 = vst.msk [vmem:[#allocation2] sm:$0xff] %vm1986, %v1939
        %1988 = vst.msk [vmem:[#allocation2 + $0x8] sm:$0xff] %vm1986, %v1941
        %1989 = vst.msk [vmem:[#allocation2 + $0x10] sm:$0xff] %vm1986, %v1943
        %1990 = vst.msk [vmem:[#allocation2 + $0x18] sm:$0xff] %vm1986, %v1945
        %1991 = vst.msk [vmem:[#allocation2 + $0x20] sm:$0xff] %vm1986, %v1947
        %1992 = vst.msk [vmem:[#allocation2 + $0x28] sm:$0xff] %vm1986, %v1949
        %1993 = vst.msk [vmem:[#allocation2 + $0x30] sm:$0xff] %vm1986, %v1951
        %1994 = vst.msk [vmem:[#allocation2 + $0x38] sm:$0xff] %vm1986, %v1953
        %1995 = vst.msk [vmem:[#allocation2 + $0x40] sm:$0xff] %vm1986, %v1955
        %1996 = vst.msk [vmem:[#allocation2 + $0x48] sm:$0xff] %vm1986, %v1957
        %1997 = vst.msk [vmem:[#allocation2 + $0x50] sm:$0xff] %vm1986, %v1959
        %1998 = vst.msk [vmem:[#allocation2 + $0x58] sm:$0xff] %vm1986, %v1961
        %1999 = vst.msk [vmem:[#allocation2 + $0x60] sm:$0xff] %vm1986, %v1963
        %2000 = vst.msk [vmem:[#allocation2 + $0x68] sm:$0xff] %vm1986, %v1965
        %2001 = vst.msk [vmem:[#allocation2 + $0x70] sm:$0xff] %vm1986, %v1967
        %2002 = vst.msk [vmem:[#allocation2 + $0x78] sm:$0xff] %vm1986, %v1969
        %2003 = vrot.lane.b32.xlu0 %v944, 112
        %v2004 = vpop.permute.xlu0 %2003
        %2005 = vrot.lane.b32.xlu0 %v945, 112
        %v2006 = vpop.permute.xlu0 %2005
        %2007 = vrot.lane.b32.xlu0 %v946, 112
        %v2008 = vpop.permute.xlu0 %2007
        %2009 = vrot.lane.b32.xlu0 %v947, 112
        %v2010 = vpop.permute.xlu0 %2009
        %2011 = vrot.lane.b32.xlu0 %v944, 80
        %v2012 = vpop.permute.xlu0 %2011
        %2013 = vrot.lane.b32.xlu0 %v945, 80
        %v2014 = vpop.permute.xlu0 %2013
        %2015 = vrot.lane.b32.xlu0 %v946, 80
        %v2016 = vpop.permute.xlu0 %2015
        %2017 = vrot.lane.b32.xlu0 %v947, 80
        %v2018 = vpop.permute.xlu0 %2017
        %v2020 = vsel %vm956, %v2004, 0
        %v2023 = vsel %vm956, %v2006, 0
        %v2026 = vsel %vm956, %v2008, 0
        %v2029 = vsel %vm956, %v2010, 0
        %v2032 = vsel %vm956, %v2012, 0
        %v2035 = vsel %vm956, %v2014, 0
        %v2038 = vsel %vm956, %v2016, 0
        %v2041 = vsel %vm956, %v2018, 0
        %2043 = vmatpush.bf16.xpose.msra.mxu0 0
        %2044 = vmatpush.bf16.xpose.msra.mxu0 0
        %2045 = vmatpush.bf16.xpose.msra.mxu0 0
        %2046 = vmatpush.bf16.xpose.msra.mxu0 0
        %2047 = vmatpush.bf16.xpose.msra.mxu0 %v2041
        %2048 = vmatpush.bf16.xpose.msra.mxu0 %v2038
        %2049 = vmatpush.bf16.xpose.msra.mxu0 %v2035
        %2050 = vmatpush.bf16.xpose.msra.mxu0 %v2032
        %2051 = vmatmul.bf16.gmra.mxu0 %v2020
        %v2052 = vpop.f32.mrf.mxu0
        %v2053 = vadd.f32 0.0, %v2052
        %v2054 = vpop.f32.mrf.mxu0
        %v2055 = vadd.f32 0.0, %v2054
        %2056 = vmatmul.bf16.gmra.mxu0 %v2023
        %v2057 = vpop.f32.mrf.mxu0
        %v2058 = vadd.f32 0.0, %v2057
        %v2059 = vpop.f32.mrf.mxu0
        %v2060 = vadd.f32 0.0, %v2059
        %2061 = vmatmul.bf16.gmra.mxu0 %v2026
        %v2062 = vpop.f32.mrf.mxu0
        %v2063 = vadd.f32 0.0, %v2062
        %v2064 = vpop.f32.mrf.mxu0
        %v2065 = vadd.f32 0.0, %v2064
        %2066 = vmatmul.bf16.gmra.mxu0 %v2029
        %v2067 = vpop.f32.mrf.mxu0
        %v2068 = vadd.f32 0.0, %v2067
        %v2069 = vpop.f32.mrf.mxu0
        %v2070 = vadd.f32 0.0, %v2069
        %2071 = vdwg.mxu0
        %2072 = vrot.lane.b32.xlu0 %v1026, 112
        %v2073 = vpop.permute.xlu0 %2072
        %2074 = vrot.lane.b32.xlu0 %v1027, 112
        %v2075 = vpop.permute.xlu0 %2074
        %2076 = vrot.lane.b32.xlu0 %v1028, 112
        %v2077 = vpop.permute.xlu0 %2076
        %2078 = vrot.lane.b32.xlu0 %v1029, 112
        %v2079 = vpop.permute.xlu0 %2078
        %2080 = vrot.lane.b32.xlu0 %v1026, 80
        %v2081 = vpop.permute.xlu0 %2080
        %2082 = vrot.lane.b32.xlu0 %v1027, 80
        %v2083 = vpop.permute.xlu0 %2082
        %2084 = vrot.lane.b32.xlu0 %v1028, 80
        %v2085 = vpop.permute.xlu0 %2084
        %2086 = vrot.lane.b32.xlu0 %v1029, 80
        %v2087 = vpop.permute.xlu0 %2086
        %v2089 = vsel %vm956, %v2073, 0
        %v2092 = vsel %vm956, %v2075, 0
        %v2095 = vsel %vm956, %v2077, 0
        %v2098 = vsel %vm956, %v2079, 0
        %v2101 = vsel %vm956, %v2081, 0
        %v2104 = vsel %vm956, %v2083, 0
        %v2107 = vsel %vm956, %v2085, 0
        %v2110 = vsel %vm956, %v2087, 0
        %2112 = vmatpush.bf16.xpose.msra.mxu0 0
        %2113 = vmatpush.bf16.xpose.msra.mxu0 0
        %2114 = vmatpush.bf16.xpose.msra.mxu0 0
        %2115 = vmatpush.bf16.xpose.msra.mxu0 0
        %2116 = vmatpush.bf16.xpose.msra.mxu0 %v2110
        %2117 = vmatpush.bf16.xpose.msra.mxu0 %v2107
        %2118 = vmatpush.bf16.xpose.msra.mxu0 %v2104
        %2119 = vmatpush.bf16.xpose.msra.mxu0 %v2101
        %2120 = vmatmul.bf16.gmra.mxu0 %v2089
        %v2121 = vpop.f32.mrf.mxu0
        %v2122 = vadd.f32 0.0, %v2121
        %v2123 = vpop.f32.mrf.mxu0
        %v2124 = vadd.f32 0.0, %v2123
        %2125 = vmatmul.bf16.gmra.mxu0 %v2092
        %v2126 = vpop.f32.mrf.mxu0
        %v2127 = vadd.f32 0.0, %v2126
        %v2128 = vpop.f32.mrf.mxu0
        %v2129 = vadd.f32 0.0, %v2128
        %2130 = vmatmul.bf16.gmra.mxu0 %v2095
        %v2131 = vpop.f32.mrf.mxu0
        %v2132 = vadd.f32 0.0, %v2131
        %v2133 = vpop.f32.mrf.mxu0
        %v2134 = vadd.f32 0.0, %v2133
        %2135 = vmatmul.bf16.gmra.mxu0 %v2098
        %v2136 = vpop.f32.mrf.mxu0
        %v2137 = vadd.f32 0.0, %v2136
        %v2138 = vpop.f32.mrf.mxu0
        %v2139 = vadd.f32 0.0, %v2138
        %2140 = vdwg.mxu0
        %v2141 = vsel %vm1091, %v2053, -inf
        %2142 = vmax.xlane.f32.xlu0 %v2141
        %v2143 = vpop.xlane.xlu0 %2142
        %v2144 = vsel %vm1091, %v2055, -inf
        %2145 = vmax.xlane.f32.xlu0 %v2144
        %v2146 = vpop.xlane.xlu0 %2145
        %v2147 = vsel %vm1091, %v2058, -inf
        %2148 = vmax.xlane.f32.xlu0 %v2147
        %v2149 = vpop.xlane.xlu0 %2148
        %v2150 = vsel %vm1091, %v2060, -inf
        %2151 = vmax.xlane.f32.xlu0 %v2150
        %v2152 = vpop.xlane.xlu0 %2151
        %v2153 = vsel %vm1091, %v2063, -inf
        %2154 = vmax.xlane.f32.xlu0 %v2153
        %v2155 = vpop.xlane.xlu0 %2154
        %v2156 = vsel %vm1091, %v2065, -inf
        %2157 = vmax.xlane.f32.xlu0 %v2156
        %v2158 = vpop.xlane.xlu0 %2157
        %v2159 = vsel %vm1091, %v2068, -inf
        %2160 = vmax.xlane.f32.xlu0 %v2159
        %v2161 = vpop.xlane.xlu0 %2160
        %v2162 = vsel %vm1091, %v2070, -inf
        %2163 = vmax.xlane.f32.xlu0 %v2162
        %v2164 = vpop.xlane.xlu0 %2163
        %v2165 = vsel %vm1091, %v2122, -inf
        %2166 = vmax.xlane.f32.xlu0 %v2165
        %v2167 = vpop.xlane.xlu0 %2166
        %v2168 = vsel %vm1091, %v2124, -inf
        %2169 = vmax.xlane.f32.xlu0 %v2168
        %v2170 = vpop.xlane.xlu0 %2169
        %v2171 = vsel %vm1091, %v2127, -inf
        %2172 = vmax.xlane.f32.xlu0 %v2171
        %v2173 = vpop.xlane.xlu0 %2172
        %v2174 = vsel %vm1091, %v2129, -inf
        %2175 = vmax.xlane.f32.xlu0 %v2174
        %v2176 = vpop.xlane.xlu0 %2175
        %v2177 = vsel %vm1091, %v2132, -inf
        %2178 = vmax.xlane.f32.xlu0 %v2177
        %v2179 = vpop.xlane.xlu0 %2178
        %v2180 = vsel %vm1091, %v2134, -inf
        %2181 = vmax.xlane.f32.xlu0 %v2180
        %v2182 = vpop.xlane.xlu0 %2181
        %v2183 = vsel %vm1091, %v2137, -inf
        %2184 = vmax.xlane.f32.xlu0 %v2183
        %v2185 = vpop.xlane.xlu0 %2184
        %v2186 = vsel %vm1091, %v2139, -inf
        %2187 = vmax.xlane.f32.xlu0 %v2186
        %v2188 = vpop.xlane.xlu0 %2187
        %v2189 = vsub.f32 %v2053, %v2143
        %v2190 = vsub.f32 %v2055, %v2146
        %v2191 = vsub.f32 %v2058, %v2149
        %v2192 = vsub.f32 %v2060, %v2152
        %v2193 = vsub.f32 %v2063, %v2155
        %v2194 = vsub.f32 %v2065, %v2158
        %v2195 = vsub.f32 %v2068, %v2161
        %v2196 = vsub.f32 %v2070, %v2164
        %v2197 = vsub.f32 %v2122, %v2167
        %v2198 = vsub.f32 %v2124, %v2170
        %v2199 = vsub.f32 %v2127, %v2173
        %v2200 = vsub.f32 %v2129, %v2176
        %v2201 = vsub.f32 %v2132, %v2179
        %v2202 = vsub.f32 %v2134, %v2182
        %v2203 = vsub.f32 %v2137, %v2185
        %v2204 = vsub.f32 %v2139, %v2188
        %v2205 = vmul.f32 %v2189, 1.442695
        %v2206 = vpow.pop %v2205
        %v2207 = vmul.f32 %v2190, 1.442695
        %v2208 = vpow.pop %v2207
        %v2209 = vmul.f32 %v2191, 1.442695
        %v2210 = vpow.pop %v2209
        %v2211 = vmul.f32 %v2192, 1.442695
        %v2212 = vpow.pop %v2211
        %v2213 = vmul.f32 %v2193, 1.442695
        %v2214 = vpow.pop %v2213
        %v2215 = vmul.f32 %v2194, 1.442695
        %v2216 = vpow.pop %v2215
        %v2217 = vmul.f32 %v2195, 1.442695
        %v2218 = vpow.pop %v2217
        %v2219 = vmul.f32 %v2196, 1.442695
        %v2220 = vpow.pop %v2219
        %v2221 = vmul.f32 %v2197, 1.442695
        %v2222 = vpow.pop %v2221
        %v2223 = vmul.f32 %v2198, 1.442695
        %v2224 = vpow.pop %v2223
        %v2225 = vmul.f32 %v2199, 1.442695
        %v2226 = vpow.pop %v2225
        %v2227 = vmul.f32 %v2200, 1.442695
        %v2228 = vpow.pop %v2227
        %v2229 = vmul.f32 %v2201, 1.442695
        %v2230 = vpow.pop %v2229
        %v2231 = vmul.f32 %v2202, 1.442695
        %v2232 = vpow.pop %v2231
        %v2233 = vmul.f32 %v2203, 1.442695
        %v2234 = vpow.pop %v2233
        %v2235 = vmul.f32 %v2204, 1.442695
        %v2236 = vpow.pop %v2235
        %v2237 = vsel %vm1091, %v2206, 0.0
        %2238 = vadd.xlane.f32.xlu0 %v2237
        %v2239 = vpop.xlane.xlu0 %2238
        %v2240 = vsel %vm1091, %v2208, 0.0
        %2241 = vadd.xlane.f32.xlu0 %v2240
        %v2242 = vpop.xlane.xlu0 %2241
        %v2243 = vsel %vm1091, %v2210, 0.0
        %2244 = vadd.xlane.f32.xlu0 %v2243
        %v2245 = vpop.xlane.xlu0 %2244
        %v2246 = vsel %vm1091, %v2212, 0.0
        %2247 = vadd.xlane.f32.xlu0 %v2246
        %v2248 = vpop.xlane.xlu0 %2247
        %v2249 = vsel %vm1091, %v2214, 0.0
        %2250 = vadd.xlane.f32.xlu0 %v2249
        %v2251 = vpop.xlane.xlu0 %2250
        %v2252 = vsel %vm1091, %v2216, 0.0
        %2253 = vadd.xlane.f32.xlu0 %v2252
        %v2254 = vpop.xlane.xlu0 %2253
        %v2255 = vsel %vm1091, %v2218, 0.0
        %2256 = vadd.xlane.f32.xlu0 %v2255
        %v2257 = vpop.xlane.xlu0 %2256
        %v2258 = vsel %vm1091, %v2220, 0.0
        %2259 = vadd.xlane.f32.xlu0 %v2258
        %v2260 = vpop.xlane.xlu0 %2259
        %v2261 = vsel %vm1091, %v2222, 0.0
        %2262 = vadd.xlane.f32.xlu0 %v2261
        %v2263 = vpop.xlane.xlu0 %2262
        %v2264 = vsel %vm1091, %v2224, 0.0
        %2265 = vadd.xlane.f32.xlu0 %v2264
        %v2266 = vpop.xlane.xlu0 %2265
        %v2267 = vsel %vm1091, %v2226, 0.0
        %2268 = vadd.xlane.f32.xlu0 %v2267
        %v2269 = vpop.xlane.xlu0 %2268
        %v2270 = vsel %vm1091, %v2228, 0.0
        %2271 = vadd.xlane.f32.xlu0 %v2270
        %v2272 = vpop.xlane.xlu0 %2271
        %v2273 = vsel %vm1091, %v2230, 0.0
        %2274 = vadd.xlane.f32.xlu0 %v2273
        %v2275 = vpop.xlane.xlu0 %2274
        %v2276 = vsel %vm1091, %v2232, 0.0
        %2277 = vadd.xlane.f32.xlu0 %v2276
        %v2278 = vpop.xlane.xlu0 %2277
        %v2279 = vsel %vm1091, %v2234, 0.0
        %2280 = vadd.xlane.f32.xlu0 %v2279
        %v2281 = vpop.xlane.xlu0 %2280
        %v2282 = vsel %vm1091, %v2236, 0.0
        %2283 = vadd.xlane.f32.xlu0 %v2282
        %v2284 = vpop.xlane.xlu0 %2283
        %v2285 = vrcp.pop %v2239
        %v2286 = vrcp.pop %v2242
        %v2287 = vrcp.pop %v2245
        %v2288 = vrcp.pop %v2248
        %v2289 = vrcp.pop %v2251
        %v2290 = vrcp.pop %v2254
        %v2291 = vrcp.pop %v2257
        %v2292 = vrcp.pop %v2260
        %v2293 = vrcp.pop %v2263
        %v2294 = vrcp.pop %v2266
        %v2295 = vrcp.pop %v2269
        %v2296 = vrcp.pop %v2272
        %v2297 = vrcp.pop %v2275
        %v2298 = vrcp.pop %v2278
        %v2299 = vrcp.pop %v2281
        %v2300 = vrcp.pop %v2284
        %v2301 = vmul.f32 %v2206, %v2285
        %v2302 = vmul.f32 %v2208, %v2286
        %v2303 = vmul.f32 %v2210, %v2287
        %v2304 = vmul.f32 %v2212, %v2288
        %v2305 = vmul.f32 %v2214, %v2289
        %v2306 = vmul.f32 %v2216, %v2290
        %v2307 = vmul.f32 %v2218, %v2291
        %v2308 = vmul.f32 %v2220, %v2292
        %v2309 = vmul.f32 %v2222, %v2293
        %v2310 = vmul.f32 %v2224, %v2294
        %v2311 = vmul.f32 %v2226, %v2295
        %v2312 = vmul.f32 %v2228, %v2296
        %v2313 = vmul.f32 %v2230, %v2297
        %v2314 = vmul.f32 %v2232, %v2298
        %v2315 = vmul.f32 %v2234, %v2299
        %v2316 = vmul.f32 %v2236, %v2300
        %v2317 = vpack.c.bf16 %v2301, %v2301
        %v2318 = vpack.c.bf16 %v2302, %v2302
        %v2319 = vpack.c.bf16 %v2303, %v2303
        %v2320 = vpack.c.bf16 %v2304, %v2304
        %v2321 = vpack.c.bf16 %v2305, %v2305
        %v2322 = vpack.c.bf16 %v2306, %v2306
        %v2323 = vpack.c.bf16 %v2307, %v2307
        %v2324 = vpack.c.bf16 %v2308, %v2308
        %v2325 = vpack.c.bf16 %v2309, %v2309
        %v2326 = vpack.c.bf16 %v2310, %v2310
        %v2327 = vpack.c.bf16 %v2311, %v2311
        %v2328 = vpack.c.bf16 %v2312, %v2312
        %v2329 = vpack.c.bf16 %v2313, %v2313
        %v2330 = vpack.c.bf16 %v2314, %v2314
        %v2331 = vpack.c.bf16 %v2315, %v2315
        %v2332 = vpack.c.bf16 %v2316, %v2316
        %v2341 = vunpack.c.l.b16 %v2317
        %v2342 = vunpack.c.l.b16 %v2318
        %v2343 = vunpack.c.l.b16 %v2319
        %v2344 = vunpack.c.l.b16 %v2320
        %v2345 = vunpack.c.l.b16 %v2321
        %v2346 = vunpack.c.l.b16 %v2322
        %v2347 = vunpack.c.l.b16 %v2323
        %v2348 = vunpack.c.l.b16 %v2324
        %v2349 = vpack.c.b16 %v2342, %v2341
        %v2350 = vpack.c.b16 %v2344, %v2343
        %v2351 = vpack.c.b16 %v2346, %v2345
        %v2352 = vpack.c.b16 %v2348, %v2347
        %2353 = vrot.lane.b32.xlu0 %v944, 48
        %v2354 = vpop.permute.xlu0 %2353
        %2355 = vrot.lane.b32.xlu0 %v945, 48
        %v2356 = vpop.permute.xlu0 %2355
        %2357 = vrot.lane.b32.xlu0 %v946, 48
        %v2358 = vpop.permute.xlu0 %2357
        %2359 = vrot.lane.b32.xlu0 %v947, 48
        %v2360 = vpop.permute.xlu0 %2359
        %v2366 = vsel %vm1091, %v2349, 0
        %v2369 = vsel %vm1091, %v2350, 0
        %v2372 = vsel %vm1091, %v2351, 0
        %v2375 = vsel %vm1091, %v2352, 0
        %2377 = vmatpush.bf16.msra.mxu0 0
        %2378 = vmatpush.bf16.msra.mxu0 0
        %2379 = vmatpush.bf16.msra.mxu0 0
        %2380 = vmatpush.bf16.msra.mxu0 0
        %2381 = vmatpush.bf16.msra.mxu0 %v2360
        %2382 = vmatpush.bf16.msra.mxu0 %v2358
        %2383 = vmatpush.bf16.msra.mxu0 %v2356
        %2384 = vmatpush.bf16.msra.mxu0 %v2354
        %2385 = vmatmul.bf16.gmra.mxu0 %v2366
        %v2386 = vpop.f32.mrf.mxu0
        %v2387 = vadd.f32 0.0, %v2386
        %v2388 = vpop.f32.mrf.mxu0
        %v2389 = vadd.f32 0.0, %v2388
        %2390 = vmatmul.bf16.gmra.mxu0 %v2369
        %v2391 = vpop.f32.mrf.mxu0
        %v2392 = vadd.f32 0.0, %v2391
        %v2393 = vpop.f32.mrf.mxu0
        %v2394 = vadd.f32 0.0, %v2393
        %2395 = vmatmul.bf16.gmra.mxu0 %v2372
        %v2396 = vpop.f32.mrf.mxu0
        %v2397 = vadd.f32 0.0, %v2396
        %v2398 = vpop.f32.mrf.mxu0
        %v2399 = vadd.f32 0.0, %v2398
        %2400 = vmatmul.bf16.gmra.mxu0 %v2375
        %v2401 = vpop.f32.mrf.mxu0
        %v2402 = vadd.f32 0.0, %v2401
        %v2403 = vpop.f32.mrf.mxu0
        %v2404 = vadd.f32 0.0, %v2403
        %2405 = vdwg.mxu0
        %v2414 = vunpack.c.l.b16 %v2325
        %v2415 = vunpack.c.l.b16 %v2326
        %v2416 = vunpack.c.l.b16 %v2327
        %v2417 = vunpack.c.l.b16 %v2328
        %v2418 = vunpack.c.l.b16 %v2329
        %v2419 = vunpack.c.l.b16 %v2330
        %v2420 = vunpack.c.l.b16 %v2331
        %v2421 = vunpack.c.l.b16 %v2332
        %v2422 = vpack.c.b16 %v2415, %v2414
        %v2423 = vpack.c.b16 %v2417, %v2416
        %v2424 = vpack.c.b16 %v2419, %v2418
        %v2425 = vpack.c.b16 %v2421, %v2420
        %2426 = vrot.lane.b32.xlu0 %v1026, 48
        %v2427 = vpop.permute.xlu0 %2426
        %2428 = vrot.lane.b32.xlu0 %v1027, 48
        %v2429 = vpop.permute.xlu0 %2428
        %2430 = vrot.lane.b32.xlu0 %v1028, 48
        %v2431 = vpop.permute.xlu0 %2430
        %2432 = vrot.lane.b32.xlu0 %v1029, 48
        %v2433 = vpop.permute.xlu0 %2432
        %v2439 = vsel %vm1091, %v2422, 0
        %v2442 = vsel %vm1091, %v2423, 0
        %v2445 = vsel %vm1091, %v2424, 0
        %v2448 = vsel %vm1091, %v2425, 0
        %2450 = vmatpush.bf16.msra.mxu0 0
        %2451 = vmatpush.bf16.msra.mxu0 0
        %2452 = vmatpush.bf16.msra.mxu0 0
        %2453 = vmatpush.bf16.msra.mxu0 0
        %2454 = vmatpush.bf16.msra.mxu0 %v2433
        %2455 = vmatpush.bf16.msra.mxu0 %v2431
        %2456 = vmatpush.bf16.msra.mxu0 %v2429
        %2457 = vmatpush.bf16.msra.mxu0 %v2427
        %2458 = vmatmul.bf16.gmra.mxu0 %v2439
        %v2459 = vpop.f32.mrf.mxu0
        %v2460 = vadd.f32 0.0, %v2459
        %v2461 = vpop.f32.mrf.mxu0
        %v2462 = vadd.f32 0.0, %v2461
        %2463 = vmatmul.bf16.gmra.mxu0 %v2442
        %v2464 = vpop.f32.mrf.mxu0
        %v2465 = vadd.f32 0.0, %v2464
        %v2466 = vpop.f32.mrf.mxu0
        %v2467 = vadd.f32 0.0, %v2466
        %2468 = vmatmul.bf16.gmra.mxu0 %v2445
        %v2469 = vpop.f32.mrf.mxu0
        %v2470 = vadd.f32 0.0, %v2469
        %v2471 = vpop.f32.mrf.mxu0
        %v2472 = vadd.f32 0.0, %v2471
        %2473 = vmatmul.bf16.gmra.mxu0 %v2448
        %v2474 = vpop.f32.mrf.mxu0
        %v2475 = vadd.f32 0.0, %v2474
        %v2476 = vpop.f32.mrf.mxu0
        %v2477 = vadd.f32 0.0, %v2476
        %2478 = vdwg.mxu0
        %2495 = vrot.lane.b32.xlu0 %v2387, 16
        %v2496 = vpop.permute.xlu0 %2495
        %2497 = vrot.lane.b32.xlu0 %v2389, 16
        %v2498 = vpop.permute.xlu0 %2497
        %2499 = vrot.lane.b32.xlu0 %v2392, 16
        %v2500 = vpop.permute.xlu0 %2499
        %2501 = vrot.lane.b32.xlu0 %v2394, 16
        %v2502 = vpop.permute.xlu0 %2501
        %2503 = vrot.lane.b32.xlu0 %v2397, 16
        %v2504 = vpop.permute.xlu0 %2503
        %2505 = vrot.lane.b32.xlu0 %v2399, 16
        %v2506 = vpop.permute.xlu0 %2505
        %2507 = vrot.lane.b32.xlu0 %v2402, 16
        %v2508 = vpop.permute.xlu0 %2507
        %2509 = vrot.lane.b32.xlu0 %v2404, 16
        %v2510 = vpop.permute.xlu0 %2509
        %2511 = vrot.lane.b32.xlu0 %v2460, 16
        %v2512 = vpop.permute.xlu0 %2511
        %2513 = vrot.lane.b32.xlu0 %v2462, 16
        %v2514 = vpop.permute.xlu0 %2513
        %2515 = vrot.lane.b32.xlu0 %v2465, 16
        %v2516 = vpop.permute.xlu0 %2515
        %2517 = vrot.lane.b32.xlu0 %v2467, 16
        %v2518 = vpop.permute.xlu0 %2517
        %2519 = vrot.lane.b32.xlu0 %v2470, 16
        %v2520 = vpop.permute.xlu0 %2519
        %2521 = vrot.lane.b32.xlu0 %v2472, 16
        %v2522 = vpop.permute.xlu0 %2521
        %2523 = vrot.lane.b32.xlu0 %v2475, 16
        %v2524 = vpop.permute.xlu0 %2523
        %2525 = vrot.lane.b32.xlu0 %v2477, 16
        %v2526 = vpop.permute.xlu0 %2525
        %vm2543 = vcmask 195712
        %2544 = vst.msk [vmem:[#allocation2] sm:$0xff] %vm2543, %v2496
        %2545 = vst.msk [vmem:[#allocation2 + $0x8] sm:$0xff] %vm2543, %v2498
        %2546 = vst.msk [vmem:[#allocation2 + $0x10] sm:$0xff] %vm2543, %v2500
        %2547 = vst.msk [vmem:[#allocation2 + $0x18] sm:$0xff] %vm2543, %v2502
        %2548 = vst.msk [vmem:[#allocation2 + $0x20] sm:$0xff] %vm2543, %v2504
        %2549 = vst.msk [vmem:[#allocation2 + $0x28] sm:$0xff] %vm2543, %v2506
        %2550 = vst.msk [vmem:[#allocation2 + $0x30] sm:$0xff] %vm2543, %v2508
        %2551 = vst.msk [vmem:[#allocation2 + $0x38] sm:$0xff] %vm2543, %v2510
        %2552 = vst.msk [vmem:[#allocation2 + $0x40] sm:$0xff] %vm2543, %v2512
        %2553 = vst.msk [vmem:[#allocation2 + $0x48] sm:$0xff] %vm2543, %v2514
        %2554 = vst.msk [vmem:[#allocation2 + $0x50] sm:$0xff] %vm2543, %v2516
        %2555 = vst.msk [vmem:[#allocation2 + $0x58] sm:$0xff] %vm2543, %v2518
        %2556 = vst.msk [vmem:[#allocation2 + $0x60] sm:$0xff] %vm2543, %v2520
        %2557 = vst.msk [vmem:[#allocation2 + $0x68] sm:$0xff] %vm2543, %v2522
        %2558 = vst.msk [vmem:[#allocation2 + $0x70] sm:$0xff] %vm2543, %v2524
        %2559 = vst.msk [vmem:[#allocation2 + $0x78] sm:$0xff] %vm2543, %v2526
        %2560 = vrot.lane.b32.xlu0 %v944, 104
        %v2561 = vpop.permute.xlu0 %2560
        %2562 = vrot.lane.b32.xlu0 %v945, 104
        %v2563 = vpop.permute.xlu0 %2562
        %2564 = vrot.lane.b32.xlu0 %v946, 104
        %v2565 = vpop.permute.xlu0 %2564
        %2566 = vrot.lane.b32.xlu0 %v947, 104
        %v2567 = vpop.permute.xlu0 %2566
        %2568 = vrot.lane.b32.xlu0 %v944, 72
        %v2569 = vpop.permute.xlu0 %2568
        %2570 = vrot.lane.b32.xlu0 %v945, 72
        %v2571 = vpop.permute.xlu0 %2570
        %2572 = vrot.lane.b32.xlu0 %v946, 72
        %v2573 = vpop.permute.xlu0 %2572
        %2574 = vrot.lane.b32.xlu0 %v947, 72
        %v2575 = vpop.permute.xlu0 %2574
        %v2577 = vsel %vm956, %v2561, 0
        %v2580 = vsel %vm956, %v2563, 0
        %v2583 = vsel %vm956, %v2565, 0
        %v2586 = vsel %vm956, %v2567, 0
        %v2589 = vsel %vm956, %v2569, 0
        %v2592 = vsel %vm956, %v2571, 0
        %v2595 = vsel %vm956, %v2573, 0
        %v2598 = vsel %vm956, %v2575, 0
        %2600 = vmatpush.bf16.xpose.msra.mxu0 0
        %2601 = vmatpush.bf16.xpose.msra.mxu0 0
        %2602 = vmatpush.bf16.xpose.msra.mxu0 0
        %2603 = vmatpush.bf16.xpose.msra.mxu0 0
        %2604 = vmatpush.bf16.xpose.msra.mxu0 %v2598
        %2605 = vmatpush.bf16.xpose.msra.mxu0 %v2595
        %2606 = vmatpush.bf16.xpose.msra.mxu0 %v2592
        %2607 = vmatpush.bf16.xpose.msra.mxu0 %v2589
        %2608 = vmatmul.bf16.gmra.mxu0 %v2577
        %v2609 = vpop.f32.mrf.mxu0
        %v2610 = vadd.f32 0.0, %v2609
        %v2611 = vpop.f32.mrf.mxu0
        %v2612 = vadd.f32 0.0, %v2611
        %2613 = vmatmul.bf16.gmra.mxu0 %v2580
        %v2614 = vpop.f32.mrf.mxu0
        %v2615 = vadd.f32 0.0, %v2614
        %v2616 = vpop.f32.mrf.mxu0
        %v2617 = vadd.f32 0.0, %v2616
        %2618 = vmatmul.bf16.gmra.mxu0 %v2583
        %v2619 = vpop.f32.mrf.mxu0
        %v2620 = vadd.f32 0.0, %v2619
        %v2621 = vpop.f32.mrf.mxu0
        %v2622 = vadd.f32 0.0, %v2621
        %2623 = vmatmul.bf16.gmra.mxu0 %v2586
        %v2624 = vpop.f32.mrf.mxu0
        %v2625 = vadd.f32 0.0, %v2624
        %v2626 = vpop.f32.mrf.mxu0
        %v2627 = vadd.f32 0.0, %v2626
        %2628 = vdwg.mxu0
        %2629 = vrot.lane.b32.xlu0 %v1026, 104
        %v2630 = vpop.permute.xlu0 %2629
        %2631 = vrot.lane.b32.xlu0 %v1027, 104
        %v2632 = vpop.permute.xlu0 %2631
        %2633 = vrot.lane.b32.xlu0 %v1028, 104
        %v2634 = vpop.permute.xlu0 %2633
        %2635 = vrot.lane.b32.xlu0 %v1029, 104
        %v2636 = vpop.permute.xlu0 %2635
        %2637 = vrot.lane.b32.xlu0 %v1026, 72
        %v2638 = vpop.permute.xlu0 %2637
        %2639 = vrot.lane.b32.xlu0 %v1027, 72
        %v2640 = vpop.permute.xlu0 %2639
        %2641 = vrot.lane.b32.xlu0 %v1028, 72
        %v2642 = vpop.permute.xlu0 %2641
        %2643 = vrot.lane.b32.xlu0 %v1029, 72
        %v2644 = vpop.permute.xlu0 %2643
        %v2646 = vsel %vm956, %v2630, 0
        %v2649 = vsel %vm956, %v2632, 0
        %v2652 = vsel %vm956, %v2634, 0
        %v2655 = vsel %vm956, %v2636, 0
        %v2658 = vsel %vm956, %v2638, 0
        %v2661 = vsel %vm956, %v2640, 0
        %v2664 = vsel %vm956, %v2642, 0
        %v2667 = vsel %vm956, %v2644, 0
        %2669 = vmatpush.bf16.xpose.msra.mxu0 0
        %2670 = vmatpush.bf16.xpose.msra.mxu0 0
        %2671 = vmatpush.bf16.xpose.msra.mxu0 0
        %2672 = vmatpush.bf16.xpose.msra.mxu0 0
        %2673 = vmatpush.bf16.xpose.msra.mxu0 %v2667
        %2674 = vmatpush.bf16.xpose.msra.mxu0 %v2664
        %2675 = vmatpush.bf16.xpose.msra.mxu0 %v2661
        %2676 = vmatpush.bf16.xpose.msra.mxu0 %v2658
        %2677 = vmatmul.bf16.gmra.mxu0 %v2646
        %v2678 = vpop.f32.mrf.mxu0
        %v2679 = vadd.f32 0.0, %v2678
        %v2680 = vpop.f32.mrf.mxu0
        %v2681 = vadd.f32 0.0, %v2680
        %2682 = vmatmul.bf16.gmra.mxu0 %v2649
        %v2683 = vpop.f32.mrf.mxu0
        %v2684 = vadd.f32 0.0, %v2683
        %v2685 = vpop.f32.mrf.mxu0
        %v2686 = vadd.f32 0.0, %v2685
        %2687 = vmatmul.bf16.gmra.mxu0 %v2652
        %v2688 = vpop.f32.mrf.mxu0
        %v2689 = vadd.f32 0.0, %v2688
        %v2690 = vpop.f32.mrf.mxu0
        %v2691 = vadd.f32 0.0, %v2690
        %2692 = vmatmul.bf16.gmra.mxu0 %v2655
        %v2693 = vpop.f32.mrf.mxu0
        %v2694 = vadd.f32 0.0, %v2693
        %v2695 = vpop.f32.mrf.mxu0
        %v2696 = vadd.f32 0.0, %v2695
        %2697 = vdwg.mxu0
        %v2698 = vsel %vm1091, %v2610, -inf
        %2699 = vmax.xlane.f32.xlu0 %v2698
        %v2700 = vpop.xlane.xlu0 %2699
        %v2701 = vsel %vm1091, %v2612, -inf
        %2702 = vmax.xlane.f32.xlu0 %v2701
        %v2703 = vpop.xlane.xlu0 %2702
        %v2704 = vsel %vm1091, %v2615, -inf
        %2705 = vmax.xlane.f32.xlu0 %v2704
        %v2706 = vpop.xlane.xlu0 %2705
        %v2707 = vsel %vm1091, %v2617, -inf
        %2708 = vmax.xlane.f32.xlu0 %v2707
        %v2709 = vpop.xlane.xlu0 %2708
        %v2710 = vsel %vm1091, %v2620, -inf
        %2711 = vmax.xlane.f32.xlu0 %v2710
        %v2712 = vpop.xlane.xlu0 %2711
        %v2713 = vsel %vm1091, %v2622, -inf
        %2714 = vmax.xlane.f32.xlu0 %v2713
        %v2715 = vpop.xlane.xlu0 %2714
        %v2716 = vsel %vm1091, %v2625, -inf
        %2717 = vmax.xlane.f32.xlu0 %v2716
        %v2718 = vpop.xlane.xlu0 %2717
        %v2719 = vsel %vm1091, %v2627, -inf
        %2720 = vmax.xlane.f32.xlu0 %v2719
        %v2721 = vpop.xlane.xlu0 %2720
        %v2722 = vsel %vm1091, %v2679, -inf
        %2723 = vmax.xlane.f32.xlu0 %v2722
        %v2724 = vpop.xlane.xlu0 %2723
        %v2725 = vsel %vm1091, %v2681, -inf
        %2726 = vmax.xlane.f32.xlu0 %v2725
        %v2727 = vpop.xlane.xlu0 %2726
        %v2728 = vsel %vm1091, %v2684, -inf
        %2729 = vmax.xlane.f32.xlu0 %v2728
        %v2730 = vpop.xlane.xlu0 %2729
        %v2731 = vsel %vm1091, %v2686, -inf
        %2732 = vmax.xlane.f32.xlu0 %v2731
        %v2733 = vpop.xlane.xlu0 %2732
        %v2734 = vsel %vm1091, %v2689, -inf
        %2735 = vmax.xlane.f32.xlu0 %v2734
        %v2736 = vpop.xlane.xlu0 %2735
        %v2737 = vsel %vm1091, %v2691, -inf
        %2738 = vmax.xlane.f32.xlu0 %v2737
        %v2739 = vpop.xlane.xlu0 %2738
        %v2740 = vsel %vm1091, %v2694, -inf
        %2741 = vmax.xlane.f32.xlu0 %v2740
        %v2742 = vpop.xlane.xlu0 %2741
        %v2743 = vsel %vm1091, %v2696, -inf
        %2744 = vmax.xlane.f32.xlu0 %v2743
        %v2745 = vpop.xlane.xlu0 %2744
        %v2746 = vsub.f32 %v2610, %v2700
        %v2747 = vsub.f32 %v2612, %v2703
        %v2748 = vsub.f32 %v2615, %v2706
        %v2749 = vsub.f32 %v2617, %v2709
        %v2750 = vsub.f32 %v2620, %v2712
        %v2751 = vsub.f32 %v2622, %v2715
        %v2752 = vsub.f32 %v2625, %v2718
        %v2753 = vsub.f32 %v2627, %v2721
        %v2754 = vsub.f32 %v2679, %v2724
        %v2755 = vsub.f32 %v2681, %v2727
        %v2756 = vsub.f32 %v2684, %v2730
        %v2757 = vsub.f32 %v2686, %v2733
        %v2758 = vsub.f32 %v2689, %v2736
        %v2759 = vsub.f32 %v2691, %v2739
        %v2760 = vsub.f32 %v2694, %v2742
        %v2761 = vsub.f32 %v2696, %v2745
        %v2762 = vmul.f32 %v2746, 1.442695
        %v2763 = vpow.pop %v2762
        %v2764 = vmul.f32 %v2747, 1.442695
        %v2765 = vpow.pop %v2764
        %v2766 = vmul.f32 %v2748, 1.442695
        %v2767 = vpow.pop %v2766
        %v2768 = vmul.f32 %v2749, 1.442695
        %v2769 = vpow.pop %v2768
        %v2770 = vmul.f32 %v2750, 1.442695
        %v2771 = vpow.pop %v2770
        %v2772 = vmul.f32 %v2751, 1.442695
        %v2773 = vpow.pop %v2772
        %v2774 = vmul.f32 %v2752, 1.442695
        %v2775 = vpow.pop %v2774
        %v2776 = vmul.f32 %v2753, 1.442695
        %v2777 = vpow.pop %v2776
        %v2778 = vmul.f32 %v2754, 1.442695
        %v2779 = vpow.pop %v2778
        %v2780 = vmul.f32 %v2755, 1.442695
        %v2781 = vpow.pop %v2780
        %v2782 = vmul.f32 %v2756, 1.442695
        %v2783 = vpow.pop %v2782
        %v2784 = vmul.f32 %v2757, 1.442695
        %v2785 = vpow.pop %v2784
        %v2786 = vmul.f32 %v2758, 1.442695
        %v2787 = vpow.pop %v2786
        %v2788 = vmul.f32 %v2759, 1.442695
        %v2789 = vpow.pop %v2788
        %v2790 = vmul.f32 %v2760, 1.442695
        %v2791 = vpow.pop %v2790
        %v2792 = vmul.f32 %v2761, 1.442695
        %v2793 = vpow.pop %v2792
        %v2794 = vsel %vm1091, %v2763, 0.0
        %2795 = vadd.xlane.f32.xlu0 %v2794
        %v2796 = vpop.xlane.xlu0 %2795
        %v2797 = vsel %vm1091, %v2765, 0.0
        %2798 = vadd.xlane.f32.xlu0 %v2797
        %v2799 = vpop.xlane.xlu0 %2798
        %v2800 = vsel %vm1091, %v2767, 0.0
        %2801 = vadd.xlane.f32.xlu0 %v2800
        %v2802 = vpop.xlane.xlu0 %2801
        %v2803 = vsel %vm1091, %v2769, 0.0
        %2804 = vadd.xlane.f32.xlu0 %v2803
        %v2805 = vpop.xlane.xlu0 %2804
        %v2806 = vsel %vm1091, %v2771, 0.0
        %2807 = vadd.xlane.f32.xlu0 %v2806
        %v2808 = vpop.xlane.xlu0 %2807
        %v2809 = vsel %vm1091, %v2773, 0.0
        %2810 = vadd.xlane.f32.xlu0 %v2809
        %v2811 = vpop.xlane.xlu0 %2810
        %v2812 = vsel %vm1091, %v2775, 0.0
        %2813 = vadd.xlane.f32.xlu0 %v2812
        %v2814 = vpop.xlane.xlu0 %2813
        %v2815 = vsel %vm1091, %v2777, 0.0
        %2816 = vadd.xlane.f32.xlu0 %v2815
        %v2817 = vpop.xlane.xlu0 %2816
        %v2818 = vsel %vm1091, %v2779, 0.0
        %2819 = vadd.xlane.f32.xlu0 %v2818
        %v2820 = vpop.xlane.xlu0 %2819
        %v2821 = vsel %vm1091, %v2781, 0.0
        %2822 = vadd.xlane.f32.xlu0 %v2821
        %v2823 = vpop.xlane.xlu0 %2822
        %v2824 = vsel %vm1091, %v2783, 0.0
        %2825 = vadd.xlane.f32.xlu0 %v2824
        %v2826 = vpop.xlane.xlu0 %2825
        %v2827 = vsel %vm1091, %v2785, 0.0
        %2828 = vadd.xlane.f32.xlu0 %v2827
        %v2829 = vpop.xlane.xlu0 %2828
        %v2830 = vsel %vm1091, %v2787, 0.0
        %2831 = vadd.xlane.f32.xlu0 %v2830
        %v2832 = vpop.xlane.xlu0 %2831
        %v2833 = vsel %vm1091, %v2789, 0.0
        %2834 = vadd.xlane.f32.xlu0 %v2833
        %v2835 = vpop.xlane.xlu0 %2834
        %v2836 = vsel %vm1091, %v2791, 0.0
        %2837 = vadd.xlane.f32.xlu0 %v2836
        %v2838 = vpop.xlane.xlu0 %2837
        %v2839 = vsel %vm1091, %v2793, 0.0
        %2840 = vadd.xlane.f32.xlu0 %v2839
        %v2841 = vpop.xlane.xlu0 %2840
        %v2842 = vrcp.pop %v2796
        %v2843 = vrcp.pop %v2799
        %v2844 = vrcp.pop %v2802
        %v2845 = vrcp.pop %v2805
        %v2846 = vrcp.pop %v2808
        %v2847 = vrcp.pop %v2811
        %v2848 = vrcp.pop %v2814
        %v2849 = vrcp.pop %v2817
        %v2850 = vrcp.pop %v2820
        %v2851 = vrcp.pop %v2823
        %v2852 = vrcp.pop %v2826
        %v2853 = vrcp.pop %v2829
        %v2854 = vrcp.pop %v2832
        %v2855 = vrcp.pop %v2835
        %v2856 = vrcp.pop %v2838
        %v2857 = vrcp.pop %v2841
        %v2858 = vmul.f32 %v2763, %v2842
        %v2859 = vmul.f32 %v2765, %v2843
        %v2860 = vmul.f32 %v2767, %v2844
        %v2861 = vmul.f32 %v2769, %v2845
        %v2862 = vmul.f32 %v2771, %v2846
        %v2863 = vmul.f32 %v2773, %v2847
        %v2864 = vmul.f32 %v2775, %v2848
        %v2865 = vmul.f32 %v2777, %v2849
        %v2866 = vmul.f32 %v2779, %v2850
        %v2867 = vmul.f32 %v2781, %v2851
        %v2868 = vmul.f32 %v2783, %v2852
        %v2869 = vmul.f32 %v2785, %v2853
        %v2870 = vmul.f32 %v2787, %v2854
        %v2871 = vmul.f32 %v2789, %v2855
        %v2872 = vmul.f32 %v2791, %v2856
        %v2873 = vmul.f32 %v2793, %v2857
        %v2874 = vpack.c.bf16 %v2858, %v2858
        %v2875 = vpack.c.bf16 %v2859, %v2859
        %v2876 = vpack.c.bf16 %v2860, %v2860
        %v2877 = vpack.c.bf16 %v2861, %v2861
        %v2878 = vpack.c.bf16 %v2862, %v2862
        %v2879 = vpack.c.bf16 %v2863, %v2863
        %v2880 = vpack.c.bf16 %v2864, %v2864
        %v2881 = vpack.c.bf16 %v2865, %v2865
        %v2882 = vpack.c.bf16 %v2866, %v2866
        %v2883 = vpack.c.bf16 %v2867, %v2867
        %v2884 = vpack.c.bf16 %v2868, %v2868
        %v2885 = vpack.c.bf16 %v2869, %v2869
        %v2886 = vpack.c.bf16 %v2870, %v2870
        %v2887 = vpack.c.bf16 %v2871, %v2871
        %v2888 = vpack.c.bf16 %v2872, %v2872
        %v2889 = vpack.c.bf16 %v2873, %v2873
        %v2898 = vunpack.c.l.b16 %v2874
        %v2899 = vunpack.c.l.b16 %v2875
        %v2900 = vunpack.c.l.b16 %v2876
        %v2901 = vunpack.c.l.b16 %v2877
        %v2902 = vunpack.c.l.b16 %v2878
        %v2903 = vunpack.c.l.b16 %v2879
        %v2904 = vunpack.c.l.b16 %v2880
        %v2905 = vunpack.c.l.b16 %v2881
        %v2906 = vpack.c.b16 %v2899, %v2898
        %v2907 = vpack.c.b16 %v2901, %v2900
        %v2908 = vpack.c.b16 %v2903, %v2902
        %v2909 = vpack.c.b16 %v2905, %v2904
        %2910 = vrot.lane.b32.xlu0 %v944, 40
        %v2911 = vpop.permute.xlu0 %2910
        %2912 = vrot.lane.b32.xlu0 %v945, 40
        %v2913 = vpop.permute.xlu0 %2912
        %2914 = vrot.lane.b32.xlu0 %v946, 40
        %v2915 = vpop.permute.xlu0 %2914
        %2916 = vrot.lane.b32.xlu0 %v947, 40
        %v2917 = vpop.permute.xlu0 %2916
        %v2923 = vsel %vm1091, %v2906, 0
        %v2926 = vsel %vm1091, %v2907, 0
        %v2929 = vsel %vm1091, %v2908, 0
        %v2932 = vsel %vm1091, %v2909, 0
        %2934 = vmatpush.bf16.msra.mxu0 0
        %2935 = vmatpush.bf16.msra.mxu0 0
        %2936 = vmatpush.bf16.msra.mxu0 0
        %2937 = vmatpush.bf16.msra.mxu0 0
        %2938 = vmatpush.bf16.msra.mxu0 %v2917
        %2939 = vmatpush.bf16.msra.mxu0 %v2915
        %2940 = vmatpush.bf16.msra.mxu0 %v2913
        %2941 = vmatpush.bf16.msra.mxu0 %v2911
        %2942 = vmatmul.bf16.gmra.mxu0 %v2923
        %v2943 = vpop.f32.mrf.mxu0
        %v2944 = vadd.f32 0.0, %v2943
        %v2945 = vpop.f32.mrf.mxu0
        %v2946 = vadd.f32 0.0, %v2945
        %2947 = vmatmul.bf16.gmra.mxu0 %v2926
        %v2948 = vpop.f32.mrf.mxu0
        %v2949 = vadd.f32 0.0, %v2948
        %v2950 = vpop.f32.mrf.mxu0
        %v2951 = vadd.f32 0.0, %v2950
        %2952 = vmatmul.bf16.gmra.mxu0 %v2929
        %v2953 = vpop.f32.mrf.mxu0
        %v2954 = vadd.f32 0.0, %v2953
        %v2955 = vpop.f32.mrf.mxu0
        %v2956 = vadd.f32 0.0, %v2955
        %2957 = vmatmul.bf16.gmra.mxu0 %v2932
        %v2958 = vpop.f32.mrf.mxu0
        %v2959 = vadd.f32 0.0, %v2958
        %v2960 = vpop.f32.mrf.mxu0
        %v2961 = vadd.f32 0.0, %v2960
        %2962 = vdwg.mxu0
        %v2971 = vunpack.c.l.b16 %v2882
        %v2972 = vunpack.c.l.b16 %v2883
        %v2973 = vunpack.c.l.b16 %v2884
        %v2974 = vunpack.c.l.b16 %v2885
        %v2975 = vunpack.c.l.b16 %v2886
        %v2976 = vunpack.c.l.b16 %v2887
        %v2977 = vunpack.c.l.b16 %v2888
        %v2978 = vunpack.c.l.b16 %v2889
        %v2979 = vpack.c.b16 %v2972, %v2971
        %v2980 = vpack.c.b16 %v2974, %v2973
        %v2981 = vpack.c.b16 %v2976, %v2975
        %v2982 = vpack.c.b16 %v2978, %v2977
        %2983 = vrot.lane.b32.xlu0 %v1026, 40
        %v2984 = vpop.permute.xlu0 %2983
        %2985 = vrot.lane.b32.xlu0 %v1027, 40
        %v2986 = vpop.permute.xlu0 %2985
        %2987 = vrot.lane.b32.xlu0 %v1028, 40
        %v2988 = vpop.permute.xlu0 %2987
        %2989 = vrot.lane.b32.xlu0 %v1029, 40
        %v2990 = vpop.permute.xlu0 %2989
        %v2996 = vsel %vm1091, %v2979, 0
        %v2999 = vsel %vm1091, %v2980, 0
        %v3002 = vsel %vm1091, %v2981, 0
        %v3005 = vsel %vm1091, %v2982, 0
        %3007 = vmatpush.bf16.msra.mxu0 0
        %3008 = vmatpush.bf16.msra.mxu0 0
        %3009 = vmatpush.bf16.msra.mxu0 0
        %3010 = vmatpush.bf16.msra.mxu0 0
        %3011 = vmatpush.bf16.msra.mxu0 %v2990
        %3012 = vmatpush.bf16.msra.mxu0 %v2988
        %3013 = vmatpush.bf16.msra.mxu0 %v2986
        %3014 = vmatpush.bf16.msra.mxu0 %v2984
        %3015 = vmatmul.bf16.gmra.mxu0 %v2996
        %v3016 = vpop.f32.mrf.mxu0
        %v3017 = vadd.f32 0.0, %v3016
        %v3018 = vpop.f32.mrf.mxu0
        %v3019 = vadd.f32 0.0, %v3018
        %3020 = vmatmul.bf16.gmra.mxu0 %v2999
        %v3021 = vpop.f32.mrf.mxu0
        %v3022 = vadd.f32 0.0, %v3021
        %v3023 = vpop.f32.mrf.mxu0
        %v3024 = vadd.f32 0.0, %v3023
        %3025 = vmatmul.bf16.gmra.mxu0 %v3002
        %v3026 = vpop.f32.mrf.mxu0
        %v3027 = vadd.f32 0.0, %v3026
        %v3028 = vpop.f32.mrf.mxu0
        %v3029 = vadd.f32 0.0, %v3028
        %3030 = vmatmul.bf16.gmra.mxu0 %v3005
        %v3031 = vpop.f32.mrf.mxu0
        %v3032 = vadd.f32 0.0, %v3031
        %v3033 = vpop.f32.mrf.mxu0
        %v3034 = vadd.f32 0.0, %v3033
        %3035 = vdwg.mxu0
        %3052 = vrot.lane.b32.xlu0 %v2944, 24
        %v3053 = vpop.permute.xlu0 %3052
        %3054 = vrot.lane.b32.xlu0 %v2946, 24
        %v3055 = vpop.permute.xlu0 %3054
        %3056 = vrot.lane.b32.xlu0 %v2949, 24
        %v3057 = vpop.permute.xlu0 %3056
        %3058 = vrot.lane.b32.xlu0 %v2951, 24
        %v3059 = vpop.permute.xlu0 %3058
        %3060 = vrot.lane.b32.xlu0 %v2954, 24
        %v3061 = vpop.permute.xlu0 %3060
        %3062 = vrot.lane.b32.xlu0 %v2956, 24
        %v3063 = vpop.permute.xlu0 %3062
        %3064 = vrot.lane.b32.xlu0 %v2959, 24
        %v3065 = vpop.permute.xlu0 %3064
        %3066 = vrot.lane.b32.xlu0 %v2961, 24
        %v3067 = vpop.permute.xlu0 %3066
        %3068 = vrot.lane.b32.xlu0 %v3017, 24
        %v3069 = vpop.permute.xlu0 %3068
        %3070 = vrot.lane.b32.xlu0 %v3019, 24
        %v3071 = vpop.permute.xlu0 %3070
        %3072 = vrot.lane.b32.xlu0 %v3022, 24
        %v3073 = vpop.permute.xlu0 %3072
        %3074 = vrot.lane.b32.xlu0 %v3024, 24
        %v3075 = vpop.permute.xlu0 %3074
        %3076 = vrot.lane.b32.xlu0 %v3027, 24
        %v3077 = vpop.permute.xlu0 %3076
        %3078 = vrot.lane.b32.xlu0 %v3029, 24
        %v3079 = vpop.permute.xlu0 %3078
        %3080 = vrot.lane.b32.xlu0 %v3032, 24
        %v3081 = vpop.permute.xlu0 %3080
        %3082 = vrot.lane.b32.xlu0 %v3034, 24
        %v3083 = vpop.permute.xlu0 %3082
        %vm3100 = vcmask 261312
        %3101 = vst.msk [vmem:[#allocation2] sm:$0xff] %vm3100, %v3053
        %3102 = vst.msk [vmem:[#allocation2 + $0x8] sm:$0xff] %vm3100, %v3055
        %3103 = vst.msk [vmem:[#allocation2 + $0x10] sm:$0xff] %vm3100, %v3057
        %3104 = vst.msk [vmem:[#allocation2 + $0x18] sm:$0xff] %vm3100, %v3059
        %3105 = vst.msk [vmem:[#allocation2 + $0x20] sm:$0xff] %vm3100, %v3061
        %3106 = vst.msk [vmem:[#allocation2 + $0x28] sm:$0xff] %vm3100, %v3063
        %3107 = vst.msk [vmem:[#allocation2 + $0x30] sm:$0xff] %vm3100, %v3065
        %3108 = vst.msk [vmem:[#allocation2 + $0x38] sm:$0xff] %vm3100, %v3067
        %3109 = vst.msk [vmem:[#allocation2 + $0x40] sm:$0xff] %vm3100, %v3069
        %3110 = vst.msk [vmem:[#allocation2 + $0x48] sm:$0xff] %vm3100, %v3071
        %3111 = vst.msk [vmem:[#allocation2 + $0x50] sm:$0xff] %vm3100, %v3073
        %3112 = vst.msk [vmem:[#allocation2 + $0x58] sm:$0xff] %vm3100, %v3075
        %3113 = vst.msk [vmem:[#allocation2 + $0x60] sm:$0xff] %vm3100, %v3077
        %3114 = vst.msk [vmem:[#allocation2 + $0x68] sm:$0xff] %vm3100, %v3079
        %3115 = vst.msk [vmem:[#allocation2 + $0x70] sm:$0xff] %vm3100, %v3081
        %3116 = vst.msk [vmem:[#allocation2 + $0x78] sm:$0xff] %vm3100, %v3083
        %v3117 = vld [vmem:[#allocation2] sm:$0xff]
        %v3118 = vld [vmem:[#allocation2 + $0x8] sm:$0xff]
        %v3119 = vld [vmem:[#allocation2 + $0x10] sm:$0xff]
        %v3120 = vld [vmem:[#allocation2 + $0x18] sm:$0xff]
        %v3121 = vld [vmem:[#allocation2 + $0x20] sm:$0xff]
        %v3122 = vld [vmem:[#allocation2 + $0x28] sm:$0xff]
        %v3123 = vld [vmem:[#allocation2 + $0x30] sm:$0xff]
        %v3124 = vld [vmem:[#allocation2 + $0x38] sm:$0xff]
        %v3125 = vld [vmem:[#allocation2 + $0x40] sm:$0xff]
        %v3126 = vld [vmem:[#allocation2 + $0x48] sm:$0xff]
        %v3127 = vld [vmem:[#allocation2 + $0x50] sm:$0xff]
        %v3128 = vld [vmem:[#allocation2 + $0x58] sm:$0xff]
        %v3129 = vld [vmem:[#allocation2 + $0x60] sm:$0xff]
        %v3130 = vld [vmem:[#allocation2 + $0x68] sm:$0xff]
        %v3131 = vld [vmem:[#allocation2 + $0x70] sm:$0xff]
        %v3132 = vld [vmem:[#allocation2 + $0x78] sm:$0xff]
        %v3133 = vpack.c.bf16 %v3118, %v3117
        %v3134 = vpack.c.bf16 %v3120, %v3119
        %v3135 = vpack.c.bf16 %v3122, %v3121
        %v3136 = vpack.c.bf16 %v3124, %v3123
        %v3137 = vpack.c.bf16 %v3126, %v3125
        %v3138 = vpack.c.bf16 %v3128, %v3127
        %v3139 = vpack.c.bf16 %v3130, %v3129
        %v3140 = vpack.c.bf16 %v3132, %v3131
        %v3141 = vld [vmem:[#allocation8] sm:$0xf]
        %v3142 = vld [vmem:[#allocation8 + $0x4] sm:$0xf]
        %v3143 = vld [vmem:[#allocation8 + $0x8] sm:$0xf]
        %v3144 = vld [vmem:[#allocation8 + $0xc] sm:$0xf]
        %v3149 = vunpack.c.l.b16 %v3141
        %v3150 = vunpack.c.l.b16 %v3142
        %v3151 = vunpack.c.l.b16 %v3143
        %v3152 = vunpack.c.l.b16 %v3144
        %v3153 = vpack.c.b16 %v3150, %v3149
        %v3154 = vpack.c.b16 %v3152, %v3151
        %vm3157 = vcmask 261120
        %v3159 = vsel %vm3157, %v3133, 0
        %v3162 = vsel %vm3157, %v3134, 0
        %v3165 = vsel %vm3157, %v3135, 0
        %v3168 = vsel %vm3157, %v3136, 0
        %v3171 = vsel %vm3157, %v3137, 0
        %v3174 = vsel %vm3157, %v3138, 0
        %v3177 = vsel %vm3157, %v3139, 0
        %v3180 = vsel %vm3157, %v3140, 0
        %3182 = vmatpush.bf16.msra.mxu0 0
        %3183 = vmatpush.bf16.msra.mxu0 0
        %3184 = vmatpush.bf16.msra.mxu0 0
        %3185 = vmatpush.bf16.msra.mxu0 0
        %3186 = vmatpush.bf16.msra.mxu0 0
        %3187 = vmatpush.bf16.msra.mxu0 0
        %3188 = vmatpush.bf16.msra.mxu0 %v3154
        %3189 = vmatpush.bf16.msra.mxu0 %v3153
        %3190 = vmatmul.bf16.gmra.mxu0 %v3159
        %v3191 = vpop.f32.mrf.mxu0
        %v3192 = vadd.f32 0.0, %v3191
        %v3193 = vpop.f32.mrf.mxu0
        %v3194 = vadd.f32 0.0, %v3193
        %3195 = vmatmul.bf16.gmra.mxu0 %v3162
        %v3196 = vpop.f32.mrf.mxu0
        %v3197 = vadd.f32 0.0, %v3196
        %v3198 = vpop.f32.mrf.mxu0
        %v3199 = vadd.f32 0.0, %v3198
        %3200 = vmatmul.bf16.gmra.mxu0 %v3165
        %v3201 = vpop.f32.mrf.mxu0
        %v3202 = vadd.f32 0.0, %v3201
        %v3203 = vpop.f32.mrf.mxu0
        %v3204 = vadd.f32 0.0, %v3203
        %3205 = vmatmul.bf16.gmra.mxu0 %v3168
        %v3206 = vpop.f32.mrf.mxu0
        %v3207 = vadd.f32 0.0, %v3206
        %v3208 = vpop.f32.mrf.mxu0
        %v3209 = vadd.f32 0.0, %v3208
        %3210 = vmatmul.bf16.gmra.mxu0 %v3171
        %v3211 = vpop.f32.mrf.mxu0
        %v3212 = vadd.f32 0.0, %v3211
        %v3213 = vpop.f32.mrf.mxu0
        %v3214 = vadd.f32 0.0, %v3213
        %3215 = vmatmul.bf16.gmra.mxu0 %v3174
        %v3216 = vpop.f32.mrf.mxu0
        %v3217 = vadd.f32 0.0, %v3216
        %v3218 = vpop.f32.mrf.mxu0
        %v3219 = vadd.f32 0.0, %v3218
        %3220 = vmatmul.bf16.gmra.mxu0 %v3177
        %v3221 = vpop.f32.mrf.mxu0
        %v3222 = vadd.f32 0.0, %v3221
        %v3223 = vpop.f32.mrf.mxu0
        %v3224 = vadd.f32 0.0, %v3223
        %3225 = vmatmul.bf16.gmra.mxu0 %v3180
        %v3226 = vpop.f32.mrf.mxu0
        %v3227 = vadd.f32 0.0, %v3226
        %v3228 = vpop.f32.mrf.mxu0
        %v3229 = vadd.f32 0.0, %v3228
        %3230 = vdwg.mxu0
        %v3231 = vadd.f32 %v417, %v3192
        %v3232 = vadd.f32 %v418, %v3194
        %v3233 = vadd.f32 %v419, %v3197
        %v3234 = vadd.f32 %v420, %v3199
        %v3235 = vadd.f32 %v421, %v3202
        %v3236 = vadd.f32 %v422, %v3204
        %v3237 = vadd.f32 %v423, %v3207
        %v3238 = vadd.f32 %v424, %v3209
        %v3239 = vadd.f32 %v425, %v3212
        %v3240 = vadd.f32 %v426, %v3214
        %v3241 = vadd.f32 %v427, %v3217
        %v3242 = vadd.f32 %v428, %v3219
        %v3243 = vadd.f32 %v429, %v3222
        %v3244 = vadd.f32 %v430, %v3224
        %v3245 = vadd.f32 %v431, %v3227
        %v3246 = vadd.f32 %v432, %v3229
        %v3247 = vld [vmem:[%s5] sm:$0x1]
        %3248 = vadd.xlane.f32.xlu0 %v3231
        %v3249 = vpop.xlane.xlu0 %3248
        %3250 = vadd.xlane.f32.xlu0 %v3232
        %v3251 = vpop.xlane.xlu0 %3250
        %3252 = vadd.xlane.f32.xlu0 %v3233
        %v3253 = vpop.xlane.xlu0 %3252
        %3254 = vadd.xlane.f32.xlu0 %v3234
        %v3255 = vpop.xlane.xlu0 %3254
        %3256 = vadd.xlane.f32.xlu0 %v3235
        %v3257 = vpop.xlane.xlu0 %3256
        %3258 = vadd.xlane.f32.xlu0 %v3236
        %v3259 = vpop.xlane.xlu0 %3258
        %3260 = vadd.xlane.f32.xlu0 %v3237
        %v3261 = vpop.xlane.xlu0 %3260
        %3262 = vadd.xlane.f32.xlu0 %v3238
        %v3263 = vpop.xlane.xlu0 %3262
        %3264 = vadd.xlane.f32.xlu0 %v3239
        %v3265 = vpop.xlane.xlu0 %3264
        %3266 = vadd.xlane.f32.xlu0 %v3240
        %v3267 = vpop.xlane.xlu0 %3266
        %3268 = vadd.xlane.f32.xlu0 %v3241
        %v3269 = vpop.xlane.xlu0 %3268
        %3270 = vadd.xlane.f32.xlu0 %v3242
        %v3271 = vpop.xlane.xlu0 %3270
        %3272 = vadd.xlane.f32.xlu0 %v3243
        %v3273 = vpop.xlane.xlu0 %3272
        %3274 = vadd.xlane.f32.xlu0 %v3244
        %v3275 = vpop.xlane.xlu0 %3274
        %3276 = vadd.xlane.f32.xlu0 %v3245
        %v3277 = vpop.xlane.xlu0 %3276
        %3278 = vadd.xlane.f32.xlu0 %v3246
        %v3279 = vpop.xlane.xlu0 %3278
        %v3280 = vmul.f32 %v3249, 0.03125
        %v3281 = vmul.f32 %v3251, 0.03125
        %v3282 = vmul.f32 %v3253, 0.03125
        %v3283 = vmul.f32 %v3255, 0.03125
        %v3284 = vmul.f32 %v3257, 0.03125
        %v3285 = vmul.f32 %v3259, 0.03125
        %v3286 = vmul.f32 %v3261, 0.03125
        %v3287 = vmul.f32 %v3263, 0.03125
        %v3288 = vmul.f32 %v3265, 0.03125
        %v3289 = vmul.f32 %v3267, 0.03125
        %v3290 = vmul.f32 %v3269, 0.03125
        %v3291 = vmul.f32 %v3271, 0.03125
        %v3292 = vmul.f32 %v3273, 0.03125
        %v3293 = vmul.f32 %v3275, 0.03125
        %v3294 = vmul.f32 %v3277, 0.03125
        %v3295 = vmul.f32 %v3279, 0.03125
        %v3296 = vsub.f32 %v3231, %v3280
        %v3297 = vsub.f32 %v3232, %v3281
        %v3298 = vsub.f32 %v3233, %v3282
        %v3299 = vsub.f32 %v3234, %v3283
        %v3300 = vsub.f32 %v3235, %v3284
        %v3301 = vsub.f32 %v3236, %v3285
        %v3302 = vsub.f32 %v3237, %v3286
        %v3303 = vsub.f32 %v3238, %v3287
        %v3304 = vsub.f32 %v3239, %v3288
        %v3305 = vsub.f32 %v3240, %v3289
        %v3306 = vsub.f32 %v3241, %v3290
        %v3307 = vsub.f32 %v3242, %v3291
        %v3308 = vsub.f32 %v3243, %v3292
        %v3309 = vsub.f32 %v3244, %v3293
        %v3310 = vsub.f32 %v3245, %v3294
        %v3311 = vsub.f32 %v3246, %v3295
        %v3312 = vsel %vm499, %v3296, 0.0
        %v3313 = vsel %vm499, %v3297, 0.0
        %v3314 = vsel %vm499, %v3298, 0.0
        %v3315 = vsel %vm499, %v3299, 0.0
        %v3316 = vsel %vm499, %v3300, 0.0
        %v3317 = vsel %vm499, %v3301, 0.0
        %v3318 = vsel %vm499, %v3302, 0.0
        %v3319 = vsel %vm499, %v3303, 0.0
        %v3320 = vsel %vm499, %v3304, 0.0
        %v3321 = vsel %vm499, %v3305, 0.0
        %v3322 = vsel %vm499, %v3306, 0.0
        %v3323 = vsel %vm499, %v3307, 0.0
        %v3324 = vsel %vm499, %v3308, 0.0
        %v3325 = vsel %vm499, %v3309, 0.0
        %v3326 = vsel %vm499, %v3310, 0.0
        %v3327 = vsel %vm499, %v3311, 0.0
        %v3328 = vmul.f32 %v3312, %v3312
        %v3329 = vmul.f32 %v3313, %v3313
        %v3330 = vmul.f32 %v3314, %v3314
        %v3331 = vmul.f32 %v3315, %v3315
        %v3332 = vmul.f32 %v3316, %v3316
        %v3333 = vmul.f32 %v3317, %v3317
        %v3334 = vmul.f32 %v3318, %v3318
        %v3335 = vmul.f32 %v3319, %v3319
        %v3336 = vmul.f32 %v3320, %v3320
        %v3337 = vmul.f32 %v3321, %v3321
        %v3338 = vmul.f32 %v3322, %v3322
        %v3339 = vmul.f32 %v3323, %v3323
        %v3340 = vmul.f32 %v3324, %v3324
        %v3341 = vmul.f32 %v3325, %v3325
        %v3342 = vmul.f32 %v3326, %v3326
        %v3343 = vmul.f32 %v3327, %v3327
        %3344 = vadd.xlane.f32.xlu0 %v3328
        %v3345 = vpop.xlane.xlu0 %3344
        %3346 = vadd.xlane.f32.xlu0 %v3329
        %v3347 = vpop.xlane.xlu0 %3346
        %3348 = vadd.xlane.f32.xlu0 %v3330
        %v3349 = vpop.xlane.xlu0 %3348
        %3350 = vadd.xlane.f32.xlu0 %v3331
        %v3351 = vpop.xlane.xlu0 %3350
        %3352 = vadd.xlane.f32.xlu0 %v3332
        %v3353 = vpop.xlane.xlu0 %3352
        %3354 = vadd.xlane.f32.xlu0 %v3333
        %v3355 = vpop.xlane.xlu0 %3354
        %3356 = vadd.xlane.f32.xlu0 %v3334
        %v3357 = vpop.xlane.xlu0 %3356
        %3358 = vadd.xlane.f32.xlu0 %v3335
        %v3359 = vpop.xlane.xlu0 %3358
        %3360 = vadd.xlane.f32.xlu0 %v3336
        %v3361 = vpop.xlane.xlu0 %3360
        %3362 = vadd.xlane.f32.xlu0 %v3337
        %v3363 = vpop.xlane.xlu0 %3362
        %3364 = vadd.xlane.f32.xlu0 %v3338
        %v3365 = vpop.xlane.xlu0 %3364
        %3366 = vadd.xlane.f32.xlu0 %v3339
        %v3367 = vpop.xlane.xlu0 %3366
        %3368 = vadd.xlane.f32.xlu0 %v3340
        %v3369 = vpop.xlane.xlu0 %3368
        %3370 = vadd.xlane.f32.xlu0 %v3341
        %v3371 = vpop.xlane.xlu0 %3370
        %3372 = vadd.xlane.f32.xlu0 %v3342
        %v3373 = vpop.xlane.xlu0 %3372
        %3374 = vadd.xlane.f32.xlu0 %v3343
        %v3375 = vpop.xlane.xlu0 %3374
        %v3376 = vmul.f32 %v3345, 0.03125
        %v3377 = vmul.f32 %v3347, 0.03125
        %v3378 = vmul.f32 %v3349, 0.03125
        %v3379 = vmul.f32 %v3351, 0.03125
        %v3380 = vmul.f32 %v3353, 0.03125
        %v3381 = vmul.f32 %v3355, 0.03125
        %v3382 = vmul.f32 %v3357, 0.03125
        %v3383 = vmul.f32 %v3359, 0.03125
        %v3384 = vmul.f32 %v3361, 0.03125
        %v3385 = vmul.f32 %v3363, 0.03125
        %v3386 = vmul.f32 %v3365, 0.03125
        %v3387 = vmul.f32 %v3367, 0.03125
        %v3388 = vmul.f32 %v3369, 0.03125
        %v3389 = vmul.f32 %v3371, 0.03125
        %v3390 = vmul.f32 %v3373, 0.03125
        %v3391 = vmul.f32 %v3375, 0.03125
        %v3392 = vadd.f32 %v3376, 1e-05
        %v3393 = vadd.f32 %v3377, 1e-05
        %v3394 = vadd.f32 %v3378, 1e-05
        %v3395 = vadd.f32 %v3379, 1e-05
        %v3396 = vadd.f32 %v3380, 1e-05
        %v3397 = vadd.f32 %v3381, 1e-05
        %v3398 = vadd.f32 %v3382, 1e-05
        %v3399 = vadd.f32 %v3383, 1e-05
        %v3400 = vadd.f32 %v3384, 1e-05
        %v3401 = vadd.f32 %v3385, 1e-05
        %v3402 = vadd.f32 %v3386, 1e-05
        %v3403 = vadd.f32 %v3387, 1e-05
        %v3404 = vadd.f32 %v3388, 1e-05
        %v3405 = vadd.f32 %v3389, 1e-05
        %v3406 = vadd.f32 %v3390, 1e-05
        %v3407 = vadd.f32 %v3391, 1e-05
        %v3408 = vrsqrt.pop %v3392
        %v3409 = vmul.f32 %v3408, %v3392
        %v3410 = vmul.f32 %v3409, %v3408
        %v3411 = vmul.f32 0.5, %v3410
        %v3412 = vsub.f32 1.5, %v3411
        %v3413 = vmul.f32 %v3408, %v3412
        %vm3414 = vweird.f32 %v3392
        %vm3415 = vweird.f32 %v3408
        %vm3416 = vmor %vm3414, %vm3415
        %v3417 = vsel %vm3416, %v3408, %v3413
        %v3418 = vrsqrt.pop %v3393
        %v3419 = vmul.f32 %v3418, %v3393
        %v3420 = vmul.f32 %v3419, %v3418
        %v3421 = vmul.f32 0.5, %v3420
        %v3422 = vsub.f32 1.5, %v3421
        %v3423 = vmul.f32 %v3418, %v3422
        %vm3424 = vweird.f32 %v3393
        %vm3425 = vweird.f32 %v3418
        %vm3426 = vmor %vm3424, %vm3425
        %v3427 = vsel %vm3426, %v3418, %v3423
        %v3428 = vrsqrt.pop %v3394
        %v3429 = vmul.f32 %v3428, %v3394
        %v3430 = vmul.f32 %v3429, %v3428
        %v3431 = vmul.f32 0.5, %v3430
        %v3432 = vsub.f32 1.5, %v3431
        %v3433 = vmul.f32 %v3428, %v3432
        %vm3434 = vweird.f32 %v3394
        %vm3435 = vweird.f32 %v3428
        %vm3436 = vmor %vm3434, %vm3435
        %v3437 = vsel %vm3436, %v3428, %v3433
        %v3438 = vrsqrt.pop %v3395
        %v3439 = vmul.f32 %v3438, %v3395
        %v3440 = vmul.f32 %v3439, %v3438
        %v3441 = vmul.f32 0.5, %v3440
        %v3442 = vsub.f32 1.5, %v3441
        %v3443 = vmul.f32 %v3438, %v3442
        %vm3444 = vweird.f32 %v3395
        %vm3445 = vweird.f32 %v3438
        %vm3446 = vmor %vm3444, %vm3445
        %v3447 = vsel %vm3446, %v3438, %v3443
        %v3448 = vrsqrt.pop %v3396
        %v3449 = vmul.f32 %v3448, %v3396
        %v3450 = vmul.f32 %v3449, %v3448
        %v3451 = vmul.f32 0.5, %v3450
        %v3452 = vsub.f32 1.5, %v3451
        %v3453 = vmul.f32 %v3448, %v3452
        %vm3454 = vweird.f32 %v3396
        %vm3455 = vweird.f32 %v3448
        %vm3456 = vmor %vm3454, %vm3455
        %v3457 = vsel %vm3456, %v3448, %v3453
        %v3458 = vrsqrt.pop %v3397
        %v3459 = vmul.f32 %v3458, %v3397
        %v3460 = vmul.f32 %v3459, %v3458
        %v3461 = vmul.f32 0.5, %v3460
        %v3462 = vsub.f32 1.5, %v3461
        %v3463 = vmul.f32 %v3458, %v3462
        %vm3464 = vweird.f32 %v3397
        %vm3465 = vweird.f32 %v3458
        %vm3466 = vmor %vm3464, %vm3465
        %v3467 = vsel %vm3466, %v3458, %v3463
        %v3468 = vrsqrt.pop %v3398
        %v3469 = vmul.f32 %v3468, %v3398
        %v3470 = vmul.f32 %v3469, %v3468
        %v3471 = vmul.f32 0.5, %v3470
        %v3472 = vsub.f32 1.5, %v3471
        %v3473 = vmul.f32 %v3468, %v3472
        %vm3474 = vweird.f32 %v3398
        %vm3475 = vweird.f32 %v3468
        %vm3476 = vmor %vm3474, %vm3475
        %v3477 = vsel %vm3476, %v3468, %v3473
        %v3478 = vrsqrt.pop %v3399
        %v3479 = vmul.f32 %v3478, %v3399
        %v3480 = vmul.f32 %v3479, %v3478
        %v3481 = vmul.f32 0.5, %v3480
        %v3482 = vsub.f32 1.5, %v3481
        %v3483 = vmul.f32 %v3478, %v3482
        %vm3484 = vweird.f32 %v3399
        %vm3485 = vweird.f32 %v3478
        %vm3486 = vmor %vm3484, %vm3485
        %v3487 = vsel %vm3486, %v3478, %v3483
        %v3488 = vrsqrt.pop %v3400
        %v3489 = vmul.f32 %v3488, %v3400
        %v3490 = vmul.f32 %v3489, %v3488
        %v3491 = vmul.f32 0.5, %v3490
        %v3492 = vsub.f32 1.5, %v3491
        %v3493 = vmul.f32 %v3488, %v3492
        %vm3494 = vweird.f32 %v3400
        %vm3495 = vweird.f32 %v3488
        %vm3496 = vmor %vm3494, %vm3495
        %v3497 = vsel %vm3496, %v3488, %v3493
        %v3498 = vrsqrt.pop %v3401
        %v3499 = vmul.f32 %v3498, %v3401
        %v3500 = vmul.f32 %v3499, %v3498
        %v3501 = vmul.f32 0.5, %v3500
        %v3502 = vsub.f32 1.5, %v3501
        %v3503 = vmul.f32 %v3498, %v3502
        %vm3504 = vweird.f32 %v3401
        %vm3505 = vweird.f32 %v3498
        %vm3506 = vmor %vm3504, %vm3505
        %v3507 = vsel %vm3506, %v3498, %v3503
        %v3508 = vrsqrt.pop %v3402
        %v3509 = vmul.f32 %v3508, %v3402
        %v3510 = vmul.f32 %v3509, %v3508
        %v3511 = vmul.f32 0.5, %v3510
        %v3512 = vsub.f32 1.5, %v3511
        %v3513 = vmul.f32 %v3508, %v3512
        %vm3514 = vweird.f32 %v3402
        %vm3515 = vweird.f32 %v3508
        %vm3516 = vmor %vm3514, %vm3515
        %v3517 = vsel %vm3516, %v3508, %v3513
        %v3518 = vrsqrt.pop %v3403
        %v3519 = vmul.f32 %v3518, %v3403
        %v3520 = vmul.f32 %v3519, %v3518
        %v3521 = vmul.f32 0.5, %v3520
        %v3522 = vsub.f32 1.5, %v3521
        %v3523 = vmul.f32 %v3518, %v3522
        %vm3524 = vweird.f32 %v3403
        %vm3525 = vweird.f32 %v3518
        %vm3526 = vmor %vm3524, %vm3525
        %v3527 = vsel %vm3526, %v3518, %v3523
        %v3528 = vrsqrt.pop %v3404
        %v3529 = vmul.f32 %v3528, %v3404
        %v3530 = vmul.f32 %v3529, %v3528
        %v3531 = vmul.f32 0.5, %v3530
        %v3532 = vsub.f32 1.5, %v3531
        %v3533 = vmul.f32 %v3528, %v3532
        %vm3534 = vweird.f32 %v3404
        %vm3535 = vweird.f32 %v3528
        %vm3536 = vmor %vm3534, %vm3535
        %v3537 = vsel %vm3536, %v3528, %v3533
        %v3538 = vrsqrt.pop %v3405
        %v3539 = vmul.f32 %v3538, %v3405
        %v3540 = vmul.f32 %v3539, %v3538
        %v3541 = vmul.f32 0.5, %v3540
        %v3542 = vsub.f32 1.5, %v3541
        %v3543 = vmul.f32 %v3538, %v3542
        %vm3544 = vweird.f32 %v3405
        %vm3545 = vweird.f32 %v3538
        %vm3546 = vmor %vm3544, %vm3545
        %v3547 = vsel %vm3546, %v3538, %v3543
        %v3548 = vrsqrt.pop %v3406
        %v3549 = vmul.f32 %v3548, %v3406
        %v3550 = vmul.f32 %v3549, %v3548
        %v3551 = vmul.f32 0.5, %v3550
        %v3552 = vsub.f32 1.5, %v3551
        %v3553 = vmul.f32 %v3548, %v3552
        %vm3554 = vweird.f32 %v3406
        %vm3555 = vweird.f32 %v3548
        %vm3556 = vmor %vm3554, %vm3555
        %v3557 = vsel %vm3556, %v3548, %v3553
        %v3558 = vrsqrt.pop %v3407
        %v3559 = vmul.f32 %v3558, %v3407
        %v3560 = vmul.f32 %v3559, %v3558
        %v3561 = vmul.f32 0.5, %v3560
        %v3562 = vsub.f32 1.5, %v3561
        %v3563 = vmul.f32 %v3558, %v3562
        %vm3564 = vweird.f32 %v3407
        %vm3565 = vweird.f32 %v3558
        %vm3566 = vmor %vm3564, %vm3565
        %v3567 = vsel %vm3566, %v3558, %v3563
        %v3568 = vmul.f32 %v3312, %v3417
        %v3569 = vmul.f32 %v3313, %v3427
        %v3570 = vmul.f32 %v3314, %v3437
        %v3571 = vmul.f32 %v3315, %v3447
        %v3572 = vmul.f32 %v3316, %v3457
        %v3573 = vmul.f32 %v3317, %v3467
        %v3574 = vmul.f32 %v3318, %v3477
        %v3575 = vmul.f32 %v3319, %v3487
        %v3576 = vmul.f32 %v3320, %v3497
        %v3577 = vmul.f32 %v3321, %v3507
        %v3578 = vmul.f32 %v3322, %v3517
        %v3579 = vmul.f32 %v3323, %v3527
        %v3580 = vmul.f32 %v3324, %v3537
        %v3581 = vmul.f32 %v3325, %v3547
        %v3582 = vmul.f32 %v3326, %v3557
        %v3583 = vmul.f32 %v3327, %v3567
        %v3585 = vperm.slane %v3247, 0
        %v3587 = vmul.f32 %v3568, %v3585
        %v3588 = vmul.f32 %v3569, %v3585
        %v3589 = vmul.f32 %v3570, %v3585
        %v3590 = vmul.f32 %v3571, %v3585
        %v3591 = vmul.f32 %v3572, %v3585
        %v3592 = vmul.f32 %v3573, %v3585
        %v3593 = vmul.f32 %v3574, %v3585
        %v3594 = vmul.f32 %v3575, %v3585
        %v3595 = vmul.f32 %v3576, %v3585
        %v3596 = vmul.f32 %v3577, %v3585
        %v3597 = vmul.f32 %v3578, %v3585
        %v3598 = vmul.f32 %v3579, %v3585
        %v3599 = vmul.f32 %v3580, %v3585
        %v3600 = vmul.f32 %v3581, %v3585
        %v3601 = vmul.f32 %v3582, %v3585
        %v3602 = vmul.f32 %v3583, %v3585
        %v3603 = vpack.c.bf16 %v3588, %v3587
        %v3604 = vpack.c.bf16 %v3590, %v3589
        %v3605 = vpack.c.bf16 %v3592, %v3591
        %v3606 = vpack.c.bf16 %v3594, %v3593
        %v3607 = vpack.c.bf16 %v3596, %v3595
        %v3608 = vpack.c.bf16 %v3598, %v3597
        %v3609 = vpack.c.bf16 %v3600, %v3599
        %v3610 = vpack.c.bf16 %v3602, %v3601
        %v3611 = vld [vmem:[%s6] sm:$0xf]
        %v3612 = vld [vmem:[%s6 + $0x4] sm:$0xf]
        %v3613 = vld [vmem:[%s6 + $0x8] sm:$0xf]
        %v3614 = vld [vmem:[%s6 + $0xc] sm:$0xf]
        %v3615 = vld [vmem:[%s6 + $0x10] sm:$0xf]
        %v3616 = vld [vmem:[%s6 + $0x14] sm:$0xf]
        %v3617 = vld [vmem:[%s6 + $0x18] sm:$0xf]
        %v3618 = vld [vmem:[%s6 + $0x1c] sm:$0xf]
        %v3619 = vld [vmem:[%s6 + $0x20] sm:$0xf]
        %v3620 = vld [vmem:[%s6 + $0x24] sm:$0xf]
        %v3621 = vld [vmem:[%s6 + $0x28] sm:$0xf]
        %v3622 = vld [vmem:[%s6 + $0x2c] sm:$0xf]
        %v3623 = vld [vmem:[%s6 + $0x30] sm:$0xf]
        %v3624 = vld [vmem:[%s6 + $0x34] sm:$0xf]
        %v3625 = vld [vmem:[%s6 + $0x38] sm:$0xf]
        %v3626 = vld [vmem:[%s6 + $0x3c] sm:$0xf]
        %v3643 = vunpack.c.l.b16 %v3611
        %v3644 = vunpack.c.l.b16 %v3612
        %v3645 = vunpack.c.l.b16 %v3613
        %v3646 = vunpack.c.l.b16 %v3614
        %v3647 = vunpack.c.l.b16 %v3615
        %v3648 = vunpack.c.l.b16 %v3616
        %v3649 = vunpack.c.l.b16 %v3617
        %v3650 = vunpack.c.l.b16 %v3618
        %v3651 = vunpack.c.l.b16 %v3619
        %v3652 = vunpack.c.l.b16 %v3620
        %v3653 = vunpack.c.l.b16 %v3621
        %v3654 = vunpack.c.l.b16 %v3622
        %v3655 = vunpack.c.l.b16 %v3623
        %v3656 = vunpack.c.l.b16 %v3624
        %v3657 = vunpack.c.l.b16 %v3625
        %v3658 = vunpack.c.l.b16 %v3626
        %v3659 = vpack.c.b16 %v3644, %v3643
        %v3660 = vpack.c.b16 %v3646, %v3645
        %v3661 = vpack.c.b16 %v3648, %v3647
        %v3662 = vpack.c.b16 %v3650, %v3649
        %v3663 = vpack.c.b16 %v3652, %v3651
        %v3664 = vpack.c.b16 %v3654, %v3653
        %v3665 = vpack.c.b16 %v3656, %v3655
        %v3666 = vpack.c.b16 %v3658, %v3657
        %3675 = vmatpush.bf16.msra.mxu0 %v3666
        %3676 = vmatpush.bf16.msra.mxu0 %v3665
        %3677 = vmatpush.bf16.msra.mxu0 %v3664
        %3678 = vmatpush.bf16.msra.mxu0 %v3663
        %3679 = vmatpush.bf16.msra.mxu0 %v3662
        %3680 = vmatpush.bf16.msra.mxu0 %v3661
        %3681 = vmatpush.bf16.msra.mxu0 %v3660
        %3682 = vmatpush.bf16.msra.mxu0 %v3659
        %3683 = vmatmul.bf16.gmra.mxu0 %v3603
        %v3684 = vpop.f32.mrf.mxu0
        %v3685 = vadd.f32 0.0, %v3684
        %v3686 = vpop.f32.mrf.mxu0
        %v3687 = vadd.f32 0.0, %v3686
        %3688 = vmatmul.bf16.gmra.mxu0 %v3604
        %v3689 = vpop.f32.mrf.mxu0
        %v3690 = vadd.f32 0.0, %v3689
        %v3691 = vpop.f32.mrf.mxu0
        %v3692 = vadd.f32 0.0, %v3691
        %3693 = vmatmul.bf16.gmra.mxu0 %v3605
        %v3694 = vpop.f32.mrf.mxu0
        %v3695 = vadd.f32 0.0, %v3694
        %v3696 = vpop.f32.mrf.mxu0
        %v3697 = vadd.f32 0.0, %v3696
        %3698 = vmatmul.bf16.gmra.mxu0 %v3606
        %v3699 = vpop.f32.mrf.mxu0
        %v3700 = vadd.f32 0.0, %v3699
        %v3701 = vpop.f32.mrf.mxu0
        %v3702 = vadd.f32 0.0, %v3701
        %3703 = vmatmul.bf16.gmra.mxu0 %v3607
        %v3704 = vpop.f32.mrf.mxu0
        %v3705 = vadd.f32 0.0, %v3704
        %v3706 = vpop.f32.mrf.mxu0
        %v3707 = vadd.f32 0.0, %v3706
        %3708 = vmatmul.bf16.gmra.mxu0 %v3608
        %v3709 = vpop.f32.mrf.mxu0
        %v3710 = vadd.f32 0.0, %v3709
        %v3711 = vpop.f32.mrf.mxu0
        %v3712 = vadd.f32 0.0, %v3711
        %3713 = vmatmul.bf16.gmra.mxu0 %v3609
        %v3714 = vpop.f32.mrf.mxu0
        %v3715 = vadd.f32 0.0, %v3714
        %v3716 = vpop.f32.mrf.mxu0
        %v3717 = vadd.f32 0.0, %v3716
        %3718 = vmatmul.bf16.gmra.mxu0 %v3610
        %v3719 = vpop.f32.mrf.mxu0
        %v3720 = vadd.f32 0.0, %v3719
        %v3721 = vpop.f32.mrf.mxu0
        %v3722 = vadd.f32 0.0, %v3721
        %3723 = vdwg.mxu0
        %v3724 = vxor.u32 %v3685, 2147483648
        %v3725 = vxor.u32 %v3687, 2147483648
        %v3726 = vxor.u32 %v3690, 2147483648
        %v3727 = vxor.u32 %v3692, 2147483648
        %v3728 = vxor.u32 %v3695, 2147483648
        %v3729 = vxor.u32 %v3697, 2147483648
        %v3730 = vxor.u32 %v3700, 2147483648
        %v3731 = vxor.u32 %v3702, 2147483648
        %v3732 = vxor.u32 %v3705, 2147483648
        %v3733 = vxor.u32 %v3707, 2147483648
        %v3734 = vxor.u32 %v3710, 2147483648
        %v3735 = vxor.u32 %v3712, 2147483648
        %v3736 = vxor.u32 %v3715, 2147483648
        %v3737 = vxor.u32 %v3717, 2147483648
        %v3738 = vxor.u32 %v3720, 2147483648
        %v3739 = vxor.u32 %v3722, 2147483648
        %v3740 = vmul.f32 %v3724, 1.442695
        %v3741 = vpow.pop %v3740
        %v3742 = vmul.f32 %v3725, 1.442695
        %v3743 = vpow.pop %v3742
        %v3744 = vmul.f32 %v3726, 1.442695
        %v3745 = vpow.pop %v3744
        %v3746 = vmul.f32 %v3727, 1.442695
        %v3747 = vpow.pop %v3746
        %v3748 = vmul.f32 %v3728, 1.442695
        %v3749 = vpow.pop %v3748
        %v3750 = vmul.f32 %v3729, 1.442695
        %v3751 = vpow.pop %v3750
        %v3752 = vmul.f32 %v3730, 1.442695
        %v3753 = vpow.pop %v3752
        %v3754 = vmul.f32 %v3731, 1.442695
        %v3755 = vpow.pop %v3754
        %v3756 = vmul.f32 %v3732, 1.442695
        %v3757 = vpow.pop %v3756
        %v3758 = vmul.f32 %v3733, 1.442695
        %v3759 = vpow.pop %v3758
        %v3760 = vmul.f32 %v3734, 1.442695
        %v3761 = vpow.pop %v3760
        %v3762 = vmul.f32 %v3735, 1.442695
        %v3763 = vpow.pop %v3762
        %v3764 = vmul.f32 %v3736, 1.442695
        %v3765 = vpow.pop %v3764
        %v3766 = vmul.f32 %v3737, 1.442695
        %v3767 = vpow.pop %v3766
        %v3768 = vmul.f32 %v3738, 1.442695
        %v3769 = vpow.pop %v3768
        %v3770 = vmul.f32 %v3739, 1.442695
        %v3771 = vpow.pop %v3770
        %v3772 = vadd.f32 %v3741, 1.0
        %v3773 = vadd.f32 %v3743, 1.0
        %v3774 = vadd.f32 %v3745, 1.0
        %v3775 = vadd.f32 %v3747, 1.0
        %v3776 = vadd.f32 %v3749, 1.0
        %v3777 = vadd.f32 %v3751, 1.0
        %v3778 = vadd.f32 %v3753, 1.0
        %v3779 = vadd.f32 %v3755, 1.0
        %v3780 = vadd.f32 %v3757, 1.0
        %v3781 = vadd.f32 %v3759, 1.0
        %v3782 = vadd.f32 %v3761, 1.0
        %v3783 = vadd.f32 %v3763, 1.0
        %v3784 = vadd.f32 %v3765, 1.0
        %v3785 = vadd.f32 %v3767, 1.0
        %v3786 = vadd.f32 %v3769, 1.0
        %v3787 = vadd.f32 %v3771, 1.0
        %v3788 = vrcp.pop %v3772
        %v3789 = vmul.f32 %v3772, %v3788
        %v3790 = vsub.f32 1.0, %v3789
        %v3791 = vmul.f32 %v3788, %v3790
        %v3792 = vadd.f32 %v3788, %v3791
        %vm3793 = vweird.f32 %v3772
        %vm3794 = vweird.f32 %v3788
        %vm3795 = vmor %vm3793, %vm3794
        %v3796 = vsel %vm3795, %v3788, %v3792
        %v3797 = vand.u32 2147483647, %v3772
        %vm3798 = vcmp.eq.f32.partialorder %v3797, 8.507059e+37
        %v3799 = vand.u32 %v3772, 2147483648
        %v3800 = vor.u32 1.1754944e-38, %v3799
        %v3801 = vsel %vm3798, %v3800, %v3796
        %v3802 = vmul.f32 1.0, %v3801
        %v3803 = vrcp.pop %v3773
        %v3804 = vmul.f32 %v3773, %v3803
        %v3805 = vsub.f32 1.0, %v3804
        %v3806 = vmul.f32 %v3803, %v3805
        %v3807 = vadd.f32 %v3803, %v3806
        %vm3808 = vweird.f32 %v3773
        %vm3809 = vweird.f32 %v3803
        %vm3810 = vmor %vm3808, %vm3809
        %v3811 = vsel %vm3810, %v3803, %v3807
        %v3812 = vand.u32 2147483647, %v3773
        %vm3813 = vcmp.eq.f32.partialorder %v3812, 8.507059e+37
        %v3814 = vand.u32 %v3773, 2147483648
        %v3815 = vor.u32 1.1754944e-38, %v3814
        %v3816 = vsel %vm3813, %v3815, %v3811
        %v3817 = vmul.f32 1.0, %v3816
        %v3818 = vrcp.pop %v3774
        %v3819 = vmul.f32 %v3774, %v3818
        %v3820 = vsub.f32 1.0, %v3819
        %v3821 = vmul.f32 %v3818, %v3820
        %v3822 = vadd.f32 %v3818, %v3821
        %vm3823 = vweird.f32 %v3774
        %vm3824 = vweird.f32 %v3818
        %vm3825 = vmor %vm3823, %vm3824
        %v3826 = vsel %vm3825, %v3818, %v3822
        %v3827 = vand.u32 2147483647, %v3774
        %vm3828 = vcmp.eq.f32.partialorder %v3827, 8.507059e+37
        %v3829 = vand.u32 %v3774, 2147483648
        %v3830 = vor.u32 1.1754944e-38, %v3829
        %v3831 = vsel %vm3828, %v3830, %v3826
        %v3832 = vmul.f32 1.0, %v3831
        %v3833 = vrcp.pop %v3775
        %v3834 = vmul.f32 %v3775, %v3833
        %v3835 = vsub.f32 1.0, %v3834
        %v3836 = vmul.f32 %v3833, %v3835
        %v3837 = vadd.f32 %v3833, %v3836
        %vm3838 = vweird.f32 %v3775
        %vm3839 = vweird.f32 %v3833
        %vm3840 = vmor %vm3838, %vm3839
        %v3841 = vsel %vm3840, %v3833, %v3837
        %v3842 = vand.u32 2147483647, %v3775
        %vm3843 = vcmp.eq.f32.partialorder %v3842, 8.507059e+37
        %v3844 = vand.u32 %v3775, 2147483648
        %v3845 = vor.u32 1.1754944e-38, %v3844
        %v3846 = vsel %vm3843, %v3845, %v3841
        %v3847 = vmul.f32 1.0, %v3846
        %v3848 = vrcp.pop %v3776
        %v3849 = vmul.f32 %v3776, %v3848
        %v3850 = vsub.f32 1.0, %v3849
        %v3851 = vmul.f32 %v3848, %v3850
        %v3852 = vadd.f32 %v3848, %v3851
        %vm3853 = vweird.f32 %v3776
        %vm3854 = vweird.f32 %v3848
        %vm3855 = vmor %vm3853, %vm3854
        %v3856 = vsel %vm3855, %v3848, %v3852
        %v3857 = vand.u32 2147483647, %v3776
        %vm3858 = vcmp.eq.f32.partialorder %v3857, 8.507059e+37
        %v3859 = vand.u32 %v3776, 2147483648
        %v3860 = vor.u32 1.1754944e-38, %v3859
        %v3861 = vsel %vm3858, %v3860, %v3856
        %v3862 = vmul.f32 1.0, %v3861
        %v3863 = vrcp.pop %v3777
        %v3864 = vmul.f32 %v3777, %v3863
        %v3865 = vsub.f32 1.0, %v3864
        %v3866 = vmul.f32 %v3863, %v3865
        %v3867 = vadd.f32 %v3863, %v3866
        %vm3868 = vweird.f32 %v3777
        %vm3869 = vweird.f32 %v3863
        %vm3870 = vmor %vm3868, %vm3869
        %v3871 = vsel %vm3870, %v3863, %v3867
        %v3872 = vand.u32 2147483647, %v3777
        %vm3873 = vcmp.eq.f32.partialorder %v3872, 8.507059e+37
        %v3874 = vand.u32 %v3777, 2147483648
        %v3875 = vor.u32 1.1754944e-38, %v3874
        %v3876 = vsel %vm3873, %v3875, %v3871
        %v3877 = vmul.f32 1.0, %v3876
        %v3878 = vrcp.pop %v3778
        %v3879 = vmul.f32 %v3778, %v3878
        %v3880 = vsub.f32 1.0, %v3879
        %v3881 = vmul.f32 %v3878, %v3880
        %v3882 = vadd.f32 %v3878, %v3881
        %vm3883 = vweird.f32 %v3778
        %vm3884 = vweird.f32 %v3878
        %vm3885 = vmor %vm3883, %vm3884
        %v3886 = vsel %vm3885, %v3878, %v3882
        %v3887 = vand.u32 2147483647, %v3778
        %vm3888 = vcmp.eq.f32.partialorder %v3887, 8.507059e+37
        %v3889 = vand.u32 %v3778, 2147483648
        %v3890 = vor.u32 1.1754944e-38, %v3889
        %v3891 = vsel %vm3888, %v3890, %v3886
        %v3892 = vmul.f32 1.0, %v3891
        %v3893 = vrcp.pop %v3779
        %v3894 = vmul.f32 %v3779, %v3893
        %v3895 = vsub.f32 1.0, %v3894
        %v3896 = vmul.f32 %v3893, %v3895
        %v3897 = vadd.f32 %v3893, %v3896
        %vm3898 = vweird.f32 %v3779
        %vm3899 = vweird.f32 %v3893
        %vm3900 = vmor %vm3898, %vm3899
        %v3901 = vsel %vm3900, %v3893, %v3897
        %v3902 = vand.u32 2147483647, %v3779
        %vm3903 = vcmp.eq.f32.partialorder %v3902, 8.507059e+37
        %v3904 = vand.u32 %v3779, 2147483648
        %v3905 = vor.u32 1.1754944e-38, %v3904
        %v3906 = vsel %vm3903, %v3905, %v3901
        %v3907 = vmul.f32 1.0, %v3906
        %v3908 = vrcp.pop %v3780
        %v3909 = vmul.f32 %v3780, %v3908
        %v3910 = vsub.f32 1.0, %v3909
        %v3911 = vmul.f32 %v3908, %v3910
        %v3912 = vadd.f32 %v3908, %v3911
        %vm3913 = vweird.f32 %v3780
        %vm3914 = vweird.f32 %v3908
        %vm3915 = vmor %vm3913, %vm3914
        %v3916 = vsel %vm3915, %v3908, %v3912
        %v3917 = vand.u32 2147483647, %v3780
        %vm3918 = vcmp.eq.f32.partialorder %v3917, 8.507059e+37
        %v3919 = vand.u32 %v3780, 2147483648
        %v3920 = vor.u32 1.1754944e-38, %v3919
        %v3921 = vsel %vm3918, %v3920, %v3916
        %v3922 = vmul.f32 1.0, %v3921
        %v3923 = vrcp.pop %v3781
        %v3924 = vmul.f32 %v3781, %v3923
        %v3925 = vsub.f32 1.0, %v3924
        %v3926 = vmul.f32 %v3923, %v3925
        %v3927 = vadd.f32 %v3923, %v3926
        %vm3928 = vweird.f32 %v3781
        %vm3929 = vweird.f32 %v3923
        %vm3930 = vmor %vm3928, %vm3929
        %v3931 = vsel %vm3930, %v3923, %v3927
        %v3932 = vand.u32 2147483647, %v3781
        %vm3933 = vcmp.eq.f32.partialorder %v3932, 8.507059e+37
        %v3934 = vand.u32 %v3781, 2147483648
        %v3935 = vor.u32 1.1754944e-38, %v3934
        %v3936 = vsel %vm3933, %v3935, %v3931
        %v3937 = vmul.f32 1.0, %v3936
        %v3938 = vrcp.pop %v3782
        %v3939 = vmul.f32 %v3782, %v3938
        %v3940 = vsub.f32 1.0, %v3939
        %v3941 = vmul.f32 %v3938, %v3940
        %v3942 = vadd.f32 %v3938, %v3941
        %vm3943 = vweird.f32 %v3782
        %vm3944 = vweird.f32 %v3938
        %vm3945 = vmor %vm3943, %vm3944
        %v3946 = vsel %vm3945, %v3938, %v3942
        %v3947 = vand.u32 2147483647, %v3782
        %vm3948 = vcmp.eq.f32.partialorder %v3947, 8.507059e+37
        %v3949 = vand.u32 %v3782, 2147483648
        %v3950 = vor.u32 1.1754944e-38, %v3949
        %v3951 = vsel %vm3948, %v3950, %v3946
        %v3952 = vmul.f32 1.0, %v3951
        %v3953 = vrcp.pop %v3783
        %v3954 = vmul.f32 %v3783, %v3953
        %v3955 = vsub.f32 1.0, %v3954
        %v3956 = vmul.f32 %v3953, %v3955
        %v3957 = vadd.f32 %v3953, %v3956
        %vm3958 = vweird.f32 %v3783
        %vm3959 = vweird.f32 %v3953
        %vm3960 = vmor %vm3958, %vm3959
        %v3961 = vsel %vm3960, %v3953, %v3957
        %v3962 = vand.u32 2147483647, %v3783
        %vm3963 = vcmp.eq.f32.partialorder %v3962, 8.507059e+37
        %v3964 = vand.u32 %v3783, 2147483648
        %v3965 = vor.u32 1.1754944e-38, %v3964
        %v3966 = vsel %vm3963, %v3965, %v3961
        %v3967 = vmul.f32 1.0, %v3966
        %v3968 = vrcp.pop %v3784
        %v3969 = vmul.f32 %v3784, %v3968
        %v3970 = vsub.f32 1.0, %v3969
        %v3971 = vmul.f32 %v3968, %v3970
        %v3972 = vadd.f32 %v3968, %v3971
        %vm3973 = vweird.f32 %v3784
        %vm3974 = vweird.f32 %v3968
        %vm3975 = vmor %vm3973, %vm3974
        %v3976 = vsel %vm3975, %v3968, %v3972
        %v3977 = vand.u32 2147483647, %v3784
        %vm3978 = vcmp.eq.f32.partialorder %v3977, 8.507059e+37
        %v3979 = vand.u32 %v3784, 2147483648
        %v3980 = vor.u32 1.1754944e-38, %v3979
        %v3981 = vsel %vm3978, %v3980, %v3976
        %v3982 = vmul.f32 1.0, %v3981
        %v3983 = vrcp.pop %v3785
        %v3984 = vmul.f32 %v3785, %v3983
        %v3985 = vsub.f32 1.0, %v3984
        %v3986 = vmul.f32 %v3983, %v3985
        %v3987 = vadd.f32 %v3983, %v3986
        %vm3988 = vweird.f32 %v3785
        %vm3989 = vweird.f32 %v3983
        %vm3990 = vmor %vm3988, %vm3989
        %v3991 = vsel %vm3990, %v3983, %v3987
        %v3992 = vand.u32 2147483647, %v3785
        %vm3993 = vcmp.eq.f32.partialorder %v3992, 8.507059e+37
        %v3994 = vand.u32 %v3785, 2147483648
        %v3995 = vor.u32 1.1754944e-38, %v3994
        %v3996 = vsel %vm3993, %v3995, %v3991
        %v3997 = vmul.f32 1.0, %v3996
        %v3998 = vrcp.pop %v3786
        %v3999 = vmul.f32 %v3786, %v3998
        %v4000 = vsub.f32 1.0, %v3999
        %v4001 = vmul.f32 %v3998, %v4000
        %v4002 = vadd.f32 %v3998, %v4001
        %vm4003 = vweird.f32 %v3786
        %vm4004 = vweird.f32 %v3998
        %vm4005 = vmor %vm4003, %vm4004
        %v4006 = vsel %vm4005, %v3998, %v4002
        %v4007 = vand.u32 2147483647, %v3786
        %vm4008 = vcmp.eq.f32.partialorder %v4007, 8.507059e+37
        %v4009 = vand.u32 %v3786, 2147483648
        %v4010 = vor.u32 1.1754944e-38, %v4009
        %v4011 = vsel %vm4008, %v4010, %v4006
        %v4012 = vmul.f32 1.0, %v4011
        %v4013 = vrcp.pop %v3787
        %v4014 = vmul.f32 %v3787, %v4013
        %v4015 = vsub.f32 1.0, %v4014
        %v4016 = vmul.f32 %v4013, %v4015
        %v4017 = vadd.f32 %v4013, %v4016
        %vm4018 = vweird.f32 %v3787
        %vm4019 = vweird.f32 %v4013
        %vm4020 = vmor %vm4018, %vm4019
        %v4021 = vsel %vm4020, %v4013, %v4017
        %v4022 = vand.u32 2147483647, %v3787
        %vm4023 = vcmp.eq.f32.partialorder %v4022, 8.507059e+37
        %v4024 = vand.u32 %v3787, 2147483648
        %v4025 = vor.u32 1.1754944e-38, %v4024
        %v4026 = vsel %vm4023, %v4025, %v4021
        %v4027 = vmul.f32 1.0, %v4026
        %v4028 = vmul.f32 %v3685, %v3802
        %v4029 = vmul.f32 %v3687, %v3817
        %v4030 = vmul.f32 %v3690, %v3832
        %v4031 = vmul.f32 %v3692, %v3847
        %v4032 = vmul.f32 %v3695, %v3862
        %v4033 = vmul.f32 %v3697, %v3877
        %v4034 = vmul.f32 %v3700, %v3892
        %v4035 = vmul.f32 %v3702, %v3907
        %v4036 = vmul.f32 %v3705, %v3922
        %v4037 = vmul.f32 %v3707, %v3937
        %v4038 = vmul.f32 %v3710, %v3952
        %v4039 = vmul.f32 %v3712, %v3967
        %v4040 = vmul.f32 %v3715, %v3982
        %v4041 = vmul.f32 %v3717, %v3997
        %v4042 = vmul.f32 %v3720, %v4012
        %v4043 = vmul.f32 %v3722, %v4027
        %v4044 = vpack.c.bf16 %v4029, %v4028
        %v4045 = vpack.c.bf16 %v4031, %v4030
        %v4046 = vpack.c.bf16 %v4033, %v4032
        %v4047 = vpack.c.bf16 %v4035, %v4034
        %v4048 = vpack.c.bf16 %v4037, %v4036
        %v4049 = vpack.c.bf16 %v4039, %v4038
        %v4050 = vpack.c.bf16 %v4041, %v4040
        %v4051 = vpack.c.bf16 %v4043, %v4042
        %v4052 = vld [vmem:[%s7] sm:$0xf]
        %v4053 = vld [vmem:[%s7 + $0x4] sm:$0xf]
        %v4054 = vld [vmem:[%s7 + $0x8] sm:$0xf]
        %v4055 = vld [vmem:[%s7 + $0xc] sm:$0xf]
        %v4056 = vld [vmem:[%s7 + $0x10] sm:$0xf]
        %v4057 = vld [vmem:[%s7 + $0x14] sm:$0xf]
        %v4058 = vld [vmem:[%s7 + $0x18] sm:$0xf]
        %v4059 = vld [vmem:[%s7 + $0x1c] sm:$0xf]
        %v4068 = vunpack.c.l.b16 %v4052
        %v4069 = vunpack.c.l.b16 %v4053
        %v4070 = vunpack.c.l.b16 %v4054
        %v4071 = vunpack.c.l.b16 %v4055
        %v4072 = vunpack.c.l.b16 %v4056
        %v4073 = vunpack.c.l.b16 %v4057
        %v4074 = vunpack.c.l.b16 %v4058
        %v4075 = vunpack.c.l.b16 %v4059
        %v4076 = vpack.c.b16 %v4069, %v4068
        %v4077 = vpack.c.b16 %v4071, %v4070
        %v4078 = vpack.c.b16 %v4073, %v4072
        %v4079 = vpack.c.b16 %v4075, %v4074
        %v4085 = vsel %vm1091, %v4044, 0
        %v4088 = vsel %vm1091, %v4045, 0
        %v4091 = vsel %vm1091, %v4046, 0
        %v4094 = vsel %vm1091, %v4047, 0
        %v4097 = vsel %vm1091, %v4048, 0
        %v4100 = vsel %vm1091, %v4049, 0
        %v4103 = vsel %vm1091, %v4050, 0
        %v4106 = vsel %vm1091, %v4051, 0
        %4108 = vmatpush.bf16.msra.mxu0 0
        %4109 = vmatpush.bf16.msra.mxu0 0
        %4110 = vmatpush.bf16.msra.mxu0 0
        %4111 = vmatpush.bf16.msra.mxu0 0
        %4112 = vmatpush.bf16.msra.mxu0 %v4079
        %4113 = vmatpush.bf16.msra.mxu0 %v4078
        %4114 = vmatpush.bf16.msra.mxu0 %v4077
        %4115 = vmatpush.bf16.msra.mxu0 %v4076
        %4116 = vmatmul.bf16.gmra.mxu0 %v4085
        %v4117 = vpop.f32.mrf.mxu0
        %v4118 = vadd.f32 0.0, %v4117
        %v4119 = vpop.f32.mrf.mxu0
        %v4120 = vadd.f32 0.0, %v4119
        %4121 = vmatmul.bf16.gmra.mxu0 %v4088
        %v4122 = vpop.f32.mrf.mxu0
        %v4123 = vadd.f32 0.0, %v4122
        %v4124 = vpop.f32.mrf.mxu0
        %v4125 = vadd.f32 0.0, %v4124
        %4126 = vmatmul.bf16.gmra.mxu0 %v4091
        %v4127 = vpop.f32.mrf.mxu0
        %v4128 = vadd.f32 0.0, %v4127
        %v4129 = vpop.f32.mrf.mxu0
        %v4130 = vadd.f32 0.0, %v4129
        %4131 = vmatmul.bf16.gmra.mxu0 %v4094
        %v4132 = vpop.f32.mrf.mxu0
        %v4133 = vadd.f32 0.0, %v4132
        %v4134 = vpop.f32.mrf.mxu0
        %v4135 = vadd.f32 0.0, %v4134
        %4136 = vmatmul.bf16.gmra.mxu0 %v4097
        %v4137 = vpop.f32.mrf.mxu0
        %v4138 = vadd.f32 0.0, %v4137
        %v4139 = vpop.f32.mrf.mxu0
        %v4140 = vadd.f32 0.0, %v4139
        %4141 = vmatmul.bf16.gmra.mxu0 %v4100
        %v4142 = vpop.f32.mrf.mxu0
        %v4143 = vadd.f32 0.0, %v4142
        %v4144 = vpop.f32.mrf.mxu0
        %v4145 = vadd.f32 0.0, %v4144
        %4146 = vmatmul.bf16.gmra.mxu0 %v4103
        %v4147 = vpop.f32.mrf.mxu0
        %v4148 = vadd.f32 0.0, %v4147
        %v4149 = vpop.f32.mrf.mxu0
        %v4150 = vadd.f32 0.0, %v4149
        %4151 = vmatmul.bf16.gmra.mxu0 %v4106
        %v4152 = vpop.f32.mrf.mxu0
        %v4153 = vadd.f32 0.0, %v4152
        %v4154 = vpop.f32.mrf.mxu0
        %v4155 = vadd.f32 0.0, %v4154
        %4156 = vdwg.mxu0
        %v4157 = vadd.f32 %v3231, %v4118
        %v4158 = vadd.f32 %v3232, %v4120
        %v4159 = vadd.f32 %v3233, %v4123
        %v4160 = vadd.f32 %v3234, %v4125
        %v4161 = vadd.f32 %v3235, %v4128
        %v4162 = vadd.f32 %v3236, %v4130
        %v4163 = vadd.f32 %v3237, %v4133
        %v4164 = vadd.f32 %v3238, %v4135
        %v4165 = vadd.f32 %v3239, %v4138
        %v4166 = vadd.f32 %v3240, %v4140
        %v4167 = vadd.f32 %v3241, %v4143
        %v4168 = vadd.f32 %v3242, %v4145
        %v4169 = vadd.f32 %v3243, %v4148
        %v4170 = vadd.f32 %v3244, %v4150
        %v4171 = vadd.f32 %v3245, %v4153
        %v4172 = vadd.f32 %v3246, %v4155
        %v4173 = vld [vmem:[%s8] sm:$0x1]
        %v4175 = vperm.slane %v4173, 0
        %v4177 = vmul.f32 %v393, %v4175
        %v4178 = vmul.f32 %v394, %v4175
        %v4179 = vmul.f32 %v395, %v4175
        %v4180 = vmul.f32 %v396, %v4175
        %v4181 = vmul.f32 %v397, %v4175
        %v4182 = vmul.f32 %v398, %v4175
        %v4183 = vmul.f32 %v399, %v4175
        %v4184 = vmul.f32 %v400, %v4175
        %v4185 = vmul.f32 %v401, %v4175
        %v4186 = vmul.f32 %v402, %v4175
        %v4187 = vmul.f32 %v403, %v4175
        %v4188 = vmul.f32 %v404, %v4175
        %v4189 = vmul.f32 %v405, %v4175
        %v4190 = vmul.f32 %v406, %v4175
        %v4191 = vmul.f32 %v407, %v4175
        %v4192 = vmul.f32 %v408, %v4175
        %v4193 = vadd.f32 %v4157, %v4177
        %v4194 = vadd.f32 %v4158, %v4178
        %v4195 = vadd.f32 %v4159, %v4179
        %v4196 = vadd.f32 %v4160, %v4180
        %v4197 = vadd.f32 %v4161, %v4181
        %v4198 = vadd.f32 %v4162, %v4182
        %v4199 = vadd.f32 %v4163, %v4183
        %v4200 = vadd.f32 %v4164, %v4184
        %v4201 = vadd.f32 %v4165, %v4185
        %v4202 = vadd.f32 %v4166, %v4186
        %v4203 = vadd.f32 %v4167, %v4187
        %v4204 = vadd.f32 %v4168, %v4188
        %v4205 = vadd.f32 %v4169, %v4189
        %v4206 = vadd.f32 %v4170, %v4190
        %v4207 = vadd.f32 %v4171, %v4191
        %v4208 = vadd.f32 %v4172, %v4192
        %4209 = vst [vmem:[%s386] sm:$0xff] %v4193
        %4210 = vst [vmem:[%s386 + $0x8] sm:$0xff] %v4194
        %4211 = vst [vmem:[%s386 + $0x10] sm:$0xff] %v4195
        %4212 = vst [vmem:[%s386 + $0x18] sm:$0xff] %v4196
        %4213 = vst [vmem:[%s386 + $0x20] sm:$0xff] %v4197
        %4214 = vst [vmem:[%s386 + $0x28] sm:$0xff] %v4198
        %4215 = vst [vmem:[%s386 + $0x30] sm:$0xff] %v4199
        %4216 = vst [vmem:[%s386 + $0x38] sm:$0xff] %v4200
        %4217 = vst [vmem:[%s386 + $0x40] sm:$0xff] %v4201
        %4218 = vst [vmem:[%s386 + $0x48] sm:$0xff] %v4202
        %4219 = vst [vmem:[%s386 + $0x50] sm:$0xff] %v4203
        %4220 = vst [vmem:[%s386 + $0x58] sm:$0xff] %v4204
        %4221 = vst [vmem:[%s386 + $0x60] sm:$0xff] %v4205
        %4222 = vst [vmem:[%s386 + $0x68] sm:$0xff] %v4206
        %4223 = vst [vmem:[%s386 + $0x70] sm:$0xff] %v4207
        %4224 = vst [vmem:[%s386 + $0x78] sm:$0xff] %v4208
        %s4225 = sand.u32 %s229, 1
        %s4226 = scalar_lea.sflag [#allocation5], %s4225
        %s4227 = sand.u32 %s229, 1
        %s4228 = smul.addr %s4227, 128
        %s4229 = scalar_lea.vmem [#allocation9], %s4228
        // Predicated region
        $region69: #{tpu_custom_call.1} parent=55 // pred_check
          %p4230 = pneg %p239
        $region70: #{tpu_custom_call.1} parent=55 // pred_check_branch
          %4232 = sbr.rel (%p4230) target = $region72
        $region71: #{tpu_custom_call.1} parent=55 // pred_region
          %s4233 = smul.u32 2, %s27
          %4235 = vsyncadd %s4226, 0
          %s4236 = smul.addr %s4233, 8
          %s4237 = smul.addr %s4236, 8
          %s4238 = scalar_lea.hbm %s9, %s4237
          %s4239 = sshll.u32 %s4229, 4
          %s4240 = int_to_ptr.vmem [resolvable:$true] %s4239
          %s4241 = sshll.u32 %s4238, 4
          %s4242 = int_to_ptr.hbm [resolvable:$true] %s4241
          %4247 = dma.vmem_to_hbm [thread:$0]  %s4240, 2048, %s4242, %s4226, 128, 128, 8
        $region72: #{tpu_custom_call.1} parent=55 // pred_fallthru
          _
      $region56: #{tpu_custom_call.1} parent=5 // pred_fallthru
        _
      %p4248 = scmp.le.s32.totalorder 2, %s22
      // Predicated region
      $region73: #{tpu_custom_call.1} parent=5 // pred_check
        %p4249 = pneg %p4248
      $region74: #{tpu_custom_call.1} parent=5 // pred_check_branch
        %4251 = sbr.rel (%p4249) target = $region76
      $region75: #{tpu_custom_call.1} parent=5 // pred_region
        %s4252 = ssub.s32 %s22, 2
        // Predicated region
        $region77: #{tpu_custom_call.1} parent=75 // pred_check
          %p4253 = pneg %p245
        $region78: #{tpu_custom_call.1} parent=75 // pred_check_branch
          %4255 = sbr.rel (%p4253) target = $region80
        $region79: #{tpu_custom_call.1} parent=75 // pred_region
          %s4256 = sand.u32 %s230, 1
          %s4257 = scalar_lea.sflag [#allocation5], %s4256
          %s4258 = sand.u32 %s230, 1
          %s4259 = smul.addr %s4258, 128
          %s4260 = scalar_lea.vmem [#allocation9], %s4259
          %4262 = dma.done %s4257, 2048
        $region80: #{tpu_custom_call.1} parent=75 // pred_fallthru
          _
      $region76: #{tpu_custom_call.1} parent=5 // pred_fallthru
        _
    $region6: #{tpu_custom_call.1} parent=1 // loop_footer
      %s26 = sadd.s32 1, %s22
    $region7: #{tpu_custom_call.1} parent=1 // loop_footer_branch
      %21 = sbr.rel target = $region3
    $region8: #{tpu_custom_call.1} parent=1 // loop_exit
      _
    %4263 = vsyncpa [#allocation4], 1
    %s4264 = scalar_lea.sflag [#allocation4], 1
    %4265 = vsyncpa %s4264, 1
    %4266 = vsyncpa [#allocation7], 1
    %4267 = vsyncpa [#allocation5], 1
    %s4268 = scalar_lea.sflag [#allocation5], 1
    %4269 = vsyncpa %s4268, 1

// kernel: tpu_custom_call.1
$region0: #{tpu_custom_call.1}
  #allocation0 [shape = 'u32[]', space=smem, size = 0x4, offset = 0x4, fixed_abs, tag = 'smem constant byte address 0x4 - core index']
  #allocation1 [shape = 'u32[72,128]{1,0:T(1,128)}', space=vmem, size = 0x9000, scoped, tag = 'internal scratch']
  #allocation2 [shape = 'f32[2,64,32]{2,1,0:T(8,128)}', space=vmem, size = 0x10000, scoped, tag = 'scratch operand']
  %s0 = inlined_call_operand.hbm [shape: f32[4,64,128], index: 0, kind: input, shape index: {}]
  %s1 = inlined_call_operand.vmem [shape: f32[64,128], index: 1, kind: input, shape index: {}]
  %s2 = inlined_call_operand.hbm [shape: bf16[128,128], index: 2, kind: input, shape index: {}]
  %s3 = inlined_call_operand.hbm [shape: bf16[32,128], index: 3, kind: input, shape index: {}]
  %s4 = inlined_call_operand.vmem [shape: f32[1,128], index: 4, kind: input, shape index: {}]
  %s5 = inlined_call_operand.vmem [shape: f32[1,128], index: 5, kind: input, shape index: {}]
  %s6 = inlined_call_operand.vmem [shape: bf16[128,64], index: 6, kind: input, shape index: {}]
  %s7 = inlined_call_operand.vmem [shape: bf16[64,128], index: 7, kind: input, shape index: {}]
  %s8 = inlined_call_operand.vmem [shape: f32[1,128], index: 8, kind: input, shape index: {}]
  %s9 = inlined_call_operand.hbm [shape: f32[4,64,128], index: 9, kind: output, shape index: {}]
  %s10 = sld [smem:[#allocation0]]
  $region81: #{tpu_custom_call.1} parent=0
    _
  %s12 = ssub.s32 1, %s10
  %s13 = scalar_select 0, %s12, %s10
  $region1: #{tpu_custom_call.1} parent=0
    #allocation3 [shape = 'u8[131072]{0}', space=vmem, size = 0x20000, scoped, tag = 'input window, operand 0']
    #allocation4 [shape = 's32[2]{0}', space=sflag, size = 0x8, scoped, tag = 'scoped memory for tpu_custom_call.1']
    #allocation5 [shape = 's32[2]{0}', space=sflag, size = 0x8, scoped, tag = 'scoped memory for tpu_custom_call.1']
    #allocation6 [shape = 'u8[32768]{0}', space=vmem, size = 0x8000, scoped, tag = 'input window, operand 2, single buffered']
    #allocation7 [shape = 's32[1]{0}', space=sflag, size = 0x4, scoped, tag = 'scoped memory for tpu_custom_call.1']
    #allocation8 [shape = 'u8[8192]{0}', space=vmem, size = 0x2000, scoped, tag = 'input window, operand 3, single buffered']
    #allocation9 [shape = 'u8[131072]{0}', space=vmem, size = 0x20000, scoped, tag = 'output window, operand 0']
    %14 = vsyncpa [#allocation4], 0
    %s15 = scalar_lea.sflag [#allocation4], 1
    %16 = vsyncpa %s15, 0
    %17 = vsyncpa [#allocation7], 0
    %18 = vsyncpa [#allocation5], 0
    %s19 = scalar_lea.sflag [#allocation5], 1
    %20 = vsyncpa %s19, 0
    loop: start=0, step=1, limit=4
    $region2: #{tpu_custom_call.1} parent=1 // loop_pre_header
      _
    $region3: #{tpu_custom_call.1} parent=1 // loop_header
      %s22 = sphi 0, %s26
      %p23 = scmp.ge.s32.totalorder %s22, 4
      %s32 = sphi 0, %s34
      %s35 = sphi 0, %s32
      %s36 = sphi 0, %s35
      %s52 = sphi 0, %s36
      %s56 = sphi 0, %s56
      %s58 = sphi 0, %s56
      %s59 = sphi 0, %s58
      %s73 = sphi 0, %s59
      %s77 = sphi 0, %s77
      %s79 = sphi 0, %s77
      %s80 = sphi 0, %s79
      %s94 = sphi 0, %s80
      %s98 = sphi 0, %s98
      %s100 = sphi 0, %s98
      %s101 = sphi 0, %s100
      %s115 = sphi 0, %s101
      %s119 = sphi 0, %s119
      %s121 = sphi 0, %s119
      %s122 = sphi 0, %s121
      %s136 = sphi 0, %s122
      %s140 = sphi 0, %s140
      %s142 = sphi 0, %s140
      %s143 = sphi 0, %s142
      %s157 = sphi 0, %s143
      %s161 = sphi 0, %s161
      %s163 = sphi 0, %s161
      %s164 = sphi 0, %s163
      %s178 = sphi 0, %s164
      %s182 = sphi 0, %s182
      %s184 = sphi 0, %s182
      %s185 = sphi 0, %s184
      %s199 = sphi 0, %s185
      %s203 = sphi 0, %s203
      %s205 = sphi 0, %s203
      %s206 = sphi 0, %s205
      %s220 = sphi 0, %s206
      %s226 = sphi 0, %s228
      %s229 = sphi 0, %s226
      %s230 = sphi 0, %s229
      %s246 = sphi 0, %s230
    $region4: #{tpu_custom_call.1} parent=1 // loop_header_branch
      %25 = sbr.rel (%p23) target = $region8
    $region5: #{tpu_custom_call.1} parent=1 // loop_body
      %s27 = ssub.s32 %s22, 1
      %s28 = ssub.s32 %s22, 2
      %s29 = sadd.s32 %s22, 1
      %s30 = ssub.s32 %s22, %s29
      %p31 = scmp.eq.s32.totalorder %s30, 0
      %s33 = sadd.s32 %s32, 1
      %s34 = scalar_select %p31, %s32, %s33
      %p37 = pneg %p31
      %p38 = scmp.eq.s32.totalorder %s22, 1
      %p39 = por %p37, %p38
      %p40 = scmp.ne.s32.totalorder %s32, %s35
      %p41 = scmp.eq.s32.totalorder %s22, 0
      %p42 = por %p40, %p41
      %p43 = scmp.ne.s32.totalorder %s32, %s35
      %p44 = scmp.eq.s32.totalorder %s27, 1
      %p45 = por %p43, %p44
      %p46 = scmp.ne.s32.totalorder %s35, %s36
      %p47 = scmp.eq.s32.totalorder %s27, 0
      %p48 = por %p46, %p47
      %p49 = scmp.ne.s32.totalorder %s35, %s36
      %p50 = scmp.eq.s32.totalorder %s28, 1
      %p51 = por %p49, %p50
      %p53 = scmp.ne.s32.totalorder %s36, %s52
      %p54 = scmp.eq.s32.totalorder %s28, 0
      %p55 = por %p53, %p54
      %s57 = sadd.s32 %s56, 1
      %p60 = scmp.eq.s32.totalorder %s22, 1
      %p61 = scmp.ne.s32.totalorder %s56, %s58
      %p62 = scmp.eq.s32.totalorder %s22, 0
      %p63 = por %p61, %p62
      %p64 = scmp.ne.s32.totalorder %s56, %s58
      %p65 = scmp.eq.s32.totalorder %s27, 1
      %p66 = por %p64, %p65
      %p67 = scmp.ne.s32.totalorder %s58, %s59
      %p68 = scmp.eq.s32.totalorder %s27, 0
      %p69 = por %p67, %p68
      %p70 = scmp.ne.s32.totalorder %s58, %s59
      %p71 = scmp.eq.s32.totalorder %s28, 1
      %p72 = por %p70, %p71
      %p74 = scmp.ne.s32.totalorder %s59, %s73
      %p75 = scmp.eq.s32.totalorder %s28, 0
      %p76 = por %p74, %p75
      %s78 = sadd.s32 %s77, 1
      %p81 = scmp.eq.s32.totalorder %s22, 1
      %p82 = scmp.ne.s32.totalorder %s77, %s79
      %p83 = scmp.eq.s32.totalorder %s22, 0
      %p84 = por %p82, %p83
      %p85 = scmp.ne.s32.totalorder %s77, %s79
      %p86 = scmp.eq.s32.totalorder %s27, 1
      %p87 = por %p85, %p86
      %p88 = scmp.ne.s32.totalorder %s79, %s80
      %p89 = scmp.eq.s32.totalorder %s27, 0
      %p90 = por %p88, %p89
      %p91 = scmp.ne.s32.totalorder %s79, %s80
      %p92 = scmp.eq.s32.totalorder %s28, 1
      %p93 = por %p91, %p92
      %p95 = scmp.ne.s32.totalorder %s80, %s94
      %p96 = scmp.eq.s32.totalorder %s28, 0
      %p97 = por %p95, %p96
      %s99 = sadd.s32 %s98, 1
      %p102 = scmp.eq.s32.totalorder %s22, 1
      %p103 = scmp.ne.s32.totalorder %s98, %s100
      %p104 = scmp.eq.s32.totalorder %s22, 0
      %p105 = por %p103, %p104
      %p106 = scmp.ne.s32.totalorder %s98, %s100
      %p107 = scmp.eq.s32.totalorder %s27, 1
      %p108 = por %p106, %p107
      %p109 = scmp.ne.s32.totalorder %s100, %s101
      %p110 = scmp.eq.s32.totalorder %s27, 0
      %p111 = por %p109, %p110
      %p112 = scmp.ne.s32.totalorder %s100, %s101
      %p113 = scmp.eq.s32.totalorder %s28, 1
      %p114 = por %p112, %p113
      %p116 = scmp.ne.s32.totalorder %s101, %s115
      %p117 = scmp.eq.s32.totalorder %s28, 0
      %p118 = por %p116, %p117
      %s120 = sadd.s32 %s119, 1
      %p123 = scmp.eq.s32.totalorder %s22, 1
      %p124 = scmp.ne.s32.totalorder %s119, %s121
      %p125 = scmp.eq.s32.totalorder %s22, 0
      %p126 = por %p124, %p125
      %p127 = scmp.ne.s32.totalorder %s119, %s121
      %p128 = scmp.eq.s32.totalorder %s27, 1
      %p129 = por %p127, %p128
      %p130 = scmp.ne.s32.totalorder %s121, %s122
      %p131 = scmp.eq.s32.totalorder %s27, 0
      %p132 = por %p130, %p131
      %p133 = scmp.ne.s32.totalorder %s121, %s122
      %p134 = scmp.eq.s32.totalorder %s28, 1
      %p135 = por %p133, %p134
      %p137 = scmp.ne.s32.totalorder %s122, %s136
      %p138 = scmp.eq.s32.totalorder %s28, 0
      %p139 = por %p137, %p138
      %s141 = sadd.s32 %s140, 1
      %p144 = scmp.eq.s32.totalorder %s22, 1
      %p145 = scmp.ne.s32.totalorder %s140, %s142
      %p146 = scmp.eq.s32.totalorder %s22, 0
      %p147 = por %p145, %p146
      %p148 = scmp.ne.s32.totalorder %s140, %s142
      %p149 = scmp.eq.s32.totalorder %s27, 1
      %p150 = por %p148, %p149
      %p151 = scmp.ne.s32.totalorder %s142, %s143
      %p152 = scmp.eq.s32.totalorder %s27, 0
      %p153 = por %p151, %p152
      %p154 = scmp.ne.s32.totalorder %s142, %s143
      %p155 = scmp.eq.s32.totalorder %s28, 1
      %p156 = por %p154, %p155
      %p158 = scmp.ne.s32.totalorder %s143, %s157
      %p159 = scmp.eq.s32.totalorder %s28, 0
      %p160 = por %p158, %p159
      %s162 = sadd.s32 %s161, 1
      %p165 = scmp.eq.s32.totalorder %s22, 1
      %p166 = scmp.ne.s32.totalorder %s161, %s163
      %p167 = scmp.eq.s32.totalorder %s22, 0
      %p168 = por %p166, %p167
      %p169 = scmp.ne.s32.totalorder %s161, %s163
      %p170 = scmp.eq.s32.totalorder %s27, 1
      %p171 = por %p169, %p170
      %p172 = scmp.ne.s32.totalorder %s163, %s164
      %p173 = scmp.eq.s32.totalorder %s27, 0
      %p174 = por %p172, %p173
      %p175 = scmp.ne.s32.totalorder %s163, %s164
      %p176 = scmp.eq.s32.totalorder %s28, 1
      %p177 = por %p175, %p176
      %p179 = scmp.ne.s32.totalorder %s164, %s178
      %p180 = scmp.eq.s32.totalorder %s28, 0
      %p181 = por %p179, %p180
      %s183 = sadd.s32 %s182, 1
      %p186 = scmp.eq.s32.totalorder %s22, 1
      %p187 = scmp.ne.s32.totalorder %s182, %s184
      %p188 = scmp.eq.s32.totalorder %s22, 0
      %p189 = por %p187, %p188
      %p190 = scmp.ne.s32.totalorder %s182, %s184
      %p191 = scmp.eq.s32.totalorder %s27, 1
      %p192 = por %p190, %p191
      %p193 = scmp.ne.s32.totalorder %s184, %s185
      %p194 = scmp.eq.s32.totalorder %s27, 0
      %p195 = por %p193, %p194
      %p196 = scmp.ne.s32.totalorder %s184, %s185
      %p197 = scmp.eq.s32.totalorder %s28, 1
      %p198 = por %p196, %p197
      %p200 = scmp.ne.s32.totalorder %s185, %s199
      %p201 = scmp.eq.s32.totalorder %s28, 0
      %p202 = por %p200, %p201
      %s204 = sadd.s32 %s203, 1
      %p207 = scmp.eq.s32.totalorder %s22, 1
      %p208 = scmp.ne.s32.totalorder %s203, %s205
      %p209 = scmp.eq.s32.totalorder %s22, 0
      %p210 = por %p208, %p209
      %p211 = scmp.ne.s32.totalorder %s203, %s205
      %p212 = scmp.eq.s32.totalorder %s27, 1
      %p213 = por %p211, %p212
      %p214 = scmp.ne.s32.totalorder %s205, %s206
      %p215 = scmp.eq.s32.totalorder %s27, 0
      %p216 = por %p214, %p215
      %p217 = scmp.ne.s32.totalorder %s205, %s206
      %p218 = scmp.eq.s32.totalorder %s28, 1
      %p219 = por %p217, %p218
      %p221 = scmp.ne.s32.totalorder %s206, %s220
      %p222 = scmp.eq.s32.totalorder %s28, 0
      %p223 = por %p221, %p222
      %s224 = ssub.s32 %s22, %s29
      %p225 = scmp.eq.s32.totalorder %s224, 0
      %s227 = sadd.s32 %s226, 1
      %s228 = scalar_select %p225, %s226, %s227
      %p231 = pneg %p225
      %p232 = scmp.eq.s32.totalorder %s22, 1
      %p233 = por %p231, %p232
      %p234 = scmp.ne.s32.totalorder %s226, %s229
      %p235 = scmp.eq.s32.totalorder %s22, 0
      %p236 = por %p234, %p235
      %p237 = scmp.ne.s32.totalorder %s226, %s229
      %p238 = scmp.eq.s32.totalorder %s27, 1
      %p239 = por %p237, %p238
      %p240 = scmp.ne.s32.totalorder %s229, %s230
      %p241 = scmp.eq.s32.totalorder %s27, 0
      %p242 = por %p240, %p241
      %p243 = scmp.ne.s32.totalorder %s229, %s230
      %p244 = scmp.eq.s32.totalorder %s28, 1
      %p245 = por %p243, %p244
      %p247 = scmp.ne.s32.totalorder %s230, %s246
      %p248 = scmp.eq.s32.totalorder %s28, 0
      %p249 = por %p247, %p248
      %p250 = scmp.le.s32.totalorder 1, %s22
      %p251 = scmp.lt.s32.totalorder %s22, 3
      %p252 = pnand %p250, %p251
      %p253 = pneg %p252
      // Predicated region
      $region9: #{tpu_custom_call.1} parent=5 // pred_check
        _
      $region10: #{tpu_custom_call.1} parent=5 // pred_check_branch
        %255 = sbr.rel (%p252) target = $region12
      $region11: #{tpu_custom_call.1} parent=5 // pred_region
        %s256 = ssub.s32 %s22, 1
        // Predicated region
        $region13: #{tpu_custom_call.1} parent=11 // pred_check
          %p257 = pneg %p69
        $region14: #{tpu_custom_call.1} parent=11 // pred_check_branch
          %259 = sbr.rel (%p257) target = $region16
        $region15: #{tpu_custom_call.1} parent=11 // pred_region
          _
        $region16: #{tpu_custom_call.1} parent=11 // pred_fallthru
          _
        // Predicated region
        $region17: #{tpu_custom_call.1} parent=11 // pred_check
          %p260 = pneg %p90
        $region18: #{tpu_custom_call.1} parent=11 // pred_check_branch
          %262 = sbr.rel (%p260) target = $region20
        $region19: #{tpu_custom_call.1} parent=11 // pred_region
          %264 = vsyncadd [#allocation7], 0
          %s265 = sshll.u32 %s2, 4
          %s266 = int_to_ptr.hbm [resolvable:$true] %s265
          %s267 = sshll.u32 [#allocation6], 4
          %s268 = int_to_ptr.vmem [resolvable:$true] %s267
          %273 = dma.hbm_to_vmem [thread:$0]  %s266, 1024, %s268, [#allocation7], 64, 64, 4
        $region20: #{tpu_custom_call.1} parent=11 // pred_fallthru
          _
        // Predicated region
        $region21: #{tpu_custom_call.1} parent=11 // pred_check
          %p274 = pneg %p111
        $region22: #{tpu_custom_call.1} parent=11 // pred_check_branch
          %276 = sbr.rel (%p274) target = $region24
        $region23: #{tpu_custom_call.1} parent=11 // pred_region
          %278 = vsyncadd [#allocation7], 0
          %s279 = sshll.u32 %s3, 4
          %s280 = int_to_ptr.hbm [resolvable:$true] %s279
          %s281 = sshll.u32 [#allocation8], 4
          %s282 = int_to_ptr.vmem [resolvable:$true] %s281
          %287 = dma.hbm_to_vmem [thread:$0]  %s280, 256, %s282, [#allocation7], 64, 64, 4
        $region24: #{tpu_custom_call.1} parent=11 // pred_fallthru
          _
        // Predicated region
        $region25: #{tpu_custom_call.1} parent=11 // pred_check
          %p288 = pneg %p132
        $region26: #{tpu_custom_call.1} parent=11 // pred_check_branch
          %290 = sbr.rel (%p288) target = $region28
        $region27: #{tpu_custom_call.1} parent=11 // pred_region
          _
        $region28: #{tpu_custom_call.1} parent=11 // pred_fallthru
          _
        // Predicated region
        $region29: #{tpu_custom_call.1} parent=11 // pred_check
          %p291 = pneg %p153
        $region30: #{tpu_custom_call.1} parent=11 // pred_check_branch
          %293 = sbr.rel (%p291) target = $region32
        $region31: #{tpu_custom_call.1} parent=11 // pred_region
          _
        $region32: #{tpu_custom_call.1} parent=11 // pred_fallthru
          _
        // Predicated region
        $region33: #{tpu_custom_call.1} parent=11 // pred_check
          %p294 = pneg %p174
        $region34: #{tpu_custom_call.1} parent=11 // pred_check_branch
          %296 = sbr.rel (%p294) target = $region36
        $region35: #{tpu_custom_call.1} parent=11 // pred_region
          _
        $region36: #{tpu_custom_call.1} parent=11 // pred_fallthru
          _
        // Predicated region
        $region37: #{tpu_custom_call.1} parent=11 // pred_check
          %p297 = pneg %p195
        $region38: #{tpu_custom_call.1} parent=11 // pred_check_branch
          %299 = sbr.rel (%p297) target = $region40
        $region39: #{tpu_custom_call.1} parent=11 // pred_region
          _
        $region40: #{tpu_custom_call.1} parent=11 // pred_fallthru
          _
        // Predicated region
        $region41: #{tpu_custom_call.1} parent=11 // pred_check
          %p300 = pneg %p216
        $region42: #{tpu_custom_call.1} parent=11 // pred_check_branch
          %302 = sbr.rel (%p300) target = $region44
        $region43: #{tpu_custom_call.1} parent=11 // pred_region
          _
        $region44: #{tpu_custom_call.1} parent=11 // pred_fallthru
          _
      $region12: #{tpu_custom_call.1} parent=5 // pred_fallthru
        _
      %p303 = scmp.lt.s32.totalorder %s22, 2
      // Predicated region
      $region45: #{tpu_custom_call.1} parent=5 // pred_check
        %p304 = pneg %p303
      $region46: #{tpu_custom_call.1} parent=5 // pred_check_branch
        %306 = sbr.rel (%p304) target = $region48
      $region47: #{tpu_custom_call.1} parent=5 // pred_region
        // Predicated region
        $region49: #{tpu_custom_call.1} parent=47 // pred_check
          %p307 = pneg %p42
        $region50: #{tpu_custom_call.1} parent=47 // pred_check_branch
          %309 = sbr.rel (%p307) target = $region52
        $region51: #{tpu_custom_call.1} parent=47 // pred_region
          %s310 = sand.u32 %s32, 1
          %s311 = scalar_lea.sflag [#allocation4], %s310
          %s312 = sand.u32 %s32, 1
          %s313 = smul.addr %s312, 128
          %s314 = scalar_lea.vmem [#allocation3], %s313
          %s315 = smul.u32 2, %s22
          %317 = vsyncadd %s311, 0
          %s318 = smul.addr %s315, 8
          %s319 = smul.addr %s318, 8
          %s320 = scalar_lea.hbm %s0, %s319
          %s321 = sshll.u32 %s320, 4
          %s322 = int_to_ptr.hbm [resolvable:$true] %s321
          %s323 = sshll.u32 %s314, 4
          %s324 = int_to_ptr.vmem [resolvable:$true] %s323
          %329 = dma.hbm_to_vmem [thread:$0]  %s322, 2048, %s324, %s311, 128, 128, 8
        $region52: #{tpu_custom_call.1} parent=47 // pred_fallthru
          _
      $region48: #{tpu_custom_call.1} parent=5 // pred_fallthru
        _
      %p330 = scmp.le.s32.totalorder 1, %s22
      %p331 = scmp.lt.s32.totalorder %s22, 3
      %p332 = pnand %p330, %p331
      %p333 = pneg %p332
      // Predicated region
      $region53: #{tpu_custom_call.1} parent=5 // pred_check
        _
      $region54: #{tpu_custom_call.1} parent=5 // pred_check_branch
        %335 = sbr.rel (%p332) target = $region56
      $region55: #{tpu_custom_call.1} parent=5 // pred_region
        %s336 = ssub.s32 %s22, 1
        %s337 = sand.u32 %s35, 1
        %s338 = scalar_lea.sflag [#allocation4], %s337
        %s339 = sand.u32 %s35, 1
        %s340 = smul.addr %s339, 128
        %s341 = scalar_lea.vmem [#allocation3], %s340
        // Predicated region
        $region57: #{tpu_custom_call.1} parent=55 // pred_check
          %p342 = pneg %p48
        $region58: #{tpu_custom_call.1} parent=55 // pred_check_branch
          %344 = sbr.rel (%p342) target = $region60
        $region59: #{tpu_custom_call.1} parent=55 // pred_region
          %346 = dma.done %s338, 2048
        $region60: #{tpu_custom_call.1} parent=55 // pred_fallthru
          _
        // Predicated region
        $region61: #{tpu_custom_call.1} parent=55 // pred_check
          %p347 = pneg %p90
        $region62: #{tpu_custom_call.1} parent=55 // pred_check_branch
          %349 = sbr.rel (%p347) target = $region64
        $region63: #{tpu_custom_call.1} parent=55 // pred_region
          %351 = dma.done [#allocation7], 1024
        $region64: #{tpu_custom_call.1} parent=55 // pred_fallthru
          _
        // Predicated region
        $region65: #{tpu_custom_call.1} parent=55 // pred_check
          %p352 = pneg %p111
        $region66: #{tpu_custom_call.1} parent=55 // pred_check_branch
          %354 = sbr.rel (%p352) target = $region68
        $region67: #{tpu_custom_call.1} parent=55 // pred_region
          %356 = dma.done [#allocation7], 256
        $region68: #{tpu_custom_call.1} parent=55 // pred_fallthru
          _
        %s357 = sand.u32 %s35, 1
        %s358 = scalar_lea.sflag [#allocation4], %s357
        %s359 = sand.u32 %s35, 1
        %s360 = smul.addr %s359, 128
        %s361 = scalar_lea.vmem [#allocation3], %s360
        %p362 = pneg %p48
        %p363 = pneg %p45
        %p364 = pneg %p69
        %p365 = pneg %p66
        %p366 = pneg %p90
        %p367 = pneg %p87
        %p368 = pneg %p111
        %p369 = pneg %p108
        %p370 = pneg %p132
        %p371 = pneg %p129
        %p372 = pneg %p153
        %p373 = pneg %p150
        %p374 = pneg %p174
        %p375 = pneg %p171
        %p376 = pneg %p195
        %p377 = pneg %p192
        %p378 = pneg %p216
        %p379 = pneg %p213
        %p380 = pneg %p242
        %p381 = pneg %p239
        %s382 = sand.u32 %s229, 1
        %s383 = scalar_lea.sflag [#allocation5], %s382
        %s384 = sand.u32 %s229, 1
        %s385 = smul.addr %s384, 128
        %s386 = scalar_lea.vmem [#allocation9], %s385
        %s387 = smul.u32 2, %s27
        %s388 = smul.u32 2, %s27
        %v390 = vlaneseq
        %v391 = vand.u32 %v390, 127
        %vm392 = vcmp.lt.s32.totalorder %v391, 32
        %v393 = vld [vmem:[%s341] sm:$0xff]
        %v394 = vld [vmem:[%s341 + $0x8] sm:$0xff]
        %v395 = vld [vmem:[%s341 + $0x10] sm:$0xff]
        %v396 = vld [vmem:[%s341 + $0x18] sm:$0xff]
        %v397 = vld [vmem:[%s341 + $0x20] sm:$0xff]
        %v398 = vld [vmem:[%s341 + $0x28] sm:$0xff]
        %v399 = vld [vmem:[%s341 + $0x30] sm:$0xff]
        %v400 = vld [vmem:[%s341 + $0x38] sm:$0xff]
        %v401 = vld [vmem:[%s341 + $0x40] sm:$0xff]
        %v402 = vld [vmem:[%s341 + $0x48] sm:$0xff]
        %v403 = vld [vmem:[%s341 + $0x50] sm:$0xff]
        %v404 = vld [vmem:[%s341 + $0x58] sm:$0xff]
        %v405 = vld [vmem:[%s341 + $0x60] sm:$0xff]
        %v406 = vld [vmem:[%s341 + $0x68] sm:$0xff]
        %v407 = vld [vmem:[%s341 + $0x70] sm:$0xff]
        %v408 = vld [vmem:[%s341 + $0x78] sm:$0xff]
        %v409 = vld [vmem:[%s1] sm:$0xff]
        %v410 = vld [vmem:[%s1 + $0x8] sm:$0xff]
        %v411 = vld [vmem:[%s1 + $0x10] sm:$0xff]
        %v412 = vld [vmem:[%s1 + $0x18] sm:$0xff]
        %v413 = vld [vmem:[%s1 + $0x20] sm:$0xff]
        %v414 = vld [vmem:[%s1 + $0x28] sm:$0xff]
        %v415 = vld [vmem:[%s1 + $0x30] sm:$0xff]
        %v416 = vld [vmem:[%s1 + $0x38] sm:$0xff]
        %v417 = vadd.f32 %v393, %v409
        %v418 = vadd.f32 %v394, %v410
        %v419 = vadd.f32 %v395, %v411
        %v420 = vadd.f32 %v396, %v412
        %v421 = vadd.f32 %v397, %v413
        %v422 = vadd.f32 %v398, %v414
        %v423 = vadd.f32 %v399, %v415
        %v424 = vadd.f32 %v400, %v416
        %v425 = vadd.f32 %v401, %v409
        %v426 = vadd.f32 %v402, %v410
        %v427 = vadd.f32 %v403, %v411
        %v428 = vadd.f32 %v404, %v412
        %v429 = vadd.f32 %v405, %v413
        %v430 = vadd.f32 %v406, %v414
        %v431 = vadd.f32 %v407, %v415
        %v432 = vadd.f32 %v408, %v416
        %v433 = vld [vmem:[%s4] sm:$0x1]
        %434 = vadd.xlane.f32.xlu0 %v417
        %v435 = vpop.xlane.xlu0 %434
        %436 = vadd.xlane.f32.xlu0 %v418
        %v437 = vpop.xlane.xlu0 %436
        %438 = vadd.xlane.f32.xlu0 %v419
        %v439 = vpop.xlane.xlu0 %438
        %440 = vadd.xlane.f32.xlu0 %v420
        %v441 = vpop.xlane.xlu0 %440
        %442 = vadd.xlane.f32.xlu0 %v421
        %v443 = vpop.xlane.xlu0 %442
        %444 = vadd.xlane.f32.xlu0 %v422
        %v445 = vpop.xlane.xlu0 %444
        %446 = vadd.xlane.f32.xlu0 %v423
        %v447 = vpop.xlane.xlu0 %446
        %448 = vadd.xlane.f32.xlu0 %v424
        %v449 = vpop.xlane.xlu0 %448
        %450 = vadd.xlane.f32.xlu0 %v425
        %v451 = vpop.xlane.xlu0 %450
        %452 = vadd.xlane.f32.xlu0 %v426
        %v453 = vpop.xlane.xlu0 %452
        %454 = vadd.xlane.f32.xlu0 %v427
        %v455 = vpop.xlane.xlu0 %454
        %456 = vadd.xlane.f32.xlu0 %v428
        %v457 = vpop.xlane.xlu0 %456
        %458 = vadd.xlane.f32.xlu0 %v429
        %v459 = vpop.xlane.xlu0 %458
        %460 = vadd.xlane.f32.xlu0 %v430
        %v461 = vpop.xlane.xlu0 %460
        %462 = vadd.xlane.f32.xlu0 %v431
        %v463 = vpop.xlane.xlu0 %462
        %464 = vadd.xlane.f32.xlu0 %v432
        %v465 = vpop.xlane.xlu0 %464
        %v466 = vmul.f32 %v435, 0.03125
        %v467 = vmul.f32 %v437, 0.03125
        %v468 = vmul.f32 %v439, 0.03125
        %v469 = vmul.f32 %v441, 0.03125
        %v470 = vmul.f32 %v443, 0.03125
        %v471 = vmul.f32 %v445, 0.03125
        %v472 = vmul.f32 %v447, 0.03125
        %v473 = vmul.f32 %v449, 0.03125
        %v474 = vmul.f32 %v451, 0.03125
        %v475 = vmul.f32 %v453, 0.03125
        %v476 = vmul.f32 %v455, 0.03125
        %v477 = vmul.f32 %v457, 0.03125
        %v478 = vmul.f32 %v459, 0.03125
        %v479 = vmul.f32 %v461, 0.03125
        %v480 = vmul.f32 %v463, 0.03125
        %v481 = vmul.f32 %v465, 0.03125
        %v482 = vsub.f32 %v417, %v466
        %v483 = vsub.f32 %v418, %v467
        %v484 = vsub.f32 %v419, %v468
        %v485 = vsub.f32 %v420, %v469
        %v486 = vsub.f32 %v421, %v470
        %v487 = vsub.f32 %v422, %v471
        %v488 = vsub.f32 %v423, %v472
        %v489 = vsub.f32 %v424, %v473
        %v490 = vsub.f32 %v425, %v474
        %v491 = vsub.f32 %v426, %v475
        %v492 = vsub.f32 %v427, %v476
        %v493 = vsub.f32 %v428, %v477
        %v494 = vsub.f32 %v429, %v478
        %v495 = vsub.f32 %v430, %v479
        %v496 = vsub.f32 %v431, %v480
        %v497 = vsub.f32 %v432, %v481
        %v498 = vsel %vm392, 1, 0
        %vm499 = vcmp.eq.s32.totalorder %v498, 1
        %v500 = vsel %vm499, %v482, 0.0
        %v501 = vsel %vm499, %v483, 0.0
        %v502 = vsel %vm499, %v484, 0.0
        %v503 = vsel %vm499, %v485, 0.0
        %v504 = vsel %vm499, %v486, 0.0
        %v505 = vsel %vm499, %v487, 0.0
        %v506 = vsel %vm499, %v488, 0.0
        %v507 = vsel %vm499, %v489, 0.0
        %v508 = vsel %vm499, %v490, 0.0
        %v509 = vsel %vm499, %v491, 0.0
        %v510 = vsel %vm499, %v492, 0.0
        %v511 = vsel %vm499, %v493, 0.0
        %v512 = vsel %vm499, %v494, 0.0
        %v513 = vsel %vm499, %v495, 0.0
        %v514 = vsel %vm499, %v496, 0.0
        %v515 = vsel %vm499, %v497, 0.0
        %v516 = vmul.f32 %v500, %v500
        %v517 = vmul.f32 %v501, %v501
        %v518 = vmul.f32 %v502, %v502
        %v519 = vmul.f32 %v503, %v503
        %v520 = vmul.f32 %v504, %v504
        %v521 = vmul.f32 %v505, %v505
        %v522 = vmul.f32 %v506, %v506
        %v523 = vmul.f32 %v507, %v507
        %v524 = vmul.f32 %v508, %v508
        %v525 = vmul.f32 %v509, %v509
        %v526 = vmul.f32 %v510, %v510
        %v527 = vmul.f32 %v511, %v511
        %v528 = vmul.f32 %v512, %v512
        %v529 = vmul.f32 %v513, %v513
        %v530 = vmul.f32 %v514, %v514
        %v531 = vmul.f32 %v515, %v515
        %532 = vadd.xlane.f32.xlu0 %v516
        %v533 = vpop.xlane.xlu0 %532
        %534 = vadd.xlane.f32.xlu0 %v517
        %v535 = vpop.xlane.xlu0 %534
        %536 = vadd.xlane.f32.xlu0 %v518
        %v537 = vpop.xlane.xlu0 %536
        %538 = vadd.xlane.f32.xlu0 %v519
        %v539 = vpop.xlane.xlu0 %538
        %540 = vadd.xlane.f32.xlu0 %v520
        %v541 = vpop.xlane.xlu0 %540
        %542 = vadd.xlane.f32.xlu0 %v521
        %v543 = vpop.xlane.xlu0 %542
        %544 = vadd.xlane.f32.xlu0 %v522
        %v545 = vpop.xlane.xlu0 %544
        %546 = vadd.xlane.f32.xlu0 %v523
        %v547 = vpop.xlane.xlu0 %546
        %548 = vadd.xlane.f32.xlu0 %v524
        %v549 = vpop.xlane.xlu0 %548
        %550 = vadd.xlane.f32.xlu0 %v525
        %v551 = vpop.xlane.xlu0 %550
        %552 = vadd.xlane.f32.xlu0 %v526
        %v553 = vpop.xlane.xlu0 %552
        %554 = vadd.xlane.f32.xlu0 %v527
        %v555 = vpop.xlane.xlu0 %554
        %556 = vadd.xlane.f32.xlu0 %v528
        %v557 = vpop.xlane.xlu0 %556
        %558 = vadd.xlane.f32.xlu0 %v529
        %v559 = vpop.xlane.xlu0 %558
        %560 = vadd.xlane.f32.xlu0 %v530
        %v561 = vpop.xlane.xlu0 %560
        %562 = vadd.xlane.f32.xlu0 %v531
        %v563 = vpop.xlane.xlu0 %562
        %v564 = vmul.f32 %v533, 0.03125
        %v565 = vmul.f32 %v535, 0.03125
        %v566 = vmul.f32 %v537, 0.03125
        %v567 = vmul.f32 %v539, 0.03125
        %v568 = vmul.f32 %v541, 0.03125
        %v569 = vmul.f32 %v543, 0.03125
        %v570 = vmul.f32 %v545, 0.03125
        %v571 = vmul.f32 %v547, 0.03125
        %v572 = vmul.f32 %v549, 0.03125
        %v573 = vmul.f32 %v551, 0.03125
        %v574 = vmul.f32 %v553, 0.03125
        %v575 = vmul.f32 %v555, 0.03125
        %v576 = vmul.f32 %v557, 0.03125
        %v577 = vmul.f32 %v559, 0.03125
        %v578 = vmul.f32 %v561, 0.03125
        %v579 = vmul.f32 %v563, 0.03125
        %v580 = vadd.f32 %v564, 1e-05
        %v581 = vadd.f32 %v565, 1e-05
        %v582 = vadd.f32 %v566, 1e-05
        %v583 = vadd.f32 %v567, 1e-05
        %v584 = vadd.f32 %v568, 1e-05
        %v585 = vadd.f32 %v569, 1e-05
        %v586 = vadd.f32 %v570, 1e-05
        %v587 = vadd.f32 %v571, 1e-05
        %v588 = vadd.f32 %v572, 1e-05
        %v589 = vadd.f32 %v573, 1e-05
        %v590 = vadd.f32 %v574, 1e-05
        %v591 = vadd.f32 %v575, 1e-05
        %v592 = vadd.f32 %v576, 1e-05
        %v593 = vadd.f32 %v577, 1e-05
        %v594 = vadd.f32 %v578, 1e-05
        %v595 = vadd.f32 %v579, 1e-05
        %v596 = vrsqrt.pop %v580
        %v597 = vmul.f32 %v596, %v580
        %v598 = vmul.f32 %v597, %v596
        %v599 = vmul.f32 0.5, %v598
        %v600 = vsub.f32 1.5, %v599
        %v601 = vmul.f32 %v596, %v600
        %vm602 = vweird.f32 %v580
        %vm603 = vweird.f32 %v596
        %vm604 = vmor %vm602, %vm603
        %v605 = vsel %vm604, %v596, %v601
        %v606 = vrsqrt.pop %v581
        %v607 = vmul.f32 %v606, %v581
        %v608 = vmul.f32 %v607, %v606
        %v609 = vmul.f32 0.5, %v608
        %v610 = vsub.f32 1.5, %v609
        %v611 = vmul.f32 %v606, %v610
        %vm612 = vweird.f32 %v581
        %vm613 = vweird.f32 %v606
        %vm614 = vmor %vm612, %vm613
        %v615 = vsel %vm614, %v606, %v611
        %v616 = vrsqrt.pop %v582
        %v617 = vmul.f32 %v616, %v582
        %v618 = vmul.f32 %v617, %v616
        %v619 = vmul.f32 0.5, %v618
        %v620 = vsub.f32 1.5, %v619
        %v621 = vmul.f32 %v616, %v620
        %vm622 = vweird.f32 %v582
        %vm623 = vweird.f32 %v616
        %vm624 = vmor %vm622, %vm623
        %v625 = vsel %vm624, %v616, %v621
        %v626 = vrsqrt.pop %v583
        %v627 = vmul.f32 %v626, %v583
        %v628 = vmul.f32 %v627, %v626
        %v629 = vmul.f32 0.5, %v628
        %v630 = vsub.f32 1.5, %v629
        %v631 = vmul.f32 %v626, %v630
        %vm632 = vweird.f32 %v583
        %vm633 = vweird.f32 %v626
        %vm634 = vmor %vm632, %vm633
        %v635 = vsel %vm634, %v626, %v631
        %v636 = vrsqrt.pop %v584
        %v637 = vmul.f32 %v636, %v584
        %v638 = vmul.f32 %v637, %v636
        %v639 = vmul.f32 0.5, %v638
        %v640 = vsub.f32 1.5, %v639
        %v641 = vmul.f32 %v636, %v640
        %vm642 = vweird.f32 %v584
        %vm643 = vweird.f32 %v636
        %vm644 = vmor %vm642, %vm643
        %v645 = vsel %vm644, %v636, %v641
        %v646 = vrsqrt.pop %v585
        %v647 = vmul.f32 %v646, %v585
        %v648 = vmul.f32 %v647, %v646
        %v649 = vmul.f32 0.5, %v648
        %v650 = vsub.f32 1.5, %v649
        %v651 = vmul.f32 %v646, %v650
        %vm652 = vweird.f32 %v585
        %vm653 = vweird.f32 %v646
        %vm654 = vmor %vm652, %vm653
        %v655 = vsel %vm654, %v646, %v651
        %v656 = vrsqrt.pop %v586
        %v657 = vmul.f32 %v656, %v586
        %v658 = vmul.f32 %v657, %v656
        %v659 = vmul.f32 0.5, %v658
        %v660 = vsub.f32 1.5, %v659
        %v661 = vmul.f32 %v656, %v660
        %vm662 = vweird.f32 %v586
        %vm663 = vweird.f32 %v656
        %vm664 = vmor %vm662, %vm663
        %v665 = vsel %vm664, %v656, %v661
        %v666 = vrsqrt.pop %v587
        %v667 = vmul.f32 %v666, %v587
        %v668 = vmul.f32 %v667, %v666
        %v669 = vmul.f32 0.5, %v668
        %v670 = vsub.f32 1.5, %v669
        %v671 = vmul.f32 %v666, %v670
        %vm672 = vweird.f32 %v587
        %vm673 = vweird.f32 %v666
        %vm674 = vmor %vm672, %vm673
        %v675 = vsel %vm674, %v666, %v671
        %v676 = vrsqrt.pop %v588
        %v677 = vmul.f32 %v676, %v588
        %v678 = vmul.f32 %v677, %v676
        %v679 = vmul.f32 0.5, %v678
        %v680 = vsub.f32 1.5, %v679
        %v681 = vmul.f32 %v676, %v680
        %vm682 = vweird.f32 %v588
        %vm683 = vweird.f32 %v676
        %vm684 = vmor %vm682, %vm683
        %v685 = vsel %vm684, %v676, %v681
        %v686 = vrsqrt.pop %v589
        %v687 = vmul.f32 %v686, %v589
        %v688 = vmul.f32 %v687, %v686
        %v689 = vmul.f32 0.5, %v688
        %v690 = vsub.f32 1.5, %v689
        %v691 = vmul.f32 %v686, %v690
        %vm692 = vweird.f32 %v589
        %vm693 = vweird.f32 %v686
        %vm694 = vmor %vm692, %vm693
        %v695 = vsel %vm694, %v686, %v691
        %v696 = vrsqrt.pop %v590
        %v697 = vmul.f32 %v696, %v590
        %v698 = vmul.f32 %v697, %v696
        %v699 = vmul.f32 0.5, %v698
        %v700 = vsub.f32 1.5, %v699
        %v701 = vmul.f32 %v696, %v700
        %vm702 = vweird.f32 %v590
        %vm703 = vweird.f32 %v696
        %vm704 = vmor %vm702, %vm703
        %v705 = vsel %vm704, %v696, %v701
        %v706 = vrsqrt.pop %v591
        %v707 = vmul.f32 %v706, %v591
        %v708 = vmul.f32 %v707, %v706
        %v709 = vmul.f32 0.5, %v708
        %v710 = vsub.f32 1.5, %v709
        %v711 = vmul.f32 %v706, %v710
        %vm712 = vweird.f32 %v591
        %vm713 = vweird.f32 %v706
        %vm714 = vmor %vm712, %vm713
        %v715 = vsel %vm714, %v706, %v711
        %v716 = vrsqrt.pop %v592
        %v717 = vmul.f32 %v716, %v592
        %v718 = vmul.f32 %v717, %v716
        %v719 = vmul.f32 0.5, %v718
        %v720 = vsub.f32 1.5, %v719
        %v721 = vmul.f32 %v716, %v720
        %vm722 = vweird.f32 %v592
        %vm723 = vweird.f32 %v716
        %vm724 = vmor %vm722, %vm723
        %v725 = vsel %vm724, %v716, %v721
        %v726 = vrsqrt.pop %v593
        %v727 = vmul.f32 %v726, %v593
        %v728 = vmul.f32 %v727, %v726
        %v729 = vmul.f32 0.5, %v728
        %v730 = vsub.f32 1.5, %v729
        %v731 = vmul.f32 %v726, %v730
        %vm732 = vweird.f32 %v593
        %vm733 = vweird.f32 %v726
        %vm734 = vmor %vm732, %vm733
        %v735 = vsel %vm734, %v726, %v731
        %v736 = vrsqrt.pop %v594
        %v737 = vmul.f32 %v736, %v594
        %v738 = vmul.f32 %v737, %v736
        %v739 = vmul.f32 0.5, %v738
        %v740 = vsub.f32 1.5, %v739
        %v741 = vmul.f32 %v736, %v740
        %vm742 = vweird.f32 %v594
        %vm743 = vweird.f32 %v736
        %vm744 = vmor %vm742, %vm743
        %v745 = vsel %vm744, %v736, %v741
        %v746 = vrsqrt.pop %v595
        %v747 = vmul.f32 %v746, %v595
        %v748 = vmul.f32 %v747, %v746
        %v749 = vmul.f32 0.5, %v748
        %v750 = vsub.f32 1.5, %v749
        %v751 = vmul.f32 %v746, %v750
        %vm752 = vweird.f32 %v595
        %vm753 = vweird.f32 %v746
        %vm754 = vmor %vm752, %vm753
        %v755 = vsel %vm754, %v746, %v751
        %v756 = vmul.f32 %v500, %v605
        %v757 = vmul.f32 %v501, %v615
        %v758 = vmul.f32 %v502, %v625
        %v759 = vmul.f32 %v503, %v635
        %v760 = vmul.f32 %v504, %v645
        %v761 = vmul.f32 %v505, %v655
        %v762 = vmul.f32 %v506, %v665
        %v763 = vmul.f32 %v507, %v675
        %v764 = vmul.f32 %v508, %v685
        %v765 = vmul.f32 %v509, %v695
        %v766 = vmul.f32 %v510, %v705
        %v767 = vmul.f32 %v511, %v715
        %v768 = vmul.f32 %v512, %v725
        %v769 = vmul.f32 %v513, %v735
        %v770 = vmul.f32 %v514, %v745
        %v771 = vmul.f32 %v515, %v755
        %v773 = vperm.slane %v433, 0
        %v775 = vmul.f32 %v756, %v773
        %v776 = vmul.f32 %v757, %v773
        %v777 = vmul.f32 %v758, %v773
        %v778 = vmul.f32 %v759, %v773
        %v779 = vmul.f32 %v760, %v773
        %v780 = vmul.f32 %v761, %v773
        %v781 = vmul.f32 %v762, %v773
        %v782 = vmul.f32 %v763, %v773
        %v783 = vmul.f32 %v764, %v773
        %v784 = vmul.f32 %v765, %v773
        %v785 = vmul.f32 %v766, %v773
        %v786 = vmul.f32 %v767, %v773
        %v787 = vmul.f32 %v768, %v773
        %v788 = vmul.f32 %v769, %v773
        %v789 = vmul.f32 %v770, %v773
        %v790 = vmul.f32 %v771, %v773
        %v791 = vpack.c.bf16 %v776, %v775
        %v792 = vpack.c.bf16 %v778, %v777
        %v793 = vpack.c.bf16 %v780, %v779
        %v794 = vpack.c.bf16 %v782, %v781
        %v795 = vpack.c.bf16 %v784, %v783
        %v796 = vpack.c.bf16 %v786, %v785
        %v797 = vpack.c.bf16 %v788, %v787
        %v798 = vpack.c.bf16 %v790, %v789
        %v799 = vld [vmem:[#allocation6] sm:$0xf]
        %v800 = vld [vmem:[#allocation6 + $0x4] sm:$0xf]
        %v801 = vld [vmem:[#allocation6 + $0x8] sm:$0xf]
        %v802 = vld [vmem:[#allocation6 + $0xc] sm:$0xf]
        %v803 = vld [vmem:[#allocation6 + $0x10] sm:$0xf]
        %v804 = vld [vmem:[#allocation6 + $0x14] sm:$0xf]
        %v805 = vld [vmem:[#allocation6 + $0x18] sm:$0xf]
        %v806 = vld [vmem:[#allocation6 + $0x1c] sm:$0xf]
        %v807 = vld [vmem:[#allocation6 + $0x20] sm:$0xf]
        %v808 = vld [vmem:[#allocation6 + $0x24] sm:$0xf]
        %v809 = vld [vmem:[#allocation6 + $0x28] sm:$0xf]
        %v810 = vld [vmem:[#allocation6 + $0x2c] sm:$0xf]
        %v811 = vld [vmem:[#allocation6 + $0x30] sm:$0xf]
        %v812 = vld [vmem:[#allocation6 + $0x34] sm:$0xf]
        %v813 = vld [vmem:[#allocation6 + $0x38] sm:$0xf]
        %v814 = vld [vmem:[#allocation6 + $0x3c] sm:$0xf]
        %v831 = vunpack.c.l.b16 %v799
        %v832 = vunpack.c.l.b16 %v800
        %v833 = vunpack.c.l.b16 %v801
        %v834 = vunpack.c.l.b16 %v802
        %v835 = vunpack.c.l.b16 %v803
        %v836 = vunpack.c.l.b16 %v804
        %v837 = vunpack.c.l.b16 %v805
        %v838 = vunpack.c.l.b16 %v806
        %v839 = vunpack.c.l.b16 %v807
        %v840 = vunpack.c.l.b16 %v808
        %v841 = vunpack.c.l.b16 %v809
        %v842 = vunpack.c.l.b16 %v810
        %v843 = vunpack.c.l.b16 %v811
        %v844 = vunpack.c.l.b16 %v812
        %v845 = vunpack.c.l.b16 %v813
        %v846 = vunpack.c.l.b16 %v814
        %v847 = vpack.c.b16 %v832, %v831
        %v848 = vpack.c.b16 %v834, %v833
        %v849 = vpack.c.b16 %v836, %v835
        %v850 = vpack.c.b16 %v838, %v837
        %v851 = vpack.c.b16 %v840, %v839
        %v852 = vpack.c.b16 %v842, %v841
        %v853 = vpack.c.b16 %v844, %v843
        %v854 = vpack.c.b16 %v846, %v845
        %863 = vmatpush.bf16.msra.mxu0 %v854
        %864 = vmatpush.bf16.msra.mxu0 %v853
        %865 = vmatpush.bf16.msra.mxu0 %v852
        %866 = vmatpush.bf16.msra.mxu0 %v851
        %867 = vmatpush.bf16.msra.mxu0 %v850
        %868 = vmatpush.bf16.msra.mxu0 %v849
        %869 = vmatpush.bf16.msra.mxu0 %v848
        %870 = vmatpush.bf16.msra.mxu0 %v847
        %871 = vmatmul.bf16.gmra.mxu0 %v791
        %v872 = vpop.f32.mrf.mxu0
        %v873 = vadd.f32 0.0, %v872
        %v874 = vpop.f32.mrf.mxu0
        %v875 = vadd.f32 0.0, %v874
        %876 = vmatmul.bf16.gmra.mxu0 %v792
        %v877 = vpop.f32.mrf.mxu0
        %v878 = vadd.f32 0.0, %v877
        %v879 = vpop.f32.mrf.mxu0
        %v880 = vadd.f32 0.0, %v879
        %881 = vmatmul.bf16.gmra.mxu0 %v793
        %v882 = vpop.f32.mrf.mxu0
        %v883 = vadd.f32 0.0, %v882
        %v884 = vpop.f32.mrf.mxu0
        %v885 = vadd.f32 0.0, %v884
        %886 = vmatmul.bf16.gmra.mxu0 %v794
        %v887 = vpop.f32.mrf.mxu0
        %v888 = vadd.f32 0.0, %v887
        %v889 = vpop.f32.mrf.mxu0
        %v890 = vadd.f32 0.0, %v889
        %891 = vmatmul.bf16.gmra.mxu0 %v795
        %v892 = vpop.f32.mrf.mxu0
        %v893 = vadd.f32 0.0, %v892
        %v894 = vpop.f32.mrf.mxu0
        %v895 = vadd.f32 0.0, %v894
        %896 = vmatmul.bf16.gmra.mxu0 %v796
        %v897 = vpop.f32.mrf.mxu0
        %v898 = vadd.f32 0.0, %v897
        %v899 = vpop.f32.mrf.mxu0
        %v900 = vadd.f32 0.0, %v899
        %901 = vmatmul.bf16.gmra.mxu0 %v797
        %v902 = vpop.f32.mrf.mxu0
        %v903 = vadd.f32 0.0, %v902
        %v904 = vpop.f32.mrf.mxu0
        %v905 = vadd.f32 0.0, %v904
        %906 = vmatmul.bf16.gmra.mxu0 %v798
        %v907 = vpop.f32.mrf.mxu0
        %v908 = vadd.f32 0.0, %v907
        %v909 = vpop.f32.mrf.mxu0
        %v910 = vadd.f32 0.0, %v909
        %911 = vdwg.mxu0
        %v912 = vpack.c.bf16 %v873, %v873
        %v913 = vpack.c.bf16 %v875, %v875
        %v914 = vpack.c.bf16 %v878, %v878
        %v915 = vpack.c.bf16 %v880, %v880
        %v916 = vpack.c.bf16 %v883, %v883
        %v917 = vpack.c.bf16 %v885, %v885
        %v918 = vpack.c.bf16 %v888, %v888
        %v919 = vpack.c.bf16 %v890, %v890
        %v920 = vpack.c.bf16 %v893, %v893
        %v921 = vpack.c.bf16 %v895, %v895
        %v922 = vpack.c.bf16 %v898, %v898
        %v923 = vpack.c.bf16 %v900, %v900
        %v924 = vpack.c.bf16 %v903, %v903
        %v925 = vpack.c.bf16 %v905, %v905
        %v926 = vpack.c.bf16 %v908, %v908
        %v927 = vpack.c.bf16 %v910, %v910
        %v936 = vunpack.c.l.b16 %v912
        %v937 = vunpack.c.l.b16 %v913
        %v938 = vunpack.c.l.b16 %v914
        %v939 = vunpack.c.l.b16 %v915
        %v940 = vunpack.c.l.b16 %v916
        %v941 = vunpack.c.l.b16 %v917
        %v942 = vunpack.c.l.b16 %v918
        %v943 = vunpack.c.l.b16 %v919
        %v944 = vpack.c.b16 %v937, %v936
        %v945 = vpack.c.b16 %v939, %v938
        %v946 = vpack.c.b16 %v941, %v940
        %v947 = vpack.c.b16 %v943, %v942
        %948 = vrot.lane.b32.xlu0 %v944, 96
        %v949 = vpop.permute.xlu0 %948
        %950 = vrot.lane.b32.xlu0 %v945, 96
        %v951 = vpop.permute.xlu0 %950
        %952 = vrot.lane.b32.xlu0 %v946, 96
        %v953 = vpop.permute.xlu0 %952
        %954 = vrot.lane.b32.xlu0 %v947, 96
        %v955 = vpop.permute.xlu0 %954
        %vm956 = vcmask 64512
        %v958 = vsel %vm956, %v944, 0
        %v961 = vsel %vm956, %v945, 0
        %v964 = vsel %vm956, %v946, 0
        %v967 = vsel %vm956, %v947, 0
        %v970 = vsel %vm956, %v949, 0
        %v973 = vsel %vm956, %v951, 0
        %v976 = vsel %vm956, %v953, 0
        %v979 = vsel %vm956, %v955, 0
        %981 = vmatpush.bf16.xpose.msra.mxu0 0
        %982 = vmatpush.bf16.xpose.msra.mxu0 0
        %983 = vmatpush.bf16.xpose.msra.mxu0 0
        %984 = vmatpush.bf16.xpose.msra.mxu0 0
        %985 = vmatpush.bf16.xpose.msra.mxu0 %v979
        %986 = vmatpush.bf16.xpose.msra.mxu0 %v976
        %987 = vmatpush.bf16.xpose.msra.mxu0 %v973
        %988 = vmatpush.bf16.xpose.msra.mxu0 %v970
        %989 = vmatmul.bf16.gmra.mxu0 %v958
        %v990 = vpop.f32.mrf.mxu0
        %v991 = vadd.f32 0.0, %v990
        %v992 = vpop.f32.mrf.mxu0
        %v993 = vadd.f32 0.0, %v992
        %994 = vmatmul.bf16.gmra.mxu0 %v961
        %v995 = vpop.f32.mrf.mxu0
        %v996 = vadd.f32 0.0, %v995
        %v997 = vpop.f32.mrf.mxu0
        %v998 = vadd.f32 0.0, %v997
        %999 = vmatmul.bf16.gmra.mxu0 %v964
        %v1000 = vpop.f32.mrf.mxu0
        %v1001 = vadd.f32 0.0, %v1000
        %v1002 = vpop.f32.mrf.mxu0
        %v1003 = vadd.f32 0.0, %v1002
        %1004 = vmatmul.bf16.gmra.mxu0 %v967
        %v1005 = vpop.f32.mrf.mxu0
        %v1006 = vadd.f32 0.0, %v1005
        %v1007 = vpop.f32.mrf.mxu0
        %v1008 = vadd.f32 0.0, %v1007
        %1009 = vdwg.mxu0
        %v1018 = vunpack.c.l.b16 %v920
        %v1019 = vunpack.c.l.b16 %v921
        %v1020 = vunpack.c.l.b16 %v922
        %v1021 = vunpack.c.l.b16 %v923
        %v1022 = vunpack.c.l.b16 %v924
        %v1023 = vunpack.c.l.b16 %v925
        %v1024 = vunpack.c.l.b16 %v926
        %v1025 = vunpack.c.l.b16 %v927
        %v1026 = vpack.c.b16 %v1019, %v1018
        %v1027 = vpack.c.b16 %v1021, %v1020
        %v1028 = vpack.c.b16 %v1023, %v1022
        %v1029 = vpack.c.b16 %v1025, %v1024
        %1030 = vrot.lane.b32.xlu0 %v1026, 96
        %v1031 = vpop.permute.xlu0 %1030
        %1032 = vrot.lane.b32.xlu0 %v1027, 96
        %v1033 = vpop.permute.xlu0 %1032
        %1034 = vrot.lane.b32.xlu0 %v1028, 96
        %v1035 = vpop.permute.xlu0 %1034
        %1036 = vrot.lane.b32.xlu0 %v1029, 96
        %v1037 = vpop.permute.xlu0 %1036
        %v1039 = vsel %vm956, %v1026, 0
        %v1042 = vsel %vm956, %v1027, 0
        %v1045 = vsel %vm956, %v1028, 0
        %v1048 = vsel %vm956, %v1029, 0
        %v1051 = vsel %vm956, %v1031, 0
        %v1054 = vsel %vm956, %v1033, 0
        %v1057 = vsel %vm956, %v1035, 0
        %v1060 = vsel %vm956, %v1037, 0
        %1062 = vmatpush.bf16.xpose.msra.mxu0 0
        %1063 = vmatpush.bf16.xpose.msra.mxu0 0
        %1064 = vmatpush.bf16.xpose.msra.mxu0 0
        %1065 = vmatpush.bf16.xpose.msra.mxu0 0
        %1066 = vmatpush.bf16.xpose.msra.mxu0 %v1060
        %1067 = vmatpush.bf16.xpose.msra.mxu0 %v1057
        %1068 = vmatpush.bf16.xpose.msra.mxu0 %v1054
        %1069 = vmatpush.bf16.xpose.msra.mxu0 %v1051
        %1070 = vmatmul.bf16.gmra.mxu0 %v1039
        %v1071 = vpop.f32.mrf.mxu0
        %v1072 = vadd.f32 0.0, %v1071
        %v1073 = vpop.f32.mrf.mxu0
        %v1074 = vadd.f32 0.0, %v1073
        %1075 = vmatmul.bf16.gmra.mxu0 %v1042
        %v1076 = vpop.f32.mrf.mxu0
        %v1077 = vadd.f32 0.0, %v1076
        %v1078 = vpop.f32.mrf.mxu0
        %v1079 = vadd.f32 0.0, %v1078
        %1080 = vmatmul.bf16.gmra.mxu0 %v1045
        %v1081 = vpop.f32.mrf.mxu0
        %v1082 = vadd.f32 0.0, %v1081
        %v1083 = vpop.f32.mrf.mxu0
        %v1084 = vadd.f32 0.0, %v1083
        %1085 = vmatmul.bf16.gmra.mxu0 %v1048
        %v1086 = vpop.f32.mrf.mxu0
        %v1087 = vadd.f32 0.0, %v1086
        %v1088 = vpop.f32.mrf.mxu0
        %v1089 = vadd.f32 0.0, %v1088
        %1090 = vdwg.mxu0
        %vm1091 = vcmask 523264
        %v1092 = vsel %vm1091, %v991, -inf
        %1093 = vmax.xlane.f32.xlu0 %v1092
        %v1094 = vpop.xlane.xlu0 %1093
        %v1095 = vsel %vm1091, %v993, -inf
        %1096 = vmax.xlane.f32.xlu0 %v1095
        %v1097 = vpop.xlane.xlu0 %1096
        %v1098 = vsel %vm1091, %v996, -inf
        %1099 = vmax.xlane.f32.xlu0 %v1098
        %v1100 = vpop.xlane.xlu0 %1099
        %v1101 = vsel %vm1091, %v998, -inf
        %1102 = vmax.xlane.f32.xlu0 %v1101
        %v1103 = vpop.xlane.xlu0 %1102
        %v1104 = vsel %vm1091, %v1001, -inf
        %1105 = vmax.xlane.f32.xlu0 %v1104
        %v1106 = vpop.xlane.xlu0 %1105
        %v1107 = vsel %vm1091, %v1003, -inf
        %1108 = vmax.xlane.f32.xlu0 %v1107
        %v1109 = vpop.xlane.xlu0 %1108
        %v1110 = vsel %vm1091, %v1006, -inf
        %1111 = vmax.xlane.f32.xlu0 %v1110
        %v1112 = vpop.xlane.xlu0 %1111
        %v1113 = vsel %vm1091, %v1008, -inf
        %1114 = vmax.xlane.f32.xlu0 %v1113
        %v1115 = vpop.xlane.xlu0 %1114
        %v1116 = vsel %vm1091, %v1072, -inf
        %1117 = vmax.xlane.f32.xlu0 %v1116
        %v1118 = vpop.xlane.xlu0 %1117
        %v1119 = vsel %vm1091, %v1074, -inf
        %1120 = vmax.xlane.f32.xlu0 %v1119
        %v1121 = vpop.xlane.xlu0 %1120
        %v1122 = vsel %vm1091, %v1077, -inf
        %1123 = vmax.xlane.f32.xlu0 %v1122
        %v1124 = vpop.xlane.xlu0 %1123
        %v1125 = vsel %vm1091, %v1079, -inf
        %1126 = vmax.xlane.f32.xlu0 %v1125
        %v1127 = vpop.xlane.xlu0 %1126
        %v1128 = vsel %vm1091, %v1082, -inf
        %1129 = vmax.xlane.f32.xlu0 %v1128
        %v1130 = vpop.xlane.xlu0 %1129
        %v1131 = vsel %vm1091, %v1084, -inf
        %1132 = vmax.xlane.f32.xlu0 %v1131
        %v1133 = vpop.xlane.xlu0 %1132
        %v1134 = vsel %vm1091, %v1087, -inf
        %1135 = vmax.xlane.f32.xlu0 %v1134
        %v1136 = vpop.xlane.xlu0 %1135
        %v1137 = vsel %vm1091, %v1089, -inf
        %1138 = vmax.xlane.f32.xlu0 %v1137
        %v1139 = vpop.xlane.xlu0 %1138
        %v1140 = vsub.f32 %v991, %v1094
        %v1141 = vsub.f32 %v993, %v1097
        %v1142 = vsub.f32 %v996, %v1100
        %v1143 = vsub.f32 %v998, %v1103
        %v1144 = vsub.f32 %v1001, %v1106
        %v1145 = vsub.f32 %v1003, %v1109
        %v1146 = vsub.f32 %v1006, %v1112
        %v1147 = vsub.f32 %v1008, %v1115
        %v1148 = vsub.f32 %v1072, %v1118
        %v1149 = vsub.f32 %v1074, %v1121
        %v1150 = vsub.f32 %v1077, %v1124
        %v1151 = vsub.f32 %v1079, %v1127
        %v1152 = vsub.f32 %v1082, %v1130
        %v1153 = vsub.f32 %v1084, %v1133
        %v1154 = vsub.f32 %v1087, %v1136
        %v1155 = vsub.f32 %v1089, %v1139
        %v1156 = vmul.f32 %v1140, 1.442695
        %v1157 = vpow.pop %v1156
        %v1158 = vmul.f32 %v1141, 1.442695
        %v1159 = vpow.pop %v1158
        %v1160 = vmul.f32 %v1142, 1.442695
        %v1161 = vpow.pop %v1160
        %v1162 = vmul.f32 %v1143, 1.442695
        %v1163 = vpow.pop %v1162
        %v1164 = vmul.f32 %v1144, 1.442695
        %v1165 = vpow.pop %v1164
        %v1166 = vmul.f32 %v1145, 1.442695
        %v1167 = vpow.pop %v1166
        %v1168 = vmul.f32 %v1146, 1.442695
        %v1169 = vpow.pop %v1168
        %v1170 = vmul.f32 %v1147, 1.442695
        %v1171 = vpow.pop %v1170
        %v1172 = vmul.f32 %v1148, 1.442695
        %v1173 = vpow.pop %v1172
        %v1174 = vmul.f32 %v1149, 1.442695
        %v1175 = vpow.pop %v1174
        %v1176 = vmul.f32 %v1150, 1.442695
        %v1177 = vpow.pop %v1176
        %v1178 = vmul.f32 %v1151, 1.442695
        %v1179 = vpow.pop %v1178
        %v1180 = vmul.f32 %v1152, 1.442695
        %v1181 = vpow.pop %v1180
        %v1182 = vmul.f32 %v1153, 1.442695
        %v1183 = vpow.pop %v1182
        %v1184 = vmul.f32 %v1154, 1.442695
        %v1185 = vpow.pop %v1184
        %v1186 = vmul.f32 %v1155, 1.442695
        %v1187 = vpow.pop %v1186
        %v1188 = vsel %vm1091, %v1157, 0.0
        %1189 = vadd.xlane.f32.xlu0 %v1188
        %v1190 = vpop.xlane.xlu0 %1189
        %v1191 = vsel %vm1091, %v1159, 0.0
        %1192 = vadd.xlane.f32.xlu0 %v1191
        %v1193 = vpop.xlane.xlu0 %1192
        %v1194 = vsel %vm1091, %v1161, 0.0
        %1195 = vadd.xlane.f32.xlu0 %v1194
        %v1196 = vpop.xlane.xlu0 %1195
        %v1197 = vsel %vm1091, %v1163, 0.0
        %1198 = vadd.xlane.f32.xlu0 %v1197
        %v1199 = vpop.xlane.xlu0 %1198
        %v1200 = vsel %vm1091, %v1165, 0.0
        %1201 = vadd.xlane.f32.xlu0 %v1200
        %v1202 = vpop.xlane.xlu0 %1201
        %v1203 = vsel %vm1091, %v1167, 0.0
        %1204 = vadd.xlane.f32.xlu0 %v1203
        %v1205 = vpop.xlane.xlu0 %1204
        %v1206 = vsel %vm1091, %v1169, 0.0
        %1207 = vadd.xlane.f32.xlu0 %v1206
        %v1208 = vpop.xlane.xlu0 %1207
        %v1209 = vsel %vm1091, %v1171, 0.0
        %1210 = vadd.xlane.f32.xlu0 %v1209
        %v1211 = vpop.xlane.xlu0 %1210
        %v1212 = vsel %vm1091, %v1173, 0.0
        %1213 = vadd.xlane.f32.xlu0 %v1212
        %v1214 = vpop.xlane.xlu0 %1213
        %v1215 = vsel %vm1091, %v1175, 0.0
        %1216 = vadd.xlane.f32.xlu0 %v1215
        %v1217 = vpop.xlane.xlu0 %1216
        %v1218 = vsel %vm1091, %v1177, 0.0
        %1219 = vadd.xlane.f32.xlu0 %v1218
        %v1220 = vpop.xlane.xlu0 %1219
        %v1221 = vsel %vm1091, %v1179, 0.0
        %1222 = vadd.xlane.f32.xlu0 %v1221
        %v1223 = vpop.xlane.xlu0 %1222
        %v1224 = vsel %vm1091, %v1181, 0.0
        %1225 = vadd.xlane.f32.xlu0 %v1224
        %v1226 = vpop.xlane.xlu0 %1225
        %v1227 = vsel %vm1091, %v1183, 0.0
        %1228 = vadd.xlane.f32.xlu0 %v1227
        %v1229 = vpop.xlane.xlu0 %1228
        %v1230 = vsel %vm1091, %v1185, 0.0
        %1231 = vadd.xlane.f32.xlu0 %v1230
        %v1232 = vpop.xlane.xlu0 %1231
        %v1233 = vsel %vm1091, %v1187, 0.0
        %1234 = vadd.xlane.f32.xlu0 %v1233
        %v1235 = vpop.xlane.xlu0 %1234
        %v1236 = vrcp.pop %v1190
        %v1237 = vrcp.pop %v1193
        %v1238 = vrcp.pop %v1196
        %v1239 = vrcp.pop %v1199
        %v1240 = vrcp.pop %v1202
        %v1241 = vrcp.pop %v1205
        %v1242 = vrcp.pop %v1208
        %v1243 = vrcp.pop %v1211
        %v1244 = vrcp.pop %v1214
        %v1245 = vrcp.pop %v1217
        %v1246 = vrcp.pop %v1220
        %v1247 = vrcp.pop %v1223
        %v1248 = vrcp.pop %v1226
        %v1249 = vrcp.pop %v1229
        %v1250 = vrcp.pop %v1232
        %v1251 = vrcp.pop %v1235
        %v1252 = vmul.f32 %v1157, %v1236
        %v1253 = vmul.f32 %v1159, %v1237
        %v1254 = vmul.f32 %v1161, %v1238
        %v1255 = vmul.f32 %v1163, %v1239
        %v1256 = vmul.f32 %v1165, %v1240
        %v1257 = vmul.f32 %v1167, %v1241
        %v1258 = vmul.f32 %v1169, %v1242
        %v1259 = vmul.f32 %v1171, %v1243
        %v1260 = vmul.f32 %v1173, %v1244
        %v1261 = vmul.f32 %v1175, %v1245
        %v1262 = vmul.f32 %v1177, %v1246
        %v1263 = vmul.f32 %v1179, %v1247
        %v1264 = vmul.f32 %v1181, %v1248
        %v1265 = vmul.f32 %v1183, %v1249
        %v1266 = vmul.f32 %v1185, %v1250
        %v1267 = vmul.f32 %v1187, %v1251
        %v1268 = vpack.c.bf16 %v1252, %v1252
        %v1269 = vpack.c.bf16 %v1253, %v1253
        %v1270 = vpack.c.bf16 %v1254, %v1254
        %v1271 = vpack.c.bf16 %v1255, %v1255
        %v1272 = vpack.c.bf16 %v1256, %v1256
        %v1273 = vpack.c.bf16 %v1257, %v1257
        %v1274 = vpack.c.bf16 %v1258, %v1258
        %v1275 = vpack.c.bf16 %v1259, %v1259
        %v1276 = vpack.c.bf16 %v1260, %v1260
        %v1277 = vpack.c.bf16 %v1261, %v1261
        %v1278 = vpack.c.bf16 %v1262, %v1262
        %v1279 = vpack.c.bf16 %v1263, %v1263
        %v1280 = vpack.c.bf16 %v1264, %v1264
        %v1281 = vpack.c.bf16 %v1265, %v1265
        %v1282 = vpack.c.bf16 %v1266, %v1266
        %v1283 = vpack.c.bf16 %v1267, %v1267
        %v1292 = vunpack.c.l.b16 %v1268
        %v1293 = vunpack.c.l.b16 %v1269
        %v1294 = vunpack.c.l.b16 %v1270
        %v1295 = vunpack.c.l.b16 %v1271
        %v1296 = vunpack.c.l.b16 %v1272
        %v1297 = vunpack.c.l.b16 %v1273
        %v1298 = vunpack.c.l.b16 %v1274
        %v1299 = vunpack.c.l.b16 %v1275
        %v1300 = vpack.c.b16 %v1293, %v1292
        %v1301 = vpack.c.b16 %v1295, %v1294
        %v1302 = vpack.c.b16 %v1297, %v1296
        %v1303 = vpack.c.b16 %v1299, %v1298
        %1304 = vrot.lane.b32.xlu0 %v944, 64
        %v1305 = vpop.permute.xlu0 %1304
        %1306 = vrot.lane.b32.xlu0 %v945, 64
        %v1307 = vpop.permute.xlu0 %1306
        %1308 = vrot.lane.b32.xlu0 %v946, 64
        %v1309 = vpop.permute.xlu0 %1308
        %1310 = vrot.lane.b32.xlu0 %v947, 64
        %v1311 = vpop.permute.xlu0 %1310
        %v1317 = vsel %vm1091, %v1300, 0
        %v1320 = vsel %vm1091, %v1301, 0
        %v1323 = vsel %vm1091, %v1302, 0
        %v1326 = vsel %vm1091, %v1303, 0
        %1328 = vmatpush.bf16.msra.mxu0 0
        %1329 = vmatpush.bf16.msra.mxu0 0
        %1330 = vmatpush.bf16.msra.mxu0 0
        %1331 = vmatpush.bf16.msra.mxu0 0
        %1332 = vmatpush.bf16.msra.mxu0 %v1311
        %1333 = vmatpush.bf16.msra.mxu0 %v1309
        %1334 = vmatpush.bf16.msra.mxu0 %v1307
        %1335 = vmatpush.bf16.msra.mxu0 %v1305
        %1336 = vmatmul.bf16.gmra.mxu0 %v1317
        %v1337 = vpop.f32.mrf.mxu0
        %v1338 = vadd.f32 0.0, %v1337
        %v1339 = vpop.f32.mrf.mxu0
        %v1340 = vadd.f32 0.0, %v1339
        %1341 = vmatmul.bf16.gmra.mxu0 %v1320
        %v1342 = vpop.f32.mrf.mxu0
        %v1343 = vadd.f32 0.0, %v1342
        %v1344 = vpop.f32.mrf.mxu0
        %v1345 = vadd.f32 0.0, %v1344
        %1346 = vmatmul.bf16.gmra.mxu0 %v1323
        %v1347 = vpop.f32.mrf.mxu0
        %v1348 = vadd.f32 0.0, %v1347
        %v1349 = vpop.f32.mrf.mxu0
        %v1350 = vadd.f32 0.0, %v1349
        %1351 = vmatmul.bf16.gmra.mxu0 %v1326
        %v1352 = vpop.f32.mrf.mxu0
        %v1353 = vadd.f32 0.0, %v1352
        %v1354 = vpop.f32.mrf.mxu0
        %v1355 = vadd.f32 0.0, %v1354
        %1356 = vdwg.mxu0
        %v1365 = vunpack.c.l.b16 %v1276
        %v1366 = vunpack.c.l.b16 %v1277
        %v1367 = vunpack.c.l.b16 %v1278
        %v1368 = vunpack.c.l.b16 %v1279
        %v1369 = vunpack.c.l.b16 %v1280
        %v1370 = vunpack.c.l.b16 %v1281
        %v1371 = vunpack.c.l.b16 %v1282
        %v1372 = vunpack.c.l.b16 %v1283
        %v1373 = vpack.c.b16 %v1366, %v1365
        %v1374 = vpack.c.b16 %v1368, %v1367
        %v1375 = vpack.c.b16 %v1370, %v1369
        %v1376 = vpack.c.b16 %v1372, %v1371
        %1377 = vrot.lane.b32.xlu0 %v1026, 64
        %v1378 = vpop.permute.xlu0 %1377
        %1379 = vrot.lane.b32.xlu0 %v1027, 64
        %v1380 = vpop.permute.xlu0 %1379
        %1381 = vrot.lane.b32.xlu0 %v1028, 64
        %v1382 = vpop.permute.xlu0 %1381
        %1383 = vrot.lane.b32.xlu0 %v1029, 64
        %v1384 = vpop.permute.xlu0 %1383
        %v1390 = vsel %vm1091, %v1373, 0
        %v1393 = vsel %vm1091, %v1374, 0
        %v1396 = vsel %vm1091, %v1375, 0
        %v1399 = vsel %vm1091, %v1376, 0
        %1401 = vmatpush.bf16.msra.mxu0 0
        %1402 = vmatpush.bf16.msra.mxu0 0
        %1403 = vmatpush.bf16.msra.mxu0 0
        %1404 = vmatpush.bf16.msra.mxu0 0
        %1405 = vmatpush.bf16.msra.mxu0 %v1384
        %1406 = vmatpush.bf16.msra.mxu0 %v1382
        %1407 = vmatpush.bf16.msra.mxu0 %v1380
        %1408 = vmatpush.bf16.msra.mxu0 %v1378
        %1409 = vmatmul.bf16.gmra.mxu0 %v1390
        %v1410 = vpop.f32.mrf.mxu0
        %v1411 = vadd.f32 0.0, %v1410
        %v1412 = vpop.f32.mrf.mxu0
        %v1413 = vadd.f32 0.0, %v1412
        %1414 = vmatmul.bf16.gmra.mxu0 %v1393
        %v1415 = vpop.f32.mrf.mxu0
        %v1416 = vadd.f32 0.0, %v1415
        %v1417 = vpop.f32.mrf.mxu0
        %v1418 = vadd.f32 0.0, %v1417
        %1419 = vmatmul.bf16.gmra.mxu0 %v1396
        %v1420 = vpop.f32.mrf.mxu0
        %v1421 = vadd.f32 0.0, %v1420
        %v1422 = vpop.f32.mrf.mxu0
        %v1423 = vadd.f32 0.0, %v1422
        %1424 = vmatmul.bf16.gmra.mxu0 %v1399
        %v1425 = vpop.f32.mrf.mxu0
        %v1426 = vadd.f32 0.0, %v1425
        %v1427 = vpop.f32.mrf.mxu0
        %v1428 = vadd.f32 0.0, %v1427
        %1429 = vdwg.mxu0
        %1430 = vst.msk [vmem:[#allocation2] sm:$0xff] %vm956, %v1338
        %1431 = vst.msk [vmem:[#allocation2 + $0x8] sm:$0xff] %vm956, %v1340
        %1432 = vst.msk [vmem:[#allocation2 + $0x10] sm:$0xff] %vm956, %v1343
        %1433 = vst.msk [vmem:[#allocation2 + $0x18] sm:$0xff] %vm956, %v1345
        %1434 = vst.msk [vmem:[#allocation2 + $0x20] sm:$0xff] %vm956, %v1348
        %1435 = vst.msk [vmem:[#allocation2 + $0x28] sm:$0xff] %vm956, %v1350
        %1436 = vst.msk [vmem:[#allocation2 + $0x30] sm:$0xff] %vm956, %v1353
        %1437 = vst.msk [vmem:[#allocation2 + $0x38] sm:$0xff] %vm956, %v1355
        %1438 = vst.msk [vmem:[#allocation2 + $0x40] sm:$0xff] %vm956, %v1411
        %1439 = vst.msk [vmem:[#allocation2 + $0x48] sm:$0xff] %vm956, %v1413
        %1440 = vst.msk [vmem:[#allocation2 + $0x50] sm:$0xff] %vm956, %v1416
        %1441 = vst.msk [vmem:[#allocation2 + $0x58] sm:$0xff] %vm956, %v1418
        %1442 = vst.msk [vmem:[#allocation2 + $0x60] sm:$0xff] %vm956, %v1421
        %1443 = vst.msk [vmem:[#allocation2 + $0x68] sm:$0xff] %vm956, %v1423
        %1444 = vst.msk [vmem:[#allocation2 + $0x70] sm:$0xff] %vm956, %v1426
        %1445 = vst.msk [vmem:[#allocation2 + $0x78] sm:$0xff] %vm956, %v1428
        %1446 = vrot.lane.b32.xlu0 %v944, 120
        %v1447 = vpop.permute.xlu0 %1446
        %1448 = vrot.lane.b32.xlu0 %v945, 120
        %v1449 = vpop.permute.xlu0 %1448
        %1450 = vrot.lane.b32.xlu0 %v946, 120
        %v1451 = vpop.permute.xlu0 %1450
        %1452 = vrot.lane.b32.xlu0 %v947, 120
        %v1453 = vpop.permute.xlu0 %1452
        %1454 = vrot.lane.b32.xlu0 %v944, 88
        %v1455 = vpop.permute.xlu0 %1454
        %1456 = vrot.lane.b32.xlu0 %v945, 88
        %v1457 = vpop.permute.xlu0 %1456
        %1458 = vrot.lane.b32.xlu0 %v946, 88
        %v1459 = vpop.permute.xlu0 %1458
        %1460 = vrot.lane.b32.xlu0 %v947, 88
        %v1461 = vpop.permute.xlu0 %1460
        %v1463 = vsel %vm956, %v1447, 0
        %v1466 = vsel %vm956, %v1449, 0
        %v1469 = vsel %vm956, %v1451, 0
        %v1472 = vsel %vm956, %v1453, 0
        %v1475 = vsel %vm956, %v1455, 0
        %v1478 = vsel %vm956, %v1457, 0
        %v1481 = vsel %vm956, %v1459, 0
        %v1484 = vsel %vm956, %v1461, 0
        %1486 = vmatpush.bf16.xpose.msra.mxu0 0
        %1487 = vmatpush.bf16.xpose.msra.mxu0 0
        %1488 = vmatpush.bf16.xpose.msra.mxu0 0
        %1489 = vmatpush.bf16.xpose.msra.mxu0 0
        %1490 = vmatpush.bf16.xpose.msra.mxu0 %v1484
        %1491 = vmatpush.bf16.xpose.msra.mxu0 %v1481
        %1492 = vmatpush.bf16.xpose.msra.mxu0 %v1478
        %1493 = vmatpush.bf16.xpose.msra.mxu0 %v1475
        %1494 = vmatmul.bf16.gmra.mxu0 %v1463
        %v1495 = vpop.f32.mrf.mxu0
        %v1496 = vadd.f32 0.0, %v1495
        %v1497 = vpop.f32.mrf.mxu0
        %v1498 = vadd.f32 0.0, %v1497
        %1499 = vmatmul.bf16.gmra.mxu0 %v1466
        %v1500 = vpop.f32.mrf.mxu0
        %v1501 = vadd.f32 0.0, %v1500
        %v1502 = vpop.f32.mrf.mxu0
        %v1503 = vadd.f32 0.0, %v1502
        %1504 = vmatmul.bf16.gmra.mxu0 %v1469
        %v1505 = vpop.f32.mrf.mxu0
        %v1506 = vadd.f32 0.0, %v1505
        %v1507 = vpop.f32.mrf.mxu0
        %v1508 = vadd.f32 0.0, %v1507
        %1509 = vmatmul.bf16.gmra.mxu0 %v1472
        %v1510 = vpop.f32.mrf.mxu0
        %v1511 = vadd.f32 0.0, %v1510
        %v1512 = vpop.f32.mrf.mxu0
        %v1513 = vadd.f32 0.0, %v1512
        %1514 = vdwg.mxu0
        %1515 = vrot.lane.b32.xlu0 %v1026, 120
        %v1516 = vpop.permute.xlu0 %1515
        %1517 = vrot.lane.b32.xlu0 %v1027, 120
        %v1518 = vpop.permute.xlu0 %1517
        %1519 = vrot.lane.b32.xlu0 %v1028, 120
        %v1520 = vpop.permute.xlu0 %1519
        %1521 = vrot.lane.b32.xlu0 %v1029, 120
        %v1522 = vpop.permute.xlu0 %1521
        %1523 = vrot.lane.b32.xlu0 %v1026, 88
        %v1524 = vpop.permute.xlu0 %1523
        %1525 = vrot.lane.b32.xlu0 %v1027, 88
        %v1526 = vpop.permute.xlu0 %1525
        %1527 = vrot.lane.b32.xlu0 %v1028, 88
        %v1528 = vpop.permute.xlu0 %1527
        %1529 = vrot.lane.b32.xlu0 %v1029, 88
        %v1530 = vpop.permute.xlu0 %1529
        %v1532 = vsel %vm956, %v1516, 0
        %v1535 = vsel %vm956, %v1518, 0
        %v1538 = vsel %vm956, %v1520, 0
        %v1541 = vsel %vm956, %v1522, 0
        %v1544 = vsel %vm956, %v1524, 0
        %v1547 = vsel %vm956, %v1526, 0
        %v1550 = vsel %vm956, %v1528, 0
        %v1553 = vsel %vm956, %v1530, 0
        %1555 = vmatpush.bf16.xpose.msra.mxu0 0
        %1556 = vmatpush.bf16.xpose.msra.mxu0 0
        %1557 = vmatpush.bf16.xpose.msra.mxu0 0
        %1558 = vmatpush.bf16.xpose.msra.mxu0 0
        %1559 = vmatpush.bf16.xpose.msra.mxu0 %v1553
        %1560 = vmatpush.bf16.xpose.msra.mxu0 %v1550
        %1561 = vmatpush.bf16.xpose.msra.mxu0 %v1547
        %1562 = vmatpush.bf16.xpose.msra.mxu0 %v1544
        %1563 = vmatmul.bf16.gmra.mxu0 %v1532
        %v1564 = vpop.f32.mrf.mxu0
        %v1565 = vadd.f32 0.0, %v1564
        %v1566 = vpop.f32.mrf.mxu0
        %v1567 = vadd.f32 0.0, %v1566
        %1568 = vmatmul.bf16.gmra.mxu0 %v1535
        %v1569 = vpop.f32.mrf.mxu0
        %v1570 = vadd.f32 0.0, %v1569
        %v1571 = vpop.f32.mrf.mxu0
        %v1572 = vadd.f32 0.0, %v1571
        %1573 = vmatmul.bf16.gmra.mxu0 %v1538
        %v1574 = vpop.f32.mrf.mxu0
        %v1575 = vadd.f32 0.0, %v1574
        %v1576 = vpop.f32.mrf.mxu0
        %v1577 = vadd.f32 0.0, %v1576
        %1578 = vmatmul.bf16.gmra.mxu0 %v1541
        %v1579 = vpop.f32.mrf.mxu0
        %v1580 = vadd.f32 0.0, %v1579
        %v1581 = vpop.f32.mrf.mxu0
        %v1582 = vadd.f32 0.0, %v1581
        %1583 = vdwg.mxu0
        %v1584 = vsel %vm1091, %v1496, -inf
        %1585 = vmax.xlane.f32.xlu0 %v1584
        %v1586 = vpop.xlane.xlu0 %1585
        %v1587 = vsel %vm1091, %v1498, -inf
        %1588 = vmax.xlane.f32.xlu0 %v1587
        %v1589 = vpop.xlane.xlu0 %1588
        %v1590 = vsel %vm1091, %v1501, -inf
        %1591 = vmax.xlane.f32.xlu0 %v1590
        %v1592 = vpop.xlane.xlu0 %1591
        %v1593 = vsel %vm1091, %v1503, -inf
        %1594 = vmax.xlane.f32.xlu0 %v1593
        %v1595 = vpop.xlane.xlu0 %1594
        %v1596 = vsel %vm1091, %v1506, -inf
        %1597 = vmax.xlane.f32.xlu0 %v1596
        %v1598 = vpop.xlane.xlu0 %1597
        %v1599 = vsel %vm1091, %v1508, -inf
        %1600 = vmax.xlane.f32.xlu0 %v1599
        %v1601 = vpop.xlane.xlu0 %1600
        %v1602 = vsel %vm1091, %v1511, -inf
        %1603 = vmax.xlane.f32.xlu0 %v1602
        %v1604 = vpop.xlane.xlu0 %1603
        %v1605 = vsel %vm1091, %v1513, -inf
        %1606 = vmax.xlane.f32.xlu0 %v1605
        %v1607 = vpop.xlane.xlu0 %1606
        %v1608 = vsel %vm1091, %v1565, -inf
        %1609 = vmax.xlane.f32.xlu0 %v1608
        %v1610 = vpop.xlane.xlu0 %1609
        %v1611 = vsel %vm1091, %v1567, -inf
        %1612 = vmax.xlane.f32.xlu0 %v1611
        %v1613 = vpop.xlane.xlu0 %1612
        %v1614 = vsel %vm1091, %v1570, -inf
        %1615 = vmax.xlane.f32.xlu0 %v1614
        %v1616 = vpop.xlane.xlu0 %1615
        %v1617 = vsel %vm1091, %v1572, -inf
        %1618 = vmax.xlane.f32.xlu0 %v1617
        %v1619 = vpop.xlane.xlu0 %1618
        %v1620 = vsel %vm1091, %v1575, -inf
        %1621 = vmax.xlane.f32.xlu0 %v1620
        %v1622 = vpop.xlane.xlu0 %1621
        %v1623 = vsel %vm1091, %v1577, -inf
        %1624 = vmax.xlane.f32.xlu0 %v1623
        %v1625 = vpop.xlane.xlu0 %1624
        %v1626 = vsel %vm1091, %v1580, -inf
        %1627 = vmax.xlane.f32.xlu0 %v1626
        %v1628 = vpop.xlane.xlu0 %1627
        %v1629 = vsel %vm1091, %v1582, -inf
        %1630 = vmax.xlane.f32.xlu0 %v1629
        %v1631 = vpop.xlane.xlu0 %1630
        %v1632 = vsub.f32 %v1496, %v1586
        %v1633 = vsub.f32 %v1498, %v1589
        %v1634 = vsub.f32 %v1501, %v1592
        %v1635 = vsub.f32 %v1503, %v1595
        %v1636 = vsub.f32 %v1506, %v1598
        %v1637 = vsub.f32 %v1508, %v1601
        %v1638 = vsub.f32 %v1511, %v1604
        %v1639 = vsub.f32 %v1513, %v1607
        %v1640 = vsub.f32 %v1565, %v1610
        %v1641 = vsub.f32 %v1567, %v1613
        %v1642 = vsub.f32 %v1570, %v1616
        %v1643 = vsub.f32 %v1572, %v1619
        %v1644 = vsub.f32 %v1575, %v1622
        %v1645 = vsub.f32 %v1577, %v1625
        %v1646 = vsub.f32 %v1580, %v1628
        %v1647 = vsub.f32 %v1582, %v1631
        %v1648 = vmul.f32 %v1632, 1.442695
        %v1649 = vpow.pop %v1648
        %v1650 = vmul.f32 %v1633, 1.442695
        %v1651 = vpow.pop %v1650
        %v1652 = vmul.f32 %v1634, 1.442695
        %v1653 = vpow.pop %v1652
        %v1654 = vmul.f32 %v1635, 1.442695
        %v1655 = vpow.pop %v1654
        %v1656 = vmul.f32 %v1636, 1.442695
        %v1657 = vpow.pop %v1656
        %v1658 = vmul.f32 %v1637, 1.442695
        %v1659 = vpow.pop %v1658
        %v1660 = vmul.f32 %v1638, 1.442695
        %v1661 = vpow.pop %v1660
        %v1662 = vmul.f32 %v1639, 1.442695
        %v1663 = vpow.pop %v1662
        %v1664 = vmul.f32 %v1640, 1.442695
        %v1665 = vpow.pop %v1664
        %v1666 = vmul.f32 %v1641, 1.442695
        %v1667 = vpow.pop %v1666
        %v1668 = vmul.f32 %v1642, 1.442695
        %v1669 = vpow.pop %v1668
        %v1670 = vmul.f32 %v1643, 1.442695
        %v1671 = vpow.pop %v1670
        %v1672 = vmul.f32 %v1644, 1.442695
        %v1673 = vpow.pop %v1672
        %v1674 = vmul.f32 %v1645, 1.442695
        %v1675 = vpow.pop %v1674
        %v1676 = vmul.f32 %v1646, 1.442695
        %v1677 = vpow.pop %v1676
        %v1678 = vmul.f32 %v1647, 1.442695
        %v1679 = vpow.pop %v1678
        %v1680 = vsel %vm1091, %v1649, 0.0
        %1681 = vadd.xlane.f32.xlu0 %v1680
        %v1682 = vpop.xlane.xlu0 %1681
        %v1683 = vsel %vm1091, %v1651, 0.0
        %1684 = vadd.xlane.f32.xlu0 %v1683
        %v1685 = vpop.xlane.xlu0 %1684
        %v1686 = vsel %vm1091, %v1653, 0.0
        %1687 = vadd.xlane.f32.xlu0 %v1686
        %v1688 = vpop.xlane.xlu0 %1687
        %v1689 = vsel %vm1091, %v1655, 0.0
        %1690 = vadd.xlane.f32.xlu0 %v1689
        %v1691 = vpop.xlane.xlu0 %1690
        %v1692 = vsel %vm1091, %v1657, 0.0
        %1693 = vadd.xlane.f32.xlu0 %v1692
        %v1694 = vpop.xlane.xlu0 %1693
        %v1695 = vsel %vm1091, %v1659, 0.0
        %1696 = vadd.xlane.f32.xlu0 %v1695
        %v1697 = vpop.xlane.xlu0 %1696
        %v1698 = vsel %vm1091, %v1661, 0.0
        %1699 = vadd.xlane.f32.xlu0 %v1698
        %v1700 = vpop.xlane.xlu0 %1699
        %v1701 = vsel %vm1091, %v1663, 0.0
        %1702 = vadd.xlane.f32.xlu0 %v1701
        %v1703 = vpop.xlane.xlu0 %1702
        %v1704 = vsel %vm1091, %v1665, 0.0
        %1705 = vadd.xlane.f32.xlu0 %v1704
        %v1706 = vpop.xlane.xlu0 %1705
        %v1707 = vsel %vm1091, %v1667, 0.0
        %1708 = vadd.xlane.f32.xlu0 %v1707
        %v1709 = vpop.xlane.xlu0 %1708
        %v1710 = vsel %vm1091, %v1669, 0.0
        %1711 = vadd.xlane.f32.xlu0 %v1710
        %v1712 = vpop.xlane.xlu0 %1711
        %v1713 = vsel %vm1091, %v1671, 0.0
        %1714 = vadd.xlane.f32.xlu0 %v1713
        %v1715 = vpop.xlane.xlu0 %1714
        %v1716 = vsel %vm1091, %v1673, 0.0
        %1717 = vadd.xlane.f32.xlu0 %v1716
        %v1718 = vpop.xlane.xlu0 %1717
        %v1719 = vsel %vm1091, %v1675, 0.0
        %1720 = vadd.xlane.f32.xlu0 %v1719
        %v1721 = vpop.xlane.xlu0 %1720
        %v1722 = vsel %vm1091, %v1677, 0.0
        %1723 = vadd.xlane.f32.xlu0 %v1722
        %v1724 = vpop.xlane.xlu0 %1723
        %v1725 = vsel %vm1091, %v1679, 0.0
        %1726 = vadd.xlane.f32.xlu0 %v1725
        %v1727 = vpop.xlane.xlu0 %1726
        %v1728 = vrcp.pop %v1682
        %v1729 = vrcp.pop %v1685
        %v1730 = vrcp.pop %v1688
        %v1731 = vrcp.pop %v1691
        %v1732 = vrcp.pop %v1694
        %v1733 = vrcp.pop %v1697
        %v1734 = vrcp.pop %v1700
        %v1735 = vrcp.pop %v1703
        %v1736 = vrcp.pop %v1706
        %v1737 = vrcp.pop %v1709
        %v1738 = vrcp.pop %v1712
        %v1739 = vrcp.pop %v1715
        %v1740 = vrcp.pop %v1718
        %v1741 = vrcp.pop %v1721
        %v1742 = vrcp.pop %v1724
        %v1743 = vrcp.pop %v1727
        %v1744 = vmul.f32 %v1649, %v1728
        %v1745 = vmul.f32 %v1651, %v1729
        %v1746 = vmul.f32 %v1653, %v1730
        %v1747 = vmul.f32 %v1655, %v1731
        %v1748 = vmul.f32 %v1657, %v1732
        %v1749 = vmul.f32 %v1659, %v1733
        %v1750 = vmul.f32 %v1661, %v1734
        %v1751 = vmul.f32 %v1663, %v1735
        %v1752 = vmul.f32 %v1665, %v1736
        %v1753 = vmul.f32 %v1667, %v1737
        %v1754 = vmul.f32 %v1669, %v1738
        %v1755 = vmul.f32 %v1671, %v1739
        %v1756 = vmul.f32 %v1673, %v1740
        %v1757 = vmul.f32 %v1675, %v1741
        %v1758 = vmul.f32 %v1677, %v1742
        %v1759 = vmul.f32 %v1679, %v1743
        %v1760 = vpack.c.bf16 %v1744, %v1744
        %v1761 = vpack.c.bf16 %v1745, %v1745
        %v1762 = vpack.c.bf16 %v1746, %v1746
        %v1763 = vpack.c.bf16 %v1747, %v1747
        %v1764 = vpack.c.bf16 %v1748, %v1748
        %v1765 = vpack.c.bf16 %v1749, %v1749
        %v1766 = vpack.c.bf16 %v1750, %v1750
        %v1767 = vpack.c.bf16 %v1751, %v1751
        %v1768 = vpack.c.bf16 %v1752, %v1752
        %v1769 = vpack.c.bf16 %v1753, %v1753
        %v1770 = vpack.c.bf16 %v1754, %v1754
        %v1771 = vpack.c.bf16 %v1755, %v1755
        %v1772 = vpack.c.bf16 %v1756, %v1756
        %v1773 = vpack.c.bf16 %v1757, %v1757
        %v1774 = vpack.c.bf16 %v1758, %v1758
        %v1775 = vpack.c.bf16 %v1759, %v1759
        %v1784 = vunpack.c.l.b16 %v1760
        %v1785 = vunpack.c.l.b16 %v1761
        %v1786 = vunpack.c.l.b16 %v1762
        %v1787 = vunpack.c.l.b16 %v1763
        %v1788 = vunpack.c.l.b16 %v1764
        %v1789 = vunpack.c.l.b16 %v1765
        %v1790 = vunpack.c.l.b16 %v1766
        %v1791 = vunpack.c.l.b16 %v1767
        %v1792 = vpack.c.b16 %v1785, %v1784
        %v1793 = vpack.c.b16 %v1787, %v1786
        %v1794 = vpack.c.b16 %v1789, %v1788
        %v1795 = vpack.c.b16 %v1791, %v1790
        %1796 = vrot.lane.b32.xlu0 %v944, 56
        %v1797 = vpop.permute.xlu0 %1796
        %1798 = vrot.lane.b32.xlu0 %v945, 56
        %v1799 = vpop.permute.xlu0 %1798
        %1800 = vrot.lane.b32.xlu0 %v946, 56
        %v1801 = vpop.permute.xlu0 %1800
        %1802 = vrot.lane.b32.xlu0 %v947, 56
        %v1803 = vpop.permute.xlu0 %1802
        %v1809 = vsel %vm1091, %v1792, 0
        %v1812 = vsel %vm1091, %v1793, 0
        %v1815 = vsel %vm1091, %v1794, 0
        %v1818 = vsel %vm1091, %v1795, 0
        %1820 = vmatpush.bf16.msra.mxu0 0
        %1821 = vmatpush.bf16.msra.mxu0 0
        %1822 = vmatpush.bf16.msra.mxu0 0
        %1823 = vmatpush.bf16.msra.mxu0 0
        %1824 = vmatpush.bf16.msra.mxu0 %v1803
        %1825 = vmatpush.bf16.msra.mxu0 %v1801
        %1826 = vmatpush.bf16.msra.mxu0 %v1799
        %1827 = vmatpush.bf16.msra.mxu0 %v1797
        %1828 = vmatmul.bf16.gmra.mxu0 %v1809
        %v1829 = vpop.f32.mrf.mxu0
        %v1830 = vadd.f32 0.0, %v1829
        %v1831 = vpop.f32.mrf.mxu0
        %v1832 = vadd.f32 0.0, %v1831
        %1833 = vmatmul.bf16.gmra.mxu0 %v1812
        %v1834 = vpop.f32.mrf.mxu0
        %v1835 = vadd.f32 0.0, %v1834
        %v1836 = vpop.f32.mrf.mxu0
        %v1837 = vadd.f32 0.0, %v1836
        %1838 = vmatmul.bf16.gmra.mxu0 %v1815
        %v1839 = vpop.f32.mrf.mxu0
        %v1840 = vadd.f32 0.0, %v1839
        %v1841 = vpop.f32.mrf.mxu0
        %v1842 = vadd.f32 0.0, %v1841
        %1843 = vmatmul.bf16.gmra.mxu0 %v1818
        %v1844 = vpop.f32.mrf.mxu0
        %v1845 = vadd.f32 0.0, %v1844
        %v1846 = vpop.f32.mrf.mxu0
        %v1847 = vadd.f32 0.0, %v1846
        %1848 = vdwg.mxu0
        %v1857 = vunpack.c.l.b16 %v1768
        %v1858 = vunpack.c.l.b16 %v1769
        %v1859 = vunpack.c.l.b16 %v1770
        %v1860 = vunpack.c.l.b16 %v1771
        %v1861 = vunpack.c.l.b16 %v1772
        %v1862 = vunpack.c.l.b16 %v1773
        %v1863 = vunpack.c.l.b16 %v1774
        %v1864 = vunpack.c.l.b16 %v1775
        %v1865 = vpack.c.b16 %v1858, %v1857
        %v1866 = vpack.c.b16 %v1860, %v1859
        %v1867 = vpack.c.b16 %v1862, %v1861
        %v1868 = vpack.c.b16 %v1864, %v1863
        %1869 = vrot.lane.b32.xlu0 %v1026, 56
        %v1870 = vpop.permute.xlu0 %1869
        %1871 = vrot.lane.b32.xlu0 %v1027, 56
        %v1872 = vpop.permute.xlu0 %1871
        %1873 = vrot.lane.b32.xlu0 %v1028, 56
        %v1874 = vpop.permute.xlu0 %1873
        %1875 = vrot.lane.b32.xlu0 %v1029, 56
        %v1876 = vpop.permute.xlu0 %1875
        %v1882 = vsel %vm1091, %v1865, 0
        %v1885 = vsel %vm1091, %v1866, 0
        %v1888 = vsel %vm1091, %v1867, 0
        %v1891 = vsel %vm1091, %v1868, 0
        %1893 = vmatpush.bf16.msra.mxu0 0
        %1894 = vmatpush.bf16.msra.mxu0 0
        %1895 = vmatpush.bf16.msra.mxu0 0
        %1896 = vmatpush.bf16.msra.mxu0 0
        %1897 = vmatpush.bf16.msra.mxu0 %v1876
        %1898 = vmatpush.bf16.msra.mxu0 %v1874
        %1899 = vmatpush.bf16.msra.mxu0 %v1872
        %1900 = vmatpush.bf16.msra.mxu0 %v1870
        %1901 = vmatmul.bf16.gmra.mxu0 %v1882
        %v1902 = vpop.f32.mrf.mxu0
        %v1903 = vadd.f32 0.0, %v1902
        %v1904 = vpop.f32.mrf.mxu0
        %v1905 = vadd.f32 0.0, %v1904
        %1906 = vmatmul.bf16.gmra.mxu0 %v1885
        %v1907 = vpop.f32.mrf.mxu0
        %v1908 = vadd.f32 0.0, %v1907
        %v1909 = vpop.f32.mrf.mxu0
        %v1910 = vadd.f32 0.0, %v1909
        %1911 = vmatmul.bf16.gmra.mxu0 %v1888
        %v1912 = vpop.f32.mrf.mxu0
        %v1913 = vadd.f32 0.0, %v1912
        %v1914 = vpop.f32.mrf.mxu0
        %v1915 = vadd.f32 0.0, %v1914
        %1916 = vmatmul.bf16.gmra.mxu0 %v1891
        %v1917 = vpop.f32.mrf.mxu0
        %v1918 = vadd.f32 0.0, %v1917
        %v1919 = vpop.f32.mrf.mxu0
        %v1920 = vadd.f32 0.0, %v1919
        %1921 = vdwg.mxu0
        %1938 = vrot.lane.b32.xlu0 %v1830, 8
        %v1939 = vpop.permute.xlu0 %1938
        %1940 = vrot.lane.b32.xlu0 %v1832, 8
        %v1941 = vpop.permute.xlu0 %1940
        %1942 = vrot.lane.b32.xlu0 %v1835, 8
        %v1943 = vpop.permute.xlu0 %1942
        %1944 = vrot.lane.b32.xlu0 %v1837, 8
        %v1945 = vpop.permute.xlu0 %1944
        %1946 = vrot.lane.b32.xlu0 %v1840, 8
        %v1947 = vpop.permute.xlu0 %1946
        %1948 = vrot.lane.b32.xlu0 %v1842, 8
        %v1949 = vpop.permute.xlu0 %1948
        %1950 = vrot.lane.b32.xlu0 %v1845, 8
        %v1951 = vpop.permute.xlu0 %1950
        %1952 = vrot.lane.b32.xlu0 %v1847, 8
        %v1953 = vpop.permute.xlu0 %1952
        %1954 = vrot.lane.b32.xlu0 %v1903, 8
        %v1955 = vpop.permute.xlu0 %1954
        %1956 = vrot.lane.b32.xlu0 %v1905, 8
        %v1957 = vpop.permute.xlu0 %1956
        %1958 = vrot.lane.b32.xlu0 %v1908, 8
        %v1959 = vpop.permute.xlu0 %1958
        %1960 = vrot.lane.b32.xlu0 %v1910, 8
        %v1961 = vpop.permute.xlu0 %1960
        %1962 = vrot.lane.b32.xlu0 %v1913, 8
        %v1963 = vpop.permute.xlu0 %1962
        %1964 = vrot.lane.b32.xlu0 %v1915, 8
        %v1965 = vpop.permute.xlu0 %1964
        %1966 = vrot.lane.b32.xlu0 %v1918, 8
        %v1967 = vpop.permute.xlu0 %1966
        %1968 = vrot.lane.b32.xlu0 %v1920, 8
        %v1969 = vpop.permute.xlu0 %1968
        %vm1986 = vcmask 130112
        %1987 = vst.msk [vmem:[#allocation2] sm:$0xff] %vm1986, %v1939
        %1988 = vst.msk [vmem:[#allocation2 + $0x8] sm:$0xff] %vm1986, %v1941
        %1989 = vst.msk [vmem:[#allocation2 + $0x10] sm:$0xff] %vm1986, %v1943
        %1990 = vst.msk [vmem:[#allocation2 + $0x18] sm:$0xff] %vm1986, %v1945
        %1991 = vst.msk [vmem:[#allocation2 + $0x20] sm:$0xff] %vm1986, %v1947
        %1992 = vst.msk [vmem:[#allocation2 + $0x28] sm:$0xff] %vm1986, %v1949
        %1993 = vst.msk [vmem:[#allocation2 + $0x30] sm:$0xff] %vm1986, %v1951
        %1994 = vst.msk [vmem:[#allocation2 + $0x38] sm:$0xff] %vm1986, %v1953
        %1995 = vst.msk [vmem:[#allocation2 + $0x40] sm:$0xff] %vm1986, %v1955
        %1996 = vst.msk [vmem:[#allocation2 + $0x48] sm:$0xff] %vm1986, %v1957
        %1997 = vst.msk [vmem:[#allocation2 + $0x50] sm:$0xff] %vm1986, %v1959
        %1998 = vst.msk [vmem:[#allocation2 + $0x58] sm:$0xff] %vm1986, %v1961
        %1999 = vst.msk [vmem:[#allocation2 + $0x60] sm:$0xff] %vm1986, %v1963
        %2000 = vst.msk [vmem:[#allocation2 + $0x68] sm:$0xff] %vm1986, %v1965
        %2001 = vst.msk [vmem:[#allocation2 + $0x70] sm:$0xff] %vm1986, %v1967
        %2002 = vst.msk [vmem:[#allocation2 + $0x78] sm:$0xff] %vm1986, %v1969
        %2003 = vrot.lane.b32.xlu0 %v944, 112
        %v2004 = vpop.permute.xlu0 %2003
        %2005 = vrot.lane.b32.xlu0 %v945, 112
        %v2006 = vpop.permute.xlu0 %2005
        %2007 = vrot.lane.b32.xlu0 %v946, 112
        %v2008 = vpop.permute.xlu0 %2007
        %2009 = vrot.lane.b32.xlu0 %v947, 112
        %v2010 = vpop.permute.xlu0 %2009
        %2011 = vrot.lane.b32.xlu0 %v944, 80
        %v2012 = vpop.permute.xlu0 %2011
        %2013 = vrot.lane.b32.xlu0 %v945, 80
        %v2014 = vpop.permute.xlu0 %2013
        %2015 = vrot.lane.b32.xlu0 %v946, 80
        %v2016 = vpop.permute.xlu0 %2015
        %2017 = vrot.lane.b32.xlu0 %v947, 80
        %v2018 = vpop.permute.xlu0 %2017
        %v2020 = vsel %vm956, %v2004, 0
        %v2023 = vsel %vm956, %v2006, 0
        %v2026 = vsel %vm956, %v2008, 0
        %v2029 = vsel %vm956, %v2010, 0
        %v2032 = vsel %vm956, %v2012, 0
        %v2035 = vsel %vm956, %v2014, 0
        %v2038 = vsel %vm956, %v2016, 0
        %v2041 = vsel %vm956, %v2018, 0
        %2043 = vmatpush.bf16.xpose.msra.mxu0 0
        %2044 = vmatpush.bf16.xpose.msra.mxu0 0
        %2045 = vmatpush.bf16.xpose.msra.mxu0 0
        %2046 = vmatpush.bf16.xpose.msra.mxu0 0
        %2047 = vmatpush.bf16.xpose.msra.mxu0 %v2041
        %2048 = vmatpush.bf16.xpose.msra.mxu0 %v2038
        %2049 = vmatpush.bf16.xpose.msra.mxu0 %v2035
        %2050 = vmatpush.bf16.xpose.msra.mxu0 %v2032
        %2051 = vmatmul.bf16.gmra.mxu0 %v2020
        %v2052 = vpop.f32.mrf.mxu0
        %v2053 = vadd.f32 0.0, %v2052
        %v2054 = vpop.f32.mrf.mxu0
        %v2055 = vadd.f32 0.0, %v2054
        %2056 = vmatmul.bf16.gmra.mxu0 %v2023
        %v2057 = vpop.f32.mrf.mxu0
        %v2058 = vadd.f32 0.0, %v2057
        %v2059 = vpop.f32.mrf.mxu0
        %v2060 = vadd.f32 0.0, %v2059
        %2061 = vmatmul.bf16.gmra.mxu0 %v2026
        %v2062 = vpop.f32.mrf.mxu0
        %v2063 = vadd.f32 0.0, %v2062
        %v2064 = vpop.f32.mrf.mxu0
        %v2065 = vadd.f32 0.0, %v2064
        %2066 = vmatmul.bf16.gmra.mxu0 %v2029
        %v2067 = vpop.f32.mrf.mxu0
        %v2068 = vadd.f32 0.0, %v2067
        %v2069 = vpop.f32.mrf.mxu0
        %v2070 = vadd.f32 0.0, %v2069
        %2071 = vdwg.mxu0
        %2072 = vrot.lane.b32.xlu0 %v1026, 112
        %v2073 = vpop.permute.xlu0 %2072
        %2074 = vrot.lane.b32.xlu0 %v1027, 112
        %v2075 = vpop.permute.xlu0 %2074
        %2076 = vrot.lane.b32.xlu0 %v1028, 112
        %v2077 = vpop.permute.xlu0 %2076
        %2078 = vrot.lane.b32.xlu0 %v1029, 112
        %v2079 = vpop.permute.xlu0 %2078
        %2080 = vrot.lane.b32.xlu0 %v1026, 80
        %v2081 = vpop.permute.xlu0 %2080
        %2082 = vrot.lane.b32.xlu0 %v1027, 80
        %v2083 = vpop.permute.xlu0 %2082
        %2084 = vrot.lane.b32.xlu0 %v1028, 80
        %v2085 = vpop.permute.xlu0 %2084
        %2086 = vrot.lane.b32.xlu0 %v1029, 80
        %v2087 = vpop.permute.xlu0 %2086
        %v2089 = vsel %vm956, %v2073, 0
        %v2092 = vsel %vm956, %v2075, 0
        %v2095 = vsel %vm956, %v2077, 0
        %v2098 = vsel %vm956, %v2079, 0
        %v2101 = vsel %vm956, %v2081, 0
        %v2104 = vsel %vm956, %v2083, 0
        %v2107 = vsel %vm956, %v2085, 0
        %v2110 = vsel %vm956, %v2087, 0
        %2112 = vmatpush.bf16.xpose.msra.mxu0 0
        %2113 = vmatpush.bf16.xpose.msra.mxu0 0
        %2114 = vmatpush.bf16.xpose.msra.mxu0 0
        %2115 = vmatpush.bf16.xpose.msra.mxu0 0
        %2116 = vmatpush.bf16.xpose.msra.mxu0 %v2110
        %2117 = vmatpush.bf16.xpose.msra.mxu0 %v2107
        %2118 = vmatpush.bf16.xpose.msra.mxu0 %v2104
        %2119 = vmatpush.bf16.xpose.msra.mxu0 %v2101
        %2120 = vmatmul.bf16.gmra.mxu0 %v2089
        %v2121 = vpop.f32.mrf.mxu0
        %v2122 = vadd.f32 0.0, %v2121
        %v2123 = vpop.f32.mrf.mxu0
        %v2124 = vadd.f32 0.0, %v2123
        %2125 = vmatmul.bf16.gmra.mxu0 %v2092
        %v2126 = vpop.f32.mrf.mxu0
        %v2127 = vadd.f32 0.0, %v2126
        %v2128 = vpop.f32.mrf.mxu0
        %v2129 = vadd.f32 0.0, %v2128
        %2130 = vmatmul.bf16.gmra.mxu0 %v2095
        %v2131 = vpop.f32.mrf.mxu0
        %v2132 = vadd.f32 0.0, %v2131
        %v2133 = vpop.f32.mrf.mxu0
        %v2134 = vadd.f32 0.0, %v2133
        %2135 = vmatmul.bf16.gmra.mxu0 %v2098
        %v2136 = vpop.f32.mrf.mxu0
        %v2137 = vadd.f32 0.0, %v2136
        %v2138 = vpop.f32.mrf.mxu0
        %v2139 = vadd.f32 0.0, %v2138
        %2140 = vdwg.mxu0
        %v2141 = vsel %vm1091, %v2053, -inf
        %2142 = vmax.xlane.f32.xlu0 %v2141
        %v2143 = vpop.xlane.xlu0 %2142
        %v2144 = vsel %vm1091, %v2055, -inf
        %2145 = vmax.xlane.f32.xlu0 %v2144
        %v2146 = vpop.xlane.xlu0 %2145
        %v2147 = vsel %vm1091, %v2058, -inf
        %2148 = vmax.xlane.f32.xlu0 %v2147
        %v2149 = vpop.xlane.xlu0 %2148
        %v2150 = vsel %vm1091, %v2060, -inf
        %2151 = vmax.xlane.f32.xlu0 %v2150
        %v2152 = vpop.xlane.xlu0 %2151
        %v2153 = vsel %vm1091, %v2063, -inf
        %2154 = vmax.xlane.f32.xlu0 %v2153
        %v2155 = vpop.xlane.xlu0 %2154
        %v2156 = vsel %vm1091, %v2065, -inf
        %2157 = vmax.xlane.f32.xlu0 %v2156
        %v2158 = vpop.xlane.xlu0 %2157
        %v2159 = vsel %vm1091, %v2068, -inf
        %2160 = vmax.xlane.f32.xlu0 %v2159
        %v2161 = vpop.xlane.xlu0 %2160
        %v2162 = vsel %vm1091, %v2070, -inf
        %2163 = vmax.xlane.f32.xlu0 %v2162
        %v2164 = vpop.xlane.xlu0 %2163
        %v2165 = vsel %vm1091, %v2122, -inf
        %2166 = vmax.xlane.f32.xlu0 %v2165
        %v2167 = vpop.xlane.xlu0 %2166
        %v2168 = vsel %vm1091, %v2124, -inf
        %2169 = vmax.xlane.f32.xlu0 %v2168
        %v2170 = vpop.xlane.xlu0 %2169
        %v2171 = vsel %vm1091, %v2127, -inf
        %2172 = vmax.xlane.f32.xlu0 %v2171
        %v2173 = vpop.xlane.xlu0 %2172
        %v2174 = vsel %vm1091, %v2129, -inf
        %2175 = vmax.xlane.f32.xlu0 %v2174
        %v2176 = vpop.xlane.xlu0 %2175
        %v2177 = vsel %vm1091, %v2132, -inf
        %2178 = vmax.xlane.f32.xlu0 %v2177
        %v2179 = vpop.xlane.xlu0 %2178
        %v2180 = vsel %vm1091, %v2134, -inf
        %2181 = vmax.xlane.f32.xlu0 %v2180
        %v2182 = vpop.xlane.xlu0 %2181
        %v2183 = vsel %vm1091, %v2137, -inf
        %2184 = vmax.xlane.f32.xlu0 %v2183
        %v2185 = vpop.xlane.xlu0 %2184
        %v2186 = vsel %vm1091, %v2139, -inf
        %2187 = vmax.xlane.f32.xlu0 %v2186
        %v2188 = vpop.xlane.xlu0 %2187
        %v2189 = vsub.f32 %v2053, %v2143
        %v2190 = vsub.f32 %v2055, %v2146
        %v2191 = vsub.f32 %v2058, %v2149
        %v2192 = vsub.f32 %v2060, %v2152
        %v2193 = vsub.f32 %v2063, %v2155
        %v2194 = vsub.f32 %v2065, %v2158
        %v2195 = vsub.f32 %v2068, %v2161
        %v2196 = vsub.f32 %v2070, %v2164
        %v2197 = vsub.f32 %v2122, %v2167
        %v2198 = vsub.f32 %v2124, %v2170
        %v2199 = vsub.f32 %v2127, %v2173
        %v2200 = vsub.f32 %v2129, %v2176
        %v2201 = vsub.f32 %v2132, %v2179
        %v2202 = vsub.f32 %v2134, %v2182
        %v2203 = vsub.f32 %v2137, %v2185
        %v2204 = vsub.f32 %v2139, %v2188
        %v2205 = vmul.f32 %v2189, 1.442695
        %v2206 = vpow.pop %v2205
        %v2207 = vmul.f32 %v2190, 1.442695
        %v2208 = vpow.pop %v2207
        %v2209 = vmul.f32 %v2191, 1.442695
        %v2210 = vpow.pop %v2209
        %v2211 = vmul.f32 %v2192, 1.442695
        %v2212 = vpow.pop %v2211
        %v2213 = vmul.f32 %v2193, 1.442695
        %v2214 = vpow.pop %v2213
        %v2215 = vmul.f32 %v2194, 1.442695
        %v2216 = vpow.pop %v2215
        %v2217 = vmul.f32 %v2195, 1.442695
        %v2218 = vpow.pop %v2217
        %v2219 = vmul.f32 %v2196, 1.442695
        %v2220 = vpow.pop %v2219
        %v2221 = vmul.f32 %v2197, 1.442695
        %v2222 = vpow.pop %v2221
        %v2223 = vmul.f32 %v2198, 1.442695
        %v2224 = vpow.pop %v2223
        %v2225 = vmul.f32 %v2199, 1.442695
        %v2226 = vpow.pop %v2225
        %v2227 = vmul.f32 %v2200, 1.442695
        %v2228 = vpow.pop %v2227
        %v2229 = vmul.f32 %v2201, 1.442695
        %v2230 = vpow.pop %v2229
        %v2231 = vmul.f32 %v2202, 1.442695
        %v2232 = vpow.pop %v2231
        %v2233 = vmul.f32 %v2203, 1.442695
        %v2234 = vpow.pop %v2233
        %v2235 = vmul.f32 %v2204, 1.442695
        %v2236 = vpow.pop %v2235
        %v2237 = vsel %vm1091, %v2206, 0.0
        %2238 = vadd.xlane.f32.xlu0 %v2237
        %v2239 = vpop.xlane.xlu0 %2238
        %v2240 = vsel %vm1091, %v2208, 0.0
        %2241 = vadd.xlane.f32.xlu0 %v2240
        %v2242 = vpop.xlane.xlu0 %2241
        %v2243 = vsel %vm1091, %v2210, 0.0
        %2244 = vadd.xlane.f32.xlu0 %v2243
        %v2245 = vpop.xlane.xlu0 %2244
        %v2246 = vsel %vm1091, %v2212, 0.0
        %2247 = vadd.xlane.f32.xlu0 %v2246
        %v2248 = vpop.xlane.xlu0 %2247
        %v2249 = vsel %vm1091, %v2214, 0.0
        %2250 = vadd.xlane.f32.xlu0 %v2249
        %v2251 = vpop.xlane.xlu0 %2250
        %v2252 = vsel %vm1091, %v2216, 0.0
        %2253 = vadd.xlane.f32.xlu0 %v2252
        %v2254 = vpop.xlane.xlu0 %2253
        %v2255 = vsel %vm1091, %v2218, 0.0
        %2256 = vadd.xlane.f32.xlu0 %v2255
        %v2257 = vpop.xlane.xlu0 %2256
        %v2258 = vsel %vm1091, %v2220, 0.0
        %2259 = vadd.xlane.f32.xlu0 %v2258
        %v2260 = vpop.xlane.xlu0 %2259
        %v2261 = vsel %vm1091, %v2222, 0.0
        %2262 = vadd.xlane.f32.xlu0 %v2261
        %v2263 = vpop.xlane.xlu0 %2262
        %v2264 = vsel %vm1091, %v2224, 0.0
        %2265 = vadd.xlane.f32.xlu0 %v2264
        %v2266 = vpop.xlane.xlu0 %2265
        %v2267 = vsel %vm1091, %v2226, 0.0
        %2268 = vadd.xlane.f32.xlu0 %v2267
        %v2269 = vpop.xlane.xlu0 %2268
        %v2270 = vsel %vm1091, %v2228, 0.0
        %2271 = vadd.xlane.f32.xlu0 %v2270
        %v2272 = vpop.xlane.xlu0 %2271
        %v2273 = vsel %vm1091, %v2230, 0.0
        %2274 = vadd.xlane.f32.xlu0 %v2273
        %v2275 = vpop.xlane.xlu0 %2274
        %v2276 = vsel %vm1091, %v2232, 0.0
        %2277 = vadd.xlane.f32.xlu0 %v2276
        %v2278 = vpop.xlane.xlu0 %2277
        %v2279 = vsel %vm1091, %v2234, 0.0
        %2280 = vadd.xlane.f32.xlu0 %v2279
        %v2281 = vpop.xlane.xlu0 %2280
        %v2282 = vsel %vm1091, %v2236, 0.0
        %2283 = vadd.xlane.f32.xlu0 %v2282
        %v2284 = vpop.xlane.xlu0 %2283
        %v2285 = vrcp.pop %v2239
        %v2286 = vrcp.pop %v2242
        %v2287 = vrcp.pop %v2245
        %v2288 = vrcp.pop %v2248
        %v2289 = vrcp.pop %v2251
        %v2290 = vrcp.pop %v2254
        %v2291 = vrcp.pop %v2257
        %v2292 = vrcp.pop %v2260
        %v2293 = vrcp.pop %v2263
        %v2294 = vrcp.pop %v2266
        %v2295 = vrcp.pop %v2269
        %v2296 = vrcp.pop %v2272
        %v2297 = vrcp.pop %v2275
        %v2298 = vrcp.pop %v2278
        %v2299 = vrcp.pop %v2281
        %v2300 = vrcp.pop %v2284
        %v2301 = vmul.f32 %v2206, %v2285
        %v2302 = vmul.f32 %v2208, %v2286
        %v2303 = vmul.f32 %v2210, %v2287
        %v2304 = vmul.f32 %v2212, %v2288
        %v2305 = vmul.f32 %v2214, %v2289
        %v2306 = vmul.f32 %v2216, %v2290
        %v2307 = vmul.f32 %v2218, %v2291
        %v2308 = vmul.f32 %v2220, %v2292
        %v2309 = vmul.f32 %v2222, %v2293
        %v2310 = vmul.f32 %v2224, %v2294
        %v2311 = vmul.f32 %v2226, %v2295
        %v2312 = vmul.f32 %v2228, %v2296
        %v2313 = vmul.f32 %v2230, %v2297
        %v2314 = vmul.f32 %v2232, %v2298
        %v2315 = vmul.f32 %v2234, %v2299
        %v2316 = vmul.f32 %v2236, %v2300
        %v2317 = vpack.c.bf16 %v2301, %v2301
        %v2318 = vpack.c.bf16 %v2302, %v2302
        %v2319 = vpack.c.bf16 %v2303, %v2303
        %v2320 = vpack.c.bf16 %v2304, %v2304
        %v2321 = vpack.c.bf16 %v2305, %v2305
        %v2322 = vpack.c.bf16 %v2306, %v2306
        %v2323 = vpack.c.bf16 %v2307, %v2307
        %v2324 = vpack.c.bf16 %v2308, %v2308
        %v2325 = vpack.c.bf16 %v2309, %v2309
        %v2326 = vpack.c.bf16 %v2310, %v2310
        %v2327 = vpack.c.bf16 %v2311, %v2311
        %v2328 = vpack.c.bf16 %v2312, %v2312
        %v2329 = vpack.c.bf16 %v2313, %v2313
        %v2330 = vpack.c.bf16 %v2314, %v2314
        %v2331 = vpack.c.bf16 %v2315, %v2315
        %v2332 = vpack.c.bf16 %v2316, %v2316
        %v2341 = vunpack.c.l.b16 %v2317
        %v2342 = vunpack.c.l.b16 %v2318
        %v2343 = vunpack.c.l.b16 %v2319
        %v2344 = vunpack.c.l.b16 %v2320
        %v2345 = vunpack.c.l.b16 %v2321
        %v2346 = vunpack.c.l.b16 %v2322
        %v2347 = vunpack.c.l.b16 %v2323
        %v2348 = vunpack.c.l.b16 %v2324
        %v2349 = vpack.c.b16 %v2342, %v2341
        %v2350 = vpack.c.b16 %v2344, %v2343
        %v2351 = vpack.c.b16 %v2346, %v2345
        %v2352 = vpack.c.b16 %v2348, %v2347
        %2353 = vrot.lane.b32.xlu0 %v944, 48
        %v2354 = vpop.permute.xlu0 %2353
        %2355 = vrot.lane.b32.xlu0 %v945, 48
        %v2356 = vpop.permute.xlu0 %2355
        %2357 = vrot.lane.b32.xlu0 %v946, 48
        %v2358 = vpop.permute.xlu0 %2357
        %2359 = vrot.lane.b32.xlu0 %v947, 48
        %v2360 = vpop.permute.xlu0 %2359
        %v2366 = vsel %vm1091, %v2349, 0
        %v2369 = vsel %vm1091, %v2350, 0
        %v2372 = vsel %vm1091, %v2351, 0
        %v2375 = vsel %vm1091, %v2352, 0
        %2377 = vmatpush.bf16.msra.mxu0 0
        %2378 = vmatpush.bf16.msra.mxu0 0
        %2379 = vmatpush.bf16.msra.mxu0 0
        %2380 = vmatpush.bf16.msra.mxu0 0
        %2381 = vmatpush.bf16.msra.mxu0 %v2360
        %2382 = vmatpush.bf16.msra.mxu0 %v2358
        %2383 = vmatpush.bf16.msra.mxu0 %v2356
        %2384 = vmatpush.bf16.msra.mxu0 %v2354
        %2385 = vmatmul.bf16.gmra.mxu0 %v2366
        %v2386 = vpop.f32.mrf.mxu0
        %v2387 = vadd.f32 0.0, %v2386
        %v2388 = vpop.f32.mrf.mxu0
        %v2389 = vadd.f32 0.0, %v2388
        %2390 = vmatmul.bf16.gmra.mxu0 %v2369
        %v2391 = vpop.f32.mrf.mxu0
        %v2392 = vadd.f32 0.0, %v2391
        %v2393 = vpop.f32.mrf.mxu0
        %v2394 = vadd.f32 0.0, %v2393
        %2395 = vmatmul.bf16.gmra.mxu0 %v2372
        %v2396 = vpop.f32.mrf.mxu0
        %v2397 = vadd.f32 0.0, %v2396
        %v2398 = vpop.f32.mrf.mxu0
        %v2399 = vadd.f32 0.0, %v2398
        %2400 = vmatmul.bf16.gmra.mxu0 %v2375
        %v2401 = vpop.f32.mrf.mxu0
        %v2402 = vadd.f32 0.0, %v2401
        %v2403 = vpop.f32.mrf.mxu0
        %v2404 = vadd.f32 0.0, %v2403
        %2405 = vdwg.mxu0
        %v2414 = vunpack.c.l.b16 %v2325
        %v2415 = vunpack.c.l.b16 %v2326
        %v2416 = vunpack.c.l.b16 %v2327
        %v2417 = vunpack.c.l.b16 %v2328
        %v2418 = vunpack.c.l.b16 %v2329
        %v2419 = vunpack.c.l.b16 %v2330
        %v2420 = vunpack.c.l.b16 %v2331
        %v2421 = vunpack.c.l.b16 %v2332
        %v2422 = vpack.c.b16 %v2415, %v2414
        %v2423 = vpack.c.b16 %v2417, %v2416
        %v2424 = vpack.c.b16 %v2419, %v2418
        %v2425 = vpack.c.b16 %v2421, %v2420
        %2426 = vrot.lane.b32.xlu0 %v1026, 48
        %v2427 = vpop.permute.xlu0 %2426
        %2428 = vrot.lane.b32.xlu0 %v1027, 48
        %v2429 = vpop.permute.xlu0 %2428
        %2430 = vrot.lane.b32.xlu0 %v1028, 48
        %v2431 = vpop.permute.xlu0 %2430
        %2432 = vrot.lane.b32.xlu0 %v1029, 48
        %v2433 = vpop.permute.xlu0 %2432
        %v2439 = vsel %vm1091, %v2422, 0
        %v2442 = vsel %vm1091, %v2423, 0
        %v2445 = vsel %vm1091, %v2424, 0
        %v2448 = vsel %vm1091, %v2425, 0
        %2450 = vmatpush.bf16.msra.mxu0 0
        %2451 = vmatpush.bf16.msra.mxu0 0
        %2452 = vmatpush.bf16.msra.mxu0 0
        %2453 = vmatpush.bf16.msra.mxu0 0
        %2454 = vmatpush.bf16.msra.mxu0 %v2433
        %2455 = vmatpush.bf16.msra.mxu0 %v2431
        %2456 = vmatpush.bf16.msra.mxu0 %v2429
        %2457 = vmatpush.bf16.msra.mxu0 %v2427
        %2458 = vmatmul.bf16.gmra.mxu0 %v2439
        %v2459 = vpop.f32.mrf.mxu0
        %v2460 = vadd.f32 0.0, %v2459
        %v2461 = vpop.f32.mrf.mxu0
        %v2462 = vadd.f32 0.0, %v2461
        %2463 = vmatmul.bf16.gmra.mxu0 %v2442
        %v2464 = vpop.f32.mrf.mxu0
        %v2465 = vadd.f32 0.0, %v2464
        %v2466 = vpop.f32.mrf.mxu0
        %v2467 = vadd.f32 0.0, %v2466
        %2468 = vmatmul.bf16.gmra.mxu0 %v2445
        %v2469 = vpop.f32.mrf.mxu0
        %v2470 = vadd.f32 0.0, %v2469
        %v2471 = vpop.f32.mrf.mxu0
        %v2472 = vadd.f32 0.0, %v2471
        %2473 = vmatmul.bf16.gmra.mxu0 %v2448
        %v2474 = vpop.f32.mrf.mxu0
        %v2475 = vadd.f32 0.0, %v2474
        %v2476 = vpop.f32.mrf.mxu0
        %v2477 = vadd.f32 0.0, %v2476
        %2478 = vdwg.mxu0
        %2495 = vrot.lane.b32.xlu0 %v2387, 16
        %v2496 = vpop.permute.xlu0 %2495
        %2497 = vrot.lane.b32.xlu0 %v2389, 16
        %v2498 = vpop.permute.xlu0 %2497
        %2499 = vrot.lane.b32.xlu0 %v2392, 16
        %v2500 = vpop.permute.xlu0 %2499
        %2501 = vrot.lane.b32.xlu0 %v2394, 16
        %v2502 = vpop.permute.xlu0 %2501
        %2503 = vrot.lane.b32.xlu0 %v2397, 16
        %v2504 = vpop.permute.xlu0 %2503
        %2505 = vrot.lane.b32.xlu0 %v2399, 16
        %v2506 = vpop.permute.xlu0 %2505
        %2507 = vrot.lane.b32.xlu0 %v2402, 16
        %v2508 = vpop.permute.xlu0 %2507
        %2509 = vrot.lane.b32.xlu0 %v2404, 16
        %v2510 = vpop.permute.xlu0 %2509
        %2511 = vrot.lane.b32.xlu0 %v2460, 16
        %v2512 = vpop.permute.xlu0 %2511
        %2513 = vrot.lane.b32.xlu0 %v2462, 16
        %v2514 = vpop.permute.xlu0 %2513
        %2515 = vrot.lane.b32.xlu0 %v2465, 16
        %v2516 = vpop.permute.xlu0 %2515
        %2517 = vrot.lane.b32.xlu0 %v2467, 16
        %v2518 = vpop.permute.xlu0 %2517
        %2519 = vrot.lane.b32.xlu0 %v2470, 16
        %v2520 = vpop.permute.xlu0 %2519
        %2521 = vrot.lane.b32.xlu0 %v2472, 16
        %v2522 = vpop.permute.xlu0 %2521
        %2523 = vrot.lane.b32.xlu0 %v2475, 16
        %v2524 = vpop.permute.xlu0 %2523
        %2525 = vrot.lane.b32.xlu0 %v2477, 16
        %v2526 = vpop.permute.xlu0 %2525
        %vm2543 = vcmask 195712
        %2544 = vst.msk [vmem:[#allocation2] sm:$0xff] %vm2543, %v2496
        %2545 = vst.msk [vmem:[#allocation2 + $0x8] sm:$0xff] %vm2543, %v2498
        %2546 = vst.msk [vmem:[#allocation2 + $0x10] sm:$0xff] %vm2543, %v2500
        %2547 = vst.msk [vmem:[#allocation2 + $0x18] sm:$0xff] %vm2543, %v2502
        %2548 = vst.msk [vmem:[#allocation2 + $0x20] sm:$0xff] %vm2543, %v2504
        %2549 = vst.msk [vmem:[#allocation2 + $0x28] sm:$0xff] %vm2543, %v2506
        %2550 = vst.msk [vmem:[#allocation2 + $0x30] sm:$0xff] %vm2543, %v2508
        %2551 = vst.msk [vmem:[#allocation2 + $0x38] sm:$0xff] %vm2543, %v2510
        %2552 = vst.msk [vmem:[#allocation2 + $0x40] sm:$0xff] %vm2543, %v2512
        %2553 = vst.msk [vmem:[#allocation2 + $0x48] sm:$0xff] %vm2543, %v2514
        %2554 = vst.msk [vmem:[#allocation2 + $0x50] sm:$0xff] %vm2543, %v2516
        %2555 = vst.msk [vmem:[#allocation2 + $0x58] sm:$0xff] %vm2543, %v2518
        %2556 = vst.msk [vmem:[#allocation2 + $0x60] sm:$0xff] %vm2543, %v2520
        %2557 = vst.msk [vmem:[#allocation2 + $0x68] sm:$0xff] %vm2543, %v2522
        %2558 = vst.msk [vmem:[#allocation2 + $0x70] sm:$0xff] %vm2543, %v2524
        %2559 = vst.msk [vmem:[#allocation2 + $0x78] sm:$0xff] %vm2543, %v2526
        %2560 = vrot.lane.b32.xlu0 %v944, 104
        %v2561 = vpop.permute.xlu0 %2560
        %2562 = vrot.lane.b32.xlu0 %v945, 104
        %v2563 = vpop.permute.xlu0 %2562
        %2564 = vrot.lane.b32.xlu0 %v946, 104
        %v2565 = vpop.permute.xlu0 %2564
        %2566 = vrot.lane.b32.xlu0 %v947, 104
        %v2567 = vpop.permute.xlu0 %2566
        %2568 = vrot.lane.b32.xlu0 %v944, 72
        %v2569 = vpop.permute.xlu0 %2568
        %2570 = vrot.lane.b32.xlu0 %v945, 72
        %v2571 = vpop.permute.xlu0 %2570
        %2572 = vrot.lane.b32.xlu0 %v946, 72
        %v2573 = vpop.permute.xlu0 %2572
        %2574 = vrot.lane.b32.xlu0 %v947, 72
        %v2575 = vpop.permute.xlu0 %2574
        %v2577 = vsel %vm956, %v2561, 0
        %v2580 = vsel %vm956, %v2563, 0
        %v2583 = vsel %vm956, %v2565, 0
        %v2586 = vsel %vm956, %v2567, 0
        %v2589 = vsel %vm956, %v2569, 0
        %v2592 = vsel %vm956, %v2571, 0
        %v2595 = vsel %vm956, %v2573, 0
        %v2598 = vsel %vm956, %v2575, 0
        %2600 = vmatpush.bf16.xpose.msra.mxu0 0
        %2601 = vmatpush.bf16.xpose.msra.mxu0 0
        %2602 = vmatpush.bf16.xpose.msra.mxu0 0
        %2603 = vmatpush.bf16.xpose.msra.mxu0 0
        %2604 = vmatpush.bf16.xpose.msra.mxu0 %v2598
        %2605 = vmatpush.bf16.xpose.msra.mxu0 %v2595
        %2606 = vmatpush.bf16.xpose.msra.mxu0 %v2592
        %2607 = vmatpush.bf16.xpose.msra.mxu0 %v2589
        %2608 = vmatmul.bf16.gmra.mxu0 %v2577
        %v2609 = vpop.f32.mrf.mxu0
        %v2610 = vadd.f32 0.0, %v2609
        %v2611 = vpop.f32.mrf.mxu0
        %v2612 = vadd.f32 0.0, %v2611
        %2613 = vmatmul.bf16.gmra.mxu0 %v2580
        %v2614 = vpop.f32.mrf.mxu0
        %v2615 = vadd.f32 0.0, %v2614
        %v2616 = vpop.f32.mrf.mxu0
        %v2617 = vadd.f32 0.0, %v2616
        %2618 = vmatmul.bf16.gmra.mxu0 %v2583
        %v2619 = vpop.f32.mrf.mxu0
        %v2620 = vadd.f32 0.0, %v2619
        %v2621 = vpop.f32.mrf.mxu0
        %v2622 = vadd.f32 0.0, %v2621
        %2623 = vmatmul.bf16.gmra.mxu0 %v2586
        %v2624 = vpop.f32.mrf.mxu0
        %v2625 = vadd.f32 0.0, %v2624
        %v2626 = vpop.f32.mrf.mxu0
        %v2627 = vadd.f32 0.0, %v2626
        %2628 = vdwg.mxu0
        %2629 = vrot.lane.b32.xlu0 %v1026, 104
        %v2630 = vpop.permute.xlu0 %2629
        %2631 = vrot.lane.b32.xlu0 %v1027, 104
        %v2632 = vpop.permute.xlu0 %2631
        %2633 = vrot.lane.b32.xlu0 %v1028, 104
        %v2634 = vpop.permute.xlu0 %2633
        %2635 = vrot.lane.b32.xlu0 %v1029, 104
        %v2636 = vpop.permute.xlu0 %2635
        %2637 = vrot.lane.b32.xlu0 %v1026, 72
        %v2638 = vpop.permute.xlu0 %2637
        %2639 = vrot.lane.b32.xlu0 %v1027, 72
        %v2640 = vpop.permute.xlu0 %2639
        %2641 = vrot.lane.b32.xlu0 %v1028, 72
        %v2642 = vpop.permute.xlu0 %2641
        %2643 = vrot.lane.b32.xlu0 %v1029, 72
        %v2644 = vpop.permute.xlu0 %2643
        %v2646 = vsel %vm956, %v2630, 0
        %v2649 = vsel %vm956, %v2632, 0
        %v2652 = vsel %vm956, %v2634, 0
        %v2655 = vsel %vm956, %v2636, 0
        %v2658 = vsel %vm956, %v2638, 0
        %v2661 = vsel %vm956, %v2640, 0
        %v2664 = vsel %vm956, %v2642, 0
        %v2667 = vsel %vm956, %v2644, 0
        %2669 = vmatpush.bf16.xpose.msra.mxu0 0
        %2670 = vmatpush.bf16.xpose.msra.mxu0 0
        %2671 = vmatpush.bf16.xpose.msra.mxu0 0
        %2672 = vmatpush.bf16.xpose.msra.mxu0 0
        %2673 = vmatpush.bf16.xpose.msra.mxu0 %v2667
        %2674 = vmatpush.bf16.xpose.msra.mxu0 %v2664
        %2675 = vmatpush.bf16.xpose.msra.mxu0 %v2661
        %2676 = vmatpush.bf16.xpose.msra.mxu0 %v2658
        %2677 = vmatmul.bf16.gmra.mxu0 %v2646
        %v2678 = vpop.f32.mrf.mxu0
        %v2679 = vadd.f32 0.0, %v2678
        %v2680 = vpop.f32.mrf.mxu0
        %v2681 = vadd.f32 0.0, %v2680
        %2682 = vmatmul.bf16.gmra.mxu0 %v2649
        %v2683 = vpop.f32.mrf.mxu0
        %v2684 = vadd.f32 0.0, %v2683
        %v2685 = vpop.f32.mrf.mxu0
        %v2686 = vadd.f32 0.0, %v2685
        %2687 = vmatmul.bf16.gmra.mxu0 %v2652
        %v2688 = vpop.f32.mrf.mxu0
        %v2689 = vadd.f32 0.0, %v2688
        %v2690 = vpop.f32.mrf.mxu0
        %v2691 = vadd.f32 0.0, %v2690
        %2692 = vmatmul.bf16.gmra.mxu0 %v2655
        %v2693 = vpop.f32.mrf.mxu0
        %v2694 = vadd.f32 0.0, %v2693
        %v2695 = vpop.f32.mrf.mxu0
        %v2696 = vadd.f32 0.0, %v2695
        %2697 = vdwg.mxu0
        %v2698 = vsel %vm1091, %v2610, -inf
        %2699 = vmax.xlane.f32.xlu0 %v2698
        %v2700 = vpop.xlane.xlu0 %2699
        %v2701 = vsel %vm1091, %v2612, -inf
        %2702 = vmax.xlane.f32.xlu0 %v2701
        %v2703 = vpop.xlane.xlu0 %2702
        %v2704 = vsel %vm1091, %v2615, -inf
        %2705 = vmax.xlane.f32.xlu0 %v2704
        %v2706 = vpop.xlane.xlu0 %2705
        %v2707 = vsel %vm1091, %v2617, -inf
        %2708 = vmax.xlane.f32.xlu0 %v2707
        %v2709 = vpop.xlane.xlu0 %2708
        %v2710 = vsel %vm1091, %v2620, -inf
        %2711 = vmax.xlane.f32.xlu0 %v2710
        %v2712 = vpop.xlane.xlu0 %2711
        %v2713 = vsel %vm1091, %v2622, -inf
        %2714 = vmax.xlane.f32.xlu0 %v2713
        %v2715 = vpop.xlane.xlu0 %2714
        %v2716 = vsel %vm1091, %v2625, -inf
        %2717 = vmax.xlane.f32.xlu0 %v2716
        %v2718 = vpop.xlane.xlu0 %2717
        %v2719 = vsel %vm1091, %v2627, -inf
        %2720 = vmax.xlane.f32.xlu0 %v2719
        %v2721 = vpop.xlane.xlu0 %2720
        %v2722 = vsel %vm1091, %v2679, -inf
        %2723 = vmax.xlane.f32.xlu0 %v2722
        %v2724 = vpop.xlane.xlu0 %2723
        %v2725 = vsel %vm1091, %v2681, -inf
        %2726 = vmax.xlane.f32.xlu0 %v2725
        %v2727 = vpop.xlane.xlu0 %2726
        %v2728 = vsel %vm1091, %v2684, -inf
        %2729 = vmax.xlane.f32.xlu0 %v2728
        %v2730 = vpop.xlane.xlu0 %2729
        %v2731 = vsel %vm1091, %v2686, -inf
        %2732 = vmax.xlane.f32.xlu0 %v2731
        %v2733 = vpop.xlane.xlu0 %2732
        %v2734 = vsel %vm1091, %v2689, -inf
        %2735 = vmax.xlane.f32.xlu0 %v2734
        %v2736 = vpop.xlane.xlu0 %2735
        %v2737 = vsel %vm1091, %v2691, -inf
        %2738 = vmax.xlane.f32.xlu0 %v2737
        %v2739 = vpop.xlane.xlu0 %2738
        %v2740 = vsel %vm1091, %v2694, -inf
        %2741 = vmax.xlane.f32.xlu0 %v2740
        %v2742 = vpop.xlane.xlu0 %2741
        %v2743 = vsel %vm1091, %v2696, -inf
        %2744 = vmax.xlane.f32.xlu0 %v2743
        %v2745 = vpop.xlane.xlu0 %2744
        %v2746 = vsub.f32 %v2610, %v2700
        %v2747 = vsub.f32 %v2612, %v2703
        %v2748 = vsub.f32 %v2615, %v2706
        %v2749 = vsub.f32 %v2617, %v2709
        %v2750 = vsub.f32 %v2620, %v2712
        %v2751 = vsub.f32 %v2622, %v2715
        %v2752 = vsub.f32 %v2625, %v2718
        %v2753 = vsub.f32 %v2627, %v2721
        %v2754 = vsub.f32 %v2679, %v2724
        %v2755 = vsub.f32 %v2681, %v2727
        %v2756 = vsub.f32 %v2684, %v2730
        %v2757 = vsub.f32 %v2686, %v2733
        %v2758 = vsub.f32 %v2689, %v2736
        %v2759 = vsub.f32 %v2691, %v2739
        %v2760 = vsub.f32 %v2694, %v2742
        %v2761 = vsub.f32 %v2696, %v2745
        %v2762 = vmul.f32 %v2746, 1.442695
        %v2763 = vpow.pop %v2762
        %v2764 = vmul.f32 %v2747, 1.442695
        %v2765 = vpow.pop %v2764
        %v2766 = vmul.f32 %v2748, 1.442695
        %v2767 = vpow.pop %v2766
        %v2768 = vmul.f32 %v2749, 1.442695
        %v2769 = vpow.pop %v2768
        %v2770 = vmul.f32 %v2750, 1.442695
        %v2771 = vpow.pop %v2770
        %v2772 = vmul.f32 %v2751, 1.442695
        %v2773 = vpow.pop %v2772
        %v2774 = vmul.f32 %v2752, 1.442695
        %v2775 = vpow.pop %v2774
        %v2776 = vmul.f32 %v2753, 1.442695
        %v2777 = vpow.pop %v2776
        %v2778 = vmul.f32 %v2754, 1.442695
        %v2779 = vpow.pop %v2778
        %v2780 = vmul.f32 %v2755, 1.442695
        %v2781 = vpow.pop %v2780
        %v2782 = vmul.f32 %v2756, 1.442695
        %v2783 = vpow.pop %v2782
        %v2784 = vmul.f32 %v2757, 1.442695
        %v2785 = vpow.pop %v2784
        %v2786 = vmul.f32 %v2758, 1.442695
        %v2787 = vpow.pop %v2786
        %v2788 = vmul.f32 %v2759, 1.442695
        %v2789 = vpow.pop %v2788
        %v2790 = vmul.f32 %v2760, 1.442695
        %v2791 = vpow.pop %v2790
        %v2792 = vmul.f32 %v2761, 1.442695
        %v2793 = vpow.pop %v2792
        %v2794 = vsel %vm1091, %v2763, 0.0
        %2795 = vadd.xlane.f32.xlu0 %v2794
        %v2796 = vpop.xlane.xlu0 %2795
        %v2797 = vsel %vm1091, %v2765, 0.0
        %2798 = vadd.xlane.f32.xlu0 %v2797
        %v2799 = vpop.xlane.xlu0 %2798
        %v2800 = vsel %vm1091, %v2767, 0.0
        %2801 = vadd.xlane.f32.xlu0 %v2800
        %v2802 = vpop.xlane.xlu0 %2801
        %v2803 = vsel %vm1091, %v2769, 0.0
        %2804 = vadd.xlane.f32.xlu0 %v2803
        %v2805 = vpop.xlane.xlu0 %2804
        %v2806 = vsel %vm1091, %v2771, 0.0
        %2807 = vadd.xlane.f32.xlu0 %v2806
        %v2808 = vpop.xlane.xlu0 %2807
        %v2809 = vsel %vm1091, %v2773, 0.0
        %2810 = vadd.xlane.f32.xlu0 %v2809
        %v2811 = vpop.xlane.xlu0 %2810
        %v2812 = vsel %vm1091, %v2775, 0.0
        %2813 = vadd.xlane.f32.xlu0 %v2812
        %v2814 = vpop.xlane.xlu0 %2813
        %v2815 = vsel %vm1091, %v2777, 0.0
        %2816 = vadd.xlane.f32.xlu0 %v2815
        %v2817 = vpop.xlane.xlu0 %2816
        %v2818 = vsel %vm1091, %v2779, 0.0
        %2819 = vadd.xlane.f32.xlu0 %v2818
        %v2820 = vpop.xlane.xlu0 %2819
        %v2821 = vsel %vm1091, %v2781, 0.0
        %2822 = vadd.xlane.f32.xlu0 %v2821
        %v2823 = vpop.xlane.xlu0 %2822
        %v2824 = vsel %vm1091, %v2783, 0.0
        %2825 = vadd.xlane.f32.xlu0 %v2824
        %v2826 = vpop.xlane.xlu0 %2825
        %v2827 = vsel %vm1091, %v2785, 0.0
        %2828 = vadd.xlane.f32.xlu0 %v2827
        %v2829 = vpop.xlane.xlu0 %2828
        %v2830 = vsel %vm1091, %v2787, 0.0
        %2831 = vadd.xlane.f32.xlu0 %v2830
        %v2832 = vpop.xlane.xlu0 %2831
        %v2833 = vsel %vm1091, %v2789, 0.0
        %2834 = vadd.xlane.f32.xlu0 %v2833
        %v2835 = vpop.xlane.xlu0 %2834
        %v2836 = vsel %vm1091, %v2791, 0.0
        %2837 = vadd.xlane.f32.xlu0 %v2836
        %v2838 = vpop.xlane.xlu0 %2837
        %v2839 = vsel %vm1091, %v2793, 0.0
        %2840 = vadd.xlane.f32.xlu0 %v2839
        %v2841 = vpop.xlane.xlu0 %2840
        %v2842 = vrcp.pop %v2796
        %v2843 = vrcp.pop %v2799
        %v2844 = vrcp.pop %v2802
        %v2845 = vrcp.pop %v2805
        %v2846 = vrcp.pop %v2808
        %v2847 = vrcp.pop %v2811
        %v2848 = vrcp.pop %v2814
        %v2849 = vrcp.pop %v2817
        %v2850 = vrcp.pop %v2820
        %v2851 = vrcp.pop %v2823
        %v2852 = vrcp.pop %v2826
        %v2853 = vrcp.pop %v2829
        %v2854 = vrcp.pop %v2832
        %v2855 = vrcp.pop %v2835
        %v2856 = vrcp.pop %v2838
        %v2857 = vrcp.pop %v2841
        %v2858 = vmul.f32 %v2763, %v2842
        %v2859 = vmul.f32 %v2765, %v2843
        %v2860 = vmul.f32 %v2767, %v2844
        %v2861 = vmul.f32 %v2769, %v2845
        %v2862 = vmul.f32 %v2771, %v2846
        %v2863 = vmul.f32 %v2773, %v2847
        %v2864 = vmul.f32 %v2775, %v2848
        %v2865 = vmul.f32 %v2777, %v2849
        %v2866 = vmul.f32 %v2779, %v2850
        %v2867 = vmul.f32 %v2781, %v2851
        %v2868 = vmul.f32 %v2783, %v2852
        %v2869 = vmul.f32 %v2785, %v2853
        %v2870 = vmul.f32 %v2787, %v2854
        %v2871 = vmul.f32 %v2789, %v2855
        %v2872 = vmul.f32 %v2791, %v2856
        %v2873 = vmul.f32 %v2793, %v2857
        %v2874 = vpack.c.bf16 %v2858, %v2858
        %v2875 = vpack.c.bf16 %v2859, %v2859
        %v2876 = vpack.c.bf16 %v2860, %v2860
        %v2877 = vpack.c.bf16 %v2861, %v2861
        %v2878 = vpack.c.bf16 %v2862, %v2862
        %v2879 = vpack.c.bf16 %v2863, %v2863
        %v2880 = vpack.c.bf16 %v2864, %v2864
        %v2881 = vpack.c.bf16 %v2865, %v2865
        %v2882 = vpack.c.bf16 %v2866, %v2866
        %v2883 = vpack.c.bf16 %v2867, %v2867
        %v2884 = vpack.c.bf16 %v2868, %v2868
        %v2885 = vpack.c.bf16 %v2869, %v2869
        %v2886 = vpack.c.bf16 %v2870, %v2870
        %v2887 = vpack.c.bf16 %v2871, %v2871
        %v2888 = vpack.c.bf16 %v2872, %v2872
        %v2889 = vpack.c.bf16 %v2873, %v2873
        %v2898 = vunpack.c.l.b16 %v2874
        %v2899 = vunpack.c.l.b16 %v2875
        %v2900 = vunpack.c.l.b16 %v2876
        %v2901 = vunpack.c.l.b16 %v2877
        %v2902 = vunpack.c.l.b16 %v2878
        %v2903 = vunpack.c.l.b16 %v2879
        %v2904 = vunpack.c.l.b16 %v2880
        %v2905 = vunpack.c.l.b16 %v2881
        %v2906 = vpack.c.b16 %v2899, %v2898
        %v2907 = vpack.c.b16 %v2901, %v2900
        %v2908 = vpack.c.b16 %v2903, %v2902
        %v2909 = vpack.c.b16 %v2905, %v2904
        %2910 = vrot.lane.b32.xlu0 %v944, 40
        %v2911 = vpop.permute.xlu0 %2910
        %2912 = vrot.lane.b32.xlu0 %v945, 40
        %v2913 = vpop.permute.xlu0 %2912
        %2914 = vrot.lane.b32.xlu0 %v946, 40
        %v2915 = vpop.permute.xlu0 %2914
        %2916 = vrot.lane.b32.xlu0 %v947, 40
        %v2917 = vpop.permute.xlu0 %2916
        %v2923 = vsel %vm1091, %v2906, 0
        %v2926 = vsel %vm1091, %v2907, 0
        %v2929 = vsel %vm1091, %v2908, 0
        %v2932 = vsel %vm1091, %v2909, 0
        %2934 = vmatpush.bf16.msra.mxu0 0
        %2935 = vmatpush.bf16.msra.mxu0 0
        %2936 = vmatpush.bf16.msra.mxu0 0
        %2937 = vmatpush.bf16.msra.mxu0 0
        %2938 = vmatpush.bf16.msra.mxu0 %v2917
        %2939 = vmatpush.bf16.msra.mxu0 %v2915
        %2940 = vmatpush.bf16.msra.mxu0 %v2913
        %2941 = vmatpush.bf16.msra.mxu0 %v2911
        %2942 = vmatmul.bf16.gmra.mxu0 %v2923
        %v2943 = vpop.f32.mrf.mxu0
        %v2944 = vadd.f32 0.0, %v2943
        %v2945 = vpop.f32.mrf.mxu0
        %v2946 = vadd.f32 0.0, %v2945
        %2947 = vmatmul.bf16.gmra.mxu0 %v2926
        %v2948 = vpop.f32.mrf.mxu0
        %v2949 = vadd.f32 0.0, %v2948
        %v2950 = vpop.f32.mrf.mxu0
        %v2951 = vadd.f32 0.0, %v2950
        %2952 = vmatmul.bf16.gmra.mxu0 %v2929
        %v2953 = vpop.f32.mrf.mxu0
        %v2954 = vadd.f32 0.0, %v2953
        %v2955 = vpop.f32.mrf.mxu0
        %v2956 = vadd.f32 0.0, %v2955
        %2957 = vmatmul.bf16.gmra.mxu0 %v2932
        %v2958 = vpop.f32.mrf.mxu0
        %v2959 = vadd.f32 0.0, %v2958
        %v2960 = vpop.f32.mrf.mxu0
        %v2961 = vadd.f32 0.0, %v2960
        %2962 = vdwg.mxu0
        %v2971 = vunpack.c.l.b16 %v2882
        %v2972 = vunpack.c.l.b16 %v2883
        %v2973 = vunpack.c.l.b16 %v2884
        %v2974 = vunpack.c.l.b16 %v2885
        %v2975 = vunpack.c.l.b16 %v2886
        %v2976 = vunpack.c.l.b16 %v2887
        %v2977 = vunpack.c.l.b16 %v2888
        %v2978 = vunpack.c.l.b16 %v2889
        %v2979 = vpack.c.b16 %v2972, %v2971
        %v2980 = vpack.c.b16 %v2974, %v2973
        %v2981 = vpack.c.b16 %v2976, %v2975
        %v2982 = vpack.c.b16 %v2978, %v2977
        %2983 = vrot.lane.b32.xlu0 %v1026, 40
        %v2984 = vpop.permute.xlu0 %2983
        %2985 = vrot.lane.b32.xlu0 %v1027, 40
        %v2986 = vpop.permute.xlu0 %2985
        %2987 = vrot.lane.b32.xlu0 %v1028, 40
        %v2988 = vpop.permute.xlu0 %2987
        %2989 = vrot.lane.b32.xlu0 %v1029, 40
        %v2990 = vpop.permute.xlu0 %2989
        %v2996 = vsel %vm1091, %v2979, 0
        %v2999 = vsel %vm1091, %v2980, 0
        %v3002 = vsel %vm1091, %v2981, 0
        %v3005 = vsel %vm1091, %v2982, 0
        %3007 = vmatpush.bf16.msra.mxu0 0
        %3008 = vmatpush.bf16.msra.mxu0 0
        %3009 = vmatpush.bf16.msra.mxu0 0
        %3010 = vmatpush.bf16.msra.mxu0 0
        %3011 = vmatpush.bf16.msra.mxu0 %v2990
        %3012 = vmatpush.bf16.msra.mxu0 %v2988
        %3013 = vmatpush.bf16.msra.mxu0 %v2986
        %3014 = vmatpush.bf16.msra.mxu0 %v2984
        %3015 = vmatmul.bf16.gmra.mxu0 %v2996
        %v3016 = vpop.f32.mrf.mxu0
        %v3017 = vadd.f32 0.0, %v3016
        %v3018 = vpop.f32.mrf.mxu0
        %v3019 = vadd.f32 0.0, %v3018
        %3020 = vmatmul.bf16.gmra.mxu0 %v2999
        %v3021 = vpop.f32.mrf.mxu0
        %v3022 = vadd.f32 0.0, %v3021
        %v3023 = vpop.f32.mrf.mxu0
        %v3024 = vadd.f32 0.0, %v3023
        %3025 = vmatmul.bf16.gmra.mxu0 %v3002
        %v3026 = vpop.f32.mrf.mxu0
        %v3027 = vadd.f32 0.0, %v3026
        %v3028 = vpop.f32.mrf.mxu0
        %v3029 = vadd.f32 0.0, %v3028
        %3030 = vmatmul.bf16.gmra.mxu0 %v3005
        %v3031 = vpop.f32.mrf.mxu0
        %v3032 = vadd.f32 0.0, %v3031
        %v3033 = vpop.f32.mrf.mxu0
        %v3034 = vadd.f32 0.0, %v3033
        %3035 = vdwg.mxu0
        %3052 = vrot.lane.b32.xlu0 %v2944, 24
        %v3053 = vpop.permute.xlu0 %3052
        %3054 = vrot.lane.b32.xlu0 %v2946, 24
        %v3055 = vpop.permute.xlu0 %3054
        %3056 = vrot.lane.b32.xlu0 %v2949, 24
        %v3057 = vpop.permute.xlu0 %3056
        %3058 = vrot.lane.b32.xlu0 %v2951, 24
        %v3059 = vpop.permute.xlu0 %3058
        %3060 = vrot.lane.b32.xlu0 %v2954, 24
        %v3061 = vpop.permute.xlu0 %3060
        %3062 = vrot.lane.b32.xlu0 %v2956, 24
        %v3063 = vpop.permute.xlu0 %3062
        %3064 = vrot.lane.b32.xlu0 %v2959, 24
        %v3065 = vpop.permute.xlu0 %3064
        %3066 = vrot.lane.b32.xlu0 %v2961, 24
        %v3067 = vpop.permute.xlu0 %3066
        %3068 = vrot.lane.b32.xlu0 %v3017, 24
        %v3069 = vpop.permute.xlu0 %3068
        %3070 = vrot.lane.b32.xlu0 %v3019, 24
        %v3071 = vpop.permute.xlu0 %3070
        %3072 = vrot.lane.b32.xlu0 %v3022, 24
        %v3073 = vpop.permute.xlu0 %3072
        %3074 = vrot.lane.b32.xlu0 %v3024, 24
        %v3075 = vpop.permute.xlu0 %3074
        %3076 = vrot.lane.b32.xlu0 %v3027, 24
        %v3077 = vpop.permute.xlu0 %3076
        %3078 = vrot.lane.b32.xlu0 %v3029, 24
        %v3079 = vpop.permute.xlu0 %3078
        %3080 = vrot.lane.b32.xlu0 %v3032, 24
        %v3081 = vpop.permute.xlu0 %3080
        %3082 = vrot.lane.b32.xlu0 %v3034, 24
        %v3083 = vpop.permute.xlu0 %3082
        %vm3100 = vcmask 261312
        %3101 = vst.msk [vmem:[#allocation2] sm:$0xff] %vm3100, %v3053
        %3102 = vst.msk [vmem:[#allocation2 + $0x8] sm:$0xff] %vm3100, %v3055
        %3103 = vst.msk [vmem:[#allocation2 + $0x10] sm:$0xff] %vm3100, %v3057
        %3104 = vst.msk [vmem:[#allocation2 + $0x18] sm:$0xff] %vm3100, %v3059
        %3105 = vst.msk [vmem:[#allocation2 + $0x20] sm:$0xff] %vm3100, %v3061
        %3106 = vst.msk [vmem:[#allocation2 + $0x28] sm:$0xff] %vm3100, %v3063
        %3107 = vst.msk [vmem:[#allocation2 + $0x30] sm:$0xff] %vm3100, %v3065
        %3108 = vst.msk [vmem:[#allocation2 + $0x38] sm:$0xff] %vm3100, %v3067
        %3109 = vst.msk [vmem:[#allocation2 + $0x40] sm:$0xff] %vm3100, %v3069
        %3110 = vst.msk [vmem:[#allocation2 + $0x48] sm:$0xff] %vm3100, %v3071
        %3111 = vst.msk [vmem:[#allocation2 + $0x50] sm:$0xff] %vm3100, %v3073
        %3112 = vst.msk [vmem:[#allocation2 + $0x58] sm:$0xff] %vm3100, %v3075
        %3113 = vst.msk [vmem:[#allocation2 + $0x60] sm:$0xff] %vm3100, %v3077
        %3114 = vst.msk [vmem:[#allocation2 + $0x68] sm:$0xff] %vm3100, %v3079
        %3115 = vst.msk [vmem:[#allocation2 + $0x70] sm:$0xff] %vm3100, %v3081
        %3116 = vst.msk [vmem:[#allocation2 + $0x78] sm:$0xff] %vm3100, %v3083
        %v3117 = vld [vmem:[#allocation2] sm:$0xff]
        %v3118 = vld [vmem:[#allocation2 + $0x8] sm:$0xff]
        %v3119 = vld [vmem:[#allocation2 + $0x10] sm:$0xff]
        %v3120 = vld [vmem:[#allocation2 + $0x18] sm:$0xff]
        %v3121 = vld [vmem:[#allocation2 + $0x20] sm:$0xff]
        %v3122 = vld [vmem:[#allocation2 + $0x28] sm:$0xff]
        %v3123 = vld [vmem:[#allocation2 + $0x30] sm:$0xff]
        %v3124 = vld [vmem:[#allocation2 + $0x38] sm:$0xff]
        %v3125 = vld [vmem:[#allocation2 + $0x40] sm:$0xff]
        %v3126 = vld [vmem:[#allocation2 + $0x48] sm:$0xff]
        %v3127 = vld [vmem:[#allocation2 + $0x50] sm:$0xff]
        %v3128 = vld [vmem:[#allocation2 + $0x58] sm:$0xff]
        %v3129 = vld [vmem:[#allocation2 + $0x60] sm:$0xff]
        %v3130 = vld [vmem:[#allocation2 + $0x68] sm:$0xff]
        %v3131 = vld [vmem:[#allocation2 + $0x70] sm:$0xff]
        %v3132 = vld [vmem:[#allocation2 + $0x78] sm:$0xff]
        %v3133 = vpack.c.bf16 %v3118, %v3117
        %v3134 = vpack.c.bf16 %v3120, %v3119
        %v3135 = vpack.c.bf16 %v3122, %v3121
        %v3136 = vpack.c.bf16 %v3124, %v3123
        %v3137 = vpack.c.bf16 %v3126, %v3125
        %v3138 = vpack.c.bf16 %v3128, %v3127
        %v3139 = vpack.c.bf16 %v3130, %v3129
        %v3140 = vpack.c.bf16 %v3132, %v3131
        %v3141 = vld [vmem:[#allocation8] sm:$0xf]
        %v3142 = vld [vmem:[#allocation8 + $0x4] sm:$0xf]
        %v3143 = vld [vmem:[#allocation8 + $0x8] sm:$0xf]
        %v3144 = vld [vmem:[#allocation8 + $0xc] sm:$0xf]
        %v3149 = vunpack.c.l.b16 %v3141
        %v3150 = vunpack.c.l.b16 %v3142
        %v3151 = vunpack.c.l.b16 %v3143
        %v3152 = vunpack.c.l.b16 %v3144
        %v3153 = vpack.c.b16 %v3150, %v3149
        %v3154 = vpack.c.b16 %v3152, %v3151
        %vm3157 = vcmask 261120
        %v3159 = vsel %vm3157, %v3133, 0
        %v3162 = vsel %vm3157, %v3134, 0
        %v3165 = vsel %vm3157, %v3135, 0
        %v3168 = vsel %vm3157, %v3136, 0
        %v3171 = vsel %vm3157, %v3137, 0
        %v3174 = vsel %vm3157, %v3138, 0
        %v3177 = vsel %vm3157, %v3139, 0
        %v3180 = vsel %vm3157, %v3140, 0
        %3182 = vmatpush.bf16.msra.mxu0 0
        %3183 = vmatpush.bf16.msra.mxu0 0
        %3184 = vmatpush.bf16.msra.mxu0 0
        %3185 = vmatpush.bf16.msra.mxu0 0
        %3186 = vmatpush.bf16.msra.mxu0 0
        %3187 = vmatpush.bf16.msra.mxu0 0
        %3188 = vmatpush.bf16.msra.mxu0 %v3154
        %3189 = vmatpush.bf16.msra.mxu0 %v3153
        %3190 = vmatmul.bf16.gmra.mxu0 %v3159
        %v3191 = vpop.f32.mrf.mxu0
        %v3192 = vadd.f32 0.0, %v3191
        %v3193 = vpop.f32.mrf.mxu0
        %v3194 = vadd.f32 0.0, %v3193
        %3195 = vmatmul.bf16.gmra.mxu0 %v3162
        %v3196 = vpop.f32.mrf.mxu0
        %v3197 = vadd.f32 0.0, %v3196
        %v3198 = vpop.f32.mrf.mxu0
        %v3199 = vadd.f32 0.0, %v3198
        %3200 = vmatmul.bf16.gmra.mxu0 %v3165
        %v3201 = vpop.f32.mrf.mxu0
        %v3202 = vadd.f32 0.0, %v3201
        %v3203 = vpop.f32.mrf.mxu0
        %v3204 = vadd.f32 0.0, %v3203
        %3205 = vmatmul.bf16.gmra.mxu0 %v3168
        %v3206 = vpop.f32.mrf.mxu0
        %v3207 = vadd.f32 0.0, %v3206
        %v3208 = vpop.f32.mrf.mxu0
        %v3209 = vadd.f32 0.0, %v3208
        %3210 = vmatmul.bf16.gmra.mxu0 %v3171
        %v3211 = vpop.f32.mrf.mxu0
        %v3212 = vadd.f32 0.0, %v3211
        %v3213 = vpop.f32.mrf.mxu0
        %v3214 = vadd.f32 0.0, %v3213
        %3215 = vmatmul.bf16.gmra.mxu0 %v3174
        %v3216 = vpop.f32.mrf.mxu0
        %v3217 = vadd.f32 0.0, %v3216
        %v3218 = vpop.f32.mrf.mxu0
        %v3219 = vadd.f32 0.0, %v3218
        %3220 = vmatmul.bf16.gmra.mxu0 %v3177
        %v3221 = vpop.f32.mrf.mxu0
        %v3222 = vadd.f32 0.0, %v3221
        %v3223 = vpop.f32.mrf.mxu0
        %v3224 = vadd.f32 0.0, %v3223
        %3225 = vmatmul.bf16.gmra.mxu0 %v3180
        %v3226 = vpop.f32.mrf.mxu0
        %v3227 = vadd.f32 0.0, %v3226
        %v3228 = vpop.f32.mrf.mxu0
        %v3229 = vadd.f32 0.0, %v3228
        %3230 = vdwg.mxu0
        %v3231 = vadd.f32 %v417, %v3192
        %v3232 = vadd.f32 %v418, %v3194
        %v3233 = vadd.f32 %v419, %v3197
        %v3234 = vadd.f32 %v420, %v3199
        %v3235 = vadd.f32 %v421, %v3202
        %v3236 = vadd.f32 %v422, %v3204
        %v3237 = vadd.f32 %v423, %v3207
        %v3238 = vadd.f32 %v424, %v3209
        %v3239 = vadd.f32 %v425, %v3212
        %v3240 = vadd.f32 %v426, %v3214
        %v3241 = vadd.f32 %v427, %v3217
        %v3242 = vadd.f32 %v428, %v3219
        %v3243 = vadd.f32 %v429, %v3222
        %v3244 = vadd.f32 %v430, %v3224
        %v3245 = vadd.f32 %v431, %v3227
        %v3246 = vadd.f32 %v432, %v3229
        %v3247 = vld [vmem:[%s5] sm:$0x1]
        %3248 = vadd.xlane.f32.xlu0 %v3231
        %v3249 = vpop.xlane.xlu0 %3248
        %3250 = vadd.xlane.f32.xlu0 %v3232
        %v3251 = vpop.xlane.xlu0 %3250
        %3252 = vadd.xlane.f32.xlu0 %v3233
        %v3253 = vpop.xlane.xlu0 %3252
        %3254 = vadd.xlane.f32.xlu0 %v3234
        %v3255 = vpop.xlane.xlu0 %3254
        %3256 = vadd.xlane.f32.xlu0 %v3235
        %v3257 = vpop.xlane.xlu0 %3256
        %3258 = vadd.xlane.f32.xlu0 %v3236
        %v3259 = vpop.xlane.xlu0 %3258
        %3260 = vadd.xlane.f32.xlu0 %v3237
        %v3261 = vpop.xlane.xlu0 %3260
        %3262 = vadd.xlane.f32.xlu0 %v3238
        %v3263 = vpop.xlane.xlu0 %3262
        %3264 = vadd.xlane.f32.xlu0 %v3239
        %v3265 = vpop.xlane.xlu0 %3264
        %3266 = vadd.xlane.f32.xlu0 %v3240
        %v3267 = vpop.xlane.xlu0 %3266
        %3268 = vadd.xlane.f32.xlu0 %v3241
        %v3269 = vpop.xlane.xlu0 %3268
        %3270 = vadd.xlane.f32.xlu0 %v3242
        %v3271 = vpop.xlane.xlu0 %3270
        %3272 = vadd.xlane.f32.xlu0 %v3243
        %v3273 = vpop.xlane.xlu0 %3272
        %3274 = vadd.xlane.f32.xlu0 %v3244
        %v3275 = vpop.xlane.xlu0 %3274
        %3276 = vadd.xlane.f32.xlu0 %v3245
        %v3277 = vpop.xlane.xlu0 %3276
        %3278 = vadd.xlane.f32.xlu0 %v3246
        %v3279 = vpop.xlane.xlu0 %3278
        %v3280 = vmul.f32 %v3249, 0.03125
        %v3281 = vmul.f32 %v3251, 0.03125
        %v3282 = vmul.f32 %v3253, 0.03125
        %v3283 = vmul.f32 %v3255, 0.03125
        %v3284 = vmul.f32 %v3257, 0.03125
        %v3285 = vmul.f32 %v3259, 0.03125
        %v3286 = vmul.f32 %v3261, 0.03125
        %v3287 = vmul.f32 %v3263, 0.03125
        %v3288 = vmul.f32 %v3265, 0.03125
        %v3289 = vmul.f32 %v3267, 0.03125
        %v3290 = vmul.f32 %v3269, 0.03125
        %v3291 = vmul.f32 %v3271, 0.03125
        %v3292 = vmul.f32 %v3273, 0.03125
        %v3293 = vmul.f32 %v3275, 0.03125
        %v3294 = vmul.f32 %v3277, 0.03125
        %v3295 = vmul.f32 %v3279, 0.03125
        %v3296 = vsub.f32 %v3231, %v3280
        %v3297 = vsub.f32 %v3232, %v3281
        %v3298 = vsub.f32 %v3233, %v3282
        %v3299 = vsub.f32 %v3234, %v3283
        %v3300 = vsub.f32 %v3235, %v3284
        %v3301 = vsub.f32 %v3236, %v3285
        %v3302 = vsub.f32 %v3237, %v3286
        %v3303 = vsub.f32 %v3238, %v3287
        %v3304 = vsub.f32 %v3239, %v3288
        %v3305 = vsub.f32 %v3240, %v3289
        %v3306 = vsub.f32 %v3241, %v3290
        %v3307 = vsub.f32 %v3242, %v3291
        %v3308 = vsub.f32 %v3243, %v3292
        %v3309 = vsub.f32 %v3244, %v3293
        %v3310 = vsub.f32 %v3245, %v3294
        %v3311 = vsub.f32 %v3246, %v3295
        %v3312 = vsel %vm499, %v3296, 0.0
        %v3313 = vsel %vm499, %v3297, 0.0
        %v3314 = vsel %vm499, %v3298, 0.0
        %v3315 = vsel %vm499, %v3299, 0.0
        %v3316 = vsel %vm499, %v3300, 0.0
        %v3317 = vsel %vm499, %v3301, 0.0
        %v3318 = vsel %vm499, %v3302, 0.0
        %v3319 = vsel %vm499, %v3303, 0.0
        %v3320 = vsel %vm499, %v3304, 0.0
        %v3321 = vsel %vm499, %v3305, 0.0
        %v3322 = vsel %vm499, %v3306, 0.0
        %v3323 = vsel %vm499, %v3307, 0.0
        %v3324 = vsel %vm499, %v3308, 0.0
        %v3325 = vsel %vm499, %v3309, 0.0
        %v3326 = vsel %vm499, %v3310, 0.0
        %v3327 = vsel %vm499, %v3311, 0.0
        %v3328 = vmul.f32 %v3312, %v3312
        %v3329 = vmul.f32 %v3313, %v3313
        %v3330 = vmul.f32 %v3314, %v3314
        %v3331 = vmul.f32 %v3315, %v3315
        %v3332 = vmul.f32 %v3316, %v3316
        %v3333 = vmul.f32 %v3317, %v3317
        %v3334 = vmul.f32 %v3318, %v3318
        %v3335 = vmul.f32 %v3319, %v3319
        %v3336 = vmul.f32 %v3320, %v3320
        %v3337 = vmul.f32 %v3321, %v3321
        %v3338 = vmul.f32 %v3322, %v3322
        %v3339 = vmul.f32 %v3323, %v3323
        %v3340 = vmul.f32 %v3324, %v3324
        %v3341 = vmul.f32 %v3325, %v3325
        %v3342 = vmul.f32 %v3326, %v3326
        %v3343 = vmul.f32 %v3327, %v3327
        %3344 = vadd.xlane.f32.xlu0 %v3328
        %v3345 = vpop.xlane.xlu0 %3344
        %3346 = vadd.xlane.f32.xlu0 %v3329
        %v3347 = vpop.xlane.xlu0 %3346
        %3348 = vadd.xlane.f32.xlu0 %v3330
        %v3349 = vpop.xlane.xlu0 %3348
        %3350 = vadd.xlane.f32.xlu0 %v3331
        %v3351 = vpop.xlane.xlu0 %3350
        %3352 = vadd.xlane.f32.xlu0 %v3332
        %v3353 = vpop.xlane.xlu0 %3352
        %3354 = vadd.xlane.f32.xlu0 %v3333
        %v3355 = vpop.xlane.xlu0 %3354
        %3356 = vadd.xlane.f32.xlu0 %v3334
        %v3357 = vpop.xlane.xlu0 %3356
        %3358 = vadd.xlane.f32.xlu0 %v3335
        %v3359 = vpop.xlane.xlu0 %3358
        %3360 = vadd.xlane.f32.xlu0 %v3336
        %v3361 = vpop.xlane.xlu0 %3360
        %3362 = vadd.xlane.f32.xlu0 %v3337
        %v3363 = vpop.xlane.xlu0 %3362
        %3364 = vadd.xlane.f32.xlu0 %v3338
        %v3365 = vpop.xlane.xlu0 %3364
        %3366 = vadd.xlane.f32.xlu0 %v3339
        %v3367 = vpop.xlane.xlu0 %3366
        %3368 = vadd.xlane.f32.xlu0 %v3340
        %v3369 = vpop.xlane.xlu0 %3368
        %3370 = vadd.xlane.f32.xlu0 %v3341
        %v3371 = vpop.xlane.xlu0 %3370
        %3372 = vadd.xlane.f32.xlu0 %v3342
        %v3373 = vpop.xlane.xlu0 %3372
        %3374 = vadd.xlane.f32.xlu0 %v3343
        %v3375 = vpop.xlane.xlu0 %3374
        %v3376 = vmul.f32 %v3345, 0.03125
        %v3377 = vmul.f32 %v3347, 0.03125
        %v3378 = vmul.f32 %v3349, 0.03125
        %v3379 = vmul.f32 %v3351, 0.03125
        %v3380 = vmul.f32 %v3353, 0.03125
        %v3381 = vmul.f32 %v3355, 0.03125
        %v3382 = vmul.f32 %v3357, 0.03125
        %v3383 = vmul.f32 %v3359, 0.03125
        %v3384 = vmul.f32 %v3361, 0.03125
        %v3385 = vmul.f32 %v3363, 0.03125
        %v3386 = vmul.f32 %v3365, 0.03125
        %v3387 = vmul.f32 %v3367, 0.03125
        %v3388 = vmul.f32 %v3369, 0.03125
        %v3389 = vmul.f32 %v3371, 0.03125
        %v3390 = vmul.f32 %v3373, 0.03125
        %v3391 = vmul.f32 %v3375, 0.03125
        %v3392 = vadd.f32 %v3376, 1e-05
        %v3393 = vadd.f32 %v3377, 1e-05
        %v3394 = vadd.f32 %v3378, 1e-05
        %v3395 = vadd.f32 %v3379, 1e-05
        %v3396 = vadd.f32 %v3380, 1e-05
        %v3397 = vadd.f32 %v3381, 1e-05
        %v3398 = vadd.f32 %v3382, 1e-05
        %v3399 = vadd.f32 %v3383, 1e-05
        %v3400 = vadd.f32 %v3384, 1e-05
        %v3401 = vadd.f32 %v3385, 1e-05
        %v3402 = vadd.f32 %v3386, 1e-05
        %v3403 = vadd.f32 %v3387, 1e-05
        %v3404 = vadd.f32 %v3388, 1e-05
        %v3405 = vadd.f32 %v3389, 1e-05
        %v3406 = vadd.f32 %v3390, 1e-05
        %v3407 = vadd.f32 %v3391, 1e-05
        %v3408 = vrsqrt.pop %v3392
        %v3409 = vmul.f32 %v3408, %v3392
        %v3410 = vmul.f32 %v3409, %v3408
        %v3411 = vmul.f32 0.5, %v3410
        %v3412 = vsub.f32 1.5, %v3411
        %v3413 = vmul.f32 %v3408, %v3412
        %vm3414 = vweird.f32 %v3392
        %vm3415 = vweird.f32 %v3408
        %vm3416 = vmor %vm3414, %vm3415
        %v3417 = vsel %vm3416, %v3408, %v3413
        %v3418 = vrsqrt.pop %v3393
        %v3419 = vmul.f32 %v3418, %v3393
        %v3420 = vmul.f32 %v3419, %v3418
        %v3421 = vmul.f32 0.5, %v3420
        %v3422 = vsub.f32 1.5, %v3421
        %v3423 = vmul.f32 %v3418, %v3422
        %vm3424 = vweird.f32 %v3393
        %vm3425 = vweird.f32 %v3418
        %vm3426 = vmor %vm3424, %vm3425
        %v3427 = vsel %vm3426, %v3418, %v3423
        %v3428 = vrsqrt.pop %v3394
        %v3429 = vmul.f32 %v3428, %v3394
        %v3430 = vmul.f32 %v3429, %v3428
        %v3431 = vmul.f32 0.5, %v3430
        %v3432 = vsub.f32 1.5, %v3431
        %v3433 = vmul.f32 %v3428, %v3432
        %vm3434 = vweird.f32 %v3394
        %vm3435 = vweird.f32 %v3428
        %vm3436 = vmor %vm3434, %vm3435
        %v3437 = vsel %vm3436, %v3428, %v3433
        %v3438 = vrsqrt.pop %v3395
        %v3439 = vmul.f32 %v3438, %v3395
        %v3440 = vmul.f32 %v3439, %v3438
        %v3441 = vmul.f32 0.5, %v3440
        %v3442 = vsub.f32 1.5, %v3441
        %v3443 = vmul.f32 %v3438, %v3442
        %vm3444 = vweird.f32 %v3395
        %vm3445 = vweird.f32 %v3438
        %vm3446 = vmor %vm3444, %vm3445
        %v3447 = vsel %vm3446, %v3438, %v3443
        %v3448 = vrsqrt.pop %v3396
        %v3449 = vmul.f32 %v3448, %v3396
        %v3450 = vmul.f32 %v3449, %v3448
        %v3451 = vmul.f32 0.5, %v3450
        %v3452 = vsub.f32 1.5, %v3451
        %v3453 = vmul.f32 %v3448, %v3452
        %vm3454 = vweird.f32 %v3396
        %vm3455 = vweird.f32 %v3448
        %vm3456 = vmor %vm3454, %vm3455
        %v3457 = vsel %vm3456, %v3448, %v3453
        %v3458 = vrsqrt.pop %v3397
        %v3459 = vmul.f32 %v3458, %v3397
        %v3460 = vmul.f32 %v3459, %v3458
        %v3461 = vmul.f32 0.5, %v3460
        %v3462 = vsub.f32 1.5, %v3461
        %v3463 = vmul.f32 %v3458, %v3462
        %vm3464 = vweird.f32 %v3397
        %vm3465 = vweird.f32 %v3458
        %vm3466 = vmor %vm3464, %vm3465
        %v3467 = vsel %vm3466, %v3458, %v3463
        %v3468 = vrsqrt.pop %v3398
        %v3469 = vmul.f32 %v3468, %v3398
        %v3470 = vmul.f32 %v3469, %v3468
        %v3471 = vmul.f32 0.5, %v3470
        %v3472 = vsub.f32 1.5, %v3471
        %v3473 = vmul.f32 %v3468, %v3472
        %vm3474 = vweird.f32 %v3398
        %vm3475 = vweird.f32 %v3468
        %vm3476 = vmor %vm3474, %vm3475
        %v3477 = vsel %vm3476, %v3468, %v3473
        %v3478 = vrsqrt.pop %v3399
        %v3479 = vmul.f32 %v3478, %v3399
        %v3480 = vmul.f32 %v3479, %v3478
        %v3481 = vmul.f32 0.5, %v3480
        %v3482 = vsub.f32 1.5, %v3481
        %v3483 = vmul.f32 %v3478, %v3482
        %vm3484 = vweird.f32 %v3399
        %vm3485 = vweird.f32 %v3478
        %vm3486 = vmor %vm3484, %vm3485
        %v3487 = vsel %vm3486, %v3478, %v3483
        %v3488 = vrsqrt.pop %v3400
        %v3489 = vmul.f32 %v3488, %v3400
        %v3490 = vmul.f32 %v3489, %v3488
        %v3491 = vmul.f32 0.5, %v3490
        %v3492 = vsub.f32 1.5, %v3491
        %v3493 = vmul.f32 %v3488, %v3492
        %vm3494 = vweird.f32 %v3400
        %vm3495 = vweird.f32 %v3488
        %vm3496 = vmor %vm3494, %vm3495
        %v3497 = vsel %vm3496, %v3488, %v3493
        %v3498 = vrsqrt.pop %v3401
        %v3499 = vmul.f32 %v3498, %v3401
        %v3500 = vmul.f32 %v3499, %v3498
        %v3501 = vmul.f32 0.5, %v3500
        %v3502 = vsub.f32 1.5, %v3501
        %v3503 = vmul.f32 %v3498, %v3502
        %vm3504 = vweird.f32 %v3401
        %vm3505 = vweird.f32 %v3498
        %vm3506 = vmor %vm3504, %vm3505
        %v3507 = vsel %vm3506, %v3498, %v3503
        %v3508 = vrsqrt.pop %v3402
        %v3509 = vmul.f32 %v3508, %v3402
        %v3510 = vmul.f32 %v3509, %v3508
        %v3511 = vmul.f32 0.5, %v3510
        %v3512 = vsub.f32 1.5, %v3511
        %v3513 = vmul.f32 %v3508, %v3512
        %vm3514 = vweird.f32 %v3402
        %vm3515 = vweird.f32 %v3508
        %vm3516 = vmor %vm3514, %vm3515
        %v3517 = vsel %vm3516, %v3508, %v3513
        %v3518 = vrsqrt.pop %v3403
        %v3519 = vmul.f32 %v3518, %v3403
        %v3520 = vmul.f32 %v3519, %v3518
        %v3521 = vmul.f32 0.5, %v3520
        %v3522 = vsub.f32 1.5, %v3521
        %v3523 = vmul.f32 %v3518, %v3522
        %vm3524 = vweird.f32 %v3403
        %vm3525 = vweird.f32 %v3518
        %vm3526 = vmor %vm3524, %vm3525
        %v3527 = vsel %vm3526, %v3518, %v3523
        %v3528 = vrsqrt.pop %v3404
        %v3529 = vmul.f32 %v3528, %v3404
        %v3530 = vmul.f32 %v3529, %v3528
        %v3531 = vmul.f32 0.5, %v3530
        %v3532 = vsub.f32 1.5, %v3531
        %v3533 = vmul.f32 %v3528, %v3532
        %vm3534 = vweird.f32 %v3404
        %vm3535 = vweird.f32 %v3528
        %vm3536 = vmor %vm3534, %vm3535
        %v3537 = vsel %vm3536, %v3528, %v3533
        %v3538 = vrsqrt.pop %v3405
        %v3539 = vmul.f32 %v3538, %v3405
        %v3540 = vmul.f32 %v3539, %v3538
        %v3541 = vmul.f32 0.5, %v3540
        %v3542 = vsub.f32 1.5, %v3541
        %v3543 = vmul.f32 %v3538, %v3542
        %vm3544 = vweird.f32 %v3405
        %vm3545 = vweird.f32 %v3538
        %vm3546 = vmor %vm3544, %vm3545
        %v3547 = vsel %vm3546, %v3538, %v3543
        %v3548 = vrsqrt.pop %v3406
        %v3549 = vmul.f32 %v3548, %v3406
        %v3550 = vmul.f32 %v3549, %v3548
        %v3551 = vmul.f32 0.5, %v3550
        %v3552 = vsub.f32 1.5, %v3551
        %v3553 = vmul.f32 %v3548, %v3552
        %vm3554 = vweird.f32 %v3406
        %vm3555 = vweird.f32 %v3548
        %vm3556 = vmor %vm3554, %vm3555
        %v3557 = vsel %vm3556, %v3548, %v3553
        %v3558 = vrsqrt.pop %v3407
        %v3559 = vmul.f32 %v3558, %v3407
        %v3560 = vmul.f32 %v3559, %v3558
        %v3561 = vmul.f32 0.5, %v3560
        %v3562 = vsub.f32 1.5, %v3561
        %v3563 = vmul.f32 %v3558, %v3562
        %vm3564 = vweird.f32 %v3407
        %vm3565 = vweird.f32 %v3558
        %vm3566 = vmor %vm3564, %vm3565
        %v3567 = vsel %vm3566, %v3558, %v3563
        %v3568 = vmul.f32 %v3312, %v3417
        %v3569 = vmul.f32 %v3313, %v3427
        %v3570 = vmul.f32 %v3314, %v3437
        %v3571 = vmul.f32 %v3315, %v3447
        %v3572 = vmul.f32 %v3316, %v3457
        %v3573 = vmul.f32 %v3317, %v3467
        %v3574 = vmul.f32 %v3318, %v3477
        %v3575 = vmul.f32 %v3319, %v3487
        %v3576 = vmul.f32 %v3320, %v3497
        %v3577 = vmul.f32 %v3321, %v3507
        %v3578 = vmul.f32 %v3322, %v3517
        %v3579 = vmul.f32 %v3323, %v3527
        %v3580 = vmul.f32 %v3324, %v3537
        %v3581 = vmul.f32 %v3325, %v3547
        %v3582 = vmul.f32 %v3326, %v3557
        %v3583 = vmul.f32 %v3327, %v3567
        %v3585 = vperm.slane %v3247, 0
        %v3587 = vmul.f32 %v3568, %v3585
        %v3588 = vmul.f32 %v3569, %v3585
        %v3589 = vmul.f32 %v3570, %v3585
        %v3590 = vmul.f32 %v3571, %v3585
        %v3591 = vmul.f32 %v3572, %v3585
        %v3592 = vmul.f32 %v3573, %v3585
        %v3593 = vmul.f32 %v3574, %v3585
        %v3594 = vmul.f32 %v3575, %v3585
        %v3595 = vmul.f32 %v3576, %v3585
        %v3596 = vmul.f32 %v3577, %v3585
        %v3597 = vmul.f32 %v3578, %v3585
        %v3598 = vmul.f32 %v3579, %v3585
        %v3599 = vmul.f32 %v3580, %v3585
        %v3600 = vmul.f32 %v3581, %v3585
        %v3601 = vmul.f32 %v3582, %v3585
        %v3602 = vmul.f32 %v3583, %v3585
        %v3603 = vpack.c.bf16 %v3588, %v3587
        %v3604 = vpack.c.bf16 %v3590, %v3589
        %v3605 = vpack.c.bf16 %v3592, %v3591
        %v3606 = vpack.c.bf16 %v3594, %v3593
        %v3607 = vpack.c.bf16 %v3596, %v3595
        %v3608 = vpack.c.bf16 %v3598, %v3597
        %v3609 = vpack.c.bf16 %v3600, %v3599
        %v3610 = vpack.c.bf16 %v3602, %v3601
        %v3611 = vld [vmem:[%s6] sm:$0xf]
        %v3612 = vld [vmem:[%s6 + $0x4] sm:$0xf]
        %v3613 = vld [vmem:[%s6 + $0x8] sm:$0xf]
        %v3614 = vld [vmem:[%s6 + $0xc] sm:$0xf]
        %v3615 = vld [vmem:[%s6 + $0x10] sm:$0xf]
        %v3616 = vld [vmem:[%s6 + $0x14] sm:$0xf]
        %v3617 = vld [vmem:[%s6 + $0x18] sm:$0xf]
        %v3618 = vld [vmem:[%s6 + $0x1c] sm:$0xf]
        %v3619 = vld [vmem:[%s6 + $0x20] sm:$0xf]
        %v3620 = vld [vmem:[%s6 + $0x24] sm:$0xf]
        %v3621 = vld [vmem:[%s6 + $0x28] sm:$0xf]
        %v3622 = vld [vmem:[%s6 + $0x2c] sm:$0xf]
        %v3623 = vld [vmem:[%s6 + $0x30] sm:$0xf]
        %v3624 = vld [vmem:[%s6 + $0x34] sm:$0xf]
        %v3625 = vld [vmem:[%s6 + $0x38] sm:$0xf]
        %v3626 = vld [vmem:[%s6 + $0x3c] sm:$0xf]
        %v3643 = vunpack.c.l.b16 %v3611
        %v3644 = vunpack.c.l.b16 %v3612
        %v3645 = vunpack.c.l.b16 %v3613
        %v3646 = vunpack.c.l.b16 %v3614
        %v3647 = vunpack.c.l.b16 %v3615
        %v3648 = vunpack.c.l.b16 %v3616
        %v3649 = vunpack.c.l.b16 %v3617
        %v3650 = vunpack.c.l.b16 %v3618
        %v3651 = vunpack.c.l.b16 %v3619
        %v3652 = vunpack.c.l.b16 %v3620
        %v3653 = vunpack.c.l.b16 %v3621
        %v3654 = vunpack.c.l.b16 %v3622
        %v3655 = vunpack.c.l.b16 %v3623
        %v3656 = vunpack.c.l.b16 %v3624
        %v3657 = vunpack.c.l.b16 %v3625
        %v3658 = vunpack.c.l.b16 %v3626
        %v3659 = vpack.c.b16 %v3644, %v3643
        %v3660 = vpack.c.b16 %v3646, %v3645
        %v3661 = vpack.c.b16 %v3648, %v3647
        %v3662 = vpack.c.b16 %v3650, %v3649
        %v3663 = vpack.c.b16 %v3652, %v3651
        %v3664 = vpack.c.b16 %v3654, %v3653
        %v3665 = vpack.c.b16 %v3656, %v3655
        %v3666 = vpack.c.b16 %v3658, %v3657
        %3675 = vmatpush.bf16.msra.mxu0 %v3666
        %3676 = vmatpush.bf16.msra.mxu0 %v3665
        %3677 = vmatpush.bf16.msra.mxu0 %v3664
        %3678 = vmatpush.bf16.msra.mxu0 %v3663
        %3679 = vmatpush.bf16.msra.mxu0 %v3662
        %3680 = vmatpush.bf16.msra.mxu0 %v3661
        %3681 = vmatpush.bf16.msra.mxu0 %v3660
        %3682 = vmatpush.bf16.msra.mxu0 %v3659
        %3683 = vmatmul.bf16.gmra.mxu0 %v3603
        %v3684 = vpop.f32.mrf.mxu0
        %v3685 = vadd.f32 0.0, %v3684
        %v3686 = vpop.f32.mrf.mxu0
        %v3687 = vadd.f32 0.0, %v3686
        %3688 = vmatmul.bf16.gmra.mxu0 %v3604
        %v3689 = vpop.f32.mrf.mxu0
        %v3690 = vadd.f32 0.0, %v3689
        %v3691 = vpop.f32.mrf.mxu0
        %v3692 = vadd.f32 0.0, %v3691
        %3693 = vmatmul.bf16.gmra.mxu0 %v3605
        %v3694 = vpop.f32.mrf.mxu0
        %v3695 = vadd.f32 0.0, %v3694
        %v3696 = vpop.f32.mrf.mxu0
        %v3697 = vadd.f32 0.0, %v3696
        %3698 = vmatmul.bf16.gmra.mxu0 %v3606
        %v3699 = vpop.f32.mrf.mxu0
        %v3700 = vadd.f32 0.0, %v3699
        %v3701 = vpop.f32.mrf.mxu0
        %v3702 = vadd.f32 0.0, %v3701
        %3703 = vmatmul.bf16.gmra.mxu0 %v3607
        %v3704 = vpop.f32.mrf.mxu0
        %v3705 = vadd.f32 0.0, %v3704
        %v3706 = vpop.f32.mrf.mxu0
        %v3707 = vadd.f32 0.0, %v3706
        %3708 = vmatmul.bf16.gmra.mxu0 %v3608
        %v3709 = vpop.f32.mrf.mxu0
        %v3710 = vadd.f32 0.0, %v3709
        %v3711 = vpop.f32.mrf.mxu0
        %v3712 = vadd.f32 0.0, %v3711
        %3713 = vmatmul.bf16.gmra.mxu0 %v3609
        %v3714 = vpop.f32.mrf.mxu0
        %v3715 = vadd.f32 0.0, %v3714
        %v3716 = vpop.f32.mrf.mxu0
        %v3717 = vadd.f32 0.0, %v3716
        %3718 = vmatmul.bf16.gmra.mxu0 %v3610
        %v3719 = vpop.f32.mrf.mxu0
        %v3720 = vadd.f32 0.0, %v3719
        %v3721 = vpop.f32.mrf.mxu0
        %v3722 = vadd.f32 0.0, %v3721
        %3723 = vdwg.mxu0
        %v3724 = vxor.u32 %v3685, 2147483648
        %v3725 = vxor.u32 %v3687, 2147483648
        %v3726 = vxor.u32 %v3690, 2147483648
        %v3727 = vxor.u32 %v3692, 2147483648
        %v3728 = vxor.u32 %v3695, 2147483648
        %v3729 = vxor.u32 %v3697, 2147483648
        %v3730 = vxor.u32 %v3700, 2147483648
        %v3731 = vxor.u32 %v3702, 2147483648
        %v3732 = vxor.u32 %v3705, 2147483648
        %v3733 = vxor.u32 %v3707, 2147483648
        %v3734 = vxor.u32 %v3710, 2147483648
        %v3735 = vxor.u32 %v3712, 2147483648
        %v3736 = vxor.u32 %v3715, 2147483648
        %v3737 = vxor.u32 %v3717, 2147483648
        %v3738 = vxor.u32 %v3720, 2147483648
        %v3739 = vxor.u32 %v3722, 2147483648
        %v3740 = vmul.f32 %v3724, 1.442695
        %v3741 = vpow.pop %v3740
        %v3742 = vmul.f32 %v3725, 1.442695
        %v3743 = vpow.pop %v3742
        %v3744 = vmul.f32 %v3726, 1.442695
        %v3745 = vpow.pop %v3744
        %v3746 = vmul.f32 %v3727, 1.442695
        %v3747 = vpow.pop %v3746
        %v3748 = vmul.f32 %v3728, 1.442695
        %v3749 = vpow.pop %v3748
        %v3750 = vmul.f32 %v3729, 1.442695
        %v3751 = vpow.pop %v3750
        %v3752 = vmul.f32 %v3730, 1.442695
        %v3753 = vpow.pop %v3752
        %v3754 = vmul.f32 %v3731, 1.442695
        %v3755 = vpow.pop %v3754
        %v3756 = vmul.f32 %v3732, 1.442695
        %v3757 = vpow.pop %v3756
        %v3758 = vmul.f32 %v3733, 1.442695
        %v3759 = vpow.pop %v3758
        %v3760 = vmul.f32 %v3734, 1.442695
        %v3761 = vpow.pop %v3760
        %v3762 = vmul.f32 %v3735, 1.442695
        %v3763 = vpow.pop %v3762
        %v3764 = vmul.f32 %v3736, 1.442695
        %v3765 = vpow.pop %v3764
        %v3766 = vmul.f32 %v3737, 1.442695
        %v3767 = vpow.pop %v3766
        %v3768 = vmul.f32 %v3738, 1.442695
        %v3769 = vpow.pop %v3768
        %v3770 = vmul.f32 %v3739, 1.442695
        %v3771 = vpow.pop %v3770
        %v3772 = vadd.f32 %v3741, 1.0
        %v3773 = vadd.f32 %v3743, 1.0
        %v3774 = vadd.f32 %v3745, 1.0
        %v3775 = vadd.f32 %v3747, 1.0
        %v3776 = vadd.f32 %v3749, 1.0
        %v3777 = vadd.f32 %v3751, 1.0
        %v3778 = vadd.f32 %v3753, 1.0
        %v3779 = vadd.f32 %v3755, 1.0
        %v3780 = vadd.f32 %v3757, 1.0
        %v3781 = vadd.f32 %v3759, 1.0
        %v3782 = vadd.f32 %v3761, 1.0
        %v3783 = vadd.f32 %v3763, 1.0
        %v3784 = vadd.f32 %v3765, 1.0
        %v3785 = vadd.f32 %v3767, 1.0
        %v3786 = vadd.f32 %v3769, 1.0
        %v3787 = vadd.f32 %v3771, 1.0
        %v3788 = vrcp.pop %v3772
        %v3789 = vmul.f32 %v3772, %v3788
        %v3790 = vsub.f32 1.0, %v3789
        %v3791 = vmul.f32 %v3788, %v3790
        %v3792 = vadd.f32 %v3788, %v3791
        %vm3793 = vweird.f32 %v3772
        %vm3794 = vweird.f32 %v3788
        %vm3795 = vmor %vm3793, %vm3794
        %v3796 = vsel %vm3795, %v3788, %v3792
        %v3797 = vand.u32 2147483647, %v3772
        %vm3798 = vcmp.eq.f32.partialorder %v3797, 8.507059e+37
        %v3799 = vand.u32 %v3772, 2147483648
        %v3800 = vor.u32 1.1754944e-38, %v3799
        %v3801 = vsel %vm3798, %v3800, %v3796
        %v3802 = vmul.f32 1.0, %v3801
        %v3803 = vrcp.pop %v3773
        %v3804 = vmul.f32 %v3773, %v3803
        %v3805 = vsub.f32 1.0, %v3804
        %v3806 = vmul.f32 %v3803, %v3805
        %v3807 = vadd.f32 %v3803, %v3806
        %vm3808 = vweird.f32 %v3773
        %vm3809 = vweird.f32 %v3803
        %vm3810 = vmor %vm3808, %vm3809
        %v3811 = vsel %vm3810, %v3803, %v3807
        %v3812 = vand.u32 2147483647, %v3773
        %vm3813 = vcmp.eq.f32.partialorder %v3812, 8.507059e+37
        %v3814 = vand.u32 %v3773, 2147483648
        %v3815 = vor.u32 1.1754944e-38, %v3814
        %v3816 = vsel %vm3813, %v3815, %v3811
        %v3817 = vmul.f32 1.0, %v3816
        %v3818 = vrcp.pop %v3774
        %v3819 = vmul.f32 %v3774, %v3818
        %v3820 = vsub.f32 1.0, %v3819
        %v3821 = vmul.f32 %v3818, %v3820
        %v3822 = vadd.f32 %v3818, %v3821
        %vm3823 = vweird.f32 %v3774
        %vm3824 = vweird.f32 %v3818
        %vm3825 = vmor %vm3823, %vm3824
        %v3826 = vsel %vm3825, %v3818, %v3822
        %v3827 = vand.u32 2147483647, %v3774
        %vm3828 = vcmp.eq.f32.partialorder %v3827, 8.507059e+37
        %v3829 = vand.u32 %v3774, 2147483648
        %v3830 = vor.u32 1.1754944e-38, %v3829
        %v3831 = vsel %vm3828, %v3830, %v3826
        %v3832 = vmul.f32 1.0, %v3831
        %v3833 = vrcp.pop %v3775
        %v3834 = vmul.f32 %v3775, %v3833
        %v3835 = vsub.f32 1.0, %v3834
        %v3836 = vmul.f32 %v3833, %v3835
        %v3837 = vadd.f32 %v3833, %v3836
        %vm3838 = vweird.f32 %v3775
        %vm3839 = vweird.f32 %v3833
        %vm3840 = vmor %vm3838, %vm3839
        %v3841 = vsel %vm3840, %v3833, %v3837
        %v3842 = vand.u32 2147483647, %v3775
        %vm3843 = vcmp.eq.f32.partialorder %v3842, 8.507059e+37
        %v3844 = vand.u32 %v3775, 2147483648
        %v3845 = vor.u32 1.1754944e-38, %v3844
        %v3846 = vsel %vm3843, %v3845, %v3841
        %v3847 = vmul.f32 1.0, %v3846
        %v3848 = vrcp.pop %v3776
        %v3849 = vmul.f32 %v3776, %v3848
        %v3850 = vsub.f32 1.0, %v3849
        %v3851 = vmul.f32 %v3848, %v3850
        %v3852 = vadd.f32 %v3848, %v3851
        %vm3853 = vweird.f32 %v3776
        %vm3854 = vweird.f32 %v3848
        %vm3855 = vmor %vm3853, %vm3854
        %v3856 = vsel %vm3855, %v3848, %v3852
        %v3857 = vand.u32 2147483647, %v3776
        %vm3858 = vcmp.eq.f32.partialorder %v3857, 8.507059e+37
        %v3859 = vand.u32 %v3776, 2147483648
        %v3860 = vor.u32 1.1754944e-38, %v3859
        %v3861 = vsel %vm3858, %v3860, %v3856
        %v3862 = vmul.f32 1.0, %v3861
        %v3863 = vrcp.pop %v3777
        %v3864 = vmul.f32 %v3777, %v3863
        %v3865 = vsub.f32 1.0, %v3864
        %v3866 = vmul.f32 %v3863, %v3865
        %v3867 = vadd.f32 %v3863, %v3866
        %vm3868 = vweird.f32 %v3777
        %vm3869 = vweird.f32 %v3863
        %vm3870 = vmor %vm3868, %vm3869
        %v3871 = vsel %vm3870, %v3863, %v3867
        %v3872 = vand.u32 2147483647, %v3777
        %vm3873 = vcmp.eq.f32.partialorder %v3872, 8.507059e+37
        %v3874 = vand.u32 %v3777, 2147483648
        %v3875 = vor.u32 1.1754944e-38, %v3874
        %v3876 = vsel %vm3873, %v3875, %v3871
        %v3877 = vmul.f32 1.0, %v3876
        %v3878 = vrcp.pop %v3778
        %v3879 = vmul.f32 %v3778, %v3878
        %v3880 = vsub.f32 1.0, %v3879
        %v3881 = vmul.f32 %v3878, %v3880
        %v3882 = vadd.f32 %v3878, %v3881
        %vm3883 = vweird.f32 %v3778
        %vm3884 = vweird.f32 %v3878
        %vm3885 = vmor %vm3883, %vm3884
        %v3886 = vsel %vm3885, %v3878, %v3882
        %v3887 = vand.u32 2147483647, %v3778
        %vm3888 = vcmp.eq.f32.partialorder %v3887, 8.507059e+37
        %v3889 = vand.u32 %v3778, 2147483648
        %v3890 = vor.u32 1.1754944e-38, %v3889
        %v3891 = vsel %vm3888, %v3890, %v3886
        %v3892 = vmul.f32 1.0, %v3891
        %v3893 = vrcp.pop %v3779
        %v3894 = vmul.f32 %v3779, %v3893
        %v3895 = vsub.f32 1.0, %v3894
        %v3896 = vmul.f32 %v3893, %v3895
        %v3897 = vadd.f32 %v3893, %v3896
        %vm3898 = vweird.f32 %v3779
        %vm3899 = vweird.f32 %v3893
        %vm3900 = vmor %vm3898, %vm3899
        %v3901 = vsel %vm3900, %v3893, %v3897
        %v3902 = vand.u32 2147483647, %v3779
        %vm3903 = vcmp.eq.f32.partialorder %v3902, 8.507059e+37
        %v3904 = vand.u32 %v3779, 2147483648
        %v3905 = vor.u32 1.1754944e-38, %v3904
        %v3906 = vsel %vm3903, %v3905, %v3901
        %v3907 = vmul.f32 1.0, %v3906
        %v3908 = vrcp.pop %v3780
        %v3909 = vmul.f32 %v3780, %v3908
        %v3910 = vsub.f32 1.0, %v3909
        %v3911 = vmul.f32 %v3908, %v3910
        %v3912 = vadd.f32 %v3908, %v3911
        %vm3913 = vweird.f32 %v3780
        %vm3914 = vweird.f32 %v3908
        %vm3915 = vmor %vm3913, %vm3914
        %v3916 = vsel %vm3915, %v3908, %v3912
        %v3917 = vand.u32 2147483647, %v3780
        %vm3918 = vcmp.eq.f32.partialorder %v3917, 8.507059e+37
        %v3919 = vand.u32 %v3780, 2147483648
        %v3920 = vor.u32 1.1754944e-38, %v3919
        %v3921 = vsel %vm3918, %v3920, %v3916
        %v3922 = vmul.f32 1.0, %v3921
        %v3923 = vrcp.pop %v3781
        %v3924 = vmul.f32 %v3781, %v3923
        %v3925 = vsub.f32 1.0, %v3924
        %v3926 = vmul.f32 %v3923, %v3925
        %v3927 = vadd.f32 %v3923, %v3926
        %vm3928 = vweird.f32 %v3781
        %vm3929 = vweird.f32 %v3923
        %vm3930 = vmor %vm3928, %vm3929
        %v3931 = vsel %vm3930, %v3923, %v3927
        %v3932 = vand.u32 2147483647, %v3781
        %vm3933 = vcmp.eq.f32.partialorder %v3932, 8.507059e+37
        %v3934 = vand.u32 %v3781, 2147483648
        %v3935 = vor.u32 1.1754944e-38, %v3934
        %v3936 = vsel %vm3933, %v3935, %v3931
        %v3937 = vmul.f32 1.0, %v3936
        %v3938 = vrcp.pop %v3782
        %v3939 = vmul.f32 %v3782, %v3938
        %v3940 = vsub.f32 1.0, %v3939
        %v3941 = vmul.f32 %v3938, %v3940
        %v3942 = vadd.f32 %v3938, %v3941
        %vm3943 = vweird.f32 %v3782
        %vm3944 = vweird.f32 %v3938
        %vm3945 = vmor %vm3943, %vm3944
        %v3946 = vsel %vm3945, %v3938, %v3942
        %v3947 = vand.u32 2147483647, %v3782
        %vm3948 = vcmp.eq.f32.partialorder %v3947, 8.507059e+37
        %v3949 = vand.u32 %v3782, 2147483648
        %v3950 = vor.u32 1.1754944e-38, %v3949
        %v3951 = vsel %vm3948, %v3950, %v3946
        %v3952 = vmul.f32 1.0, %v3951
        %v3953 = vrcp.pop %v3783
        %v3954 = vmul.f32 %v3783, %v3953
        %v3955 = vsub.f32 1.0, %v3954
        %v3956 = vmul.f32 %v3953, %v3955
        %v3957 = vadd.f32 %v3953, %v3956
        %vm3958 = vweird.f32 %v3783
        %vm3959 = vweird.f32 %v3953
        %vm3960 = vmor %vm3958, %vm3959
        %v3961 = vsel %vm3960, %v3953, %v3957
        %v3962 = vand.u32 2147483647, %v3783
        %vm3963 = vcmp.eq.f32.partialorder %v3962, 8.507059e+37
        %v3964 = vand.u32 %v3783, 2147483648
        %v3965 = vor.u32 1.1754944e-38, %v3964
        %v3966 = vsel %vm3963, %v3965, %v3961
        %v3967 = vmul.f32 1.0, %v3966
        %v3968 = vrcp.pop %v3784
        %v3969 = vmul.f32 %v3784, %v3968
        %v3970 = vsub.f32 1.0, %v3969
        %v3971 = vmul.f32 %v3968, %v3970
        %v3972 = vadd.f32 %v3968, %v3971
        %vm3973 = vweird.f32 %v3784
        %vm3974 = vweird.f32 %v3968
        %vm3975 = vmor %vm3973, %vm3974
        %v3976 = vsel %vm3975, %v3968, %v3972
        %v3977 = vand.u32 2147483647, %v3784
        %vm3978 = vcmp.eq.f32.partialorder %v3977, 8.507059e+37
        %v3979 = vand.u32 %v3784, 2147483648
        %v3980 = vor.u32 1.1754944e-38, %v3979
        %v3981 = vsel %vm3978, %v3980, %v3976
        %v3982 = vmul.f32 1.0, %v3981
        %v3983 = vrcp.pop %v3785
        %v3984 = vmul.f32 %v3785, %v3983
        %v3985 = vsub.f32 1.0, %v3984
        %v3986 = vmul.f32 %v3983, %v3985
        %v3987 = vadd.f32 %v3983, %v3986
        %vm3988 = vweird.f32 %v3785
        %vm3989 = vweird.f32 %v3983
        %vm3990 = vmor %vm3988, %vm3989
        %v3991 = vsel %vm3990, %v3983, %v3987
        %v3992 = vand.u32 2147483647, %v3785
        %vm3993 = vcmp.eq.f32.partialorder %v3992, 8.507059e+37
        %v3994 = vand.u32 %v3785, 2147483648
        %v3995 = vor.u32 1.1754944e-38, %v3994
        %v3996 = vsel %vm3993, %v3995, %v3991
        %v3997 = vmul.f32 1.0, %v3996
        %v3998 = vrcp.pop %v3786
        %v3999 = vmul.f32 %v3786, %v3998
        %v4000 = vsub.f32 1.0, %v3999
        %v4001 = vmul.f32 %v3998, %v4000
        %v4002 = vadd.f32 %v3998, %v4001
        %vm4003 = vweird.f32 %v3786
        %vm4004 = vweird.f32 %v3998
        %vm4005 = vmor %vm4003, %vm4004
        %v4006 = vsel %vm4005, %v3998, %v4002
        %v4007 = vand.u32 2147483647, %v3786
        %vm4008 = vcmp.eq.f32.partialorder %v4007, 8.507059e+37
        %v4009 = vand.u32 %v3786, 2147483648
        %v4010 = vor.u32 1.1754944e-38, %v4009
        %v4011 = vsel %vm4008, %v4010, %v4006
        %v4012 = vmul.f32 1.0, %v4011
        %v4013 = vrcp.pop %v3787
        %v4014 = vmul.f32 %v3787, %v4013
        %v4015 = vsub.f32 1.0, %v4014
        %v4016 = vmul.f32 %v4013, %v4015
        %v4017 = vadd.f32 %v4013, %v4016
        %vm4018 = vweird.f32 %v3787
        %vm4019 = vweird.f32 %v4013
        %vm4020 = vmor %vm4018, %vm4019
        %v4021 = vsel %vm4020, %v4013, %v4017
        %v4022 = vand.u32 2147483647, %v3787
        %vm4023 = vcmp.eq.f32.partialorder %v4022, 8.507059e+37
        %v4024 = vand.u32 %v3787, 2147483648
        %v4025 = vor.u32 1.1754944e-38, %v4024
        %v4026 = vsel %vm4023, %v4025, %v4021
        %v4027 = vmul.f32 1.0, %v4026
        %v4028 = vmul.f32 %v3685, %v3802
        %v4029 = vmul.f32 %v3687, %v3817
        %v4030 = vmul.f32 %v3690, %v3832
        %v4031 = vmul.f32 %v3692, %v3847
        %v4032 = vmul.f32 %v3695, %v3862
        %v4033 = vmul.f32 %v3697, %v3877
        %v4034 = vmul.f32 %v3700, %v3892
        %v4035 = vmul.f32 %v3702, %v3907
        %v4036 = vmul.f32 %v3705, %v3922
        %v4037 = vmul.f32 %v3707, %v3937
        %v4038 = vmul.f32 %v3710, %v3952
        %v4039 = vmul.f32 %v3712, %v3967
        %v4040 = vmul.f32 %v3715, %v3982
        %v4041 = vmul.f32 %v3717, %v3997
        %v4042 = vmul.f32 %v3720, %v4012
        %v4043 = vmul.f32 %v3722, %v4027
        %v4044 = vpack.c.bf16 %v4029, %v4028
        %v4045 = vpack.c.bf16 %v4031, %v4030
        %v4046 = vpack.c.bf16 %v4033, %v4032
        %v4047 = vpack.c.bf16 %v4035, %v4034
        %v4048 = vpack.c.bf16 %v4037, %v4036
        %v4049 = vpack.c.bf16 %v4039, %v4038
        %v4050 = vpack.c.bf16 %v4041, %v4040
        %v4051 = vpack.c.bf16 %v4043, %v4042
        %v4052 = vld [vmem:[%s7] sm:$0xf]
        %v4053 = vld [vmem:[%s7 + $0x4] sm:$0xf]
        %v4054 = vld [vmem:[%s7 + $0x8] sm:$0xf]
        %v4055 = vld [vmem:[%s7 + $0xc] sm:$0xf]
        %v4056 = vld [vmem:[%s7 + $0x10] sm:$0xf]
        %v4057 = vld [vmem:[%s7 + $0x14] sm:$0xf]
        %v4058 = vld [vmem:[%s7 + $0x18] sm:$0xf]
        %v4059 = vld [vmem:[%s7 + $0x1c] sm:$0xf]
        %v4068 = vunpack.c.l.b16 %v4052
        %v4069 = vunpack.c.l.b16 %v4053
        %v4070 = vunpack.c.l.b16 %v4054
        %v4071 = vunpack.c.l.b16 %v4055
        %v4072 = vunpack.c.l.b16 %v4056
        %v4073 = vunpack.c.l.b16 %v4057
        %v4074 = vunpack.c.l.b16 %v4058
        %v4075 = vunpack.c.l.b16 %v4059
        %v4076 = vpack.c.b16 %v4069, %v4068
        %v4077 = vpack.c.b16 %v4071, %v4070
        %v4078 = vpack.c.b16 %v4073, %v4072
        %v4079 = vpack.c.b16 %v4075, %v4074
        %v4085 = vsel %vm1091, %v4044, 0
        %v4088 = vsel %vm1091, %v4045, 0
        %v4091 = vsel %vm1091, %v4046, 0
        %v4094 = vsel %vm1091, %v4047, 0
        %v4097 = vsel %vm1091, %v4048, 0
        %v4100 = vsel %vm1091, %v4049, 0
        %v4103 = vsel %vm1091, %v4050, 0
        %v4106 = vsel %vm1091, %v4051, 0
        %4108 = vmatpush.bf16.msra.mxu0 0
        %4109 = vmatpush.bf16.msra.mxu0 0
        %4110 = vmatpush.bf16.msra.mxu0 0
        %4111 = vmatpush.bf16.msra.mxu0 0
        %4112 = vmatpush.bf16.msra.mxu0 %v4079
        %4113 = vmatpush.bf16.msra.mxu0 %v4078
        %4114 = vmatpush.bf16.msra.mxu0 %v4077
        %4115 = vmatpush.bf16.msra.mxu0 %v4076
        %4116 = vmatmul.bf16.gmra.mxu0 %v4085
        %v4117 = vpop.f32.mrf.mxu0
        %v4118 = vadd.f32 0.0, %v4117
        %v4119 = vpop.f32.mrf.mxu0
        %v4120 = vadd.f32 0.0, %v4119
        %4121 = vmatmul.bf16.gmra.mxu0 %v4088
        %v4122 = vpop.f32.mrf.mxu0
        %v4123 = vadd.f32 0.0, %v4122
        %v4124 = vpop.f32.mrf.mxu0
        %v4125 = vadd.f32 0.0, %v4124
        %4126 = vmatmul.bf16.gmra.mxu0 %v4091
        %v4127 = vpop.f32.mrf.mxu0
        %v4128 = vadd.f32 0.0, %v4127
        %v4129 = vpop.f32.mrf.mxu0
        %v4130 = vadd.f32 0.0, %v4129
        %4131 = vmatmul.bf16.gmra.mxu0 %v4094
        %v4132 = vpop.f32.mrf.mxu0
        %v4133 = vadd.f32 0.0, %v4132
        %v4134 = vpop.f32.mrf.mxu0
        %v4135 = vadd.f32 0.0, %v4134
        %4136 = vmatmul.bf16.gmra.mxu0 %v4097
        %v4137 = vpop.f32.mrf.mxu0
        %v4138 = vadd.f32 0.0, %v4137
        %v4139 = vpop.f32.mrf.mxu0
        %v4140 = vadd.f32 0.0, %v4139
        %4141 = vmatmul.bf16.gmra.mxu0 %v4100
        %v4142 = vpop.f32.mrf.mxu0
        %v4143 = vadd.f32 0.0, %v4142
        %v4144 = vpop.f32.mrf.mxu0
        %v4145 = vadd.f32 0.0, %v4144
        %4146 = vmatmul.bf16.gmra.mxu0 %v4103
        %v4147 = vpop.f32.mrf.mxu0
        %v4148 = vadd.f32 0.0, %v4147
        %v4149 = vpop.f32.mrf.mxu0
        %v4150 = vadd.f32 0.0, %v4149
        %4151 = vmatmul.bf16.gmra.mxu0 %v4106
        %v4152 = vpop.f32.mrf.mxu0
        %v4153 = vadd.f32 0.0, %v4152
        %v4154 = vpop.f32.mrf.mxu0
        %v4155 = vadd.f32 0.0, %v4154
        %4156 = vdwg.mxu0
        %v4157 = vadd.f32 %v3231, %v4118
        %v4158 = vadd.f32 %v3232, %v4120
        %v4159 = vadd.f32 %v3233, %v4123
        %v4160 = vadd.f32 %v3234, %v4125
        %v4161 = vadd.f32 %v3235, %v4128
        %v4162 = vadd.f32 %v3236, %v4130
        %v4163 = vadd.f32 %v3237, %v4133
        %v4164 = vadd.f32 %v3238, %v4135
        %v4165 = vadd.f32 %v3239, %v4138
        %v4166 = vadd.f32 %v3240, %v4140
        %v4167 = vadd.f32 %v3241, %v4143
        %v4168 = vadd.f32 %v3242, %v4145
        %v4169 = vadd.f32 %v3243, %v4148
        %v4170 = vadd.f32 %v3244, %v4150
        %v4171 = vadd.f32 %v3245, %v4153
        %v4172 = vadd.f32 %v3246, %v4155
        %v4173 = vld [vmem:[%s8] sm:$0x1]
        %v4175 = vperm.slane %v4173, 0
        %v4177 = vmul.f32 %v393, %v4175
        %v4178 = vmul.f32 %v394, %v4175
        %v4179 = vmul.f32 %v395, %v4175
        %v4180 = vmul.f32 %v396, %v4175
        %v4181 = vmul.f32 %v397, %v4175
        %v4182 = vmul.f32 %v398, %v4175
        %v4183 = vmul.f32 %v399, %v4175
        %v4184 = vmul.f32 %v400, %v4175
        %v4185 = vmul.f32 %v401, %v4175
        %v4186 = vmul.f32 %v402, %v4175
        %v4187 = vmul.f32 %v403, %v4175
        %v4188 = vmul.f32 %v404, %v4175
        %v4189 = vmul.f32 %v405, %v4175
        %v4190 = vmul.f32 %v406, %v4175
        %v4191 = vmul.f32 %v407, %v4175
        %v4192 = vmul.f32 %v408, %v4175
        %v4193 = vadd.f32 %v4157, %v4177
        %v4194 = vadd.f32 %v4158, %v4178
        %v4195 = vadd.f32 %v4159, %v4179
        %v4196 = vadd.f32 %v4160, %v4180
        %v4197 = vadd.f32 %v4161, %v4181
        %v4198 = vadd.f32 %v4162, %v4182
        %v4199 = vadd.f32 %v4163, %v4183
        %v4200 = vadd.f32 %v4164, %v4184
        %v4201 = vadd.f32 %v4165, %v4185
        %v4202 = vadd.f32 %v4166, %v4186
        %v4203 = vadd.f32 %v4167, %v4187
        %v4204 = vadd.f32 %v4168, %v4188
        %v4205 = vadd.f32 %v4169, %v4189
        %v4206 = vadd.f32 %v4170, %v4190
        %v4207 = vadd.f32 %v4171, %v4191
        %v4208 = vadd.f32 %v4172, %v4192
        %4209 = vst [vmem:[%s386] sm:$0xff] %v4193
        %4210 = vst [vmem:[%s386 + $0x8] sm:$0xff] %v4194
        %4211 = vst [vmem:[%s386 + $0x10] sm:$0xff] %v4195
        %4212 = vst [vmem:[%s386 + $0x18] sm:$0xff] %v4196
        %4213 = vst [vmem:[%s386 + $0x20] sm:$0xff] %v4197
        %4214 = vst [vmem:[%s386 + $0x28] sm:$0xff] %v4198
        %4215 = vst [vmem:[%s386 + $0x30] sm:$0xff] %v4199
        %4216 = vst [vmem:[%s386 + $0x38] sm:$0xff] %v4200
        %4217 = vst [vmem:[%s386 + $0x40] sm:$0xff] %v4201
        %4218 = vst [vmem:[%s386 + $0x48] sm:$0xff] %v4202
        %4219 = vst [vmem:[%s386 + $0x50] sm:$0xff] %v4203
        %4220 = vst [vmem:[%s386 + $0x58] sm:$0xff] %v4204
        %4221 = vst [vmem:[%s386 + $0x60] sm:$0xff] %v4205
        %4222 = vst [vmem:[%s386 + $0x68] sm:$0xff] %v4206
        %4223 = vst [vmem:[%s386 + $0x70] sm:$0xff] %v4207
        %4224 = vst [vmem:[%s386 + $0x78] sm:$0xff] %v4208
        %s4225 = sand.u32 %s229, 1
        %s4226 = scalar_lea.sflag [#allocation5], %s4225
        %s4227 = sand.u32 %s229, 1
        %s4228 = smul.addr %s4227, 128
        %s4229 = scalar_lea.vmem [#allocation9], %s4228
        // Predicated region
        $region69: #{tpu_custom_call.1} parent=55 // pred_check
          %p4230 = pneg %p239
        $region70: #{tpu_custom_call.1} parent=55 // pred_check_branch
          %4232 = sbr.rel (%p4230) target = $region72
        $region71: #{tpu_custom_call.1} parent=55 // pred_region
          %s4233 = smul.u32 2, %s27
          %4235 = vsyncadd %s4226, 0
          %s4236 = smul.addr %s4233, 8
          %s4237 = smul.addr %s4236, 8
          %s4238 = scalar_lea.hbm %s9, %s4237
          %s4239 = sshll.u32 %s4229, 4
          %s4240 = int_to_ptr.vmem [resolvable:$true] %s4239
          %s4241 = sshll.u32 %s4238, 4
          %s4242 = int_to_ptr.hbm [resolvable:$true] %s4241
          %4247 = dma.vmem_to_hbm [thread:$0]  %s4240, 2048, %s4242, %s4226, 128, 128, 8
        $region72: #{tpu_custom_call.1} parent=55 // pred_fallthru
          _
      $region56: #{tpu_custom_call.1} parent=5 // pred_fallthru
        _
      %p4248 = scmp.le.s32.totalorder 2, %s22
      // Predicated region
      $region73: #{tpu_custom_call.1} parent=5 // pred_check
        %p4249 = pneg %p4248
      $region74: #{tpu_custom_call.1} parent=5 // pred_check_branch
        %4251 = sbr.rel (%p4249) target = $region76
      $region75: #{tpu_custom_call.1} parent=5 // pred_region
        %s4252 = ssub.s32 %s22, 2
        // Predicated region
        $region77: #{tpu_custom_call.1} parent=75 // pred_check
          %p4253 = pneg %p245
        $region78: #{tpu_custom_call.1} parent=75 // pred_check_branch
          %4255 = sbr.rel (%p4253) target = $region80
        $region79: #{tpu_custom_call.1} parent=75 // pred_region
          %s4256 = sand.u32 %s230, 1
          %s4257 = scalar_lea.sflag [#allocation5], %s4256
          %s4258 = sand.u32 %s230, 1
          %s4259 = smul.addr %s4258, 128
          %s4260 = scalar_lea.vmem [#allocation9], %s4259
          %4262 = dma.done %s4257, 2048
        $region80: #{tpu_custom_call.1} parent=75 // pred_fallthru
          _
      $region76: #{tpu_custom_call.1} parent=5 // pred_fallthru
        _
    $region6: #{tpu_custom_call.1} parent=1 // loop_footer
      %s26 = sadd.s32 1, %s22
    $region7: #{tpu_custom_call.1} parent=1 // loop_footer_branch
      %21 = sbr.rel target = $region3
    $region8: #{tpu_custom_call.1} parent=1 // loop_exit
      _
    %4263 = vsyncpa [#allocation4], 1
    %s4264 = scalar_lea.sflag [#allocation4], 1
    %4265 = vsyncpa %s4264, 1
    %4266 = vsyncpa [#allocation7], 1
    %4267 = vsyncpa [#allocation5], 1
    %s4268 = scalar_lea.sflag [#allocation5], 1
    %4269 = vsyncpa %s4268, 1

</llo_original>
